<compile_context>
chip_gen: v7x
topology: tpu7x:2x2x1
jax: 0.10.0
libtpu: 0.0.40
codegen_flags: <defaults>
</compile_context>

<pallas_src>
import math
import functools

import jax
import jax.numpy as jnp
from jax import lax
from jax.experimental import pallas as pl
from jax.experimental.pallas import tpu as pltpu

# ----------------------------- config (small, synthetic) -----------------------------
B = 2            # batch
S = 8            # sequence length
H = 32           # bert hidden size == lstm hidden size
NH = 2           # attention heads
DH = H // NH     # head dim
FFN = 64         # bert intermediate size
N_LAYERS = 2     # bert encoder layers
VOCAB = 50
MAX_POS = 64
POLARITIES = 3   # opt.polarities_dim


def _vmem():
    return pl.BlockSpec(memory_space=pltpu.MemorySpace.VMEM)


# ----------------------------- in-kernel helpers (values) ----------------------------
def _layernorm(x, g, b, eps=1e-12):
    mu = jnp.mean(x, axis=-1, keepdims=True)
    var = jnp.mean((x - mu) ** 2, axis=-1, keepdims=True)
    return (x - mu) * lax.rsqrt(var + eps) * g + b


def _gelu(x):
    # TODO(synk): torch BERT uses erf-GELU; tanh approximation differs at ~1e-3.
    c = math.sqrt(2.0 / math.pi)
    return 0.5 * x * (1.0 + jnp.tanh(c * (x + 0.044715 * x * x * x)))


def _softmax_rows(s):
    s = s - jnp.max(s, axis=-1, keepdims=True)
    p = jnp.exp(s)
    return p * pl.reciprocal(jnp.sum(p, axis=-1, keepdims=True), approx=True)


# ----------------------------------- fused kernel ------------------------------------
def fused_forward_kernel(emb_ref, xlen_ref,
                         emb_g_ref, emb_b_ref,
                         wq_ref, bq_ref, wk_ref, bk_ref, wv_ref, bv_ref,
                         wo_ref, bo_ref, ln1g_ref, ln1b_ref,
                         w1_ref, b1_ref, w2_ref, b2_ref, ln2g_ref, ln2b_ref,
                         wih_ref, whh_ref, lstm_b_ref,
                         dw_ref, db_ref,
                         out_ref,
                         *, num_layers, num_heads, hidden, seq, head_dim):
    f32 = jnp.float32
    bf16 = jnp.bfloat16

    # ------------------------- BERT embeddings LayerNorm ------------------------------
    x = _layernorm(emb_ref[...], emb_g_ref[...], emb_b_ref[...])    # [B, S, H] f32
    b_, s_, h_ = x.shape
    scale = 1.0 / math.sqrt(head_dim)

    # Load all (tiny) weights once; static value indexing after this is free.
    wq, bq = wq_ref[...], bq_ref[...]
    wk, bk = wk_ref[...], bk_ref[...]
    wv, bv = wv_ref[...], bv_ref[...]
    wo, bo = wo_ref[...], bo_ref[...]
    ln1g, ln1b = ln1g_ref[...], ln1b_ref[...]
    w1, b1 = w1_ref[...], b1_ref[...]
    w2, b2 = w2_ref[...], b2_ref[...]
    ln2g, ln2b = ln2g_ref[...], ln2b_ref[...]

    # ------------------------------ BERT encoder layers -------------------------------
    for l in range(num_layers):
        x2 = x.reshape(b_ * s_, h_)
        x2b = x2.astype(bf16)

        # Self-attention: heads live on a leading weight axis, so the head split is a
        # free leading-axis index; the per-head output projections are summed (no
        # lane-axis slices, no concatenate).
        attn = jnp.zeros((b_ * s_, h_), f32)
        for hd in range(num_heads):
            q = (jnp.dot(x2b, wq[l, hd], preferred_element_type=f32)
                 + bq[l, hd]).reshape(b_, s_, head_dim)
            k = (jnp.dot(x2b, wk[l, hd], preferred_element_type=f32)
                 + bk[l, hd]).reshape(b_, s_, head_dim)
            v = (jnp.dot(x2b, wv[l, hd], preferred_element_type=f32)
                 + bv[l, hd]).reshape(b_, s_, head_dim)
            sc = jnp.einsum('bqd,bkd->bqk', q.astype(bf16), k.astype(bf16),
                            preferred_element_type=f32) * scale
            p = _softmax_rows(sc)
            ctx = jnp.einsum('bqk,bkd->bqd', p.astype(bf16), v.astype(bf16),
                             preferred_element_type=f32)
            attn = attn + jnp.dot(ctx.reshape(b_ * s_, head_dim).astype(bf16),
                                  wo[l, hd], preferred_element_type=f32)
        attn = attn + bo[l]
        x = _layernorm(x + attn.reshape(b_, s_, h_), ln1g[l], ln1b[l])

        # Feed-forward
        x2 = x.reshape(b_ * s_, h_)
        h1 = jnp.dot(x2.astype(bf16), w1[l], preferred_element_type=f32) + b1[l]
        h1 = _gelu(h1)
        h2 = jnp.dot(h1.astype(bf16), w2[l], preferred_element_type=f32) + b2[l]
        x = _layernorm(x + h2.reshape(b_, s_, h_), ln2g[l], ln2b[l])

    # ---------------------------- forward-direction LSTM ------------------------------
    # (h_n[1] / backward direction never reaches the reference output, so it is not
    #  computed.)  Packed-sequence semantics: padded (trailing) steps keep old state.
    wih = wih_ref[...]          # [4, H, H] bf16, gate order i, f, g, o
    whh = whh_ref[...]          # [4, H, H] bf16
    lb = lstm_b_ref[...]        # [4, 1, H] f32 (b_ih + b_hh combined)
    xlen = xlen_ref[...]        # [B, 1] int32

    # Hoist the input projection out of the recurrence: one matmul per gate over all
    # timesteps; gates stay split along the leading axis (no lane slicing in the loop).
    x2b = x.reshape(b_ * s_, h_).astype(bf16)
    gin = [(jnp.dot(x2b, wih[g], preferred_element_type=f32)
            + lb[g]).reshape(b_, s_, hidden) for g in range(4)]

    h = jnp.zeros((b_, hidden), f32)
    c = jnp.zeros((b_, hidden), f32)
    for t in range(seq):        # fully unrolled static time loop (S is small & static)
        hb = h.astype(bf16)
        gi = jax.nn.sigmoid(gin[0][:, t, :]
                            + jnp.dot(hb, whh[0], preferred_element_type=f32))
        gf = jax.nn.sigmoid(gin[1][:, t, :]
                            + jnp.dot(hb, whh[1], preferred_element_type=f32))
        gg = jnp.tanh(gin[2][:, t, :]
                      + jnp.dot(hb, whh[2], preferred_element_type=f32))
        go = jax.nn.sigmoid(gin[3][:, t, :]
                            + jnp.dot(hb, whh[3], preferred_element_type=f32))
        c_new = gf * c + gi * gg
        h_new = go * jnp.tanh(c_new)
        valid = t < xlen        # [B, 1]
        h = jnp.where(valid, h_new, h)
        c = jnp.where(valid, c_new, c)

    # ---------------------------------- final dense -----------------------------------
    out_ref[...] = (jnp.dot(h, dw_ref[...], preferred_element_type=f32)
                    + db_ref[...])


# ----------------------------------- wrapper ------------------------------------------
@jax.jit
def bert_lstm_forward(params, text_bert_indices, bert_segments_ids):
    del bert_segments_ids  # unpacked but never used by the reference forward
    b_, s_ = text_bert_indices.shape

    # BERT embedding lookup stays wrapper-side XLA glue (token-id gather); everything
    # downstream is one fused Pallas kernel.
    emb = (params['word_emb'][text_bert_indices]
           + params['pos_emb'][:s_][None, :, :]
           + params['type_emb'][0][None, None, :]).astype(jnp.float32)

    # x_len = sum(indices != 0, dim=-1)
    x_len = jnp.sum(text_bert_indices != 0, axis=-1).astype(jnp.int32).reshape(b_, 1)

    args = (emb, x_len,
            params['emb_ln_g'], params['emb_ln_b'],
            params['wq'], params['bq'], params['wk'], params['bk'],
            params['wv'], params['bv'], params['wo'], params['bo'],
            params['ln1_g'], params['ln1_b'],
            params['w1'], params['b1'], params['w2'], params['b2'],
            params['ln2_g'], params['ln2_b'],
            params['lstm_wih'], params['lstm_whh'], params['lstm_b'],
            params['dense_w'], params['dense_b'])

    kernel = functools.partial(fused_forward_kernel,
                               num_layers=N_LAYERS, num_heads=NH,
                               hidden=H, seq=s_, head_dim=DH)
    return pl.pallas_call(
        kernel,
        out_shape=jax.ShapeDtypeStruct((b_, POLARITIES), jnp.float32),
        in_specs=[_vmem()] * len(args),
        out_specs=_vmem(),
    )(*args)


# ----------------------------------- parameters --------------------------------------
def init_params(key):
    keys = iter(jax.random.split(key, 64))

    def nrm(shape, scale=0.02, dtype=jnp.float32):
        return (scale * jax.random.normal(next(keys), shape, jnp.float32)).astype(dtype)

    bf = jnp.bfloat16
    params = {
        'word_emb': nrm((VOCAB, H)),
        'pos_emb': nrm((MAX_POS, H)),
        'type_emb': nrm((2, H)),
        'emb_ln_g': jnp.ones((1, H), jnp.float32),
        'emb_ln_b': jnp.zeros((1, H), jnp.float32),
        # per-layer, per-head attention weights stacked on leading axes (bf16 for MXU)
        'wq': nrm((N_LAYERS, NH, H, DH), dtype=bf),
        'bq': jnp.zeros((N_LAYERS, NH, 1, DH), jnp.float32),
        'wk': nrm((N_LAYERS, NH, H, DH), dtype=bf),
        'bk': jnp.zeros((N_LAYERS, NH, 1, DH), jnp.float32),
        'wv': nrm((N_LAYERS, NH, H, DH), dtype=bf),
        'bv': jnp.zeros((N_LAYERS, NH, 1, DH), jnp.float32),
        'wo': nrm((N_LAYERS, NH, DH, H), dtype=bf),
        'bo': jnp.zeros((N_LAYERS, 1, H), jnp.float32),
        'ln1_g': jnp.ones((N_LAYERS, 1, H), jnp.float32),
        'ln1_b': jnp.zeros((N_LAYERS, 1, H), jnp.float32),
        'w1': nrm((N_LAYERS, H, FFN), dtype=bf),
        'b1': jnp.zeros((N_LAYERS, 1, FFN), jnp.float32),
        'w2': nrm((N_LAYERS, FFN, H), dtype=bf),
        'b2': jnp.zeros((N_LAYERS, 1, H), jnp.float32),
        'ln2_g': jnp.ones((N_LAYERS, 1, H), jnp.float32),
        'ln2_b': jnp.zeros((N_LAYERS, 1, H), jnp.float32),
        # forward-direction LSTM (gate order i, f, g, o), gates split on leading axis;
        # bias = b_ih + b_hh combined
        'lstm_wih': nrm((4, H, H), 0.05, dtype=bf),
        'lstm_whh': nrm((4, H, H), 0.05, dtype=bf),
        'lstm_b': jnp.zeros((4, 1, H), jnp.float32),
        # nn.Linear(hidden_size, polarities_dim), stored input-major [H, P]
        'dense_w': nrm((H, POLARITIES), 0.05),
        'dense_b': jnp.zeros((1, POLARITIES), jnp.float32),
    }
    return params


# ------------------------------------- main -------------------------------------------
if __name__ == "__main__":
    key = jax.random.PRNGKey(0)
    k_ids, k_params = jax.random.split(key)

    # token ids with trailing padding (id 0) to exercise x_len
    ids = jax.random.randint(k_ids, (B, S), 1, VOCAB, dtype=jnp.int32)
    lengths = jnp.array([5, S], jnp.int32)
    valid = jnp.arange(S, dtype=jnp.int32)[None, :] < lengths[:, None]
    text_bert_indices = jnp.where(valid, ids, 0)
    bert_segments_ids = jnp.zeros((B, S), jnp.int32)

    params = init_params(k_params)

    out = bert_lstm_forward(params, text_bert_indices, bert_segments_ids)
    out = jax.block_until_ready(out)
    assert out.shape == (B, POLARITIES)
    assert bool(jnp.all(jnp.isfinite(out)))
    print("KERNEL_OK")
</pallas_src>

<mosaic_0001>
module attributes {stable_mosaic.version = 11 : i64} {
  func.func @fused_forward_kernel(%arg0: memref<2x8x32xf32, #tpu.memory_space<vmem>>, %arg1: memref<2x1xi32, #tpu.memory_space<vmem>>, %arg2: memref<1x32xf32, #tpu.memory_space<vmem>>, %arg3: memref<1x32xf32, #tpu.memory_space<vmem>>, %arg4: memref<2x2x32x16xbf16, #tpu.memory_space<vmem>>, %arg5: memref<2x2x1x16xf32, #tpu.memory_space<vmem>>, %arg6: memref<2x2x32x16xbf16, #tpu.memory_space<vmem>>, %arg7: memref<2x2x1x16xf32, #tpu.memory_space<vmem>>, %arg8: memref<2x2x32x16xbf16, #tpu.memory_space<vmem>>, %arg9: memref<2x2x1x16xf32, #tpu.memory_space<vmem>>, %arg10: memref<2x2x16x32xbf16, #tpu.memory_space<vmem>>, %arg11: memref<2x1x32xf32, #tpu.memory_space<vmem>>, %arg12: memref<2x1x32xf32, #tpu.memory_space<vmem>>, %arg13: memref<2x1x32xf32, #tpu.memory_space<vmem>>, %arg14: memref<2x32x64xbf16, #tpu.memory_space<vmem>>, %arg15: memref<2x1x64xf32, #tpu.memory_space<vmem>>, %arg16: memref<2x64x32xbf16, #tpu.memory_space<vmem>>, %arg17: memref<2x1x32xf32, #tpu.memory_space<vmem>>, %arg18: memref<2x1x32xf32, #tpu.memory_space<vmem>>, %arg19: memref<2x1x32xf32, #tpu.memory_space<vmem>>, %arg20: memref<4x32x32xbf16, #tpu.memory_space<vmem>>, %arg21: memref<4x32x32xbf16, #tpu.memory_space<vmem>>, %arg22: memref<4x1x32xf32, #tpu.memory_space<vmem>>, %arg23: memref<32x3xf32, #tpu.memory_space<vmem>>, %arg24: memref<1x3xf32, #tpu.memory_space<vmem>>, %arg25: memref<2x3xf32, #tpu.memory_space<vmem>>) attributes {dimension_semantics = [], scalar_prefetch = 0 : i64, scratch_operands = 0 : i64, tpu.core_type = #tpu.core_type<tc>} {
    %c0 = arith.constant 0 : index
    %c0_0 = arith.constant 0 : index
    %c0_1 = arith.constant 0 : index
    %0 = vector.load %arg0[%c0, %c0_0, %c0_1] : memref<2x8x32xf32, #tpu.memory_space<vmem>>, vector<2x8x32xf32>
    %c0_2 = arith.constant 0 : index
    %c0_3 = arith.constant 0 : index
    %1 = vector.load %arg2[%c0_2, %c0_3] : memref<1x32xf32, #tpu.memory_space<vmem>>, vector<1x32xf32>
    %c0_4 = arith.constant 0 : index
    %c0_5 = arith.constant 0 : index
    %2 = vector.load %arg3[%c0_4, %c0_5] : memref<1x32xf32, #tpu.memory_space<vmem>>, vector<1x32xf32>
    %cst = arith.constant dense<0.000000e+00> : vector<2x8xf32>
    %3 = vector.multi_reduction <add>, %0, %cst [2] : vector<2x8x32xf32> to vector<2x8xf32>
    %4 = vector.shape_cast %3 : vector<2x8xf32> to vector<2x8x1xf32>
    %cst_6 = arith.constant 3.200000e+01 : f32
    %5 = vector.broadcast %cst_6 : f32 to vector<2x8x1xf32>
    %6 = arith.divf %4, %5 : vector<2x8x1xf32>
    %7 = vector.broadcast %6 : vector<2x8x1xf32> to vector<2x8x32xf32>
    %8 = arith.subf %0, %7 : vector<2x8x32xf32>
    %9 = arith.mulf %8, %8 : vector<2x8x32xf32>
    %cst_7 = arith.constant dense<0.000000e+00> : vector<2x8xf32>
    %10 = vector.multi_reduction <add>, %9, %cst_7 [2] : vector<2x8x32xf32> to vector<2x8xf32>
    %11 = vector.shape_cast %10 : vector<2x8xf32> to vector<2x8x1xf32>
    %cst_8 = arith.constant 3.200000e+01 : f32
    %12 = vector.broadcast %cst_8 : f32 to vector<2x8x1xf32>
    %13 = arith.divf %11, %12 : vector<2x8x1xf32>
    %14 = vector.broadcast %6 : vector<2x8x1xf32> to vector<2x8x32xf32>
    %15 = arith.subf %0, %14 : vector<2x8x32xf32>
    %cst_9 = arith.constant 9.99999996E-13 : f32
    %16 = vector.broadcast %cst_9 : f32 to vector<2x8x1xf32>
    %17 = arith.addf %13, %16 : vector<2x8x1xf32>
    %18 = math.rsqrt %17 : vector<2x8x1xf32>
    %19 = vector.broadcast %18 : vector<2x8x1xf32> to vector<2x8x32xf32>
    %20 = arith.mulf %15, %19 : vector<2x8x32xf32>
    %21 = vector.shape_cast %1 : vector<1x32xf32> to vector<1x1x32xf32>
    %22 = vector.broadcast %21 : vector<1x1x32xf32> to vector<2x8x32xf32>
    %23 = arith.mulf %20, %22 : vector<2x8x32xf32>
    %24 = vector.shape_cast %2 : vector<1x32xf32> to vector<1x1x32xf32>
    %25 = vector.broadcast %24 : vector<1x1x32xf32> to vector<2x8x32xf32>
    %26 = arith.addf %23, %25 : vector<2x8x32xf32>
    %c0_10 = arith.constant 0 : index
    %c0_11 = arith.constant 0 : index
    %c0_12 = arith.constant 0 : index
    %c0_13 = arith.constant 0 : index
    %27 = vector.load %arg4[%c0_10, %c0_11, %c0_12, %c0_13] : memref<2x2x32x16xbf16, #tpu.memory_space<vmem>>, vector<2x2x32x16xbf16>
    %c0_14 = arith.constant 0 : index
    %c0_15 = arith.constant 0 : index
    %c0_16 = arith.constant 0 : index
    %c0_17 = arith.constant 0 : index
    %28 = vector.load %arg5[%c0_14, %c0_15, %c0_16, %c0_17] : memref<2x2x1x16xf32, #tpu.memory_space<vmem>>, vector<2x2x1x16xf32>
    %c0_18 = arith.constant 0 : index
    %c0_19 = arith.constant 0 : index
    %c0_20 = arith.constant 0 : index
    %c0_21 = arith.constant 0 : index
    %29 = vector.load %arg6[%c0_18, %c0_19, %c0_20, %c0_21] : memref<2x2x32x16xbf16, #tpu.memory_space<vmem>>, vector<2x2x32x16xbf16>
    %c0_22 = arith.constant 0 : index
    %c0_23 = arith.constant 0 : index
    %c0_24 = arith.constant 0 : index
    %c0_25 = arith.constant 0 : index
    %30 = vector.load %arg7[%c0_22, %c0_23, %c0_24, %c0_25] : memref<2x2x1x16xf32, #tpu.memory_space<vmem>>, vector<2x2x1x16xf32>
    %c0_26 = arith.constant 0 : index
    %c0_27 = arith.constant 0 : index
    %c0_28 = arith.constant 0 : index
    %c0_29 = arith.constant 0 : index
    %31 = vector.load %arg8[%c0_26, %c0_27, %c0_28, %c0_29] : memref<2x2x32x16xbf16, #tpu.memory_space<vmem>>, vector<2x2x32x16xbf16>
    %c0_30 = arith.constant 0 : index
    %c0_31 = arith.constant 0 : index
    %c0_32 = arith.constant 0 : index
    %c0_33 = arith.constant 0 : index
    %32 = vector.load %arg9[%c0_30, %c0_31, %c0_32, %c0_33] : memref<2x2x1x16xf32, #tpu.memory_space<vmem>>, vector<2x2x1x16xf32>
    %c0_34 = arith.constant 0 : index
    %c0_35 = arith.constant 0 : index
    %c0_36 = arith.constant 0 : index
    %c0_37 = arith.constant 0 : index
    %33 = vector.load %arg10[%c0_34, %c0_35, %c0_36, %c0_37] : memref<2x2x16x32xbf16, #tpu.memory_space<vmem>>, vector<2x2x16x32xbf16>
    %c0_38 = arith.constant 0 : index
    %c0_39 = arith.constant 0 : index
    %c0_40 = arith.constant 0 : index
    %34 = vector.load %arg11[%c0_38, %c0_39, %c0_40] : memref<2x1x32xf32, #tpu.memory_space<vmem>>, vector<2x1x32xf32>
    %c0_41 = arith.constant 0 : index
    %c0_42 = arith.constant 0 : index
    %c0_43 = arith.constant 0 : index
    %35 = vector.load %arg12[%c0_41, %c0_42, %c0_43] : memref<2x1x32xf32, #tpu.memory_space<vmem>>, vector<2x1x32xf32>
    %c0_44 = arith.constant 0 : index
    %c0_45 = arith.constant 0 : index
    %c0_46 = arith.constant 0 : index
    %36 = vector.load %arg13[%c0_44, %c0_45, %c0_46] : memref<2x1x32xf32, #tpu.memory_space<vmem>>, vector<2x1x32xf32>
    %c0_47 = arith.constant 0 : index
    %c0_48 = arith.constant 0 : index
    %c0_49 = arith.constant 0 : index
    %37 = vector.load %arg14[%c0_47, %c0_48, %c0_49] : memref<2x32x64xbf16, #tpu.memory_space<vmem>>, vector<2x32x64xbf16>
    %c0_50 = arith.constant 0 : index
    %c0_51 = arith.constant 0 : index
    %c0_52 = arith.constant 0 : index
    %38 = vector.load %arg15[%c0_50, %c0_51, %c0_52] : memref<2x1x64xf32, #tpu.memory_space<vmem>>, vector<2x1x64xf32>
    %c0_53 = arith.constant 0 : index
    %c0_54 = arith.constant 0 : index
    %c0_55 = arith.constant 0 : index
    %39 = vector.load %arg16[%c0_53, %c0_54, %c0_55] : memref<2x64x32xbf16, #tpu.memory_space<vmem>>, vector<2x64x32xbf16>
    %c0_56 = arith.constant 0 : index
    %c0_57 = arith.constant 0 : index
    %c0_58 = arith.constant 0 : index
    %40 = vector.load %arg17[%c0_56, %c0_57, %c0_58] : memref<2x1x32xf32, #tpu.memory_space<vmem>>, vector<2x1x32xf32>
    %c0_59 = arith.constant 0 : index
    %c0_60 = arith.constant 0 : index
    %c0_61 = arith.constant 0 : index
    %41 = vector.load %arg18[%c0_59, %c0_60, %c0_61] : memref<2x1x32xf32, #tpu.memory_space<vmem>>, vector<2x1x32xf32>
    %c0_62 = arith.constant 0 : index
    %c0_63 = arith.constant 0 : index
    %c0_64 = arith.constant 0 : index
    %42 = vector.load %arg19[%c0_62, %c0_63, %c0_64] : memref<2x1x32xf32, #tpu.memory_space<vmem>>, vector<2x1x32xf32>
    %43 = vector.shape_cast %26 : vector<2x8x32xf32> to vector<16x32xf32>
    %44 = arith.truncf %43 : vector<16x32xf32> to vector<16x32xbf16>
    %cst_65 = arith.constant 0.000000e+00 : f32
    %45 = vector.broadcast %cst_65 : f32 to vector<16x32xf32>
    %46 = vector.extract_strided_slice %27 {offsets = [0, 0, 0, 0], sizes = [1, 1, 32, 16], strides = [1, 1, 1, 1]} : vector<2x2x32x16xbf16> to vector<1x1x32x16xbf16>
    %47 = vector.shape_cast %46 : vector<1x1x32x16xbf16> to vector<32x16xbf16>
    %cst_66 = arith.constant dense<0.000000e+00> : vector<16x16xf32>
    %48 = tpu.matmul %44, %47, %cst_66 {dimension_numbers = #tpu.dot_dimension_numbers<[1], [0], [0], [1], [0, 0, 1, 1], [], []>} : vector<16x32xbf16>, vector<32x16xbf16>, vector<16x16xf32> -> vector<16x16xf32>
    %49 = vector.extract_strided_slice %28 {offsets = [0, 0, 0, 0], sizes = [1, 1, 1, 16], strides = [1, 1, 1, 1]} : vector<2x2x1x16xf32> to vector<1x1x1x16xf32>
    %50 = vector.shape_cast %49 : vector<1x1x1x16xf32> to vector<1x16xf32>
    %51 = vector.broadcast %50 : vector<1x16xf32> to vector<16x16xf32>
    %52 = arith.addf %48, %51 : vector<16x16xf32>
    %53 = vector.shape_cast %52 : vector<16x16xf32> to vector<2x8x16xf32>
    %54 = vector.extract_strided_slice %29 {offsets = [0, 0, 0, 0], sizes = [1, 1, 32, 16], strides = [1, 1, 1, 1]} : vector<2x2x32x16xbf16> to vector<1x1x32x16xbf16>
    %55 = vector.shape_cast %54 : vector<1x1x32x16xbf16> to vector<32x16xbf16>
    %cst_67 = arith.constant dense<0.000000e+00> : vector<16x16xf32>
    %56 = tpu.matmul %44, %55, %cst_67 {dimension_numbers = #tpu.dot_dimension_numbers<[1], [0], [0], [1], [0, 0, 1, 1], [], []>} : vector<16x32xbf16>, vector<32x16xbf16>, vector<16x16xf32> -> vector<16x16xf32>
    %57 = vector.extract_strided_slice %30 {offsets = [0, 0, 0, 0], sizes = [1, 1, 1, 16], strides = [1, 1, 1, 1]} : vector<2x2x1x16xf32> to vector<1x1x1x16xf32>
    %58 = vector.shape_cast %57 : vector<1x1x1x16xf32> to vector<1x16xf32>
    %59 = vector.broadcast %58 : vector<1x16xf32> to vector<16x16xf32>
    %60 = arith.addf %56, %59 : vector<16x16xf32>
    %61 = vector.shape_cast %60 : vector<16x16xf32> to vector<2x8x16xf32>
    %62 = vector.extract_strided_slice %31 {offsets = [0, 0, 0, 0], sizes = [1, 1, 32, 16], strides = [1, 1, 1, 1]} : vector<2x2x32x16xbf16> to vector<1x1x32x16xbf16>
    %63 = vector.shape_cast %62 : vector<1x1x32x16xbf16> to vector<32x16xbf16>
    %cst_68 = arith.constant dense<0.000000e+00> : vector<16x16xf32>
    %64 = tpu.matmul %44, %63, %cst_68 {dimension_numbers = #tpu.dot_dimension_numbers<[1], [0], [0], [1], [0, 0, 1, 1], [], []>} : vector<16x32xbf16>, vector<32x16xbf16>, vector<16x16xf32> -> vector<16x16xf32>
    %65 = vector.extract_strided_slice %32 {offsets = [0, 0, 0, 0], sizes = [1, 1, 1, 16], strides = [1, 1, 1, 1]} : vector<2x2x1x16xf32> to vector<1x1x1x16xf32>
    %66 = vector.shape_cast %65 : vector<1x1x1x16xf32> to vector<1x16xf32>
    %67 = vector.broadcast %66 : vector<1x16xf32> to vector<16x16xf32>
    %68 = arith.addf %64, %67 : vector<16x16xf32>
    %69 = vector.shape_cast %68 : vector<16x16xf32> to vector<2x8x16xf32>
    %70 = arith.truncf %53 : vector<2x8x16xf32> to vector<2x8x16xbf16>
    %71 = arith.truncf %61 : vector<2x8x16xf32> to vector<2x8x16xbf16>
    "tpu.trace_start"() <{level = 10 : i32, message = "bqd,bkd->bqk"}> : () -> ()
    %cst_69 = arith.constant dense<0.000000e+00> : vector<2x8x8xf32>
    %72 = tpu.matmul %70, %71, %cst_69 {dimension_numbers = #tpu.dot_dimension_numbers<[2], [2], [1], [1], [0, 0, 0, 1, 1, 1], [0], [0]>} : vector<2x8x16xbf16>, vector<2x8x16xbf16>, vector<2x8x8xf32> -> vector<2x8x8xf32>
    "tpu.trace_stop"() : () -> ()
    %cst_70 = arith.constant 2.500000e-01 : f32
    %73 = vector.broadcast %cst_70 : f32 to vector<2x8x8xf32>
    %74 = arith.mulf %72, %73 : vector<2x8x8xf32>
    %cst_71 = arith.constant dense<0xFF800000> : vector<2x8xf32>
    %75 = vector.multi_reduction <maximumf>, %74, %cst_71 [2] : vector<2x8x8xf32> to vector<2x8xf32>
    %76 = vector.shape_cast %75 : vector<2x8xf32> to vector<2x8x1xf32>
    %77 = vector.broadcast %76 : vector<2x8x1xf32> to vector<2x8x8xf32>
    %78 = arith.subf %74, %77 : vector<2x8x8xf32>
    %79 = math.exp %78 : vector<2x8x8xf32>
    %cst_72 = arith.constant dense<0.000000e+00> : vector<2x8xf32>
    %80 = vector.multi_reduction <add>, %79, %cst_72 [2] : vector<2x8x8xf32> to vector<2x8xf32>
    %81 = vector.shape_cast %80 : vector<2x8xf32> to vector<2x8x1xf32>
    %82 = tpu.reciprocal %81 {approx = true} : vector<2x8x1xf32> -> vector<2x8x1xf32>
    %83 = vector.broadcast %82 : vector<2x8x1xf32> to vector<2x8x8xf32>
    %84 = arith.mulf %79, %83 : vector<2x8x8xf32>
    %85 = arith.truncf %84 : vector<2x8x8xf32> to vector<2x8x8xbf16>
    %86 = arith.truncf %69 : vector<2x8x16xf32> to vector<2x8x16xbf16>
    "tpu.trace_start"() <{level = 10 : i32, message = "bqk,bkd->bqd"}> : () -> ()
    %cst_73 = arith.constant dense<0.000000e+00> : vector<2x8x16xf32>
    %87 = tpu.matmul %85, %86, %cst_73 {dimension_numbers = #tpu.dot_dimension_numbers<[2], [1], [1], [2], [0, 0, 0, 1, 1, 2], [0], [0]>} : vector<2x8x8xbf16>, vector<2x8x16xbf16>, vector<2x8x16xf32> -> vector<2x8x16xf32>
    "tpu.trace_stop"() : () -> ()
    %88 = vector.shape_cast %87 : vector<2x8x16xf32> to vector<16x16xf32>
    %89 = arith.truncf %88 : vector<16x16xf32> to vector<16x16xbf16>
    %90 = vector.extract_strided_slice %33 {offsets = [0, 0, 0, 0], sizes = [1, 1, 16, 32], strides = [1, 1, 1, 1]} : vector<2x2x16x32xbf16> to vector<1x1x16x32xbf16>
    %91 = vector.shape_cast %90 : vector<1x1x16x32xbf16> to vector<16x32xbf16>
    %cst_74 = arith.constant dense<0.000000e+00> : vector<16x32xf32>
    %92 = tpu.matmul %89, %91, %cst_74 {dimension_numbers = #tpu.dot_dimension_numbers<[1], [0], [0], [1], [0, 0, 1, 1], [], []>} : vector<16x16xbf16>, vector<16x32xbf16>, vector<16x32xf32> -> vector<16x32xf32>
    %93 = arith.addf %45, %92 : vector<16x32xf32>
    %94 = vector.extract_strided_slice %27 {offsets = [0, 1, 0, 0], sizes = [1, 1, 32, 16], strides = [1, 1, 1, 1]} : vector<2x2x32x16xbf16> to vector<1x1x32x16xbf16>
    %95 = vector.shape_cast %94 : vector<1x1x32x16xbf16> to vector<32x16xbf16>
    %cst_75 = arith.constant dense<0.000000e+00> : vector<16x16xf32>
    %96 = tpu.matmul %44, %95, %cst_75 {dimension_numbers = #tpu.dot_dimension_numbers<[1], [0], [0], [1], [0, 0, 1, 1], [], []>} : vector<16x32xbf16>, vector<32x16xbf16>, vector<16x16xf32> -> vector<16x16xf32>
    %97 = vector.extract_strided_slice %28 {offsets = [0, 1, 0, 0], sizes = [1, 1, 1, 16], strides = [1, 1, 1, 1]} : vector<2x2x1x16xf32> to vector<1x1x1x16xf32>
    %98 = vector.shape_cast %97 : vector<1x1x1x16xf32> to vector<1x16xf32>
    %99 = vector.broadcast %98 : vector<1x16xf32> to vector<16x16xf32>
    %100 = arith.addf %96, %99 : vector<16x16xf32>
    %101 = vector.shape_cast %100 : vector<16x16xf32> to vector<2x8x16xf32>
    %102 = vector.extract_strided_slice %29 {offsets = [0, 1, 0, 0], sizes = [1, 1, 32, 16], strides = [1, 1, 1, 1]} : vector<2x2x32x16xbf16> to vector<1x1x32x16xbf16>
    %103 = vector.shape_cast %102 : vector<1x1x32x16xbf16> to vector<32x16xbf16>
    %cst_76 = arith.constant dense<0.000000e+00> : vector<16x16xf32>
    %104 = tpu.matmul %44, %103, %cst_76 {dimension_numbers = #tpu.dot_dimension_numbers<[1], [0], [0], [1], [0, 0, 1, 1], [], []>} : vector<16x32xbf16>, vector<32x16xbf16>, vector<16x16xf32> -> vector<16x16xf32>
    %105 = vector.extract_strided_slice %30 {offsets = [0, 1, 0, 0], sizes = [1, 1, 1, 16], strides = [1, 1, 1, 1]} : vector<2x2x1x16xf32> to vector<1x1x1x16xf32>
    %106 = vector.shape_cast %105 : vector<1x1x1x16xf32> to vector<1x16xf32>
    %107 = vector.broadcast %106 : vector<1x16xf32> to vector<16x16xf32>
    %108 = arith.addf %104, %107 : vector<16x16xf32>
    %109 = vector.shape_cast %108 : vector<16x16xf32> to vector<2x8x16xf32>
    %110 = vector.extract_strided_slice %31 {offsets = [0, 1, 0, 0], sizes = [1, 1, 32, 16], strides = [1, 1, 1, 1]} : vector<2x2x32x16xbf16> to vector<1x1x32x16xbf16>
    %111 = vector.shape_cast %110 : vector<1x1x32x16xbf16> to vector<32x16xbf16>
    %cst_77 = arith.constant dense<0.000000e+00> : vector<16x16xf32>
    %112 = tpu.matmul %44, %111, %cst_77 {dimension_numbers = #tpu.dot_dimension_numbers<[1], [0], [0], [1], [0, 0, 1, 1], [], []>} : vector<16x32xbf16>, vector<32x16xbf16>, vector<16x16xf32> -> vector<16x16xf32>
    %113 = vector.extract_strided_slice %32 {offsets = [0, 1, 0, 0], sizes = [1, 1, 1, 16], strides = [1, 1, 1, 1]} : vector<2x2x1x16xf32> to vector<1x1x1x16xf32>
    %114 = vector.shape_cast %113 : vector<1x1x1x16xf32> to vector<1x16xf32>
    %115 = vector.broadcast %114 : vector<1x16xf32> to vector<16x16xf32>
    %116 = arith.addf %112, %115 : vector<16x16xf32>
    %117 = vector.shape_cast %116 : vector<16x16xf32> to vector<2x8x16xf32>
    %118 = arith.truncf %101 : vector<2x8x16xf32> to vector<2x8x16xbf16>
    %119 = arith.truncf %109 : vector<2x8x16xf32> to vector<2x8x16xbf16>
    "tpu.trace_start"() <{level = 10 : i32, message = "bqd,bkd->bqk"}> : () -> ()
    %cst_78 = arith.constant dense<0.000000e+00> : vector<2x8x8xf32>
    %120 = tpu.matmul %118, %119, %cst_78 {dimension_numbers = #tpu.dot_dimension_numbers<[2], [2], [1], [1], [0, 0, 0, 1, 1, 1], [0], [0]>} : vector<2x8x16xbf16>, vector<2x8x16xbf16>, vector<2x8x8xf32> -> vector<2x8x8xf32>
    "tpu.trace_stop"() : () -> ()
    %cst_79 = arith.constant 2.500000e-01 : f32
    %121 = vector.broadcast %cst_79 : f32 to vector<2x8x8xf32>
    %122 = arith.mulf %120, %121 : vector<2x8x8xf32>
    %cst_80 = arith.constant dense<0xFF800000> : vector<2x8xf32>
    %123 = vector.multi_reduction <maximumf>, %122, %cst_80 [2] : vector<2x8x8xf32> to vector<2x8xf32>
    %124 = vector.shape_cast %123 : vector<2x8xf32> to vector<2x8x1xf32>
    %125 = vector.broadcast %124 : vector<2x8x1xf32> to vector<2x8x8xf32>
    %126 = arith.subf %122, %125 : vector<2x8x8xf32>
    %127 = math.exp %126 : vector<2x8x8xf32>
    %cst_81 = arith.constant dense<0.000000e+00> : vector<2x8xf32>
    %128 = vector.multi_reduction <add>, %127, %cst_81 [2] : vector<2x8x8xf32> to vector<2x8xf32>
    %129 = vector.shape_cast %128 : vector<2x8xf32> to vector<2x8x1xf32>
    %130 = tpu.reciprocal %129 {approx = true} : vector<2x8x1xf32> -> vector<2x8x1xf32>
    %131 = vector.broadcast %130 : vector<2x8x1xf32> to vector<2x8x8xf32>
    %132 = arith.mulf %127, %131 : vector<2x8x8xf32>
    %133 = arith.truncf %132 : vector<2x8x8xf32> to vector<2x8x8xbf16>
    %134 = arith.truncf %117 : vector<2x8x16xf32> to vector<2x8x16xbf16>
    "tpu.trace_start"() <{level = 10 : i32, message = "bqk,bkd->bqd"}> : () -> ()
    %cst_82 = arith.constant dense<0.000000e+00> : vector<2x8x16xf32>
    %135 = tpu.matmul %133, %134, %cst_82 {dimension_numbers = #tpu.dot_dimension_numbers<[2], [1], [1], [2], [0, 0, 0, 1, 1, 2], [0], [0]>} : vector<2x8x8xbf16>, vector<2x8x16xbf16>, vector<2x8x16xf32> -> vector<2x8x16xf32>
    "tpu.trace_stop"() : () -> ()
    %136 = vector.shape_cast %135 : vector<2x8x16xf32> to vector<16x16xf32>
    %137 = arith.truncf %136 : vector<16x16xf32> to vector<16x16xbf16>
    %138 = vector.extract_strided_slice %33 {offsets = [0, 1, 0, 0], sizes = [1, 1, 16, 32], strides = [1, 1, 1, 1]} : vector<2x2x16x32xbf16> to vector<1x1x16x32xbf16>
    %139 = vector.shape_cast %138 : vector<1x1x16x32xbf16> to vector<16x32xbf16>
    %cst_83 = arith.constant dense<0.000000e+00> : vector<16x32xf32>
    %140 = tpu.matmul %137, %139, %cst_83 {dimension_numbers = #tpu.dot_dimension_numbers<[1], [0], [0], [1], [0, 0, 1, 1], [], []>} : vector<16x16xbf16>, vector<16x32xbf16>, vector<16x32xf32> -> vector<16x32xf32>
    %141 = arith.addf %93, %140 : vector<16x32xf32>
    %142 = vector.extract_strided_slice %34 {offsets = [0, 0, 0], sizes = [1, 1, 32], strides = [1, 1, 1]} : vector<2x1x32xf32> to vector<1x1x32xf32>
    %143 = vector.shape_cast %142 : vector<1x1x32xf32> to vector<1x32xf32>
    %144 = vector.broadcast %143 : vector<1x32xf32> to vector<16x32xf32>
    %145 = arith.addf %141, %144 : vector<16x32xf32>
    %146 = vector.shape_cast %145 : vector<16x32xf32> to vector<2x8x32xf32>
    %147 = arith.addf %26, %146 : vector<2x8x32xf32>
    %148 = vector.extract_strided_slice %35 {offsets = [0, 0, 0], sizes = [1, 1, 32], strides = [1, 1, 1]} : vector<2x1x32xf32> to vector<1x1x32xf32>
    %149 = vector.shape_cast %148 : vector<1x1x32xf32> to vector<1x32xf32>
    %150 = vector.extract_strided_slice %36 {offsets = [0, 0, 0], sizes = [1, 1, 32], strides = [1, 1, 1]} : vector<2x1x32xf32> to vector<1x1x32xf32>
    %151 = vector.shape_cast %150 : vector<1x1x32xf32> to vector<1x32xf32>
    %cst_84 = arith.constant dense<0.000000e+00> : vector<2x8xf32>
    %152 = vector.multi_reduction <add>, %147, %cst_84 [2] : vector<2x8x32xf32> to vector<2x8xf32>
    %153 = vector.shape_cast %152 : vector<2x8xf32> to vector<2x8x1xf32>
    %cst_85 = arith.constant 3.200000e+01 : f32
    %154 = vector.broadcast %cst_85 : f32 to vector<2x8x1xf32>
    %155 = arith.divf %153, %154 : vector<2x8x1xf32>
    %156 = vector.broadcast %155 : vector<2x8x1xf32> to vector<2x8x32xf32>
    %157 = arith.subf %147, %156 : vector<2x8x32xf32>
    %158 = arith.mulf %157, %157 : vector<2x8x32xf32>
    %cst_86 = arith.constant dense<0.000000e+00> : vector<2x8xf32>
    %159 = vector.multi_reduction <add>, %158, %cst_86 [2] : vector<2x8x32xf32> to vector<2x8xf32>
    %160 = vector.shape_cast %159 : vector<2x8xf32> to vector<2x8x1xf32>
    %cst_87 = arith.constant 3.200000e+01 : f32
    %161 = vector.broadcast %cst_87 : f32 to vector<2x8x1xf32>
    %162 = arith.divf %160, %161 : vector<2x8x1xf32>
    %163 = vector.broadcast %155 : vector<2x8x1xf32> to vector<2x8x32xf32>
    %164 = arith.subf %147, %163 : vector<2x8x32xf32>
    %cst_88 = arith.constant 9.99999996E-13 : f32
    %165 = vector.broadcast %cst_88 : f32 to vector<2x8x1xf32>
    %166 = arith.addf %162, %165 : vector<2x8x1xf32>
    %167 = math.rsqrt %166 : vector<2x8x1xf32>
    %168 = vector.broadcast %167 : vector<2x8x1xf32> to vector<2x8x32xf32>
    %169 = arith.mulf %164, %168 : vector<2x8x32xf32>
    %170 = vector.shape_cast %149 : vector<1x32xf32> to vector<1x1x32xf32>
    %171 = vector.broadcast %170 : vector<1x1x32xf32> to vector<2x8x32xf32>
    %172 = arith.mulf %169, %171 : vector<2x8x32xf32>
    %173 = vector.shape_cast %151 : vector<1x32xf32> to vector<1x1x32xf32>
    %174 = vector.broadcast %173 : vector<1x1x32xf32> to vector<2x8x32xf32>
    %175 = arith.addf %172, %174 : vector<2x8x32xf32>
    %176 = vector.shape_cast %175 : vector<2x8x32xf32> to vector<16x32xf32>
    %177 = arith.truncf %176 : vector<16x32xf32> to vector<16x32xbf16>
    %178 = vector.extract_strided_slice %37 {offsets = [0, 0, 0], sizes = [1, 32, 64], strides = [1, 1, 1]} : vector<2x32x64xbf16> to vector<1x32x64xbf16>
    %179 = vector.shape_cast %178 : vector<1x32x64xbf16> to vector<32x64xbf16>
    %cst_89 = arith.constant dense<0.000000e+00> : vector<16x64xf32>
    %180 = tpu.matmul %177, %179, %cst_89 {dimension_numbers = #tpu.dot_dimension_numbers<[1], [0], [0], [1], [0, 0, 1, 1], [], []>} : vector<16x32xbf16>, vector<32x64xbf16>, vector<16x64xf32> -> vector<16x64xf32>
    %181 = vector.extract_strided_slice %38 {offsets = [0, 0, 0], sizes = [1, 1, 64], strides = [1, 1, 1]} : vector<2x1x64xf32> to vector<1x1x64xf32>
    %182 = vector.shape_cast %181 : vector<1x1x64xf32> to vector<1x64xf32>
    %183 = vector.broadcast %182 : vector<1x64xf32> to vector<16x64xf32>
    %184 = arith.addf %180, %183 : vector<16x64xf32>
    %cst_90 = arith.constant 5.000000e-01 : f32
    %185 = vector.broadcast %cst_90 : f32 to vector<16x64xf32>
    %186 = arith.mulf %185, %184 : vector<16x64xf32>
    %cst_91 = arith.constant 4.471500e-02 : f32
    %187 = vector.broadcast %cst_91 : f32 to vector<16x64xf32>
    %188 = arith.mulf %187, %184 : vector<16x64xf32>
    %189 = arith.mulf %188, %184 : vector<16x64xf32>
    %190 = arith.mulf %189, %184 : vector<16x64xf32>
    %191 = arith.addf %184, %190 : vector<16x64xf32>
    %cst_92 = arith.constant 0.797884583 : f32
    %192 = vector.broadcast %cst_92 : f32 to vector<16x64xf32>
    %193 = arith.mulf %192, %191 : vector<16x64xf32>
    %194 = math.tanh %193 : vector<16x64xf32>
    %cst_93 = arith.constant 1.000000e+00 : f32
    %195 = vector.broadcast %cst_93 : f32 to vector<16x64xf32>
    %196 = arith.addf %195, %194 : vector<16x64xf32>
    %197 = arith.mulf %186, %196 : vector<16x64xf32>
    %198 = arith.truncf %197 : vector<16x64xf32> to vector<16x64xbf16>
    %199 = vector.extract_strided_slice %39 {offsets = [0, 0, 0], sizes = [1, 64, 32], strides = [1, 1, 1]} : vector<2x64x32xbf16> to vector<1x64x32xbf16>
    %200 = vector.shape_cast %199 : vector<1x64x32xbf16> to vector<64x32xbf16>
    %cst_94 = arith.constant dense<0.000000e+00> : vector<16x32xf32>
    %201 = tpu.matmul %198, %200, %cst_94 {dimension_numbers = #tpu.dot_dimension_numbers<[1], [0], [0], [1], [0, 0, 1, 1], [], []>} : vector<16x64xbf16>, vector<64x32xbf16>, vector<16x32xf32> -> vector<16x32xf32>
    %202 = vector.extract_strided_slice %40 {offsets = [0, 0, 0], sizes = [1, 1, 32], strides = [1, 1, 1]} : vector<2x1x32xf32> to vector<1x1x32xf32>
    %203 = vector.shape_cast %202 : vector<1x1x32xf32> to vector<1x32xf32>
    %204 = vector.broadcast %203 : vector<1x32xf32> to vector<16x32xf32>
    %205 = arith.addf %201, %204 : vector<16x32xf32>
    %206 = vector.shape_cast %205 : vector<16x32xf32> to vector<2x8x32xf32>
    %207 = arith.addf %175, %206 : vector<2x8x32xf32>
    %208 = vector.extract_strided_slice %41 {offsets = [0, 0, 0], sizes = [1, 1, 32], strides = [1, 1, 1]} : vector<2x1x32xf32> to vector<1x1x32xf32>
    %209 = vector.shape_cast %208 : vector<1x1x32xf32> to vector<1x32xf32>
    %210 = vector.extract_strided_slice %42 {offsets = [0, 0, 0], sizes = [1, 1, 32], strides = [1, 1, 1]} : vector<2x1x32xf32> to vector<1x1x32xf32>
    %211 = vector.shape_cast %210 : vector<1x1x32xf32> to vector<1x32xf32>
    %cst_95 = arith.constant dense<0.000000e+00> : vector<2x8xf32>
    %212 = vector.multi_reduction <add>, %207, %cst_95 [2] : vector<2x8x32xf32> to vector<2x8xf32>
    %213 = vector.shape_cast %212 : vector<2x8xf32> to vector<2x8x1xf32>
    %cst_96 = arith.constant 3.200000e+01 : f32
    %214 = vector.broadcast %cst_96 : f32 to vector<2x8x1xf32>
    %215 = arith.divf %213, %214 : vector<2x8x1xf32>
    %216 = vector.broadcast %215 : vector<2x8x1xf32> to vector<2x8x32xf32>
    %217 = arith.subf %207, %216 : vector<2x8x32xf32>
    %218 = arith.mulf %217, %217 : vector<2x8x32xf32>
    %cst_97 = arith.constant dense<0.000000e+00> : vector<2x8xf32>
    %219 = vector.multi_reduction <add>, %218, %cst_97 [2] : vector<2x8x32xf32> to vector<2x8xf32>
    %220 = vector.shape_cast %219 : vector<2x8xf32> to vector<2x8x1xf32>
    %cst_98 = arith.constant 3.200000e+01 : f32
    %221 = vector.broadcast %cst_98 : f32 to vector<2x8x1xf32>
    %222 = arith.divf %220, %221 : vector<2x8x1xf32>
    %223 = vector.broadcast %215 : vector<2x8x1xf32> to vector<2x8x32xf32>
    %224 = arith.subf %207, %223 : vector<2x8x32xf32>
    %cst_99 = arith.constant 9.99999996E-13 : f32
    %225 = vector.broadcast %cst_99 : f32 to vector<2x8x1xf32>
    %226 = arith.addf %222, %225 : vector<2x8x1xf32>
    %227 = math.rsqrt %226 : vector<2x8x1xf32>
    %228 = vector.broadcast %227 : vector<2x8x1xf32> to vector<2x8x32xf32>
    %229 = arith.mulf %224, %228 : vector<2x8x32xf32>
    %230 = vector.shape_cast %209 : vector<1x32xf32> to vector<1x1x32xf32>
    %231 = vector.broadcast %230 : vector<1x1x32xf32> to vector<2x8x32xf32>
    %232 = arith.mulf %229, %231 : vector<2x8x32xf32>
    %233 = vector.shape_cast %211 : vector<1x32xf32> to vector<1x1x32xf32>
    %234 = vector.broadcast %233 : vector<1x1x32xf32> to vector<2x8x32xf32>
    %235 = arith.addf %232, %234 : vector<2x8x32xf32>
    %236 = vector.shape_cast %235 : vector<2x8x32xf32> to vector<16x32xf32>
    %237 = arith.truncf %236 : vector<16x32xf32> to vector<16x32xbf16>
    %cst_100 = arith.constant 0.000000e+00 : f32
    %238 = vector.broadcast %cst_100 : f32 to vector<16x32xf32>
    %239 = vector.extract_strided_slice %27 {offsets = [1, 0, 0, 0], sizes = [1, 1, 32, 16], strides = [1, 1, 1, 1]} : vector<2x2x32x16xbf16> to vector<1x1x32x16xbf16>
    %240 = vector.shape_cast %239 : vector<1x1x32x16xbf16> to vector<32x16xbf16>
    %cst_101 = arith.constant dense<0.000000e+00> : vector<16x16xf32>
    %241 = tpu.matmul %237, %240, %cst_101 {dimension_numbers = #tpu.dot_dimension_numbers<[1], [0], [0], [1], [0, 0, 1, 1], [], []>} : vector<16x32xbf16>, vector<32x16xbf16>, vector<16x16xf32> -> vector<16x16xf32>
    %242 = vector.extract_strided_slice %28 {offsets = [1, 0, 0, 0], sizes = [1, 1, 1, 16], strides = [1, 1, 1, 1]} : vector<2x2x1x16xf32> to vector<1x1x1x16xf32>
    %243 = vector.shape_cast %242 : vector<1x1x1x16xf32> to vector<1x16xf32>
    %244 = vector.broadcast %243 : vector<1x16xf32> to vector<16x16xf32>
    %245 = arith.addf %241, %244 : vector<16x16xf32>
    %246 = vector.shape_cast %245 : vector<16x16xf32> to vector<2x8x16xf32>
    %247 = vector.extract_strided_slice %29 {offsets = [1, 0, 0, 0], sizes = [1, 1, 32, 16], strides = [1, 1, 1, 1]} : vector<2x2x32x16xbf16> to vector<1x1x32x16xbf16>
    %248 = vector.shape_cast %247 : vector<1x1x32x16xbf16> to vector<32x16xbf16>
    %cst_102 = arith.constant dense<0.000000e+00> : vector<16x16xf32>
    %249 = tpu.matmul %237, %248, %cst_102 {dimension_numbers = #tpu.dot_dimension_numbers<[1], [0], [0], [1], [0, 0, 1, 1], [], []>} : vector<16x32xbf16>, vector<32x16xbf16>, vector<16x16xf32> -> vector<16x16xf32>
    %250 = vector.extract_strided_slice %30 {offsets = [1, 0, 0, 0], sizes = [1, 1, 1, 16], strides = [1, 1, 1, 1]} : vector<2x2x1x16xf32> to vector<1x1x1x16xf32>
    %251 = vector.shape_cast %250 : vector<1x1x1x16xf32> to vector<1x16xf32>
    %252 = vector.broadcast %251 : vector<1x16xf32> to vector<16x16xf32>
    %253 = arith.addf %249, %252 : vector<16x16xf32>
    %254 = vector.shape_cast %253 : vector<16x16xf32> to vector<2x8x16xf32>
    %255 = vector.extract_strided_slice %31 {offsets = [1, 0, 0, 0], sizes = [1, 1, 32, 16], strides = [1, 1, 1, 1]} : vector<2x2x32x16xbf16> to vector<1x1x32x16xbf16>
    %256 = vector.shape_cast %255 : vector<1x1x32x16xbf16> to vector<32x16xbf16>
    %cst_103 = arith.constant dense<0.000000e+00> : vector<16x16xf32>
    %257 = tpu.matmul %237, %256, %cst_103 {dimension_numbers = #tpu.dot_dimension_numbers<[1], [0], [0], [1], [0, 0, 1, 1], [], []>} : vector<16x32xbf16>, vector<32x16xbf16>, vector<16x16xf32> -> vector<16x16xf32>
    %258 = vector.extract_strided_slice %32 {offsets = [1, 0, 0, 0], sizes = [1, 1, 1, 16], strides = [1, 1, 1, 1]} : vector<2x2x1x16xf32> to vector<1x1x1x16xf32>
    %259 = vector.shape_cast %258 : vector<1x1x1x16xf32> to vector<1x16xf32>
    %260 = vector.broadcast %259 : vector<1x16xf32> to vector<16x16xf32>
    %261 = arith.addf %257, %260 : vector<16x16xf32>
    %262 = vector.shape_cast %261 : vector<16x16xf32> to vector<2x8x16xf32>
    %263 = arith.truncf %246 : vector<2x8x16xf32> to vector<2x8x16xbf16>
    %264 = arith.truncf %254 : vector<2x8x16xf32> to vector<2x8x16xbf16>
    "tpu.trace_start"() <{level = 10 : i32, message = "bqd,bkd->bqk"}> : () -> ()
    %cst_104 = arith.constant dense<0.000000e+00> : vector<2x8x8xf32>
    %265 = tpu.matmul %263, %264, %cst_104 {dimension_numbers = #tpu.dot_dimension_numbers<[2], [2], [1], [1], [0, 0, 0, 1, 1, 1], [0], [0]>} : vector<2x8x16xbf16>, vector<2x8x16xbf16>, vector<2x8x8xf32> -> vector<2x8x8xf32>
    "tpu.trace_stop"() : () -> ()
    %cst_105 = arith.constant 2.500000e-01 : f32
    %266 = vector.broadcast %cst_105 : f32 to vector<2x8x8xf32>
    %267 = arith.mulf %265, %266 : vector<2x8x8xf32>
    %cst_106 = arith.constant dense<0xFF800000> : vector<2x8xf32>
    %268 = vector.multi_reduction <maximumf>, %267, %cst_106 [2] : vector<2x8x8xf32> to vector<2x8xf32>
    %269 = vector.shape_cast %268 : vector<2x8xf32> to vector<2x8x1xf32>
    %270 = vector.broadcast %269 : vector<2x8x1xf32> to vector<2x8x8xf32>
    %271 = arith.subf %267, %270 : vector<2x8x8xf32>
    %272 = math.exp %271 : vector<2x8x8xf32>
    %cst_107 = arith.constant dense<0.000000e+00> : vector<2x8xf32>
    %273 = vector.multi_reduction <add>, %272, %cst_107 [2] : vector<2x8x8xf32> to vector<2x8xf32>
    %274 = vector.shape_cast %273 : vector<2x8xf32> to vector<2x8x1xf32>
    %275 = tpu.reciprocal %274 {approx = true} : vector<2x8x1xf32> -> vector<2x8x1xf32>
    %276 = vector.broadcast %275 : vector<2x8x1xf32> to vector<2x8x8xf32>
    %277 = arith.mulf %272, %276 : vector<2x8x8xf32>
    %278 = arith.truncf %277 : vector<2x8x8xf32> to vector<2x8x8xbf16>
    %279 = arith.truncf %262 : vector<2x8x16xf32> to vector<2x8x16xbf16>
    "tpu.trace_start"() <{level = 10 : i32, message = "bqk,bkd->bqd"}> : () -> ()
    %cst_108 = arith.constant dense<0.000000e+00> : vector<2x8x16xf32>
    %280 = tpu.matmul %278, %279, %cst_108 {dimension_numbers = #tpu.dot_dimension_numbers<[2], [1], [1], [2], [0, 0, 0, 1, 1, 2], [0], [0]>} : vector<2x8x8xbf16>, vector<2x8x16xbf16>, vector<2x8x16xf32> -> vector<2x8x16xf32>
    "tpu.trace_stop"() : () -> ()
    %281 = vector.shape_cast %280 : vector<2x8x16xf32> to vector<16x16xf32>
    %282 = arith.truncf %281 : vector<16x16xf32> to vector<16x16xbf16>
    %283 = vector.extract_strided_slice %33 {offsets = [1, 0, 0, 0], sizes = [1, 1, 16, 32], strides = [1, 1, 1, 1]} : vector<2x2x16x32xbf16> to vector<1x1x16x32xbf16>
    %284 = vector.shape_cast %283 : vector<1x1x16x32xbf16> to vector<16x32xbf16>
    %cst_109 = arith.constant dense<0.000000e+00> : vector<16x32xf32>
    %285 = tpu.matmul %282, %284, %cst_109 {dimension_numbers = #tpu.dot_dimension_numbers<[1], [0], [0], [1], [0, 0, 1, 1], [], []>} : vector<16x16xbf16>, vector<16x32xbf16>, vector<16x32xf32> -> vector<16x32xf32>
    %286 = arith.addf %238, %285 : vector<16x32xf32>
    %287 = vector.extract_strided_slice %27 {offsets = [1, 1, 0, 0], sizes = [1, 1, 32, 16], strides = [1, 1, 1, 1]} : vector<2x2x32x16xbf16> to vector<1x1x32x16xbf16>
    %288 = vector.shape_cast %287 : vector<1x1x32x16xbf16> to vector<32x16xbf16>
    %cst_110 = arith.constant dense<0.000000e+00> : vector<16x16xf32>
    %289 = tpu.matmul %237, %288, %cst_110 {dimension_numbers = #tpu.dot_dimension_numbers<[1], [0], [0], [1], [0, 0, 1, 1], [], []>} : vector<16x32xbf16>, vector<32x16xbf16>, vector<16x16xf32> -> vector<16x16xf32>
    %290 = vector.extract_strided_slice %28 {offsets = [1, 1, 0, 0], sizes = [1, 1, 1, 16], strides = [1, 1, 1, 1]} : vector<2x2x1x16xf32> to vector<1x1x1x16xf32>
    %291 = vector.shape_cast %290 : vector<1x1x1x16xf32> to vector<1x16xf32>
    %292 = vector.broadcast %291 : vector<1x16xf32> to vector<16x16xf32>
    %293 = arith.addf %289, %292 : vector<16x16xf32>
    %294 = vector.shape_cast %293 : vector<16x16xf32> to vector<2x8x16xf32>
    %295 = vector.extract_strided_slice %29 {offsets = [1, 1, 0, 0], sizes = [1, 1, 32, 16], strides = [1, 1, 1, 1]} : vector<2x2x32x16xbf16> to vector<1x1x32x16xbf16>
    %296 = vector.shape_cast %295 : vector<1x1x32x16xbf16> to vector<32x16xbf16>
    %cst_111 = arith.constant dense<0.000000e+00> : vector<16x16xf32>
    %297 = tpu.matmul %237, %296, %cst_111 {dimension_numbers = #tpu.dot_dimension_numbers<[1], [0], [0], [1], [0, 0, 1, 1], [], []>} : vector<16x32xbf16>, vector<32x16xbf16>, vector<16x16xf32> -> vector<16x16xf32>
    %298 = vector.extract_strided_slice %30 {offsets = [1, 1, 0, 0], sizes = [1, 1, 1, 16], strides = [1, 1, 1, 1]} : vector<2x2x1x16xf32> to vector<1x1x1x16xf32>
    %299 = vector.shape_cast %298 : vector<1x1x1x16xf32> to vector<1x16xf32>
    %300 = vector.broadcast %299 : vector<1x16xf32> to vector<16x16xf32>
    %301 = arith.addf %297, %300 : vector<16x16xf32>
    %302 = vector.shape_cast %301 : vector<16x16xf32> to vector<2x8x16xf32>
    %303 = vector.extract_strided_slice %31 {offsets = [1, 1, 0, 0], sizes = [1, 1, 32, 16], strides = [1, 1, 1, 1]} : vector<2x2x32x16xbf16> to vector<1x1x32x16xbf16>
    %304 = vector.shape_cast %303 : vector<1x1x32x16xbf16> to vector<32x16xbf16>
    %cst_112 = arith.constant dense<0.000000e+00> : vector<16x16xf32>
    %305 = tpu.matmul %237, %304, %cst_112 {dimension_numbers = #tpu.dot_dimension_numbers<[1], [0], [0], [1], [0, 0, 1, 1], [], []>} : vector<16x32xbf16>, vector<32x16xbf16>, vector<16x16xf32> -> vector<16x16xf32>
    %306 = vector.extract_strided_slice %32 {offsets = [1, 1, 0, 0], sizes = [1, 1, 1, 16], strides = [1, 1, 1, 1]} : vector<2x2x1x16xf32> to vector<1x1x1x16xf32>
    %307 = vector.shape_cast %306 : vector<1x1x1x16xf32> to vector<1x16xf32>
    %308 = vector.broadcast %307 : vector<1x16xf32> to vector<16x16xf32>
    %309 = arith.addf %305, %308 : vector<16x16xf32>
    %310 = vector.shape_cast %309 : vector<16x16xf32> to vector<2x8x16xf32>
    %311 = arith.truncf %294 : vector<2x8x16xf32> to vector<2x8x16xbf16>
    %312 = arith.truncf %302 : vector<2x8x16xf32> to vector<2x8x16xbf16>
    "tpu.trace_start"() <{level = 10 : i32, message = "bqd,bkd->bqk"}> : () -> ()
    %cst_113 = arith.constant dense<0.000000e+00> : vector<2x8x8xf32>
    %313 = tpu.matmul %311, %312, %cst_113 {dimension_numbers = #tpu.dot_dimension_numbers<[2], [2], [1], [1], [0, 0, 0, 1, 1, 1], [0], [0]>} : vector<2x8x16xbf16>, vector<2x8x16xbf16>, vector<2x8x8xf32> -> vector<2x8x8xf32>
    "tpu.trace_stop"() : () -> ()
    %cst_114 = arith.constant 2.500000e-01 : f32
    %314 = vector.broadcast %cst_114 : f32 to vector<2x8x8xf32>
    %315 = arith.mulf %313, %314 : vector<2x8x8xf32>
    %cst_115 = arith.constant dense<0xFF800000> : vector<2x8xf32>
    %316 = vector.multi_reduction <maximumf>, %315, %cst_115 [2] : vector<2x8x8xf32> to vector<2x8xf32>
    %317 = vector.shape_cast %316 : vector<2x8xf32> to vector<2x8x1xf32>
    %318 = vector.broadcast %317 : vector<2x8x1xf32> to vector<2x8x8xf32>
    %319 = arith.subf %315, %318 : vector<2x8x8xf32>
    %320 = math.exp %319 : vector<2x8x8xf32>
    %cst_116 = arith.constant dense<0.000000e+00> : vector<2x8xf32>
    %321 = vector.multi_reduction <add>, %320, %cst_116 [2] : vector<2x8x8xf32> to vector<2x8xf32>
    %322 = vector.shape_cast %321 : vector<2x8xf32> to vector<2x8x1xf32>
    %323 = tpu.reciprocal %322 {approx = true} : vector<2x8x1xf32> -> vector<2x8x1xf32>
    %324 = vector.broadcast %323 : vector<2x8x1xf32> to vector<2x8x8xf32>
    %325 = arith.mulf %320, %324 : vector<2x8x8xf32>
    %326 = arith.truncf %325 : vector<2x8x8xf32> to vector<2x8x8xbf16>
    %327 = arith.truncf %310 : vector<2x8x16xf32> to vector<2x8x16xbf16>
    "tpu.trace_start"() <{level = 10 : i32, message = "bqk,bkd->bqd"}> : () -> ()
    %cst_117 = arith.constant dense<0.000000e+00> : vector<2x8x16xf32>
    %328 = tpu.matmul %326, %327, %cst_117 {dimension_numbers = #tpu.dot_dimension_numbers<[2], [1], [1], [2], [0, 0, 0, 1, 1, 2], [0], [0]>} : vector<2x8x8xbf16>, vector<2x8x16xbf16>, vector<2x8x16xf32> -> vector<2x8x16xf32>
    "tpu.trace_stop"() : () -> ()
    %329 = vector.shape_cast %328 : vector<2x8x16xf32> to vector<16x16xf32>
    %330 = arith.truncf %329 : vector<16x16xf32> to vector<16x16xbf16>
    %331 = vector.extract_strided_slice %33 {offsets = [1, 1, 0, 0], sizes = [1, 1, 16, 32], strides = [1, 1, 1, 1]} : vector<2x2x16x32xbf16> to vector<1x1x16x32xbf16>
    %332 = vector.shape_cast %331 : vector<1x1x16x32xbf16> to vector<16x32xbf16>
    %cst_118 = arith.constant dense<0.000000e+00> : vector<16x32xf32>
    %333 = tpu.matmul %330, %332, %cst_118 {dimension_numbers = #tpu.dot_dimension_numbers<[1], [0], [0], [1], [0, 0, 1, 1], [], []>} : vector<16x16xbf16>, vector<16x32xbf16>, vector<16x32xf32> -> vector<16x32xf32>
    %334 = arith.addf %286, %333 : vector<16x32xf32>
    %335 = vector.extract_strided_slice %34 {offsets = [1, 0, 0], sizes = [1, 1, 32], strides = [1, 1, 1]} : vector<2x1x32xf32> to vector<1x1x32xf32>
    %336 = vector.shape_cast %335 : vector<1x1x32xf32> to vector<1x32xf32>
    %337 = vector.broadcast %336 : vector<1x32xf32> to vector<16x32xf32>
    %338 = arith.addf %334, %337 : vector<16x32xf32>
    %339 = vector.shape_cast %338 : vector<16x32xf32> to vector<2x8x32xf32>
    %340 = arith.addf %235, %339 : vector<2x8x32xf32>
    %341 = vector.extract_strided_slice %35 {offsets = [1, 0, 0], sizes = [1, 1, 32], strides = [1, 1, 1]} : vector<2x1x32xf32> to vector<1x1x32xf32>
    %342 = vector.shape_cast %341 : vector<1x1x32xf32> to vector<1x32xf32>
    %343 = vector.extract_strided_slice %36 {offsets = [1, 0, 0], sizes = [1, 1, 32], strides = [1, 1, 1]} : vector<2x1x32xf32> to vector<1x1x32xf32>
    %344 = vector.shape_cast %343 : vector<1x1x32xf32> to vector<1x32xf32>
    %cst_119 = arith.constant dense<0.000000e+00> : vector<2x8xf32>
    %345 = vector.multi_reduction <add>, %340, %cst_119 [2] : vector<2x8x32xf32> to vector<2x8xf32>
    %346 = vector.shape_cast %345 : vector<2x8xf32> to vector<2x8x1xf32>
    %cst_120 = arith.constant 3.200000e+01 : f32
    %347 = vector.broadcast %cst_120 : f32 to vector<2x8x1xf32>
    %348 = arith.divf %346, %347 : vector<2x8x1xf32>
    %349 = vector.broadcast %348 : vector<2x8x1xf32> to vector<2x8x32xf32>
    %350 = arith.subf %340, %349 : vector<2x8x32xf32>
    %351 = arith.mulf %350, %350 : vector<2x8x32xf32>
    %cst_121 = arith.constant dense<0.000000e+00> : vector<2x8xf32>
    %352 = vector.multi_reduction <add>, %351, %cst_121 [2] : vector<2x8x32xf32> to vector<2x8xf32>
    %353 = vector.shape_cast %352 : vector<2x8xf32> to vector<2x8x1xf32>
    %cst_122 = arith.constant 3.200000e+01 : f32
    %354 = vector.broadcast %cst_122 : f32 to vector<2x8x1xf32>
    %355 = arith.divf %353, %354 : vector<2x8x1xf32>
    %356 = vector.broadcast %348 : vector<2x8x1xf32> to vector<2x8x32xf32>
    %357 = arith.subf %340, %356 : vector<2x8x32xf32>
    %cst_123 = arith.constant 9.99999996E-13 : f32
    %358 = vector.broadcast %cst_123 : f32 to vector<2x8x1xf32>
    %359 = arith.addf %355, %358 : vector<2x8x1xf32>
    %360 = math.rsqrt %359 : vector<2x8x1xf32>
    %361 = vector.broadcast %360 : vector<2x8x1xf32> to vector<2x8x32xf32>
    %362 = arith.mulf %357, %361 : vector<2x8x32xf32>
    %363 = vector.shape_cast %342 : vector<1x32xf32> to vector<1x1x32xf32>
    %364 = vector.broadcast %363 : vector<1x1x32xf32> to vector<2x8x32xf32>
    %365 = arith.mulf %362, %364 : vector<2x8x32xf32>
    %366 = vector.shape_cast %344 : vector<1x32xf32> to vector<1x1x32xf32>
    %367 = vector.broadcast %366 : vector<1x1x32xf32> to vector<2x8x32xf32>
    %368 = arith.addf %365, %367 : vector<2x8x32xf32>
    %369 = vector.shape_cast %368 : vector<2x8x32xf32> to vector<16x32xf32>
    %370 = arith.truncf %369 : vector<16x32xf32> to vector<16x32xbf16>
    %371 = vector.extract_strided_slice %37 {offsets = [1, 0, 0], sizes = [1, 32, 64], strides = [1, 1, 1]} : vector<2x32x64xbf16> to vector<1x32x64xbf16>
    %372 = vector.shape_cast %371 : vector<1x32x64xbf16> to vector<32x64xbf16>
    %cst_124 = arith.constant dense<0.000000e+00> : vector<16x64xf32>
    %373 = tpu.matmul %370, %372, %cst_124 {dimension_numbers = #tpu.dot_dimension_numbers<[1], [0], [0], [1], [0, 0, 1, 1], [], []>} : vector<16x32xbf16>, vector<32x64xbf16>, vector<16x64xf32> -> vector<16x64xf32>
    %374 = vector.extract_strided_slice %38 {offsets = [1, 0, 0], sizes = [1, 1, 64], strides = [1, 1, 1]} : vector<2x1x64xf32> to vector<1x1x64xf32>
    %375 = vector.shape_cast %374 : vector<1x1x64xf32> to vector<1x64xf32>
    %376 = vector.broadcast %375 : vector<1x64xf32> to vector<16x64xf32>
    %377 = arith.addf %373, %376 : vector<16x64xf32>
    %cst_125 = arith.constant 5.000000e-01 : f32
    %378 = vector.broadcast %cst_125 : f32 to vector<16x64xf32>
    %379 = arith.mulf %378, %377 : vector<16x64xf32>
    %cst_126 = arith.constant 4.471500e-02 : f32
    %380 = vector.broadcast %cst_126 : f32 to vector<16x64xf32>
    %381 = arith.mulf %380, %377 : vector<16x64xf32>
    %382 = arith.mulf %381, %377 : vector<16x64xf32>
    %383 = arith.mulf %382, %377 : vector<16x64xf32>
    %384 = arith.addf %377, %383 : vector<16x64xf32>
    %cst_127 = arith.constant 0.797884583 : f32
    %385 = vector.broadcast %cst_127 : f32 to vector<16x64xf32>
    %386 = arith.mulf %385, %384 : vector<16x64xf32>
    %387 = math.tanh %386 : vector<16x64xf32>
    %cst_128 = arith.constant 1.000000e+00 : f32
    %388 = vector.broadcast %cst_128 : f32 to vector<16x64xf32>
    %389 = arith.addf %388, %387 : vector<16x64xf32>
    %390 = arith.mulf %379, %389 : vector<16x64xf32>
    %391 = arith.truncf %390 : vector<16x64xf32> to vector<16x64xbf16>
    %392 = vector.extract_strided_slice %39 {offsets = [1, 0, 0], sizes = [1, 64, 32], strides = [1, 1, 1]} : vector<2x64x32xbf16> to vector<1x64x32xbf16>
    %393 = vector.shape_cast %392 : vector<1x64x32xbf16> to vector<64x32xbf16>
    %cst_129 = arith.constant dense<0.000000e+00> : vector<16x32xf32>
    %394 = tpu.matmul %391, %393, %cst_129 {dimension_numbers = #tpu.dot_dimension_numbers<[1], [0], [0], [1], [0, 0, 1, 1], [], []>} : vector<16x64xbf16>, vector<64x32xbf16>, vector<16x32xf32> -> vector<16x32xf32>
    %395 = vector.extract_strided_slice %40 {offsets = [1, 0, 0], sizes = [1, 1, 32], strides = [1, 1, 1]} : vector<2x1x32xf32> to vector<1x1x32xf32>
    %396 = vector.shape_cast %395 : vector<1x1x32xf32> to vector<1x32xf32>
    %397 = vector.broadcast %396 : vector<1x32xf32> to vector<16x32xf32>
    %398 = arith.addf %394, %397 : vector<16x32xf32>
    %399 = vector.shape_cast %398 : vector<16x32xf32> to vector<2x8x32xf32>
    %400 = arith.addf %368, %399 : vector<2x8x32xf32>
    %401 = vector.extract_strided_slice %41 {offsets = [1, 0, 0], sizes = [1, 1, 32], strides = [1, 1, 1]} : vector<2x1x32xf32> to vector<1x1x32xf32>
    %402 = vector.shape_cast %401 : vector<1x1x32xf32> to vector<1x32xf32>
    %403 = vector.extract_strided_slice %42 {offsets = [1, 0, 0], sizes = [1, 1, 32], strides = [1, 1, 1]} : vector<2x1x32xf32> to vector<1x1x32xf32>
    %404 = vector.shape_cast %403 : vector<1x1x32xf32> to vector<1x32xf32>
    %cst_130 = arith.constant dense<0.000000e+00> : vector<2x8xf32>
    %405 = vector.multi_reduction <add>, %400, %cst_130 [2] : vector<2x8x32xf32> to vector<2x8xf32>
    %406 = vector.shape_cast %405 : vector<2x8xf32> to vector<2x8x1xf32>
    %cst_131 = arith.constant 3.200000e+01 : f32
    %407 = vector.broadcast %cst_131 : f32 to vector<2x8x1xf32>
    %408 = arith.divf %406, %407 : vector<2x8x1xf32>
    %409 = vector.broadcast %408 : vector<2x8x1xf32> to vector<2x8x32xf32>
    %410 = arith.subf %400, %409 : vector<2x8x32xf32>
    %411 = arith.mulf %410, %410 : vector<2x8x32xf32>
    %cst_132 = arith.constant dense<0.000000e+00> : vector<2x8xf32>
    %412 = vector.multi_reduction <add>, %411, %cst_132 [2] : vector<2x8x32xf32> to vector<2x8xf32>
    %413 = vector.shape_cast %412 : vector<2x8xf32> to vector<2x8x1xf32>
    %cst_133 = arith.constant 3.200000e+01 : f32
    %414 = vector.broadcast %cst_133 : f32 to vector<2x8x1xf32>
    %415 = arith.divf %413, %414 : vector<2x8x1xf32>
    %416 = vector.broadcast %408 : vector<2x8x1xf32> to vector<2x8x32xf32>
    %417 = arith.subf %400, %416 : vector<2x8x32xf32>
    %cst_134 = arith.constant 9.99999996E-13 : f32
    %418 = vector.broadcast %cst_134 : f32 to vector<2x8x1xf32>
    %419 = arith.addf %415, %418 : vector<2x8x1xf32>
    %420 = math.rsqrt %419 : vector<2x8x1xf32>
    %421 = vector.broadcast %420 : vector<2x8x1xf32> to vector<2x8x32xf32>
    %422 = arith.mulf %417, %421 : vector<2x8x32xf32>
    %423 = vector.shape_cast %402 : vector<1x32xf32> to vector<1x1x32xf32>
    %424 = vector.broadcast %423 : vector<1x1x32xf32> to vector<2x8x32xf32>
    %425 = arith.mulf %422, %424 : vector<2x8x32xf32>
    %426 = vector.shape_cast %404 : vector<1x32xf32> to vector<1x1x32xf32>
    %427 = vector.broadcast %426 : vector<1x1x32xf32> to vector<2x8x32xf32>
    %428 = arith.addf %425, %427 : vector<2x8x32xf32>
    %c0_135 = arith.constant 0 : index
    %c0_136 = arith.constant 0 : index
    %c0_137 = arith.constant 0 : index
    %429 = vector.load %arg20[%c0_135, %c0_136, %c0_137] : memref<4x32x32xbf16, #tpu.memory_space<vmem>>, vector<4x32x32xbf16>
    %c0_138 = arith.constant 0 : index
    %c0_139 = arith.constant 0 : index
    %c0_140 = arith.constant 0 : index
    %430 = vector.load %arg21[%c0_138, %c0_139, %c0_140] : memref<4x32x32xbf16, #tpu.memory_space<vmem>>, vector<4x32x32xbf16>
    %c0_141 = arith.constant 0 : index
    %c0_142 = arith.constant 0 : index
    %c0_143 = arith.constant 0 : index
    %431 = vector.load %arg22[%c0_141, %c0_142, %c0_143] : memref<4x1x32xf32, #tpu.memory_space<vmem>>, vector<4x1x32xf32>
    %c0_144 = arith.constant 0 : index
    %c0_145 = arith.constant 0 : index
    %432 = vector.load %arg1[%c0_144, %c0_145] : memref<2x1xi32, #tpu.memory_space<vmem>>, vector<2x1xi32>
    %433 = vector.shape_cast %428 : vector<2x8x32xf32> to vector<16x32xf32>
    %434 = arith.truncf %433 : vector<16x32xf32> to vector<16x32xbf16>
    %435 = vector.extract_strided_slice %429 {offsets = [0, 0, 0], sizes = [1, 32, 32], strides = [1, 1, 1]} : vector<4x32x32xbf16> to vector<1x32x32xbf16>
    %436 = vector.shape_cast %435 : vector<1x32x32xbf16> to vector<32x32xbf16>
    %cst_146 = arith.constant dense<0.000000e+00> : vector<16x32xf32>
    %437 = tpu.matmul %434, %436, %cst_146 {dimension_numbers = #tpu.dot_dimension_numbers<[1], [0], [0], [1], [0, 0, 1, 1], [], []>} : vector<16x32xbf16>, vector<32x32xbf16>, vector<16x32xf32> -> vector<16x32xf32>
    %438 = vector.extract_strided_slice %431 {offsets = [0, 0, 0], sizes = [1, 1, 32], strides = [1, 1, 1]} : vector<4x1x32xf32> to vector<1x1x32xf32>
    %439 = vector.shape_cast %438 : vector<1x1x32xf32> to vector<1x32xf32>
    %440 = vector.broadcast %439 : vector<1x32xf32> to vector<16x32xf32>
    %441 = arith.addf %437, %440 : vector<16x32xf32>
    %442 = vector.shape_cast %441 : vector<16x32xf32> to vector<2x8x32xf32>
    %443 = vector.extract_strided_slice %429 {offsets = [1, 0, 0], sizes = [1, 32, 32], strides = [1, 1, 1]} : vector<4x32x32xbf16> to vector<1x32x32xbf16>
    %444 = vector.shape_cast %443 : vector<1x32x32xbf16> to vector<32x32xbf16>
    %cst_147 = arith.constant dense<0.000000e+00> : vector<16x32xf32>
    %445 = tpu.matmul %434, %444, %cst_147 {dimension_numbers = #tpu.dot_dimension_numbers<[1], [0], [0], [1], [0, 0, 1, 1], [], []>} : vector<16x32xbf16>, vector<32x32xbf16>, vector<16x32xf32> -> vector<16x32xf32>
    %446 = vector.extract_strided_slice %431 {offsets = [1, 0, 0], sizes = [1, 1, 32], strides = [1, 1, 1]} : vector<4x1x32xf32> to vector<1x1x32xf32>
    %447 = vector.shape_cast %446 : vector<1x1x32xf32> to vector<1x32xf32>
    %448 = vector.broadcast %447 : vector<1x32xf32> to vector<16x32xf32>
    %449 = arith.addf %445, %448 : vector<16x32xf32>
    %450 = vector.shape_cast %449 : vector<16x32xf32> to vector<2x8x32xf32>
    %451 = vector.extract_strided_slice %429 {offsets = [2, 0, 0], sizes = [1, 32, 32], strides = [1, 1, 1]} : vector<4x32x32xbf16> to vector<1x32x32xbf16>
    %452 = vector.shape_cast %451 : vector<1x32x32xbf16> to vector<32x32xbf16>
    %cst_148 = arith.constant dense<0.000000e+00> : vector<16x32xf32>
    %453 = tpu.matmul %434, %452, %cst_148 {dimension_numbers = #tpu.dot_dimension_numbers<[1], [0], [0], [1], [0, 0, 1, 1], [], []>} : vector<16x32xbf16>, vector<32x32xbf16>, vector<16x32xf32> -> vector<16x32xf32>
    %454 = vector.extract_strided_slice %431 {offsets = [2, 0, 0], sizes = [1, 1, 32], strides = [1, 1, 1]} : vector<4x1x32xf32> to vector<1x1x32xf32>
    %455 = vector.shape_cast %454 : vector<1x1x32xf32> to vector<1x32xf32>
    %456 = vector.broadcast %455 : vector<1x32xf32> to vector<16x32xf32>
    %457 = arith.addf %453, %456 : vector<16x32xf32>
    %458 = vector.shape_cast %457 : vector<16x32xf32> to vector<2x8x32xf32>
    %459 = vector.extract_strided_slice %429 {offsets = [3, 0, 0], sizes = [1, 32, 32], strides = [1, 1, 1]} : vector<4x32x32xbf16> to vector<1x32x32xbf16>
    %460 = vector.shape_cast %459 : vector<1x32x32xbf16> to vector<32x32xbf16>
    %cst_149 = arith.constant dense<0.000000e+00> : vector<16x32xf32>
    %461 = tpu.matmul %434, %460, %cst_149 {dimension_numbers = #tpu.dot_dimension_numbers<[1], [0], [0], [1], [0, 0, 1, 1], [], []>} : vector<16x32xbf16>, vector<32x32xbf16>, vector<16x32xf32> -> vector<16x32xf32>
    %462 = vector.extract_strided_slice %431 {offsets = [3, 0, 0], sizes = [1, 1, 32], strides = [1, 1, 1]} : vector<4x1x32xf32> to vector<1x1x32xf32>
    %463 = vector.shape_cast %462 : vector<1x1x32xf32> to vector<1x32xf32>
    %464 = vector.broadcast %463 : vector<1x32xf32> to vector<16x32xf32>
    %465 = arith.addf %461, %464 : vector<16x32xf32>
    %466 = vector.shape_cast %465 : vector<16x32xf32> to vector<2x8x32xf32>
    %cst_150 = arith.constant 0.000000e+00 : f32
    %467 = vector.broadcast %cst_150 : f32 to vector<2x32xf32>
    %cst_151 = arith.constant 0.000000e+00 : f32
    %468 = vector.broadcast %cst_151 : f32 to vector<2x32xf32>
    %469 = arith.truncf %467 : vector<2x32xf32> to vector<2x32xbf16>
    %470 = vector.extract_strided_slice %442 {offsets = [0, 0, 0], sizes = [2, 1, 32], strides = [1, 1, 1]} : vector<2x8x32xf32> to vector<2x1x32xf32>
    %471 = vector.shape_cast %470 : vector<2x1x32xf32> to vector<2x32xf32>
    %472 = vector.extract_strided_slice %430 {offsets = [0, 0, 0], sizes = [1, 32, 32], strides = [1, 1, 1]} : vector<4x32x32xbf16> to vector<1x32x32xbf16>
    %473 = vector.shape_cast %472 : vector<1x32x32xbf16> to vector<32x32xbf16>
    %cst_152 = arith.constant dense<0.000000e+00> : vector<2x32xf32>
    %474 = tpu.matmul %469, %473, %cst_152 {dimension_numbers = #tpu.dot_dimension_numbers<[1], [0], [0], [1], [0, 0, 1, 1], [], []>} : vector<2x32xbf16>, vector<32x32xbf16>, vector<2x32xf32> -> vector<2x32xf32>
    %475 = arith.addf %471, %474 : vector<2x32xf32>
    %476 = arith.negf %475 : vector<2x32xf32>
    %477 = math.exp %476 : vector<2x32xf32>
    %cst_153 = arith.constant 1.000000e+00 : f32
    %478 = vector.broadcast %cst_153 : f32 to vector<2x32xf32>
    %479 = arith.addf %478, %477 : vector<2x32xf32>
    %480 = arith.divf %478, %479 : vector<2x32xf32>
    %481 = vector.extract_strided_slice %450 {offsets = [0, 0, 0], sizes = [2, 1, 32], strides = [1, 1, 1]} : vector<2x8x32xf32> to vector<2x1x32xf32>
    %482 = vector.shape_cast %481 : vector<2x1x32xf32> to vector<2x32xf32>
    %483 = vector.extract_strided_slice %430 {offsets = [1, 0, 0], sizes = [1, 32, 32], strides = [1, 1, 1]} : vector<4x32x32xbf16> to vector<1x32x32xbf16>
    %484 = vector.shape_cast %483 : vector<1x32x32xbf16> to vector<32x32xbf16>
    %cst_154 = arith.constant dense<0.000000e+00> : vector<2x32xf32>
    %485 = tpu.matmul %469, %484, %cst_154 {dimension_numbers = #tpu.dot_dimension_numbers<[1], [0], [0], [1], [0, 0, 1, 1], [], []>} : vector<2x32xbf16>, vector<32x32xbf16>, vector<2x32xf32> -> vector<2x32xf32>
    %486 = arith.addf %482, %485 : vector<2x32xf32>
    %487 = arith.negf %486 : vector<2x32xf32>
    %488 = math.exp %487 : vector<2x32xf32>
    %cst_155 = arith.constant 1.000000e+00 : f32
    %489 = vector.broadcast %cst_155 : f32 to vector<2x32xf32>
    %490 = arith.addf %489, %488 : vector<2x32xf32>
    %491 = arith.divf %489, %490 : vector<2x32xf32>
    %492 = vector.extract_strided_slice %458 {offsets = [0, 0, 0], sizes = [2, 1, 32], strides = [1, 1, 1]} : vector<2x8x32xf32> to vector<2x1x32xf32>
    %493 = vector.shape_cast %492 : vector<2x1x32xf32> to vector<2x32xf32>
    %494 = vector.extract_strided_slice %430 {offsets = [2, 0, 0], sizes = [1, 32, 32], strides = [1, 1, 1]} : vector<4x32x32xbf16> to vector<1x32x32xbf16>
    %495 = vector.shape_cast %494 : vector<1x32x32xbf16> to vector<32x32xbf16>
    %cst_156 = arith.constant dense<0.000000e+00> : vector<2x32xf32>
    %496 = tpu.matmul %469, %495, %cst_156 {dimension_numbers = #tpu.dot_dimension_numbers<[1], [0], [0], [1], [0, 0, 1, 1], [], []>} : vector<2x32xbf16>, vector<32x32xbf16>, vector<2x32xf32> -> vector<2x32xf32>
    %497 = arith.addf %493, %496 : vector<2x32xf32>
    %498 = math.tanh %497 : vector<2x32xf32>
    %499 = vector.extract_strided_slice %466 {offsets = [0, 0, 0], sizes = [2, 1, 32], strides = [1, 1, 1]} : vector<2x8x32xf32> to vector<2x1x32xf32>
    %500 = vector.shape_cast %499 : vector<2x1x32xf32> to vector<2x32xf32>
    %501 = vector.extract_strided_slice %430 {offsets = [3, 0, 0], sizes = [1, 32, 32], strides = [1, 1, 1]} : vector<4x32x32xbf16> to vector<1x32x32xbf16>
    %502 = vector.shape_cast %501 : vector<1x32x32xbf16> to vector<32x32xbf16>
    %cst_157 = arith.constant dense<0.000000e+00> : vector<2x32xf32>
    %503 = tpu.matmul %469, %502, %cst_157 {dimension_numbers = #tpu.dot_dimension_numbers<[1], [0], [0], [1], [0, 0, 1, 1], [], []>} : vector<2x32xbf16>, vector<32x32xbf16>, vector<2x32xf32> -> vector<2x32xf32>
    %504 = arith.addf %500, %503 : vector<2x32xf32>
    %505 = arith.negf %504 : vector<2x32xf32>
    %506 = math.exp %505 : vector<2x32xf32>
    %cst_158 = arith.constant 1.000000e+00 : f32
    %507 = vector.broadcast %cst_158 : f32 to vector<2x32xf32>
    %508 = arith.addf %507, %506 : vector<2x32xf32>
    %509 = arith.divf %507, %508 : vector<2x32xf32>
    %510 = arith.mulf %491, %468 : vector<2x32xf32>
    %511 = arith.mulf %480, %498 : vector<2x32xf32>
    %512 = arith.addf %510, %511 : vector<2x32xf32>
    %513 = math.tanh %512 : vector<2x32xf32>
    %514 = arith.mulf %509, %513 : vector<2x32xf32>
    %c0_i32 = arith.constant 0 : i32
    %515 = vector.broadcast %c0_i32 : i32 to vector<2x1xi32>
    %516 = arith.cmpi sgt, %432, %515 : vector<2x1xi32>
    %517 = vector.shape_cast %516 : vector<2x1xi1> to vector<2x1xi1>
    %518 = vector.broadcast %517 : vector<2x1xi1> to vector<2x32xi1>
    %519 = arith.select %518, %514, %467 : vector<2x32xi1>, vector<2x32xf32>
    %520 = vector.shape_cast %516 : vector<2x1xi1> to vector<2x1xi1>
    %521 = vector.broadcast %520 : vector<2x1xi1> to vector<2x32xi1>
    %522 = arith.select %521, %512, %468 : vector<2x32xi1>, vector<2x32xf32>
    %523 = arith.truncf %519 : vector<2x32xf32> to vector<2x32xbf16>
    %524 = vector.extract_strided_slice %442 {offsets = [0, 1, 0], sizes = [2, 1, 32], strides = [1, 1, 1]} : vector<2x8x32xf32> to vector<2x1x32xf32>
    %525 = vector.shape_cast %524 : vector<2x1x32xf32> to vector<2x32xf32>
    %526 = vector.extract_strided_slice %430 {offsets = [0, 0, 0], sizes = [1, 32, 32], strides = [1, 1, 1]} : vector<4x32x32xbf16> to vector<1x32x32xbf16>
    %527 = vector.shape_cast %526 : vector<1x32x32xbf16> to vector<32x32xbf16>
    %cst_159 = arith.constant dense<0.000000e+00> : vector<2x32xf32>
    %528 = tpu.matmul %523, %527, %cst_159 {dimension_numbers = #tpu.dot_dimension_numbers<[1], [0], [0], [1], [0, 0, 1, 1], [], []>} : vector<2x32xbf16>, vector<32x32xbf16>, vector<2x32xf32> -> vector<2x32xf32>
    %529 = arith.addf %525, %528 : vector<2x32xf32>
    %530 = arith.negf %529 : vector<2x32xf32>
    %531 = math.exp %530 : vector<2x32xf32>
    %cst_160 = arith.constant 1.000000e+00 : f32
    %532 = vector.broadcast %cst_160 : f32 to vector<2x32xf32>
    %533 = arith.addf %532, %531 : vector<2x32xf32>
    %534 = arith.divf %532, %533 : vector<2x32xf32>
    %535 = vector.extract_strided_slice %450 {offsets = [0, 1, 0], sizes = [2, 1, 32], strides = [1, 1, 1]} : vector<2x8x32xf32> to vector<2x1x32xf32>
    %536 = vector.shape_cast %535 : vector<2x1x32xf32> to vector<2x32xf32>
    %537 = vector.extract_strided_slice %430 {offsets = [1, 0, 0], sizes = [1, 32, 32], strides = [1, 1, 1]} : vector<4x32x32xbf16> to vector<1x32x32xbf16>
    %538 = vector.shape_cast %537 : vector<1x32x32xbf16> to vector<32x32xbf16>
    %cst_161 = arith.constant dense<0.000000e+00> : vector<2x32xf32>
    %539 = tpu.matmul %523, %538, %cst_161 {dimension_numbers = #tpu.dot_dimension_numbers<[1], [0], [0], [1], [0, 0, 1, 1], [], []>} : vector<2x32xbf16>, vector<32x32xbf16>, vector<2x32xf32> -> vector<2x32xf32>
    %540 = arith.addf %536, %539 : vector<2x32xf32>
    %541 = arith.negf %540 : vector<2x32xf32>
    %542 = math.exp %541 : vector<2x32xf32>
    %cst_162 = arith.constant 1.000000e+00 : f32
    %543 = vector.broadcast %cst_162 : f32 to vector<2x32xf32>
    %544 = arith.addf %543, %542 : vector<2x32xf32>
    %545 = arith.divf %543, %544 : vector<2x32xf32>
    %546 = vector.extract_strided_slice %458 {offsets = [0, 1, 0], sizes = [2, 1, 32], strides = [1, 1, 1]} : vector<2x8x32xf32> to vector<2x1x32xf32>
    %547 = vector.shape_cast %546 : vector<2x1x32xf32> to vector<2x32xf32>
    %548 = vector.extract_strided_slice %430 {offsets = [2, 0, 0], sizes = [1, 32, 32], strides = [1, 1, 1]} : vector<4x32x32xbf16> to vector<1x32x32xbf16>
    %549 = vector.shape_cast %548 : vector<1x32x32xbf16> to vector<32x32xbf16>
    %cst_163 = arith.constant dense<0.000000e+00> : vector<2x32xf32>
    %550 = tpu.matmul %523, %549, %cst_163 {dimension_numbers = #tpu.dot_dimension_numbers<[1], [0], [0], [1], [0, 0, 1, 1], [], []>} : vector<2x32xbf16>, vector<32x32xbf16>, vector<2x32xf32> -> vector<2x32xf32>
    %551 = arith.addf %547, %550 : vector<2x32xf32>
    %552 = math.tanh %551 : vector<2x32xf32>
    %553 = vector.extract_strided_slice %466 {offsets = [0, 1, 0], sizes = [2, 1, 32], strides = [1, 1, 1]} : vector<2x8x32xf32> to vector<2x1x32xf32>
    %554 = vector.shape_cast %553 : vector<2x1x32xf32> to vector<2x32xf32>
    %555 = vector.extract_strided_slice %430 {offsets = [3, 0, 0], sizes = [1, 32, 32], strides = [1, 1, 1]} : vector<4x32x32xbf16> to vector<1x32x32xbf16>
    %556 = vector.shape_cast %555 : vector<1x32x32xbf16> to vector<32x32xbf16>
    %cst_164 = arith.constant dense<0.000000e+00> : vector<2x32xf32>
    %557 = tpu.matmul %523, %556, %cst_164 {dimension_numbers = #tpu.dot_dimension_numbers<[1], [0], [0], [1], [0, 0, 1, 1], [], []>} : vector<2x32xbf16>, vector<32x32xbf16>, vector<2x32xf32> -> vector<2x32xf32>
    %558 = arith.addf %554, %557 : vector<2x32xf32>
    %559 = arith.negf %558 : vector<2x32xf32>
    %560 = math.exp %559 : vector<2x32xf32>
    %cst_165 = arith.constant 1.000000e+00 : f32
    %561 = vector.broadcast %cst_165 : f32 to vector<2x32xf32>
    %562 = arith.addf %561, %560 : vector<2x32xf32>
    %563 = arith.divf %561, %562 : vector<2x32xf32>
    %564 = arith.mulf %545, %522 : vector<2x32xf32>
    %565 = arith.mulf %534, %552 : vector<2x32xf32>
    %566 = arith.addf %564, %565 : vector<2x32xf32>
    %567 = math.tanh %566 : vector<2x32xf32>
    %568 = arith.mulf %563, %567 : vector<2x32xf32>
    %c1_i32 = arith.constant 1 : i32
    %569 = vector.broadcast %c1_i32 : i32 to vector<2x1xi32>
    %570 = arith.cmpi sgt, %432, %569 : vector<2x1xi32>
    %571 = vector.shape_cast %570 : vector<2x1xi1> to vector<2x1xi1>
    %572 = vector.broadcast %571 : vector<2x1xi1> to vector<2x32xi1>
    %573 = arith.select %572, %568, %519 : vector<2x32xi1>, vector<2x32xf32>
    %574 = vector.shape_cast %570 : vector<2x1xi1> to vector<2x1xi1>
    %575 = vector.broadcast %574 : vector<2x1xi1> to vector<2x32xi1>
    %576 = arith.select %575, %566, %522 : vector<2x32xi1>, vector<2x32xf32>
    %577 = arith.truncf %573 : vector<2x32xf32> to vector<2x32xbf16>
    %578 = vector.extract_strided_slice %442 {offsets = [0, 2, 0], sizes = [2, 1, 32], strides = [1, 1, 1]} : vector<2x8x32xf32> to vector<2x1x32xf32>
    %579 = vector.shape_cast %578 : vector<2x1x32xf32> to vector<2x32xf32>
    %580 = vector.extract_strided_slice %430 {offsets = [0, 0, 0], sizes = [1, 32, 32], strides = [1, 1, 1]} : vector<4x32x32xbf16> to vector<1x32x32xbf16>
    %581 = vector.shape_cast %580 : vector<1x32x32xbf16> to vector<32x32xbf16>
    %cst_166 = arith.constant dense<0.000000e+00> : vector<2x32xf32>
    %582 = tpu.matmul %577, %581, %cst_166 {dimension_numbers = #tpu.dot_dimension_numbers<[1], [0], [0], [1], [0, 0, 1, 1], [], []>} : vector<2x32xbf16>, vector<32x32xbf16>, vector<2x32xf32> -> vector<2x32xf32>
    %583 = arith.addf %579, %582 : vector<2x32xf32>
    %584 = arith.negf %583 : vector<2x32xf32>
    %585 = math.exp %584 : vector<2x32xf32>
    %cst_167 = arith.constant 1.000000e+00 : f32
    %586 = vector.broadcast %cst_167 : f32 to vector<2x32xf32>
    %587 = arith.addf %586, %585 : vector<2x32xf32>
    %588 = arith.divf %586, %587 : vector<2x32xf32>
    %589 = vector.extract_strided_slice %450 {offsets = [0, 2, 0], sizes = [2, 1, 32], strides = [1, 1, 1]} : vector<2x8x32xf32> to vector<2x1x32xf32>
    %590 = vector.shape_cast %589 : vector<2x1x32xf32> to vector<2x32xf32>
    %591 = vector.extract_strided_slice %430 {offsets = [1, 0, 0], sizes = [1, 32, 32], strides = [1, 1, 1]} : vector<4x32x32xbf16> to vector<1x32x32xbf16>
    %592 = vector.shape_cast %591 : vector<1x32x32xbf16> to vector<32x32xbf16>
    %cst_168 = arith.constant dense<0.000000e+00> : vector<2x32xf32>
    %593 = tpu.matmul %577, %592, %cst_168 {dimension_numbers = #tpu.dot_dimension_numbers<[1], [0], [0], [1], [0, 0, 1, 1], [], []>} : vector<2x32xbf16>, vector<32x32xbf16>, vector<2x32xf32> -> vector<2x32xf32>
    %594 = arith.addf %590, %593 : vector<2x32xf32>
    %595 = arith.negf %594 : vector<2x32xf32>
    %596 = math.exp %595 : vector<2x32xf32>
    %cst_169 = arith.constant 1.000000e+00 : f32
    %597 = vector.broadcast %cst_169 : f32 to vector<2x32xf32>
    %598 = arith.addf %597, %596 : vector<2x32xf32>
    %599 = arith.divf %597, %598 : vector<2x32xf32>
    %600 = vector.extract_strided_slice %458 {offsets = [0, 2, 0], sizes = [2, 1, 32], strides = [1, 1, 1]} : vector<2x8x32xf32> to vector<2x1x32xf32>
    %601 = vector.shape_cast %600 : vector<2x1x32xf32> to vector<2x32xf32>
    %602 = vector.extract_strided_slice %430 {offsets = [2, 0, 0], sizes = [1, 32, 32], strides = [1, 1, 1]} : vector<4x32x32xbf16> to vector<1x32x32xbf16>
    %603 = vector.shape_cast %602 : vector<1x32x32xbf16> to vector<32x32xbf16>
    %cst_170 = arith.constant dense<0.000000e+00> : vector<2x32xf32>
    %604 = tpu.matmul %577, %603, %cst_170 {dimension_numbers = #tpu.dot_dimension_numbers<[1], [0], [0], [1], [0, 0, 1, 1], [], []>} : vector<2x32xbf16>, vector<32x32xbf16>, vector<2x32xf32> -> vector<2x32xf32>
    %605 = arith.addf %601, %604 : vector<2x32xf32>
    %606 = math.tanh %605 : vector<2x32xf32>
    %607 = vector.extract_strided_slice %466 {offsets = [0, 2, 0], sizes = [2, 1, 32], strides = [1, 1, 1]} : vector<2x8x32xf32> to vector<2x1x32xf32>
    %608 = vector.shape_cast %607 : vector<2x1x32xf32> to vector<2x32xf32>
    %609 = vector.extract_strided_slice %430 {offsets = [3, 0, 0], sizes = [1, 32, 32], strides = [1, 1, 1]} : vector<4x32x32xbf16> to vector<1x32x32xbf16>
    %610 = vector.shape_cast %609 : vector<1x32x32xbf16> to vector<32x32xbf16>
    %cst_171 = arith.constant dense<0.000000e+00> : vector<2x32xf32>
    %611 = tpu.matmul %577, %610, %cst_171 {dimension_numbers = #tpu.dot_dimension_numbers<[1], [0], [0], [1], [0, 0, 1, 1], [], []>} : vector<2x32xbf16>, vector<32x32xbf16>, vector<2x32xf32> -> vector<2x32xf32>
    %612 = arith.addf %608, %611 : vector<2x32xf32>
    %613 = arith.negf %612 : vector<2x32xf32>
    %614 = math.exp %613 : vector<2x32xf32>
    %cst_172 = arith.constant 1.000000e+00 : f32
    %615 = vector.broadcast %cst_172 : f32 to vector<2x32xf32>
    %616 = arith.addf %615, %614 : vector<2x32xf32>
    %617 = arith.divf %615, %616 : vector<2x32xf32>
    %618 = arith.mulf %599, %576 : vector<2x32xf32>
    %619 = arith.mulf %588, %606 : vector<2x32xf32>
    %620 = arith.addf %618, %619 : vector<2x32xf32>
    %621 = math.tanh %620 : vector<2x32xf32>
    %622 = arith.mulf %617, %621 : vector<2x32xf32>
    %c2_i32 = arith.constant 2 : i32
    %623 = vector.broadcast %c2_i32 : i32 to vector<2x1xi32>
    %624 = arith.cmpi sgt, %432, %623 : vector<2x1xi32>
    %625 = vector.shape_cast %624 : vector<2x1xi1> to vector<2x1xi1>
    %626 = vector.broadcast %625 : vector<2x1xi1> to vector<2x32xi1>
    %627 = arith.select %626, %622, %573 : vector<2x32xi1>, vector<2x32xf32>
    %628 = vector.shape_cast %624 : vector<2x1xi1> to vector<2x1xi1>
    %629 = vector.broadcast %628 : vector<2x1xi1> to vector<2x32xi1>
    %630 = arith.select %629, %620, %576 : vector<2x32xi1>, vector<2x32xf32>
    %631 = arith.truncf %627 : vector<2x32xf32> to vector<2x32xbf16>
    %632 = vector.extract_strided_slice %442 {offsets = [0, 3, 0], sizes = [2, 1, 32], strides = [1, 1, 1]} : vector<2x8x32xf32> to vector<2x1x32xf32>
    %633 = vector.shape_cast %632 : vector<2x1x32xf32> to vector<2x32xf32>
    %634 = vector.extract_strided_slice %430 {offsets = [0, 0, 0], sizes = [1, 32, 32], strides = [1, 1, 1]} : vector<4x32x32xbf16> to vector<1x32x32xbf16>
    %635 = vector.shape_cast %634 : vector<1x32x32xbf16> to vector<32x32xbf16>
    %cst_173 = arith.constant dense<0.000000e+00> : vector<2x32xf32>
    %636 = tpu.matmul %631, %635, %cst_173 {dimension_numbers = #tpu.dot_dimension_numbers<[1], [0], [0], [1], [0, 0, 1, 1], [], []>} : vector<2x32xbf16>, vector<32x32xbf16>, vector<2x32xf32> -> vector<2x32xf32>
    %637 = arith.addf %633, %636 : vector<2x32xf32>
    %638 = arith.negf %637 : vector<2x32xf32>
    %639 = math.exp %638 : vector<2x32xf32>
    %cst_174 = arith.constant 1.000000e+00 : f32
    %640 = vector.broadcast %cst_174 : f32 to vector<2x32xf32>
    %641 = arith.addf %640, %639 : vector<2x32xf32>
    %642 = arith.divf %640, %641 : vector<2x32xf32>
    %643 = vector.extract_strided_slice %450 {offsets = [0, 3, 0], sizes = [2, 1, 32], strides = [1, 1, 1]} : vector<2x8x32xf32> to vector<2x1x32xf32>
    %644 = vector.shape_cast %643 : vector<2x1x32xf32> to vector<2x32xf32>
    %645 = vector.extract_strided_slice %430 {offsets = [1, 0, 0], sizes = [1, 32, 32], strides = [1, 1, 1]} : vector<4x32x32xbf16> to vector<1x32x32xbf16>
    %646 = vector.shape_cast %645 : vector<1x32x32xbf16> to vector<32x32xbf16>
    %cst_175 = arith.constant dense<0.000000e+00> : vector<2x32xf32>
    %647 = tpu.matmul %631, %646, %cst_175 {dimension_numbers = #tpu.dot_dimension_numbers<[1], [0], [0], [1], [0, 0, 1, 1], [], []>} : vector<2x32xbf16>, vector<32x32xbf16>, vector<2x32xf32> -> vector<2x32xf32>
    %648 = arith.addf %644, %647 : vector<2x32xf32>
    %649 = arith.negf %648 : vector<2x32xf32>
    %650 = math.exp %649 : vector<2x32xf32>
    %cst_176 = arith.constant 1.000000e+00 : f32
    %651 = vector.broadcast %cst_176 : f32 to vector<2x32xf32>
    %652 = arith.addf %651, %650 : vector<2x32xf32>
    %653 = arith.divf %651, %652 : vector<2x32xf32>
    %654 = vector.extract_strided_slice %458 {offsets = [0, 3, 0], sizes = [2, 1, 32], strides = [1, 1, 1]} : vector<2x8x32xf32> to vector<2x1x32xf32>
    %655 = vector.shape_cast %654 : vector<2x1x32xf32> to vector<2x32xf32>
    %656 = vector.extract_strided_slice %430 {offsets = [2, 0, 0], sizes = [1, 32, 32], strides = [1, 1, 1]} : vector<4x32x32xbf16> to vector<1x32x32xbf16>
    %657 = vector.shape_cast %656 : vector<1x32x32xbf16> to vector<32x32xbf16>
    %cst_177 = arith.constant dense<0.000000e+00> : vector<2x32xf32>
    %658 = tpu.matmul %631, %657, %cst_177 {dimension_numbers = #tpu.dot_dimension_numbers<[1], [0], [0], [1], [0, 0, 1, 1], [], []>} : vector<2x32xbf16>, vector<32x32xbf16>, vector<2x32xf32> -> vector<2x32xf32>
    %659 = arith.addf %655, %658 : vector<2x32xf32>
    %660 = math.tanh %659 : vector<2x32xf32>
    %661 = vector.extract_strided_slice %466 {offsets = [0, 3, 0], sizes = [2, 1, 32], strides = [1, 1, 1]} : vector<2x8x32xf32> to vector<2x1x32xf32>
    %662 = vector.shape_cast %661 : vector<2x1x32xf32> to vector<2x32xf32>
    %663 = vector.extract_strided_slice %430 {offsets = [3, 0, 0], sizes = [1, 32, 32], strides = [1, 1, 1]} : vector<4x32x32xbf16> to vector<1x32x32xbf16>
    %664 = vector.shape_cast %663 : vector<1x32x32xbf16> to vector<32x32xbf16>
    %cst_178 = arith.constant dense<0.000000e+00> : vector<2x32xf32>
    %665 = tpu.matmul %631, %664, %cst_178 {dimension_numbers = #tpu.dot_dimension_numbers<[1], [0], [0], [1], [0, 0, 1, 1], [], []>} : vector<2x32xbf16>, vector<32x32xbf16>, vector<2x32xf32> -> vector<2x32xf32>
    %666 = arith.addf %662, %665 : vector<2x32xf32>
    %667 = arith.negf %666 : vector<2x32xf32>
    %668 = math.exp %667 : vector<2x32xf32>
    %cst_179 = arith.constant 1.000000e+00 : f32
    %669 = vector.broadcast %cst_179 : f32 to vector<2x32xf32>
    %670 = arith.addf %669, %668 : vector<2x32xf32>
    %671 = arith.divf %669, %670 : vector<2x32xf32>
    %672 = arith.mulf %653, %630 : vector<2x32xf32>
    %673 = arith.mulf %642, %660 : vector<2x32xf32>
    %674 = arith.addf %672, %673 : vector<2x32xf32>
    %675 = math.tanh %674 : vector<2x32xf32>
    %676 = arith.mulf %671, %675 : vector<2x32xf32>
    %c3_i32 = arith.constant 3 : i32
    %677 = vector.broadcast %c3_i32 : i32 to vector<2x1xi32>
    %678 = arith.cmpi sgt, %432, %677 : vector<2x1xi32>
    %679 = vector.shape_cast %678 : vector<2x1xi1> to vector<2x1xi1>
    %680 = vector.broadcast %679 : vector<2x1xi1> to vector<2x32xi1>
    %681 = arith.select %680, %676, %627 : vector<2x32xi1>, vector<2x32xf32>
    %682 = vector.shape_cast %678 : vector<2x1xi1> to vector<2x1xi1>
    %683 = vector.broadcast %682 : vector<2x1xi1> to vector<2x32xi1>
    %684 = arith.select %683, %674, %630 : vector<2x32xi1>, vector<2x32xf32>
    %685 = arith.truncf %681 : vector<2x32xf32> to vector<2x32xbf16>
    %686 = vector.extract_strided_slice %442 {offsets = [0, 4, 0], sizes = [2, 1, 32], strides = [1, 1, 1]} : vector<2x8x32xf32> to vector<2x1x32xf32>
    %687 = vector.shape_cast %686 : vector<2x1x32xf32> to vector<2x32xf32>
    %688 = vector.extract_strided_slice %430 {offsets = [0, 0, 0], sizes = [1, 32, 32], strides = [1, 1, 1]} : vector<4x32x32xbf16> to vector<1x32x32xbf16>
    %689 = vector.shape_cast %688 : vector<1x32x32xbf16> to vector<32x32xbf16>
    %cst_180 = arith.constant dense<0.000000e+00> : vector<2x32xf32>
    %690 = tpu.matmul %685, %689, %cst_180 {dimension_numbers = #tpu.dot_dimension_numbers<[1], [0], [0], [1], [0, 0, 1, 1], [], []>} : vector<2x32xbf16>, vector<32x32xbf16>, vector<2x32xf32> -> vector<2x32xf32>
    %691 = arith.addf %687, %690 : vector<2x32xf32>
    %692 = arith.negf %691 : vector<2x32xf32>
    %693 = math.exp %692 : vector<2x32xf32>
    %cst_181 = arith.constant 1.000000e+00 : f32
    %694 = vector.broadcast %cst_181 : f32 to vector<2x32xf32>
    %695 = arith.addf %694, %693 : vector<2x32xf32>
    %696 = arith.divf %694, %695 : vector<2x32xf32>
    %697 = vector.extract_strided_slice %450 {offsets = [0, 4, 0], sizes = [2, 1, 32], strides = [1, 1, 1]} : vector<2x8x32xf32> to vector<2x1x32xf32>
    %698 = vector.shape_cast %697 : vector<2x1x32xf32> to vector<2x32xf32>
    %699 = vector.extract_strided_slice %430 {offsets = [1, 0, 0], sizes = [1, 32, 32], strides = [1, 1, 1]} : vector<4x32x32xbf16> to vector<1x32x32xbf16>
    %700 = vector.shape_cast %699 : vector<1x32x32xbf16> to vector<32x32xbf16>
    %cst_182 = arith.constant dense<0.000000e+00> : vector<2x32xf32>
    %701 = tpu.matmul %685, %700, %cst_182 {dimension_numbers = #tpu.dot_dimension_numbers<[1], [0], [0], [1], [0, 0, 1, 1], [], []>} : vector<2x32xbf16>, vector<32x32xbf16>, vector<2x32xf32> -> vector<2x32xf32>
    %702 = arith.addf %698, %701 : vector<2x32xf32>
    %703 = arith.negf %702 : vector<2x32xf32>
    %704 = math.exp %703 : vector<2x32xf32>
    %cst_183 = arith.constant 1.000000e+00 : f32
    %705 = vector.broadcast %cst_183 : f32 to vector<2x32xf32>
    %706 = arith.addf %705, %704 : vector<2x32xf32>
    %707 = arith.divf %705, %706 : vector<2x32xf32>
    %708 = vector.extract_strided_slice %458 {offsets = [0, 4, 0], sizes = [2, 1, 32], strides = [1, 1, 1]} : vector<2x8x32xf32> to vector<2x1x32xf32>
    %709 = vector.shape_cast %708 : vector<2x1x32xf32> to vector<2x32xf32>
    %710 = vector.extract_strided_slice %430 {offsets = [2, 0, 0], sizes = [1, 32, 32], strides = [1, 1, 1]} : vector<4x32x32xbf16> to vector<1x32x32xbf16>
    %711 = vector.shape_cast %710 : vector<1x32x32xbf16> to vector<32x32xbf16>
    %cst_184 = arith.constant dense<0.000000e+00> : vector<2x32xf32>
    %712 = tpu.matmul %685, %711, %cst_184 {dimension_numbers = #tpu.dot_dimension_numbers<[1], [0], [0], [1], [0, 0, 1, 1], [], []>} : vector<2x32xbf16>, vector<32x32xbf16>, vector<2x32xf32> -> vector<2x32xf32>
    %713 = arith.addf %709, %712 : vector<2x32xf32>
    %714 = math.tanh %713 : vector<2x32xf32>
    %715 = vector.extract_strided_slice %466 {offsets = [0, 4, 0], sizes = [2, 1, 32], strides = [1, 1, 1]} : vector<2x8x32xf32> to vector<2x1x32xf32>
    %716 = vector.shape_cast %715 : vector<2x1x32xf32> to vector<2x32xf32>
    %717 = vector.extract_strided_slice %430 {offsets = [3, 0, 0], sizes = [1, 32, 32], strides = [1, 1, 1]} : vector<4x32x32xbf16> to vector<1x32x32xbf16>
    %718 = vector.shape_cast %717 : vector<1x32x32xbf16> to vector<32x32xbf16>
    %cst_185 = arith.constant dense<0.000000e+00> : vector<2x32xf32>
    %719 = tpu.matmul %685, %718, %cst_185 {dimension_numbers = #tpu.dot_dimension_numbers<[1], [0], [0], [1], [0, 0, 1, 1], [], []>} : vector<2x32xbf16>, vector<32x32xbf16>, vector<2x32xf32> -> vector<2x32xf32>
    %720 = arith.addf %716, %719 : vector<2x32xf32>
    %721 = arith.negf %720 : vector<2x32xf32>
    %722 = math.exp %721 : vector<2x32xf32>
    %cst_186 = arith.constant 1.000000e+00 : f32
    %723 = vector.broadcast %cst_186 : f32 to vector<2x32xf32>
    %724 = arith.addf %723, %722 : vector<2x32xf32>
    %725 = arith.divf %723, %724 : vector<2x32xf32>
    %726 = arith.mulf %707, %684 : vector<2x32xf32>
    %727 = arith.mulf %696, %714 : vector<2x32xf32>
    %728 = arith.addf %726, %727 : vector<2x32xf32>
    %729 = math.tanh %728 : vector<2x32xf32>
    %730 = arith.mulf %725, %729 : vector<2x32xf32>
    %c4_i32 = arith.constant 4 : i32
    %731 = vector.broadcast %c4_i32 : i32 to vector<2x1xi32>
    %732 = arith.cmpi sgt, %432, %731 : vector<2x1xi32>
    %733 = vector.shape_cast %732 : vector<2x1xi1> to vector<2x1xi1>
    %734 = vector.broadcast %733 : vector<2x1xi1> to vector<2x32xi1>
    %735 = arith.select %734, %730, %681 : vector<2x32xi1>, vector<2x32xf32>
    %736 = vector.shape_cast %732 : vector<2x1xi1> to vector<2x1xi1>
    %737 = vector.broadcast %736 : vector<2x1xi1> to vector<2x32xi1>
    %738 = arith.select %737, %728, %684 : vector<2x32xi1>, vector<2x32xf32>
    %739 = arith.truncf %735 : vector<2x32xf32> to vector<2x32xbf16>
    %740 = vector.extract_strided_slice %442 {offsets = [0, 5, 0], sizes = [2, 1, 32], strides = [1, 1, 1]} : vector<2x8x32xf32> to vector<2x1x32xf32>
    %741 = vector.shape_cast %740 : vector<2x1x32xf32> to vector<2x32xf32>
    %742 = vector.extract_strided_slice %430 {offsets = [0, 0, 0], sizes = [1, 32, 32], strides = [1, 1, 1]} : vector<4x32x32xbf16> to vector<1x32x32xbf16>
    %743 = vector.shape_cast %742 : vector<1x32x32xbf16> to vector<32x32xbf16>
    %cst_187 = arith.constant dense<0.000000e+00> : vector<2x32xf32>
    %744 = tpu.matmul %739, %743, %cst_187 {dimension_numbers = #tpu.dot_dimension_numbers<[1], [0], [0], [1], [0, 0, 1, 1], [], []>} : vector<2x32xbf16>, vector<32x32xbf16>, vector<2x32xf32> -> vector<2x32xf32>
    %745 = arith.addf %741, %744 : vector<2x32xf32>
    %746 = arith.negf %745 : vector<2x32xf32>
    %747 = math.exp %746 : vector<2x32xf32>
    %cst_188 = arith.constant 1.000000e+00 : f32
    %748 = vector.broadcast %cst_188 : f32 to vector<2x32xf32>
    %749 = arith.addf %748, %747 : vector<2x32xf32>
    %750 = arith.divf %748, %749 : vector<2x32xf32>
    %751 = vector.extract_strided_slice %450 {offsets = [0, 5, 0], sizes = [2, 1, 32], strides = [1, 1, 1]} : vector<2x8x32xf32> to vector<2x1x32xf32>
    %752 = vector.shape_cast %751 : vector<2x1x32xf32> to vector<2x32xf32>
    %753 = vector.extract_strided_slice %430 {offsets = [1, 0, 0], sizes = [1, 32, 32], strides = [1, 1, 1]} : vector<4x32x32xbf16> to vector<1x32x32xbf16>
    %754 = vector.shape_cast %753 : vector<1x32x32xbf16> to vector<32x32xbf16>
    %cst_189 = arith.constant dense<0.000000e+00> : vector<2x32xf32>
    %755 = tpu.matmul %739, %754, %cst_189 {dimension_numbers = #tpu.dot_dimension_numbers<[1], [0], [0], [1], [0, 0, 1, 1], [], []>} : vector<2x32xbf16>, vector<32x32xbf16>, vector<2x32xf32> -> vector<2x32xf32>
    %756 = arith.addf %752, %755 : vector<2x32xf32>
    %757 = arith.negf %756 : vector<2x32xf32>
    %758 = math.exp %757 : vector<2x32xf32>
    %cst_190 = arith.constant 1.000000e+00 : f32
    %759 = vector.broadcast %cst_190 : f32 to vector<2x32xf32>
    %760 = arith.addf %759, %758 : vector<2x32xf32>
    %761 = arith.divf %759, %760 : vector<2x32xf32>
    %762 = vector.extract_strided_slice %458 {offsets = [0, 5, 0], sizes = [2, 1, 32], strides = [1, 1, 1]} : vector<2x8x32xf32> to vector<2x1x32xf32>
    %763 = vector.shape_cast %762 : vector<2x1x32xf32> to vector<2x32xf32>
    %764 = vector.extract_strided_slice %430 {offsets = [2, 0, 0], sizes = [1, 32, 32], strides = [1, 1, 1]} : vector<4x32x32xbf16> to vector<1x32x32xbf16>
    %765 = vector.shape_cast %764 : vector<1x32x32xbf16> to vector<32x32xbf16>
    %cst_191 = arith.constant dense<0.000000e+00> : vector<2x32xf32>
    %766 = tpu.matmul %739, %765, %cst_191 {dimension_numbers = #tpu.dot_dimension_numbers<[1], [0], [0], [1], [0, 0, 1, 1], [], []>} : vector<2x32xbf16>, vector<32x32xbf16>, vector<2x32xf32> -> vector<2x32xf32>
    %767 = arith.addf %763, %766 : vector<2x32xf32>
    %768 = math.tanh %767 : vector<2x32xf32>
    %769 = vector.extract_strided_slice %466 {offsets = [0, 5, 0], sizes = [2, 1, 32], strides = [1, 1, 1]} : vector<2x8x32xf32> to vector<2x1x32xf32>
    %770 = vector.shape_cast %769 : vector<2x1x32xf32> to vector<2x32xf32>
    %771 = vector.extract_strided_slice %430 {offsets = [3, 0, 0], sizes = [1, 32, 32], strides = [1, 1, 1]} : vector<4x32x32xbf16> to vector<1x32x32xbf16>
    %772 = vector.shape_cast %771 : vector<1x32x32xbf16> to vector<32x32xbf16>
    %cst_192 = arith.constant dense<0.000000e+00> : vector<2x32xf32>
    %773 = tpu.matmul %739, %772, %cst_192 {dimension_numbers = #tpu.dot_dimension_numbers<[1], [0], [0], [1], [0, 0, 1, 1], [], []>} : vector<2x32xbf16>, vector<32x32xbf16>, vector<2x32xf32> -> vector<2x32xf32>
    %774 = arith.addf %770, %773 : vector<2x32xf32>
    %775 = arith.negf %774 : vector<2x32xf32>
    %776 = math.exp %775 : vector<2x32xf32>
    %cst_193 = arith.constant 1.000000e+00 : f32
    %777 = vector.broadcast %cst_193 : f32 to vector<2x32xf32>
    %778 = arith.addf %777, %776 : vector<2x32xf32>
    %779 = arith.divf %777, %778 : vector<2x32xf32>
    %780 = arith.mulf %761, %738 : vector<2x32xf32>
    %781 = arith.mulf %750, %768 : vector<2x32xf32>
    %782 = arith.addf %780, %781 : vector<2x32xf32>
    %783 = math.tanh %782 : vector<2x32xf32>
    %784 = arith.mulf %779, %783 : vector<2x32xf32>
    %c5_i32 = arith.constant 5 : i32
    %785 = vector.broadcast %c5_i32 : i32 to vector<2x1xi32>
    %786 = arith.cmpi sgt, %432, %785 : vector<2x1xi32>
    %787 = vector.shape_cast %786 : vector<2x1xi1> to vector<2x1xi1>
    %788 = vector.broadcast %787 : vector<2x1xi1> to vector<2x32xi1>
    %789 = arith.select %788, %784, %735 : vector<2x32xi1>, vector<2x32xf32>
    %790 = vector.shape_cast %786 : vector<2x1xi1> to vector<2x1xi1>
    %791 = vector.broadcast %790 : vector<2x1xi1> to vector<2x32xi1>
    %792 = arith.select %791, %782, %738 : vector<2x32xi1>, vector<2x32xf32>
    %793 = arith.truncf %789 : vector<2x32xf32> to vector<2x32xbf16>
    %794 = vector.extract_strided_slice %442 {offsets = [0, 6, 0], sizes = [2, 1, 32], strides = [1, 1, 1]} : vector<2x8x32xf32> to vector<2x1x32xf32>
    %795 = vector.shape_cast %794 : vector<2x1x32xf32> to vector<2x32xf32>
    %796 = vector.extract_strided_slice %430 {offsets = [0, 0, 0], sizes = [1, 32, 32], strides = [1, 1, 1]} : vector<4x32x32xbf16> to vector<1x32x32xbf16>
    %797 = vector.shape_cast %796 : vector<1x32x32xbf16> to vector<32x32xbf16>
    %cst_194 = arith.constant dense<0.000000e+00> : vector<2x32xf32>
    %798 = tpu.matmul %793, %797, %cst_194 {dimension_numbers = #tpu.dot_dimension_numbers<[1], [0], [0], [1], [0, 0, 1, 1], [], []>} : vector<2x32xbf16>, vector<32x32xbf16>, vector<2x32xf32> -> vector<2x32xf32>
    %799 = arith.addf %795, %798 : vector<2x32xf32>
    %800 = arith.negf %799 : vector<2x32xf32>
    %801 = math.exp %800 : vector<2x32xf32>
    %cst_195 = arith.constant 1.000000e+00 : f32
    %802 = vector.broadcast %cst_195 : f32 to vector<2x32xf32>
    %803 = arith.addf %802, %801 : vector<2x32xf32>
    %804 = arith.divf %802, %803 : vector<2x32xf32>
    %805 = vector.extract_strided_slice %450 {offsets = [0, 6, 0], sizes = [2, 1, 32], strides = [1, 1, 1]} : vector<2x8x32xf32> to vector<2x1x32xf32>
    %806 = vector.shape_cast %805 : vector<2x1x32xf32> to vector<2x32xf32>
    %807 = vector.extract_strided_slice %430 {offsets = [1, 0, 0], sizes = [1, 32, 32], strides = [1, 1, 1]} : vector<4x32x32xbf16> to vector<1x32x32xbf16>
    %808 = vector.shape_cast %807 : vector<1x32x32xbf16> to vector<32x32xbf16>
    %cst_196 = arith.constant dense<0.000000e+00> : vector<2x32xf32>
    %809 = tpu.matmul %793, %808, %cst_196 {dimension_numbers = #tpu.dot_dimension_numbers<[1], [0], [0], [1], [0, 0, 1, 1], [], []>} : vector<2x32xbf16>, vector<32x32xbf16>, vector<2x32xf32> -> vector<2x32xf32>
    %810 = arith.addf %806, %809 : vector<2x32xf32>
    %811 = arith.negf %810 : vector<2x32xf32>
    %812 = math.exp %811 : vector<2x32xf32>
    %cst_197 = arith.constant 1.000000e+00 : f32
    %813 = vector.broadcast %cst_197 : f32 to vector<2x32xf32>
    %814 = arith.addf %813, %812 : vector<2x32xf32>
    %815 = arith.divf %813, %814 : vector<2x32xf32>
    %816 = vector.extract_strided_slice %458 {offsets = [0, 6, 0], sizes = [2, 1, 32], strides = [1, 1, 1]} : vector<2x8x32xf32> to vector<2x1x32xf32>
    %817 = vector.shape_cast %816 : vector<2x1x32xf32> to vector<2x32xf32>
    %818 = vector.extract_strided_slice %430 {offsets = [2, 0, 0], sizes = [1, 32, 32], strides = [1, 1, 1]} : vector<4x32x32xbf16> to vector<1x32x32xbf16>
    %819 = vector.shape_cast %818 : vector<1x32x32xbf16> to vector<32x32xbf16>
    %cst_198 = arith.constant dense<0.000000e+00> : vector<2x32xf32>
    %820 = tpu.matmul %793, %819, %cst_198 {dimension_numbers = #tpu.dot_dimension_numbers<[1], [0], [0], [1], [0, 0, 1, 1], [], []>} : vector<2x32xbf16>, vector<32x32xbf16>, vector<2x32xf32> -> vector<2x32xf32>
    %821 = arith.addf %817, %820 : vector<2x32xf32>
    %822 = math.tanh %821 : vector<2x32xf32>
    %823 = vector.extract_strided_slice %466 {offsets = [0, 6, 0], sizes = [2, 1, 32], strides = [1, 1, 1]} : vector<2x8x32xf32> to vector<2x1x32xf32>
    %824 = vector.shape_cast %823 : vector<2x1x32xf32> to vector<2x32xf32>
    %825 = vector.extract_strided_slice %430 {offsets = [3, 0, 0], sizes = [1, 32, 32], strides = [1, 1, 1]} : vector<4x32x32xbf16> to vector<1x32x32xbf16>
    %826 = vector.shape_cast %825 : vector<1x32x32xbf16> to vector<32x32xbf16>
    %cst_199 = arith.constant dense<0.000000e+00> : vector<2x32xf32>
    %827 = tpu.matmul %793, %826, %cst_199 {dimension_numbers = #tpu.dot_dimension_numbers<[1], [0], [0], [1], [0, 0, 1, 1], [], []>} : vector<2x32xbf16>, vector<32x32xbf16>, vector<2x32xf32> -> vector<2x32xf32>
    %828 = arith.addf %824, %827 : vector<2x32xf32>
    %829 = arith.negf %828 : vector<2x32xf32>
    %830 = math.exp %829 : vector<2x32xf32>
    %cst_200 = arith.constant 1.000000e+00 : f32
    %831 = vector.broadcast %cst_200 : f32 to vector<2x32xf32>
    %832 = arith.addf %831, %830 : vector<2x32xf32>
    %833 = arith.divf %831, %832 : vector<2x32xf32>
    %834 = arith.mulf %815, %792 : vector<2x32xf32>
    %835 = arith.mulf %804, %822 : vector<2x32xf32>
    %836 = arith.addf %834, %835 : vector<2x32xf32>
    %837 = math.tanh %836 : vector<2x32xf32>
    %838 = arith.mulf %833, %837 : vector<2x32xf32>
    %c6_i32 = arith.constant 6 : i32
    %839 = vector.broadcast %c6_i32 : i32 to vector<2x1xi32>
    %840 = arith.cmpi sgt, %432, %839 : vector<2x1xi32>
    %841 = vector.shape_cast %840 : vector<2x1xi1> to vector<2x1xi1>
    %842 = vector.broadcast %841 : vector<2x1xi1> to vector<2x32xi1>
    %843 = arith.select %842, %838, %789 : vector<2x32xi1>, vector<2x32xf32>
    %844 = vector.shape_cast %840 : vector<2x1xi1> to vector<2x1xi1>
    %845 = vector.broadcast %844 : vector<2x1xi1> to vector<2x32xi1>
    %846 = arith.select %845, %836, %792 : vector<2x32xi1>, vector<2x32xf32>
    %847 = arith.truncf %843 : vector<2x32xf32> to vector<2x32xbf16>
    %848 = vector.extract_strided_slice %442 {offsets = [0, 7, 0], sizes = [2, 1, 32], strides = [1, 1, 1]} : vector<2x8x32xf32> to vector<2x1x32xf32>
    %849 = vector.shape_cast %848 : vector<2x1x32xf32> to vector<2x32xf32>
    %850 = vector.extract_strided_slice %430 {offsets = [0, 0, 0], sizes = [1, 32, 32], strides = [1, 1, 1]} : vector<4x32x32xbf16> to vector<1x32x32xbf16>
    %851 = vector.shape_cast %850 : vector<1x32x32xbf16> to vector<32x32xbf16>
    %cst_201 = arith.constant dense<0.000000e+00> : vector<2x32xf32>
    %852 = tpu.matmul %847, %851, %cst_201 {dimension_numbers = #tpu.dot_dimension_numbers<[1], [0], [0], [1], [0, 0, 1, 1], [], []>} : vector<2x32xbf16>, vector<32x32xbf16>, vector<2x32xf32> -> vector<2x32xf32>
    %853 = arith.addf %849, %852 : vector<2x32xf32>
    %854 = arith.negf %853 : vector<2x32xf32>
    %855 = math.exp %854 : vector<2x32xf32>
    %cst_202 = arith.constant 1.000000e+00 : f32
    %856 = vector.broadcast %cst_202 : f32 to vector<2x32xf32>
    %857 = arith.addf %856, %855 : vector<2x32xf32>
    %858 = arith.divf %856, %857 : vector<2x32xf32>
    %859 = vector.extract_strided_slice %450 {offsets = [0, 7, 0], sizes = [2, 1, 32], strides = [1, 1, 1]} : vector<2x8x32xf32> to vector<2x1x32xf32>
    %860 = vector.shape_cast %859 : vector<2x1x32xf32> to vector<2x32xf32>
    %861 = vector.extract_strided_slice %430 {offsets = [1, 0, 0], sizes = [1, 32, 32], strides = [1, 1, 1]} : vector<4x32x32xbf16> to vector<1x32x32xbf16>
    %862 = vector.shape_cast %861 : vector<1x32x32xbf16> to vector<32x32xbf16>
    %cst_203 = arith.constant dense<0.000000e+00> : vector<2x32xf32>
    %863 = tpu.matmul %847, %862, %cst_203 {dimension_numbers = #tpu.dot_dimension_numbers<[1], [0], [0], [1], [0, 0, 1, 1], [], []>} : vector<2x32xbf16>, vector<32x32xbf16>, vector<2x32xf32> -> vector<2x32xf32>
    %864 = arith.addf %860, %863 : vector<2x32xf32>
    %865 = arith.negf %864 : vector<2x32xf32>
    %866 = math.exp %865 : vector<2x32xf32>
    %cst_204 = arith.constant 1.000000e+00 : f32
    %867 = vector.broadcast %cst_204 : f32 to vector<2x32xf32>
    %868 = arith.addf %867, %866 : vector<2x32xf32>
    %869 = arith.divf %867, %868 : vector<2x32xf32>
    %870 = vector.extract_strided_slice %458 {offsets = [0, 7, 0], sizes = [2, 1, 32], strides = [1, 1, 1]} : vector<2x8x32xf32> to vector<2x1x32xf32>
    %871 = vector.shape_cast %870 : vector<2x1x32xf32> to vector<2x32xf32>
    %872 = vector.extract_strided_slice %430 {offsets = [2, 0, 0], sizes = [1, 32, 32], strides = [1, 1, 1]} : vector<4x32x32xbf16> to vector<1x32x32xbf16>
    %873 = vector.shape_cast %872 : vector<1x32x32xbf16> to vector<32x32xbf16>
    %cst_205 = arith.constant dense<0.000000e+00> : vector<2x32xf32>
    %874 = tpu.matmul %847, %873, %cst_205 {dimension_numbers = #tpu.dot_dimension_numbers<[1], [0], [0], [1], [0, 0, 1, 1], [], []>} : vector<2x32xbf16>, vector<32x32xbf16>, vector<2x32xf32> -> vector<2x32xf32>
    %875 = arith.addf %871, %874 : vector<2x32xf32>
    %876 = math.tanh %875 : vector<2x32xf32>
    %877 = vector.extract_strided_slice %466 {offsets = [0, 7, 0], sizes = [2, 1, 32], strides = [1, 1, 1]} : vector<2x8x32xf32> to vector<2x1x32xf32>
    %878 = vector.shape_cast %877 : vector<2x1x32xf32> to vector<2x32xf32>
    %879 = vector.extract_strided_slice %430 {offsets = [3, 0, 0], sizes = [1, 32, 32], strides = [1, 1, 1]} : vector<4x32x32xbf16> to vector<1x32x32xbf16>
    %880 = vector.shape_cast %879 : vector<1x32x32xbf16> to vector<32x32xbf16>
    %cst_206 = arith.constant dense<0.000000e+00> : vector<2x32xf32>
    %881 = tpu.matmul %847, %880, %cst_206 {dimension_numbers = #tpu.dot_dimension_numbers<[1], [0], [0], [1], [0, 0, 1, 1], [], []>} : vector<2x32xbf16>, vector<32x32xbf16>, vector<2x32xf32> -> vector<2x32xf32>
    %882 = arith.addf %878, %881 : vector<2x32xf32>
    %883 = arith.negf %882 : vector<2x32xf32>
    %884 = math.exp %883 : vector<2x32xf32>
    %cst_207 = arith.constant 1.000000e+00 : f32
    %885 = vector.broadcast %cst_207 : f32 to vector<2x32xf32>
    %886 = arith.addf %885, %884 : vector<2x32xf32>
    %887 = arith.divf %885, %886 : vector<2x32xf32>
    %888 = arith.mulf %869, %846 : vector<2x32xf32>
    %889 = arith.mulf %858, %876 : vector<2x32xf32>
    %890 = arith.addf %888, %889 : vector<2x32xf32>
    %891 = math.tanh %890 : vector<2x32xf32>
    %892 = arith.mulf %887, %891 : vector<2x32xf32>
    %c7_i32 = arith.constant 7 : i32
    %893 = vector.broadcast %c7_i32 : i32 to vector<2x1xi32>
    %894 = arith.cmpi sgt, %432, %893 : vector<2x1xi32>
    %895 = vector.shape_cast %894 : vector<2x1xi1> to vector<2x1xi1>
    %896 = vector.broadcast %895 : vector<2x1xi1> to vector<2x32xi1>
    %897 = arith.select %896, %892, %843 : vector<2x32xi1>, vector<2x32xf32>
    %c0_208 = arith.constant 0 : index
    %c0_209 = arith.constant 0 : index
    %898 = vector.load %arg23[%c0_208, %c0_209] : memref<32x3xf32, #tpu.memory_space<vmem>>, vector<32x3xf32>
    %cst_210 = arith.constant dense<0.000000e+00> : vector<2x3xf32>
    %899 = tpu.matmul %897, %898, %cst_210 {dimension_numbers = #tpu.dot_dimension_numbers<[1], [0], [0], [1], [0, 0, 1, 1], [], []>} : vector<2x32xf32>, vector<32x3xf32>, vector<2x3xf32> -> vector<2x3xf32>
    %c0_211 = arith.constant 0 : index
    %c0_212 = arith.constant 0 : index
    %900 = vector.load %arg24[%c0_211, %c0_212] : memref<1x3xf32, #tpu.memory_space<vmem>>, vector<1x3xf32>
    %901 = vector.broadcast %900 : vector<1x3xf32> to vector<2x3xf32>
    %902 = arith.addf %899, %901 : vector<2x3xf32>
    %c0_213 = arith.constant 0 : index
    %c0_214 = arith.constant 0 : index
    %903 = vector.load %arg25[%c0_213, %c0_214] : memref<2x3xf32, #tpu.memory_space<vmem>>, vector<2x3xf32>
    tpu.vector_store %arg25[%c0_213, %c0_214], %902 {strides = array<i32>} : memref<2x3xf32, #tpu.memory_space<vmem>>, vector<2x3xf32>,
    return
  }
}

</mosaic_0001>

<llo_original>
// kernel: bert_lstm_forward.1
$region0: #{bert_lstm_forward.1}
  #allocation0 [shape = 'u32[]', space=smem, size = 0x4, offset = 0x4, fixed_abs, tag = 'smem constant byte address 0x4 - core index']
  #allocation1 [shape = 'u32[144,128]{1,0:T(1,128)}', space=vmem, size = 0x12000, scoped, tag = 'internal scratch']
  %s0 = inlined_call_operand.vmem [shape: f32[2,8,32], index: 0, kind: input, shape index: {}]
  %s1 = inlined_call_operand.vmem [shape: s32[2,1], index: 1, kind: input, shape index: {}]
  %s2 = inlined_call_operand.vmem [shape: f32[1,32], index: 2, kind: input, shape index: {}]
  %s3 = inlined_call_operand.vmem [shape: f32[1,32], index: 3, kind: input, shape index: {}]
  %s4 = inlined_call_operand.vmem [shape: bf16[2,2,32,16], index: 4, kind: input, shape index: {}]
  %s5 = inlined_call_operand.vmem [shape: f32[2,2,1,16], index: 5, kind: input, shape index: {}]
  %s6 = inlined_call_operand.vmem [shape: bf16[2,2,32,16], index: 6, kind: input, shape index: {}]
  %s7 = inlined_call_operand.vmem [shape: f32[2,2,1,16], index: 7, kind: input, shape index: {}]
  %s8 = inlined_call_operand.vmem [shape: bf16[2,2,32,16], index: 8, kind: input, shape index: {}]
  %s9 = inlined_call_operand.vmem [shape: f32[2,2,1,16], index: 9, kind: input, shape index: {}]
  %s10 = inlined_call_operand.vmem [shape: bf16[2,2,16,32], index: 10, kind: input, shape index: {}]
  %s11 = inlined_call_operand.vmem [shape: f32[2,1,32], index: 11, kind: input, shape index: {}]
  %s12 = inlined_call_operand.vmem [shape: f32[2,1,32], index: 12, kind: input, shape index: {}]
  %s13 = inlined_call_operand.vmem [shape: f32[2,1,32], index: 13, kind: input, shape index: {}]
  %s14 = inlined_call_operand.vmem [shape: bf16[2,32,64], index: 14, kind: input, shape index: {}]
  %s15 = inlined_call_operand.vmem [shape: f32[2,1,64], index: 15, kind: input, shape index: {}]
  %s16 = inlined_call_operand.vmem [shape: bf16[2,64,32], index: 16, kind: input, shape index: {}]
  %s17 = inlined_call_operand.vmem [shape: f32[2,1,32], index: 17, kind: input, shape index: {}]
  %s18 = inlined_call_operand.vmem [shape: f32[2,1,32], index: 18, kind: input, shape index: {}]
  %s19 = inlined_call_operand.vmem [shape: f32[2,1,32], index: 19, kind: input, shape index: {}]
  %s20 = inlined_call_operand.vmem [shape: bf16[4,32,32], index: 20, kind: input, shape index: {}]
  %s21 = inlined_call_operand.vmem [shape: bf16[4,32,32], index: 21, kind: input, shape index: {}]
  %s22 = inlined_call_operand.vmem [shape: f32[4,1,32], index: 22, kind: input, shape index: {}]
  %s23 = inlined_call_operand.vmem [shape: f32[32,3], index: 23, kind: input, shape index: {}]
  %s24 = inlined_call_operand.vmem [shape: f32[1,3], index: 24, kind: input, shape index: {}]
  %s25 = inlined_call_operand.hbm [shape: f32[2,3], index: 25, kind: output, shape index: {}]
  %s26 = sld [smem:[#allocation0]]
  $region110: #{bert_lstm_forward.1} parent=0
    _
  %s28 = ssub.s32 1, %s26
  %s29 = scalar_select 0, %s28, %s26
  $region1: #{bert_lstm_forward.1} parent=0
    #allocation2 [shape = 'u8[1024]{0}', space=vmem, size = 0x400, scoped, tag = 'output window, operand 0, single buffered']
    #allocation3 [shape = 's32[1]{0}', space=sflag, size = 0x4, scoped, tag = 'scoped memory for bert_lstm_forward.1']
    %30 = vsyncpa [#allocation3], 0
    // Predicated region
    $region2: #{bert_lstm_forward.1} parent=1 // pred_check
      _
    $region3: #{bert_lstm_forward.1} parent=1 // pred_check_branch
      %32 = sbr.rel (0) target = $region5
    $region4: #{bert_lstm_forward.1} parent=1 // pred_region
      _
    $region5: #{bert_lstm_forward.1} parent=1 // pred_fallthru
      _
    // Predicated region
    $region6: #{bert_lstm_forward.1} parent=1 // pred_check
      _
    $region7: #{bert_lstm_forward.1} parent=1 // pred_check_branch
      %34 = sbr.rel (0) target = $region9
    $region8: #{bert_lstm_forward.1} parent=1 // pred_region
      _
    $region9: #{bert_lstm_forward.1} parent=1 // pred_fallthru
      _
    // Predicated region
    $region10: #{bert_lstm_forward.1} parent=1 // pred_check
      _
    $region11: #{bert_lstm_forward.1} parent=1 // pred_check_branch
      %36 = sbr.rel (0) target = $region13
    $region12: #{bert_lstm_forward.1} parent=1 // pred_region
      _
    $region13: #{bert_lstm_forward.1} parent=1 // pred_fallthru
      _
    // Predicated region
    $region14: #{bert_lstm_forward.1} parent=1 // pred_check
      _
    $region15: #{bert_lstm_forward.1} parent=1 // pred_check_branch
      %38 = sbr.rel (0) target = $region17
    $region16: #{bert_lstm_forward.1} parent=1 // pred_region
      _
    $region17: #{bert_lstm_forward.1} parent=1 // pred_fallthru
      _
    // Predicated region
    $region18: #{bert_lstm_forward.1} parent=1 // pred_check
      _
    $region19: #{bert_lstm_forward.1} parent=1 // pred_check_branch
      %40 = sbr.rel (0) target = $region21
    $region20: #{bert_lstm_forward.1} parent=1 // pred_region
      _
    $region21: #{bert_lstm_forward.1} parent=1 // pred_fallthru
      _
    // Predicated region
    $region22: #{bert_lstm_forward.1} parent=1 // pred_check
      _
    $region23: #{bert_lstm_forward.1} parent=1 // pred_check_branch
      %42 = sbr.rel (0) target = $region25
    $region24: #{bert_lstm_forward.1} parent=1 // pred_region
      _
    $region25: #{bert_lstm_forward.1} parent=1 // pred_fallthru
      _
    // Predicated region
    $region26: #{bert_lstm_forward.1} parent=1 // pred_check
      _
    $region27: #{bert_lstm_forward.1} parent=1 // pred_check_branch
      %44 = sbr.rel (0) target = $region29
    $region28: #{bert_lstm_forward.1} parent=1 // pred_region
      _
    $region29: #{bert_lstm_forward.1} parent=1 // pred_fallthru
      _
    // Predicated region
    $region30: #{bert_lstm_forward.1} parent=1 // pred_check
      _
    $region31: #{bert_lstm_forward.1} parent=1 // pred_check_branch
      %46 = sbr.rel (0) target = $region33
    $region32: #{bert_lstm_forward.1} parent=1 // pred_region
      _
    $region33: #{bert_lstm_forward.1} parent=1 // pred_fallthru
      _
    // Predicated region
    $region34: #{bert_lstm_forward.1} parent=1 // pred_check
      _
    $region35: #{bert_lstm_forward.1} parent=1 // pred_check_branch
      %48 = sbr.rel (0) target = $region37
    $region36: #{bert_lstm_forward.1} parent=1 // pred_region
      _
    $region37: #{bert_lstm_forward.1} parent=1 // pred_fallthru
      _
    // Predicated region
    $region38: #{bert_lstm_forward.1} parent=1 // pred_check
      _
    $region39: #{bert_lstm_forward.1} parent=1 // pred_check_branch
      %50 = sbr.rel (0) target = $region41
    $region40: #{bert_lstm_forward.1} parent=1 // pred_region
      _
    $region41: #{bert_lstm_forward.1} parent=1 // pred_fallthru
      _
    // Predicated region
    $region42: #{bert_lstm_forward.1} parent=1 // pred_check
      _
    $region43: #{bert_lstm_forward.1} parent=1 // pred_check_branch
      %52 = sbr.rel (0) target = $region45
    $region44: #{bert_lstm_forward.1} parent=1 // pred_region
      _
    $region45: #{bert_lstm_forward.1} parent=1 // pred_fallthru
      _
    // Predicated region
    $region46: #{bert_lstm_forward.1} parent=1 // pred_check
      _
    $region47: #{bert_lstm_forward.1} parent=1 // pred_check_branch
      %54 = sbr.rel (0) target = $region49
    $region48: #{bert_lstm_forward.1} parent=1 // pred_region
      _
    $region49: #{bert_lstm_forward.1} parent=1 // pred_fallthru
      _
    // Predicated region
    $region50: #{bert_lstm_forward.1} parent=1 // pred_check
      _
    $region51: #{bert_lstm_forward.1} parent=1 // pred_check_branch
      %56 = sbr.rel (0) target = $region53
    $region52: #{bert_lstm_forward.1} parent=1 // pred_region
      _
    $region53: #{bert_lstm_forward.1} parent=1 // pred_fallthru
      _
    // Predicated region
    $region54: #{bert_lstm_forward.1} parent=1 // pred_check
      _
    $region55: #{bert_lstm_forward.1} parent=1 // pred_check_branch
      %58 = sbr.rel (0) target = $region57
    $region56: #{bert_lstm_forward.1} parent=1 // pred_region
      _
    $region57: #{bert_lstm_forward.1} parent=1 // pred_fallthru
      _
    // Predicated region
    $region58: #{bert_lstm_forward.1} parent=1 // pred_check
      _
    $region59: #{bert_lstm_forward.1} parent=1 // pred_check_branch
      %60 = sbr.rel (0) target = $region61
    $region60: #{bert_lstm_forward.1} parent=1 // pred_region
      _
    $region61: #{bert_lstm_forward.1} parent=1 // pred_fallthru
      _
    // Predicated region
    $region62: #{bert_lstm_forward.1} parent=1 // pred_check
      _
    $region63: #{bert_lstm_forward.1} parent=1 // pred_check_branch
      %62 = sbr.rel (0) target = $region65
    $region64: #{bert_lstm_forward.1} parent=1 // pred_region
      _
    $region65: #{bert_lstm_forward.1} parent=1 // pred_fallthru
      _
    // Predicated region
    $region66: #{bert_lstm_forward.1} parent=1 // pred_check
      _
    $region67: #{bert_lstm_forward.1} parent=1 // pred_check_branch
      %64 = sbr.rel (0) target = $region69
    $region68: #{bert_lstm_forward.1} parent=1 // pred_region
      _
    $region69: #{bert_lstm_forward.1} parent=1 // pred_fallthru
      _
    // Predicated region
    $region70: #{bert_lstm_forward.1} parent=1 // pred_check
      _
    $region71: #{bert_lstm_forward.1} parent=1 // pred_check_branch
      %66 = sbr.rel (0) target = $region73
    $region72: #{bert_lstm_forward.1} parent=1 // pred_region
      _
    $region73: #{bert_lstm_forward.1} parent=1 // pred_fallthru
      _
    // Predicated region
    $region74: #{bert_lstm_forward.1} parent=1 // pred_check
      _
    $region75: #{bert_lstm_forward.1} parent=1 // pred_check_branch
      %68 = sbr.rel (0) target = $region77
    $region76: #{bert_lstm_forward.1} parent=1 // pred_region
      _
    $region77: #{bert_lstm_forward.1} parent=1 // pred_fallthru
      _
    // Predicated region
    $region78: #{bert_lstm_forward.1} parent=1 // pred_check
      _
    $region79: #{bert_lstm_forward.1} parent=1 // pred_check_branch
      %70 = sbr.rel (0) target = $region81
    $region80: #{bert_lstm_forward.1} parent=1 // pred_region
      _
    $region81: #{bert_lstm_forward.1} parent=1 // pred_fallthru
      _
    // Predicated region
    $region82: #{bert_lstm_forward.1} parent=1 // pred_check
      _
    $region83: #{bert_lstm_forward.1} parent=1 // pred_check_branch
      %72 = sbr.rel (0) target = $region85
    $region84: #{bert_lstm_forward.1} parent=1 // pred_region
      _
    $region85: #{bert_lstm_forward.1} parent=1 // pred_fallthru
      _
    // Predicated region
    $region86: #{bert_lstm_forward.1} parent=1 // pred_check
      _
    $region87: #{bert_lstm_forward.1} parent=1 // pred_check_branch
      %74 = sbr.rel (0) target = $region89
    $region88: #{bert_lstm_forward.1} parent=1 // pred_region
      _
    $region89: #{bert_lstm_forward.1} parent=1 // pred_fallthru
      _
    // Predicated region
    $region90: #{bert_lstm_forward.1} parent=1 // pred_check
      _
    $region91: #{bert_lstm_forward.1} parent=1 // pred_check_branch
      %76 = sbr.rel (0) target = $region93
    $region92: #{bert_lstm_forward.1} parent=1 // pred_region
      _
    $region93: #{bert_lstm_forward.1} parent=1 // pred_fallthru
      _
    // Predicated region
    $region94: #{bert_lstm_forward.1} parent=1 // pred_check
      _
    $region95: #{bert_lstm_forward.1} parent=1 // pred_check_branch
      %78 = sbr.rel (0) target = $region97
    $region96: #{bert_lstm_forward.1} parent=1 // pred_region
      _
    $region97: #{bert_lstm_forward.1} parent=1 // pred_fallthru
      _
    // Predicated region
    $region98: #{bert_lstm_forward.1} parent=1 // pred_check
      _
    $region99: #{bert_lstm_forward.1} parent=1 // pred_check_branch
      %80 = sbr.rel (0) target = $region101
    $region100: #{bert_lstm_forward.1} parent=1 // pred_region
      _
    $region101: #{bert_lstm_forward.1} parent=1 // pred_fallthru
      _
    %v82 = vld [vmem:[%s0] sm:$0xff]
    %v83 = vld [vmem:[%s0 + $0x8] sm:$0xff]
    %v84 = vld [vmem:[%s2] sm:$0x1]
    %v85 = vld [vmem:[%s3] sm:$0x1]
    %vm86 = vcmask 261120
    %v87 = vsel %vm86, %v82, 0.0
    %88 = vadd.xlane.f32.xlu0 %v87
    %v89 = vpop.xlane.xlu0 %88
    %v90 = vsel %vm86, %v83, 0.0
    %91 = vadd.xlane.f32.xlu0 %v90
    %v92 = vpop.xlane.xlu0 %91
    %v93 = vrcp.pop 32.0
    %v94 = vmul.f32 %v89, %v93
    %v95 = vmul.f32 %v92, %v93
    %v96 = vsub.f32 %v82, %v94
    %v97 = vsub.f32 %v83, %v95
    %v98 = vmul.f32 %v96, %v96
    %v99 = vmul.f32 %v97, %v97
    %v100 = vsel %vm86, %v98, 0.0
    %101 = vadd.xlane.f32.xlu0 %v100
    %v102 = vpop.xlane.xlu0 %101
    %v103 = vsel %vm86, %v99, 0.0
    %104 = vadd.xlane.f32.xlu0 %v103
    %v105 = vpop.xlane.xlu0 %104
    %v106 = vmul.f32 %v102, %v93
    %v107 = vmul.f32 %v105, %v93
    %v108 = vadd.f32 %v106, 1e-12
    %v109 = vadd.f32 %v107, 1e-12
    %v110 = vrsqrt.pop %v108
    %v111 = vrsqrt.pop %v109
    %v112 = vmul.f32 %v96, %v110
    %v113 = vmul.f32 %v97, %v111
    %v115 = vlaneseq
    %v116 = vshrl.u32 %v115, 7
    %v117 = vsub.s32 0, %v116
    %v118 = vrot.slane %v84, %v117
    %v120 = vmul.f32 %v112, %v118
    %v121 = vmul.f32 %v113, %v118
    %v123 = vlaneseq
    %v124 = vshrl.u32 %v123, 7
    %v125 = vsub.s32 0, %v124
    %v126 = vrot.slane %v85, %v125
    %v128 = vadd.f32 %v120, %v126
    %v129 = vadd.f32 %v121, %v126
    %v130 = vld [vmem:[%s4] sm:$0xf]
    %v131 = vld [vmem:[%s4 + $0x4] sm:$0xf]
    %v132 = vld [vmem:[%s4 + $0x8] sm:$0xf]
    %v133 = vld [vmem:[%s4 + $0xc] sm:$0xf]
    %v134 = vld [vmem:[%s4 + $0x10] sm:$0xf]
    %v135 = vld [vmem:[%s4 + $0x14] sm:$0xf]
    %v136 = vld [vmem:[%s4 + $0x18] sm:$0xf]
    %v137 = vld [vmem:[%s4 + $0x1c] sm:$0xf]
    %v138 = vld [vmem:[%s4 + $0x20] sm:$0xf]
    %v139 = vld [vmem:[%s4 + $0x24] sm:$0xf]
    %v140 = vld [vmem:[%s4 + $0x28] sm:$0xf]
    %v141 = vld [vmem:[%s4 + $0x2c] sm:$0xf]
    %v142 = vld [vmem:[%s4 + $0x30] sm:$0xf]
    %v143 = vld [vmem:[%s4 + $0x34] sm:$0xf]
    %v144 = vld [vmem:[%s4 + $0x38] sm:$0xf]
    %v145 = vld [vmem:[%s4 + $0x3c] sm:$0xf]
    %v146 = vld [vmem:[%s5] sm:$0x1]
    %v147 = vld [vmem:[%s5 + $0x1] sm:$0x1]
    %v148 = vld [vmem:[%s5 + $0x2] sm:$0x1]
    %v149 = vld [vmem:[%s5 + $0x3] sm:$0x1]
    %v150 = vld [vmem:[%s6] sm:$0xf]
    %v151 = vld [vmem:[%s6 + $0x4] sm:$0xf]
    %v152 = vld [vmem:[%s6 + $0x8] sm:$0xf]
    %v153 = vld [vmem:[%s6 + $0xc] sm:$0xf]
    %v154 = vld [vmem:[%s6 + $0x10] sm:$0xf]
    %v155 = vld [vmem:[%s6 + $0x14] sm:$0xf]
    %v156 = vld [vmem:[%s6 + $0x18] sm:$0xf]
    %v157 = vld [vmem:[%s6 + $0x1c] sm:$0xf]
    %v158 = vld [vmem:[%s6 + $0x20] sm:$0xf]
    %v159 = vld [vmem:[%s6 + $0x24] sm:$0xf]
    %v160 = vld [vmem:[%s6 + $0x28] sm:$0xf]
    %v161 = vld [vmem:[%s6 + $0x2c] sm:$0xf]
    %v162 = vld [vmem:[%s6 + $0x30] sm:$0xf]
    %v163 = vld [vmem:[%s6 + $0x34] sm:$0xf]
    %v164 = vld [vmem:[%s6 + $0x38] sm:$0xf]
    %v165 = vld [vmem:[%s6 + $0x3c] sm:$0xf]
    %v166 = vld [vmem:[%s7] sm:$0x1]
    %v167 = vld [vmem:[%s7 + $0x1] sm:$0x1]
    %v168 = vld [vmem:[%s7 + $0x2] sm:$0x1]
    %v169 = vld [vmem:[%s7 + $0x3] sm:$0x1]
    %v170 = vld [vmem:[%s8] sm:$0xf]
    %v171 = vld [vmem:[%s8 + $0x4] sm:$0xf]
    %v172 = vld [vmem:[%s8 + $0x8] sm:$0xf]
    %v173 = vld [vmem:[%s8 + $0xc] sm:$0xf]
    %v174 = vld [vmem:[%s8 + $0x10] sm:$0xf]
    %v175 = vld [vmem:[%s8 + $0x14] sm:$0xf]
    %v176 = vld [vmem:[%s8 + $0x18] sm:$0xf]
    %v177 = vld [vmem:[%s8 + $0x1c] sm:$0xf]
    %v178 = vld [vmem:[%s8 + $0x20] sm:$0xf]
    %v179 = vld [vmem:[%s8 + $0x24] sm:$0xf]
    %v180 = vld [vmem:[%s8 + $0x28] sm:$0xf]
    %v181 = vld [vmem:[%s8 + $0x2c] sm:$0xf]
    %v182 = vld [vmem:[%s8 + $0x30] sm:$0xf]
    %v183 = vld [vmem:[%s8 + $0x34] sm:$0xf]
    %v184 = vld [vmem:[%s8 + $0x38] sm:$0xf]
    %v185 = vld [vmem:[%s8 + $0x3c] sm:$0xf]
    %v186 = vld [vmem:[%s9] sm:$0x1]
    %v187 = vld [vmem:[%s9 + $0x1] sm:$0x1]
    %v188 = vld [vmem:[%s9 + $0x2] sm:$0x1]
    %v189 = vld [vmem:[%s9 + $0x3] sm:$0x1]
    %v190 = vld [vmem:[%s10] sm:$0xf]
    %v191 = vld [vmem:[%s10 + $0x4] sm:$0xf]
    %v192 = vld [vmem:[%s10 + $0x8] sm:$0xf]
    %v193 = vld [vmem:[%s10 + $0xc] sm:$0xf]
    %v194 = vld [vmem:[%s10 + $0x10] sm:$0xf]
    %v195 = vld [vmem:[%s10 + $0x14] sm:$0xf]
    %v196 = vld [vmem:[%s10 + $0x18] sm:$0xf]
    %v197 = vld [vmem:[%s10 + $0x1c] sm:$0xf]
    %v198 = vld [vmem:[%s11] sm:$0x1]
    %v199 = vld [vmem:[%s11 + $0x1] sm:$0x1]
    %v200 = vld [vmem:[%s12] sm:$0x1]
    %v201 = vld [vmem:[%s12 + $0x1] sm:$0x1]
    %v202 = vld [vmem:[%s13] sm:$0x1]
    %v203 = vld [vmem:[%s13 + $0x1] sm:$0x1]
    %v204 = vld [vmem:[%s14] sm:$0xf]
    %v205 = vld [vmem:[%s14 + $0x4] sm:$0xf]
    %v206 = vld [vmem:[%s14 + $0x8] sm:$0xf]
    %v207 = vld [vmem:[%s14 + $0xc] sm:$0xf]
    %v208 = vld [vmem:[%s14 + $0x10] sm:$0xf]
    %v209 = vld [vmem:[%s14 + $0x14] sm:$0xf]
    %v210 = vld [vmem:[%s14 + $0x18] sm:$0xf]
    %v211 = vld [vmem:[%s14 + $0x1c] sm:$0xf]
    %v212 = vld [vmem:[%s15] sm:$0x1]
    %v213 = vld [vmem:[%s15 + $0x1] sm:$0x1]
    %v214 = vld [vmem:[%s16] sm:$0xf]
    %v215 = vld [vmem:[%s16 + $0x4] sm:$0xf]
    %v216 = vld [vmem:[%s16 + $0x8] sm:$0xf]
    %v217 = vld [vmem:[%s16 + $0xc] sm:$0xf]
    %v218 = vld [vmem:[%s16 + $0x10] sm:$0xf]
    %v219 = vld [vmem:[%s16 + $0x14] sm:$0xf]
    %v220 = vld [vmem:[%s16 + $0x18] sm:$0xf]
    %v221 = vld [vmem:[%s16 + $0x1c] sm:$0xf]
    %v222 = vld [vmem:[%s16 + $0x20] sm:$0xf]
    %v223 = vld [vmem:[%s16 + $0x24] sm:$0xf]
    %v224 = vld [vmem:[%s16 + $0x28] sm:$0xf]
    %v225 = vld [vmem:[%s16 + $0x2c] sm:$0xf]
    %v226 = vld [vmem:[%s16 + $0x30] sm:$0xf]
    %v227 = vld [vmem:[%s16 + $0x34] sm:$0xf]
    %v228 = vld [vmem:[%s16 + $0x38] sm:$0xf]
    %v229 = vld [vmem:[%s16 + $0x3c] sm:$0xf]
    %v230 = vld [vmem:[%s17] sm:$0x1]
    %v231 = vld [vmem:[%s17 + $0x1] sm:$0x1]
    %v232 = vld [vmem:[%s18] sm:$0x1]
    %v233 = vld [vmem:[%s18 + $0x1] sm:$0x1]
    %v234 = vld [vmem:[%s19] sm:$0x1]
    %v235 = vld [vmem:[%s19 + $0x1] sm:$0x1]
    %v236 = vpack.c.bf16 %v129, %v128
    %v238 = vlaneseq
    %v239 = vshrl.u32 %v238, 7
    %v240 = vsub.s32 0, %v239
    %v241 = vrot.slane %v146, %v240
    %v247 = vunpack.c.l.b16 %v130
    %v248 = vunpack.c.l.b16 %v131
    %v249 = vunpack.c.l.b16 %v132
    %v250 = vunpack.c.l.b16 %v133
    %v251 = vpack.c.b16 %v248, %v247
    %v252 = vpack.c.b16 %v250, %v249
    %v256 = vsel %vm86, %v236, 0
    %258 = vmatprep.subr.bf16.mxu0 0
    %259 = vmatpush1.bf16.msra.mxu0 %v251
    %260 = vmatprep.subr.bf16.mxu0 0
    %261 = vmatpush1.bf16.msra.mxu0 %v252
    %262 = vmatprep.subr.bf16.mxu0 0
    %263 = vmatpush1.bf16.msra.mxu0 0
    %264 = vmatprep.subr.bf16.mxu0 0
    %265 = vmatpush1.bf16.msra.mxu0 0
    %266 = vmatprep.subr.bf16.mxu0 0
    %267 = vmatpush1.bf16.msra.mxu0 0
    %268 = vmatprep.subr.bf16.mxu0 0
    %269 = vmatpush1.bf16.msra.mxu0 0
    %270 = vmatprep.subr.bf16.mxu0 0
    %271 = vmatpush1.bf16.msra.mxu0 0
    %272 = vmatprep.subr.bf16.mxu0 0
    %273 = vmatpush1.bf16.msra.mxu0 0
    %274 = vmatprep.subr.bf16.mxu0 0
    %275 = vmatpush1.bf16.msra.mxu0 0
    %276 = vmatprep.subr.bf16.mxu0 0
    %277 = vmatpush1.bf16.msra.mxu0 0
    %278 = vmatprep.subr.bf16.mxu0 0
    %279 = vmatpush1.bf16.msra.mxu0 0
    %280 = vmatprep.subr.bf16.mxu0 0
    %281 = vmatpush1.bf16.msra.mxu0 0
    %282 = vmatprep.subr.bf16.mxu0 0
    %283 = vmatpush1.bf16.msra.mxu0 0
    %284 = vmatprep.subr.bf16.mxu0 0
    %285 = vmatpush1.bf16.msra.mxu0 0
    %286 = vmatprep.subr.bf16.mxu0 0
    %287 = vmatpush1.bf16.msra.mxu0 0
    %288 = vmatprep.subr.bf16.mxu0 0
    %289 = vmatpush1.bf16.msra.mxu0 0
    %290 = vmatprep.mubr.bf16.mxu0 0
    %291 = vmatmul.mubr.bf16.gmra.mrb[0].mxu0 %v256
    %v292 = vpop.f32.mrb[0].mxu0
    %v293 = vadd.f32 %v241, %v292
    %v294 = vpop.f32.mrb[0].mxu0
    %v295 = vpop.f32.mrb[0].mxu0
    %v296 = vadd.f32 %v241, %v295
    %v297 = vpop.f32.mrb[0].mxu0
    %298 = vdwg.mxu0
    %v300 = vlaneseq
    %v301 = vshrl.u32 %v300, 7
    %v302 = vsub.s32 0, %v301
    %v303 = vrot.slane %v166, %v302
    %v309 = vunpack.c.l.b16 %v150
    %v310 = vunpack.c.l.b16 %v151
    %v311 = vunpack.c.l.b16 %v152
    %v312 = vunpack.c.l.b16 %v153
    %v313 = vpack.c.b16 %v310, %v309
    %v314 = vpack.c.b16 %v312, %v311
    %317 = vmatprep.subr.bf16.mxu0 0
    %318 = vmatpush1.bf16.msra.mxu0 %v313
    %319 = vmatprep.subr.bf16.mxu0 0
    %320 = vmatpush1.bf16.msra.mxu0 %v314
    %321 = vmatprep.subr.bf16.mxu0 0
    %322 = vmatpush1.bf16.msra.mxu0 0
    %323 = vmatprep.subr.bf16.mxu0 0
    %324 = vmatpush1.bf16.msra.mxu0 0
    %325 = vmatprep.subr.bf16.mxu0 0
    %326 = vmatpush1.bf16.msra.mxu0 0
    %327 = vmatprep.subr.bf16.mxu0 0
    %328 = vmatpush1.bf16.msra.mxu0 0
    %329 = vmatprep.subr.bf16.mxu0 0
    %330 = vmatpush1.bf16.msra.mxu0 0
    %331 = vmatprep.subr.bf16.mxu0 0
    %332 = vmatpush1.bf16.msra.mxu0 0
    %333 = vmatprep.subr.bf16.mxu0 0
    %334 = vmatpush1.bf16.msra.mxu0 0
    %335 = vmatprep.subr.bf16.mxu0 0
    %336 = vmatpush1.bf16.msra.mxu0 0
    %337 = vmatprep.subr.bf16.mxu0 0
    %338 = vmatpush1.bf16.msra.mxu0 0
    %339 = vmatprep.subr.bf16.mxu0 0
    %340 = vmatpush1.bf16.msra.mxu0 0
    %341 = vmatprep.subr.bf16.mxu0 0
    %342 = vmatpush1.bf16.msra.mxu0 0
    %343 = vmatprep.subr.bf16.mxu0 0
    %344 = vmatpush1.bf16.msra.mxu0 0
    %345 = vmatprep.subr.bf16.mxu0 0
    %346 = vmatpush1.bf16.msra.mxu0 0
    %347 = vmatprep.subr.bf16.mxu0 0
    %348 = vmatpush1.bf16.msra.mxu0 0
    %349 = vmatprep.mubr.bf16.mxu0 0
    %350 = vmatmul.mubr.bf16.gmra.mrb[0].mxu0 %v256
    %v351 = vpop.f32.mrb[0].mxu0
    %v352 = vadd.f32 %v303, %v351
    %v353 = vpop.f32.mrb[0].mxu0
    %v354 = vpop.f32.mrb[0].mxu0
    %v355 = vadd.f32 %v303, %v354
    %v356 = vpop.f32.mrb[0].mxu0
    %357 = vdwg.mxu0
    %v359 = vlaneseq
    %v360 = vshrl.u32 %v359, 7
    %v361 = vsub.s32 0, %v360
    %v362 = vrot.slane %v186, %v361
    %v368 = vunpack.c.l.b16 %v170
    %v369 = vunpack.c.l.b16 %v171
    %v370 = vunpack.c.l.b16 %v172
    %v371 = vunpack.c.l.b16 %v173
    %v372 = vpack.c.b16 %v369, %v368
    %v373 = vpack.c.b16 %v371, %v370
    %376 = vmatprep.subr.bf16.mxu0 0
    %377 = vmatpush1.bf16.msra.mxu0 %v372
    %378 = vmatprep.subr.bf16.mxu0 0
    %379 = vmatpush1.bf16.msra.mxu0 %v373
    %380 = vmatprep.subr.bf16.mxu0 0
    %381 = vmatpush1.bf16.msra.mxu0 0
    %382 = vmatprep.subr.bf16.mxu0 0
    %383 = vmatpush1.bf16.msra.mxu0 0
    %384 = vmatprep.subr.bf16.mxu0 0
    %385 = vmatpush1.bf16.msra.mxu0 0
    %386 = vmatprep.subr.bf16.mxu0 0
    %387 = vmatpush1.bf16.msra.mxu0 0
    %388 = vmatprep.subr.bf16.mxu0 0
    %389 = vmatpush1.bf16.msra.mxu0 0
    %390 = vmatprep.subr.bf16.mxu0 0
    %391 = vmatpush1.bf16.msra.mxu0 0
    %392 = vmatprep.subr.bf16.mxu0 0
    %393 = vmatpush1.bf16.msra.mxu0 0
    %394 = vmatprep.subr.bf16.mxu0 0
    %395 = vmatpush1.bf16.msra.mxu0 0
    %396 = vmatprep.subr.bf16.mxu0 0
    %397 = vmatpush1.bf16.msra.mxu0 0
    %398 = vmatprep.subr.bf16.mxu0 0
    %399 = vmatpush1.bf16.msra.mxu0 0
    %400 = vmatprep.subr.bf16.mxu0 0
    %401 = vmatpush1.bf16.msra.mxu0 0
    %402 = vmatprep.subr.bf16.mxu0 0
    %403 = vmatpush1.bf16.msra.mxu0 0
    %404 = vmatprep.subr.bf16.mxu0 0
    %405 = vmatpush1.bf16.msra.mxu0 0
    %406 = vmatprep.subr.bf16.mxu0 0
    %407 = vmatpush1.bf16.msra.mxu0 0
    %408 = vmatprep.mubr.bf16.mxu0 0
    %409 = vmatmul.mubr.bf16.gmra.mrb[0].mxu0 %v256
    %v410 = vpop.f32.mrb[0].mxu0
    %v411 = vadd.f32 %v362, %v410
    %v412 = vpop.f32.mrb[0].mxu0
    %v413 = vpop.f32.mrb[0].mxu0
    %v414 = vadd.f32 %v362, %v413
    %v415 = vpop.f32.mrb[0].mxu0
    %416 = vdwg.mxu0
    %v417 = vpack.c.bf16 %v293, %v293
    %v418 = vpack.c.bf16 %v296, %v296
    %v419 = vpack.c.bf16 %v352, %v352
    %v420 = vpack.c.bf16 %v355, %v355
    %vm421 = vcmask 130048
    %v423 = vsel %vm421, %v417, 0
    %v426 = vsel %vm421, %v419, 0
    %428 = vmatprep.subr.bf16.mxu0 0
    %429 = vmatpush1.bf16.xpose.msra.mxu0 %v426
    %430 = vmatprep.subr.bf16.mxu0 0
    %431 = vmatpush1.bf16.xpose.msra.mxu0 0
    %432 = vmatprep.subr.bf16.mxu0 0
    %433 = vmatpush1.bf16.xpose.msra.mxu0 0
    %434 = vmatprep.subr.bf16.mxu0 0
    %435 = vmatpush1.bf16.xpose.msra.mxu0 0
    %436 = vmatprep.subr.bf16.mxu0 0
    %437 = vmatpush1.bf16.xpose.msra.mxu0 0
    %438 = vmatprep.subr.bf16.mxu0 0
    %439 = vmatpush1.bf16.xpose.msra.mxu0 0
    %440 = vmatprep.subr.bf16.mxu0 0
    %441 = vmatpush1.bf16.xpose.msra.mxu0 0
    %442 = vmatprep.subr.bf16.mxu0 0
    %443 = vmatpush1.bf16.xpose.msra.mxu0 0
    %444 = vmatprep.subr.bf16.mxu0 0
    %445 = vmatpush1.bf16.xpose.msra.mxu0 0
    %446 = vmatprep.subr.bf16.mxu0 0
    %447 = vmatpush1.bf16.xpose.msra.mxu0 0
    %448 = vmatprep.subr.bf16.mxu0 0
    %449 = vmatpush1.bf16.xpose.msra.mxu0 0
    %450 = vmatprep.subr.bf16.mxu0 0
    %451 = vmatpush1.bf16.xpose.msra.mxu0 0
    %452 = vmatprep.subr.bf16.mxu0 0
    %453 = vmatpush1.bf16.xpose.msra.mxu0 0
    %454 = vmatprep.subr.bf16.mxu0 0
    %455 = vmatpush1.bf16.xpose.msra.mxu0 0
    %456 = vmatprep.subr.bf16.mxu0 0
    %457 = vmatpush1.bf16.xpose.msra.mxu0 0
    %458 = vmatprep.subr.bf16.mxu0 0
    %459 = vmatpush1.bf16.xpose.msra.mxu0 0
    %460 = vmatprep.mubr.bf16.mxu0 0
    %461 = vmatmul.mubr.bf16.gmra.mrb[0].mxu0 %v423
    %v462 = vpop.f32.mrb[0].mxu0
    %v463 = vadd.f32 0.0, %v462
    %v464 = vpop.f32.mrb[0].mxu0
    %v465 = vpop.f32.mrb[0].mxu0
    %v466 = vpop.f32.mrb[0].mxu0
    %467 = vdwg.mxu0
    %v469 = vsel %vm421, %v418, 0
    %v472 = vsel %vm421, %v420, 0
    %474 = vmatprep.subr.bf16.mxu0 0
    %475 = vmatpush1.bf16.xpose.msra.mxu0 %v472
    %476 = vmatprep.subr.bf16.mxu0 0
    %477 = vmatpush1.bf16.xpose.msra.mxu0 0
    %478 = vmatprep.subr.bf16.mxu0 0
    %479 = vmatpush1.bf16.xpose.msra.mxu0 0
    %480 = vmatprep.subr.bf16.mxu0 0
    %481 = vmatpush1.bf16.xpose.msra.mxu0 0
    %482 = vmatprep.subr.bf16.mxu0 0
    %483 = vmatpush1.bf16.xpose.msra.mxu0 0
    %484 = vmatprep.subr.bf16.mxu0 0
    %485 = vmatpush1.bf16.xpose.msra.mxu0 0
    %486 = vmatprep.subr.bf16.mxu0 0
    %487 = vmatpush1.bf16.xpose.msra.mxu0 0
    %488 = vmatprep.subr.bf16.mxu0 0
    %489 = vmatpush1.bf16.xpose.msra.mxu0 0
    %490 = vmatprep.subr.bf16.mxu0 0
    %491 = vmatpush1.bf16.xpose.msra.mxu0 0
    %492 = vmatprep.subr.bf16.mxu0 0
    %493 = vmatpush1.bf16.xpose.msra.mxu0 0
    %494 = vmatprep.subr.bf16.mxu0 0
    %495 = vmatpush1.bf16.xpose.msra.mxu0 0
    %496 = vmatprep.subr.bf16.mxu0 0
    %497 = vmatpush1.bf16.xpose.msra.mxu0 0
    %498 = vmatprep.subr.bf16.mxu0 0
    %499 = vmatpush1.bf16.xpose.msra.mxu0 0
    %500 = vmatprep.subr.bf16.mxu0 0
    %501 = vmatpush1.bf16.xpose.msra.mxu0 0
    %502 = vmatprep.subr.bf16.mxu0 0
    %503 = vmatpush1.bf16.xpose.msra.mxu0 0
    %504 = vmatprep.subr.bf16.mxu0 0
    %505 = vmatpush1.bf16.xpose.msra.mxu0 0
    %506 = vmatprep.mubr.bf16.mxu0 0
    %507 = vmatmul.mubr.bf16.gmra.mrb[0].mxu0 %v469
    %v508 = vpop.f32.mrb[0].mxu0
    %v509 = vadd.f32 0.0, %v508
    %v510 = vpop.f32.mrb[0].mxu0
    %v511 = vpop.f32.mrb[0].mxu0
    %v512 = vpop.f32.mrb[0].mxu0
    %513 = vdwg.mxu0
    %v514 = vmul.f32 %v463, 0.25
    %v515 = vmul.f32 %v509, 0.25
    %vm516 = vcmask 64512
    %v517 = vsel %vm516, %v514, -inf
    %518 = vmax.xlane.f32.xlu0 %v517
    %v519 = vpop.xlane.xlu0 %518
    %v520 = vsel %vm516, %v515, -inf
    %521 = vmax.xlane.f32.xlu0 %v520
    %v522 = vpop.xlane.xlu0 %521
    %v523 = vsub.f32 %v514, %v519
    %v524 = vsub.f32 %v515, %v522
    %v525 = vmul.f32 %v523, 1.442695
    %v526 = vpow.pop %v525
    %v527 = vmul.f32 %v524, 1.442695
    %v528 = vpow.pop %v527
    %v529 = vsel %vm516, %v526, 0.0
    %530 = vadd.xlane.f32.xlu0 %v529
    %v531 = vpop.xlane.xlu0 %530
    %v532 = vsel %vm516, %v528, 0.0
    %533 = vadd.xlane.f32.xlu0 %v532
    %v534 = vpop.xlane.xlu0 %533
    %v535 = vrcp.pop %v531
    %v536 = vrcp.pop %v534
    %v537 = vmul.f32 %v526, %v535
    %v538 = vmul.f32 %v528, %v536
    %v539 = vpack.c.bf16 %v537, %v537
    %v540 = vpack.c.bf16 %v538, %v538
    %v541 = vpack.c.bf16 %v411, %v411
    %v542 = vpack.c.bf16 %v414, %v414
    %v544 = vsel %vm516, %v539, 0
    %vm546 = vcmask 1043456
    %v548 = vsel %vm546, %v541, 0
    %550 = vmatprep.subr.bf16.mxu0 0
    %551 = vmatpush1.bf16.msra.mxu0 %v548
    %552 = vmatprep.subr.bf16.mxu0 0
    %553 = vmatpush1.bf16.msra.mxu0 0
    %554 = vmatprep.subr.bf16.mxu0 0
    %555 = vmatpush1.bf16.msra.mxu0 0
    %556 = vmatprep.subr.bf16.mxu0 0
    %557 = vmatpush1.bf16.msra.mxu0 0
    %558 = vmatprep.subr.bf16.mxu0 0
    %559 = vmatpush1.bf16.msra.mxu0 0
    %560 = vmatprep.subr.bf16.mxu0 0
    %561 = vmatpush1.bf16.msra.mxu0 0
    %562 = vmatprep.subr.bf16.mxu0 0
    %563 = vmatpush1.bf16.msra.mxu0 0
    %564 = vmatprep.subr.bf16.mxu0 0
    %565 = vmatpush1.bf16.msra.mxu0 0
    %566 = vmatprep.subr.bf16.mxu0 0
    %567 = vmatpush1.bf16.msra.mxu0 0
    %568 = vmatprep.subr.bf16.mxu0 0
    %569 = vmatpush1.bf16.msra.mxu0 0
    %570 = vmatprep.subr.bf16.mxu0 0
    %571 = vmatpush1.bf16.msra.mxu0 0
    %572 = vmatprep.subr.bf16.mxu0 0
    %573 = vmatpush1.bf16.msra.mxu0 0
    %574 = vmatprep.subr.bf16.mxu0 0
    %575 = vmatpush1.bf16.msra.mxu0 0
    %576 = vmatprep.subr.bf16.mxu0 0
    %577 = vmatpush1.bf16.msra.mxu0 0
    %578 = vmatprep.subr.bf16.mxu0 0
    %579 = vmatpush1.bf16.msra.mxu0 0
    %580 = vmatprep.subr.bf16.mxu0 0
    %581 = vmatpush1.bf16.msra.mxu0 0
    %582 = vmatprep.mubr.bf16.mxu0 0
    %583 = vmatmul.mubr.bf16.gmra.mrb[0].mxu0 %v544
    %v584 = vpop.f32.mrb[0].mxu0
    %v585 = vadd.f32 0.0, %v584
    %v586 = vpop.f32.mrb[0].mxu0
    %v587 = vpop.f32.mrb[0].mxu0
    %v588 = vpop.f32.mrb[0].mxu0
    %589 = vdwg.mxu0
    %v591 = vsel %vm516, %v540, 0
    %v594 = vsel %vm546, %v542, 0
    %596 = vmatprep.subr.bf16.mxu0 0
    %597 = vmatpush1.bf16.msra.mxu0 %v594
    %598 = vmatprep.subr.bf16.mxu0 0
    %599 = vmatpush1.bf16.msra.mxu0 0
    %600 = vmatprep.subr.bf16.mxu0 0
    %601 = vmatpush1.bf16.msra.mxu0 0
    %602 = vmatprep.subr.bf16.mxu0 0
    %603 = vmatpush1.bf16.msra.mxu0 0
    %604 = vmatprep.subr.bf16.mxu0 0
    %605 = vmatpush1.bf16.msra.mxu0 0
    %606 = vmatprep.subr.bf16.mxu0 0
    %607 = vmatpush1.bf16.msra.mxu0 0
    %608 = vmatprep.subr.bf16.mxu0 0
    %609 = vmatpush1.bf16.msra.mxu0 0
    %610 = vmatprep.subr.bf16.mxu0 0
    %611 = vmatpush1.bf16.msra.mxu0 0
    %612 = vmatprep.subr.bf16.mxu0 0
    %613 = vmatpush1.bf16.msra.mxu0 0
    %614 = vmatprep.subr.bf16.mxu0 0
    %615 = vmatpush1.bf16.msra.mxu0 0
    %616 = vmatprep.subr.bf16.mxu0 0
    %617 = vmatpush1.bf16.msra.mxu0 0
    %618 = vmatprep.subr.bf16.mxu0 0
    %619 = vmatpush1.bf16.msra.mxu0 0
    %620 = vmatprep.subr.bf16.mxu0 0
    %621 = vmatpush1.bf16.msra.mxu0 0
    %622 = vmatprep.subr.bf16.mxu0 0
    %623 = vmatpush1.bf16.msra.mxu0 0
    %624 = vmatprep.subr.bf16.mxu0 0
    %625 = vmatpush1.bf16.msra.mxu0 0
    %626 = vmatprep.subr.bf16.mxu0 0
    %627 = vmatpush1.bf16.msra.mxu0 0
    %628 = vmatprep.mubr.bf16.mxu0 0
    %629 = vmatmul.mubr.bf16.gmra.mrb[0].mxu0 %v591
    %v630 = vpop.f32.mrb[0].mxu0
    %v631 = vadd.f32 0.0, %v630
    %v632 = vpop.f32.mrb[0].mxu0
    %v633 = vpop.f32.mrb[0].mxu0
    %v634 = vpop.f32.mrb[0].mxu0
    %635 = vdwg.mxu0
    %v636 = vpack.c.bf16 %v631, %v585
    %v638 = vlaneseq
    %v639 = vshrl.u32 %v638, 7
    %v640 = vsub.s32 0, %v639
    %v641 = vrot.slane %v147, %v640
    %v647 = vunpack.c.l.b16 %v134
    %v648 = vunpack.c.l.b16 %v135
    %v649 = vunpack.c.l.b16 %v136
    %v650 = vunpack.c.l.b16 %v137
    %v651 = vpack.c.b16 %v648, %v647
    %v652 = vpack.c.b16 %v650, %v649
    %655 = vmatprep.subr.bf16.mxu0 0
    %656 = vmatpush1.bf16.msra.mxu0 %v651
    %657 = vmatprep.subr.bf16.mxu0 0
    %658 = vmatpush1.bf16.msra.mxu0 %v652
    %659 = vmatprep.subr.bf16.mxu0 0
    %660 = vmatpush1.bf16.msra.mxu0 0
    %661 = vmatprep.subr.bf16.mxu0 0
    %662 = vmatpush1.bf16.msra.mxu0 0
    %663 = vmatprep.subr.bf16.mxu0 0
    %664 = vmatpush1.bf16.msra.mxu0 0
    %665 = vmatprep.subr.bf16.mxu0 0
    %666 = vmatpush1.bf16.msra.mxu0 0
    %667 = vmatprep.subr.bf16.mxu0 0
    %668 = vmatpush1.bf16.msra.mxu0 0
    %669 = vmatprep.subr.bf16.mxu0 0
    %670 = vmatpush1.bf16.msra.mxu0 0
    %671 = vmatprep.subr.bf16.mxu0 0
    %672 = vmatpush1.bf16.msra.mxu0 0
    %673 = vmatprep.subr.bf16.mxu0 0
    %674 = vmatpush1.bf16.msra.mxu0 0
    %675 = vmatprep.subr.bf16.mxu0 0
    %676 = vmatpush1.bf16.msra.mxu0 0
    %677 = vmatprep.subr.bf16.mxu0 0
    %678 = vmatpush1.bf16.msra.mxu0 0
    %679 = vmatprep.subr.bf16.mxu0 0
    %680 = vmatpush1.bf16.msra.mxu0 0
    %681 = vmatprep.subr.bf16.mxu0 0
    %682 = vmatpush1.bf16.msra.mxu0 0
    %683 = vmatprep.subr.bf16.mxu0 0
    %684 = vmatpush1.bf16.msra.mxu0 0
    %685 = vmatprep.subr.bf16.mxu0 0
    %686 = vmatpush1.bf16.msra.mxu0 0
    %687 = vmatprep.mubr.bf16.mxu0 0
    %688 = vmatmul.mubr.bf16.gmra.mrb[0].mxu0 %v256
    %v689 = vpop.f32.mrb[0].mxu0
    %v690 = vadd.f32 %v641, %v689
    %v691 = vpop.f32.mrb[0].mxu0
    %v692 = vpop.f32.mrb[0].mxu0
    %v693 = vadd.f32 %v641, %v692
    %v694 = vpop.f32.mrb[0].mxu0
    %695 = vdwg.mxu0
    %v697 = vlaneseq
    %v698 = vshrl.u32 %v697, 7
    %v699 = vsub.s32 0, %v698
    %v700 = vrot.slane %v167, %v699
    %v706 = vunpack.c.l.b16 %v154
    %v707 = vunpack.c.l.b16 %v155
    %v708 = vunpack.c.l.b16 %v156
    %v709 = vunpack.c.l.b16 %v157
    %v710 = vpack.c.b16 %v707, %v706
    %v711 = vpack.c.b16 %v709, %v708
    %714 = vmatprep.subr.bf16.mxu0 0
    %715 = vmatpush1.bf16.msra.mxu0 %v710
    %716 = vmatprep.subr.bf16.mxu0 0
    %717 = vmatpush1.bf16.msra.mxu0 %v711
    %718 = vmatprep.subr.bf16.mxu0 0
    %719 = vmatpush1.bf16.msra.mxu0 0
    %720 = vmatprep.subr.bf16.mxu0 0
    %721 = vmatpush1.bf16.msra.mxu0 0
    %722 = vmatprep.subr.bf16.mxu0 0
    %723 = vmatpush1.bf16.msra.mxu0 0
    %724 = vmatprep.subr.bf16.mxu0 0
    %725 = vmatpush1.bf16.msra.mxu0 0
    %726 = vmatprep.subr.bf16.mxu0 0
    %727 = vmatpush1.bf16.msra.mxu0 0
    %728 = vmatprep.subr.bf16.mxu0 0
    %729 = vmatpush1.bf16.msra.mxu0 0
    %730 = vmatprep.subr.bf16.mxu0 0
    %731 = vmatpush1.bf16.msra.mxu0 0
    %732 = vmatprep.subr.bf16.mxu0 0
    %733 = vmatpush1.bf16.msra.mxu0 0
    %734 = vmatprep.subr.bf16.mxu0 0
    %735 = vmatpush1.bf16.msra.mxu0 0
    %736 = vmatprep.subr.bf16.mxu0 0
    %737 = vmatpush1.bf16.msra.mxu0 0
    %738 = vmatprep.subr.bf16.mxu0 0
    %739 = vmatpush1.bf16.msra.mxu0 0
    %740 = vmatprep.subr.bf16.mxu0 0
    %741 = vmatpush1.bf16.msra.mxu0 0
    %742 = vmatprep.subr.bf16.mxu0 0
    %743 = vmatpush1.bf16.msra.mxu0 0
    %744 = vmatprep.subr.bf16.mxu0 0
    %745 = vmatpush1.bf16.msra.mxu0 0
    %746 = vmatprep.mubr.bf16.mxu0 0
    %747 = vmatmul.mubr.bf16.gmra.mrb[0].mxu0 %v256
    %v748 = vpop.f32.mrb[0].mxu0
    %v749 = vadd.f32 %v700, %v748
    %v750 = vpop.f32.mrb[0].mxu0
    %v751 = vpop.f32.mrb[0].mxu0
    %v752 = vadd.f32 %v700, %v751
    %v753 = vpop.f32.mrb[0].mxu0
    %754 = vdwg.mxu0
    %v756 = vlaneseq
    %v757 = vshrl.u32 %v756, 7
    %v758 = vsub.s32 0, %v757
    %v759 = vrot.slane %v187, %v758
    %v765 = vunpack.c.l.b16 %v174
    %v766 = vunpack.c.l.b16 %v175
    %v767 = vunpack.c.l.b16 %v176
    %v768 = vunpack.c.l.b16 %v177
    %v769 = vpack.c.b16 %v766, %v765
    %v770 = vpack.c.b16 %v768, %v767
    %773 = vmatprep.subr.bf16.mxu0 0
    %774 = vmatpush1.bf16.msra.mxu0 %v769
    %775 = vmatprep.subr.bf16.mxu0 0
    %776 = vmatpush1.bf16.msra.mxu0 %v770
    %777 = vmatprep.subr.bf16.mxu0 0
    %778 = vmatpush1.bf16.msra.mxu0 0
    %779 = vmatprep.subr.bf16.mxu0 0
    %780 = vmatpush1.bf16.msra.mxu0 0
    %781 = vmatprep.subr.bf16.mxu0 0
    %782 = vmatpush1.bf16.msra.mxu0 0
    %783 = vmatprep.subr.bf16.mxu0 0
    %784 = vmatpush1.bf16.msra.mxu0 0
    %785 = vmatprep.subr.bf16.mxu0 0
    %786 = vmatpush1.bf16.msra.mxu0 0
    %787 = vmatprep.subr.bf16.mxu0 0
    %788 = vmatpush1.bf16.msra.mxu0 0
    %789 = vmatprep.subr.bf16.mxu0 0
    %790 = vmatpush1.bf16.msra.mxu0 0
    %791 = vmatprep.subr.bf16.mxu0 0
    %792 = vmatpush1.bf16.msra.mxu0 0
    %793 = vmatprep.subr.bf16.mxu0 0
    %794 = vmatpush1.bf16.msra.mxu0 0
    %795 = vmatprep.subr.bf16.mxu0 0
    %796 = vmatpush1.bf16.msra.mxu0 0
    %797 = vmatprep.subr.bf16.mxu0 0
    %798 = vmatpush1.bf16.msra.mxu0 0
    %799 = vmatprep.subr.bf16.mxu0 0
    %800 = vmatpush1.bf16.msra.mxu0 0
    %801 = vmatprep.subr.bf16.mxu0 0
    %802 = vmatpush1.bf16.msra.mxu0 0
    %803 = vmatprep.subr.bf16.mxu0 0
    %804 = vmatpush1.bf16.msra.mxu0 0
    %805 = vmatprep.mubr.bf16.mxu0 0
    %806 = vmatmul.mubr.bf16.gmra.mrb[0].mxu0 %v256
    %v807 = vpop.f32.mrb[0].mxu0
    %v808 = vadd.f32 %v759, %v807
    %v809 = vpop.f32.mrb[0].mxu0
    %v810 = vpop.f32.mrb[0].mxu0
    %v811 = vadd.f32 %v759, %v810
    %v812 = vpop.f32.mrb[0].mxu0
    %813 = vdwg.mxu0
    %v814 = vpack.c.bf16 %v690, %v690
    %v815 = vpack.c.bf16 %v693, %v693
    %v816 = vpack.c.bf16 %v749, %v749
    %v817 = vpack.c.bf16 %v752, %v752
    %v819 = vsel %vm421, %v814, 0
    %v822 = vsel %vm421, %v816, 0
    %824 = vmatprep.subr.bf16.mxu0 0
    %825 = vmatpush1.bf16.xpose.msra.mxu0 %v822
    %826 = vmatprep.subr.bf16.mxu0 0
    %827 = vmatpush1.bf16.xpose.msra.mxu0 0
    %828 = vmatprep.subr.bf16.mxu0 0
    %829 = vmatpush1.bf16.xpose.msra.mxu0 0
    %830 = vmatprep.subr.bf16.mxu0 0
    %831 = vmatpush1.bf16.xpose.msra.mxu0 0
    %832 = vmatprep.subr.bf16.mxu0 0
    %833 = vmatpush1.bf16.xpose.msra.mxu0 0
    %834 = vmatprep.subr.bf16.mxu0 0
    %835 = vmatpush1.bf16.xpose.msra.mxu0 0
    %836 = vmatprep.subr.bf16.mxu0 0
    %837 = vmatpush1.bf16.xpose.msra.mxu0 0
    %838 = vmatprep.subr.bf16.mxu0 0
    %839 = vmatpush1.bf16.xpose.msra.mxu0 0
    %840 = vmatprep.subr.bf16.mxu0 0
    %841 = vmatpush1.bf16.xpose.msra.mxu0 0
    %842 = vmatprep.subr.bf16.mxu0 0
    %843 = vmatpush1.bf16.xpose.msra.mxu0 0
    %844 = vmatprep.subr.bf16.mxu0 0
    %845 = vmatpush1.bf16.xpose.msra.mxu0 0
    %846 = vmatprep.subr.bf16.mxu0 0
    %847 = vmatpush1.bf16.xpose.msra.mxu0 0
    %848 = vmatprep.subr.bf16.mxu0 0
    %849 = vmatpush1.bf16.xpose.msra.mxu0 0
    %850 = vmatprep.subr.bf16.mxu0 0
    %851 = vmatpush1.bf16.xpose.msra.mxu0 0
    %852 = vmatprep.subr.bf16.mxu0 0
    %853 = vmatpush1.bf16.xpose.msra.mxu0 0
    %854 = vmatprep.subr.bf16.mxu0 0
    %855 = vmatpush1.bf16.xpose.msra.mxu0 0
    %856 = vmatprep.mubr.bf16.mxu0 0
    %857 = vmatmul.mubr.bf16.gmra.mrb[0].mxu0 %v819
    %v858 = vpop.f32.mrb[0].mxu0
    %v859 = vadd.f32 0.0, %v858
    %v860 = vpop.f32.mrb[0].mxu0
    %v861 = vpop.f32.mrb[0].mxu0
    %v862 = vpop.f32.mrb[0].mxu0
    %863 = vdwg.mxu0
    %v865 = vsel %vm421, %v815, 0
    %v868 = vsel %vm421, %v817, 0
    %870 = vmatprep.subr.bf16.mxu0 0
    %871 = vmatpush1.bf16.xpose.msra.mxu0 %v868
    %872 = vmatprep.subr.bf16.mxu0 0
    %873 = vmatpush1.bf16.xpose.msra.mxu0 0
    %874 = vmatprep.subr.bf16.mxu0 0
    %875 = vmatpush1.bf16.xpose.msra.mxu0 0
    %876 = vmatprep.subr.bf16.mxu0 0
    %877 = vmatpush1.bf16.xpose.msra.mxu0 0
    %878 = vmatprep.subr.bf16.mxu0 0
    %879 = vmatpush1.bf16.xpose.msra.mxu0 0
    %880 = vmatprep.subr.bf16.mxu0 0
    %881 = vmatpush1.bf16.xpose.msra.mxu0 0
    %882 = vmatprep.subr.bf16.mxu0 0
    %883 = vmatpush1.bf16.xpose.msra.mxu0 0
    %884 = vmatprep.subr.bf16.mxu0 0
    %885 = vmatpush1.bf16.xpose.msra.mxu0 0
    %886 = vmatprep.subr.bf16.mxu0 0
    %887 = vmatpush1.bf16.xpose.msra.mxu0 0
    %888 = vmatprep.subr.bf16.mxu0 0
    %889 = vmatpush1.bf16.xpose.msra.mxu0 0
    %890 = vmatprep.subr.bf16.mxu0 0
    %891 = vmatpush1.bf16.xpose.msra.mxu0 0
    %892 = vmatprep.subr.bf16.mxu0 0
    %893 = vmatpush1.bf16.xpose.msra.mxu0 0
    %894 = vmatprep.subr.bf16.mxu0 0
    %895 = vmatpush1.bf16.xpose.msra.mxu0 0
    %896 = vmatprep.subr.bf16.mxu0 0
    %897 = vmatpush1.bf16.xpose.msra.mxu0 0
    %898 = vmatprep.subr.bf16.mxu0 0
    %899 = vmatpush1.bf16.xpose.msra.mxu0 0
    %900 = vmatprep.subr.bf16.mxu0 0
    %901 = vmatpush1.bf16.xpose.msra.mxu0 0
    %902 = vmatprep.mubr.bf16.mxu0 0
    %903 = vmatmul.mubr.bf16.gmra.mrb[0].mxu0 %v865
    %v904 = vpop.f32.mrb[0].mxu0
    %v905 = vadd.f32 0.0, %v904
    %v906 = vpop.f32.mrb[0].mxu0
    %v907 = vpop.f32.mrb[0].mxu0
    %v908 = vpop.f32.mrb[0].mxu0
    %909 = vdwg.mxu0
    %v910 = vmul.f32 %v859, 0.25
    %v911 = vmul.f32 %v905, 0.25
    %v912 = vsel %vm516, %v910, -inf
    %913 = vmax.xlane.f32.xlu0 %v912
    %v914 = vpop.xlane.xlu0 %913
    %v915 = vsel %vm516, %v911, -inf
    %916 = vmax.xlane.f32.xlu0 %v915
    %v917 = vpop.xlane.xlu0 %916
    %v918 = vsub.f32 %v910, %v914
    %v919 = vsub.f32 %v911, %v917
    %v920 = vmul.f32 %v918, 1.442695
    %v921 = vpow.pop %v920
    %v922 = vmul.f32 %v919, 1.442695
    %v923 = vpow.pop %v922
    %v924 = vsel %vm516, %v921, 0.0
    %925 = vadd.xlane.f32.xlu0 %v924
    %v926 = vpop.xlane.xlu0 %925
    %v927 = vsel %vm516, %v923, 0.0
    %928 = vadd.xlane.f32.xlu0 %v927
    %v929 = vpop.xlane.xlu0 %928
    %v930 = vrcp.pop %v926
    %v931 = vrcp.pop %v929
    %v932 = vmul.f32 %v921, %v930
    %v933 = vmul.f32 %v923, %v931
    %v934 = vpack.c.bf16 %v932, %v932
    %v935 = vpack.c.bf16 %v933, %v933
    %v936 = vpack.c.bf16 %v808, %v808
    %v937 = vpack.c.bf16 %v811, %v811
    %v939 = vsel %vm516, %v934, 0
    %v942 = vsel %vm546, %v936, 0
    %944 = vmatprep.subr.bf16.mxu0 0
    %945 = vmatpush1.bf16.msra.mxu0 %v942
    %946 = vmatprep.subr.bf16.mxu0 0
    %947 = vmatpush1.bf16.msra.mxu0 0
    %948 = vmatprep.subr.bf16.mxu0 0
    %949 = vmatpush1.bf16.msra.mxu0 0
    %950 = vmatprep.subr.bf16.mxu0 0
    %951 = vmatpush1.bf16.msra.mxu0 0
    %952 = vmatprep.subr.bf16.mxu0 0
    %953 = vmatpush1.bf16.msra.mxu0 0
    %954 = vmatprep.subr.bf16.mxu0 0
    %955 = vmatpush1.bf16.msra.mxu0 0
    %956 = vmatprep.subr.bf16.mxu0 0
    %957 = vmatpush1.bf16.msra.mxu0 0
    %958 = vmatprep.subr.bf16.mxu0 0
    %959 = vmatpush1.bf16.msra.mxu0 0
    %960 = vmatprep.subr.bf16.mxu0 0
    %961 = vmatpush1.bf16.msra.mxu0 0
    %962 = vmatprep.subr.bf16.mxu0 0
    %963 = vmatpush1.bf16.msra.mxu0 0
    %964 = vmatprep.subr.bf16.mxu0 0
    %965 = vmatpush1.bf16.msra.mxu0 0
    %966 = vmatprep.subr.bf16.mxu0 0
    %967 = vmatpush1.bf16.msra.mxu0 0
    %968 = vmatprep.subr.bf16.mxu0 0
    %969 = vmatpush1.bf16.msra.mxu0 0
    %970 = vmatprep.subr.bf16.mxu0 0
    %971 = vmatpush1.bf16.msra.mxu0 0
    %972 = vmatprep.subr.bf16.mxu0 0
    %973 = vmatpush1.bf16.msra.mxu0 0
    %974 = vmatprep.subr.bf16.mxu0 0
    %975 = vmatpush1.bf16.msra.mxu0 0
    %976 = vmatprep.mubr.bf16.mxu0 0
    %977 = vmatmul.mubr.bf16.gmra.mrb[0].mxu0 %v939
    %v978 = vpop.f32.mrb[0].mxu0
    %v979 = vadd.f32 0.0, %v978
    %v980 = vpop.f32.mrb[0].mxu0
    %v981 = vpop.f32.mrb[0].mxu0
    %v982 = vpop.f32.mrb[0].mxu0
    %983 = vdwg.mxu0
    %v985 = vsel %vm516, %v935, 0
    %v988 = vsel %vm546, %v937, 0
    %990 = vmatprep.subr.bf16.mxu0 0
    %991 = vmatpush1.bf16.msra.mxu0 %v988
    %992 = vmatprep.subr.bf16.mxu0 0
    %993 = vmatpush1.bf16.msra.mxu0 0
    %994 = vmatprep.subr.bf16.mxu0 0
    %995 = vmatpush1.bf16.msra.mxu0 0
    %996 = vmatprep.subr.bf16.mxu0 0
    %997 = vmatpush1.bf16.msra.mxu0 0
    %998 = vmatprep.subr.bf16.mxu0 0
    %999 = vmatpush1.bf16.msra.mxu0 0
    %1000 = vmatprep.subr.bf16.mxu0 0
    %1001 = vmatpush1.bf16.msra.mxu0 0
    %1002 = vmatprep.subr.bf16.mxu0 0
    %1003 = vmatpush1.bf16.msra.mxu0 0
    %1004 = vmatprep.subr.bf16.mxu0 0
    %1005 = vmatpush1.bf16.msra.mxu0 0
    %1006 = vmatprep.subr.bf16.mxu0 0
    %1007 = vmatpush1.bf16.msra.mxu0 0
    %1008 = vmatprep.subr.bf16.mxu0 0
    %1009 = vmatpush1.bf16.msra.mxu0 0
    %1010 = vmatprep.subr.bf16.mxu0 0
    %1011 = vmatpush1.bf16.msra.mxu0 0
    %1012 = vmatprep.subr.bf16.mxu0 0
    %1013 = vmatpush1.bf16.msra.mxu0 0
    %1014 = vmatprep.subr.bf16.mxu0 0
    %1015 = vmatpush1.bf16.msra.mxu0 0
    %1016 = vmatprep.subr.bf16.mxu0 0
    %1017 = vmatpush1.bf16.msra.mxu0 0
    %1018 = vmatprep.subr.bf16.mxu0 0
    %1019 = vmatpush1.bf16.msra.mxu0 0
    %1020 = vmatprep.subr.bf16.mxu0 0
    %1021 = vmatpush1.bf16.msra.mxu0 0
    %1022 = vmatprep.mubr.bf16.mxu0 0
    %1023 = vmatmul.mubr.bf16.gmra.mrb[0].mxu0 %v985
    %v1024 = vpop.f32.mrb[0].mxu0
    %v1025 = vadd.f32 0.0, %v1024
    %v1026 = vpop.f32.mrb[0].mxu0
    %v1027 = vpop.f32.mrb[0].mxu0
    %v1028 = vpop.f32.mrb[0].mxu0
    %1029 = vdwg.mxu0
    %v1030 = vpack.c.bf16 %v1025, %v979
    %v1033 = vunpack.c.l.b16 %v192
    %v1034 = vunpack.c.l.b16 %v193
    %v1035 = vpack.c.b16 %v1034, %v1033
    %v1038 = vsel %vm421, %v1030, 0
    %1040 = vmatprep.subr.bf16.mxu0 0
    %1041 = vmatpush1.bf16.msra.mxu0 %v1035
    %1042 = vmatprep.subr.bf16.mxu0 0
    %1043 = vmatpush1.bf16.msra.mxu0 0
    %1044 = vmatprep.subr.bf16.mxu0 0
    %1045 = vmatpush1.bf16.msra.mxu0 0
    %1046 = vmatprep.subr.bf16.mxu0 0
    %1047 = vmatpush1.bf16.msra.mxu0 0
    %1048 = vmatprep.subr.bf16.mxu0 0
    %1049 = vmatpush1.bf16.msra.mxu0 0
    %1050 = vmatprep.subr.bf16.mxu0 0
    %1051 = vmatpush1.bf16.msra.mxu0 0
    %1052 = vmatprep.subr.bf16.mxu0 0
    %1053 = vmatpush1.bf16.msra.mxu0 0
    %1054 = vmatprep.subr.bf16.mxu0 0
    %1055 = vmatpush1.bf16.msra.mxu0 0
    %1056 = vmatprep.subr.bf16.mxu0 0
    %1057 = vmatpush1.bf16.msra.mxu0 0
    %1058 = vmatprep.subr.bf16.mxu0 0
    %1059 = vmatpush1.bf16.msra.mxu0 0
    %1060 = vmatprep.subr.bf16.mxu0 0
    %1061 = vmatpush1.bf16.msra.mxu0 0
    %1062 = vmatprep.subr.bf16.mxu0 0
    %1063 = vmatpush1.bf16.msra.mxu0 0
    %1064 = vmatprep.subr.bf16.mxu0 0
    %1065 = vmatpush1.bf16.msra.mxu0 0
    %1066 = vmatprep.subr.bf16.mxu0 0
    %1067 = vmatpush1.bf16.msra.mxu0 0
    %1068 = vmatprep.subr.bf16.mxu0 0
    %1069 = vmatpush1.bf16.msra.mxu0 0
    %1070 = vmatprep.subr.bf16.mxu0 0
    %1071 = vmatpush1.bf16.msra.mxu0 0
    %1072 = vmatprep.mubr.bf16.mxu0 0
    %1073 = vmatmul.mubr.bf16.gmra.mrb[0].mxu0 %v1038
    %v1074 = vpop.f32.mrb[0].mxu0
    %v1075 = vadd.f32 0.0, %v1074
    %v1076 = vpop.f32.mrb[0].mxu0
    %v1077 = vpop.f32.mrb[0].mxu0
    %v1078 = vadd.f32 0.0, %v1077
    %v1079 = vpop.f32.mrb[0].mxu0
    %1080 = vdwg.mxu0
    %v1083 = vunpack.c.l.b16 %v190
    %v1084 = vunpack.c.l.b16 %v191
    %v1085 = vpack.c.b16 %v1084, %v1083
    %v1088 = vsel %vm421, %v636, 0
    %1090 = vmatprep.subr.bf16.mxu0 0
    %1091 = vmatpush1.bf16.msra.mxu0 %v1085
    %1092 = vmatprep.subr.bf16.mxu0 0
    %1093 = vmatpush1.bf16.msra.mxu0 0
    %1094 = vmatprep.subr.bf16.mxu0 0
    %1095 = vmatpush1.bf16.msra.mxu0 0
    %1096 = vmatprep.subr.bf16.mxu0 0
    %1097 = vmatpush1.bf16.msra.mxu0 0
    %1098 = vmatprep.subr.bf16.mxu0 0
    %1099 = vmatpush1.bf16.msra.mxu0 0
    %1100 = vmatprep.subr.bf16.mxu0 0
    %1101 = vmatpush1.bf16.msra.mxu0 0
    %1102 = vmatprep.subr.bf16.mxu0 0
    %1103 = vmatpush1.bf16.msra.mxu0 0
    %1104 = vmatprep.subr.bf16.mxu0 0
    %1105 = vmatpush1.bf16.msra.mxu0 0
    %1106 = vmatprep.subr.bf16.mxu0 0
    %1107 = vmatpush1.bf16.msra.mxu0 0
    %1108 = vmatprep.subr.bf16.mxu0 0
    %1109 = vmatpush1.bf16.msra.mxu0 0
    %1110 = vmatprep.subr.bf16.mxu0 0
    %1111 = vmatpush1.bf16.msra.mxu0 0
    %1112 = vmatprep.subr.bf16.mxu0 0
    %1113 = vmatpush1.bf16.msra.mxu0 0
    %1114 = vmatprep.subr.bf16.mxu0 0
    %1115 = vmatpush1.bf16.msra.mxu0 0
    %1116 = vmatprep.subr.bf16.mxu0 0
    %1117 = vmatpush1.bf16.msra.mxu0 0
    %1118 = vmatprep.subr.bf16.mxu0 0
    %1119 = vmatpush1.bf16.msra.mxu0 0
    %1120 = vmatprep.subr.bf16.mxu0 0
    %1121 = vmatpush1.bf16.msra.mxu0 0
    %1122 = vmatprep.mubr.bf16.mxu0 0
    %1123 = vmatmul.mubr.bf16.gmra.mrb[0].mxu0 %v1088
    %v1124 = vpop.f32.mrb[0].mxu0
    %v1125 = vadd.f32 %v1075, %v1124
    %v1126 = vpop.f32.mrb[0].mxu0
    %v1127 = vpop.f32.mrb[0].mxu0
    %v1128 = vadd.f32 %v1078, %v1127
    %v1129 = vpop.f32.mrb[0].mxu0
    %1130 = vdwg.mxu0
    %v1132 = vlaneseq
    %v1133 = vshrl.u32 %v1132, 7
    %v1134 = vsub.s32 0, %v1133
    %v1135 = vrot.slane %v198, %v1134
    %v1137 = vadd.f32 %v1125, %v1135
    %v1138 = vadd.f32 %v1128, %v1135
    %v1139 = vadd.f32 %v128, %v1137
    %v1140 = vadd.f32 %v129, %v1138
    %v1141 = vsel %vm86, %v1139, 0.0
    %1142 = vadd.xlane.f32.xlu0 %v1141
    %v1143 = vpop.xlane.xlu0 %1142
    %v1144 = vsel %vm86, %v1140, 0.0
    %1145 = vadd.xlane.f32.xlu0 %v1144
    %v1146 = vpop.xlane.xlu0 %1145
    %v1147 = vmul.f32 %v1143, %v93
    %v1148 = vmul.f32 %v1146, %v93
    %v1149 = vsub.f32 %v1139, %v1147
    %v1150 = vsub.f32 %v1140, %v1148
    %v1151 = vmul.f32 %v1149, %v1149
    %v1152 = vmul.f32 %v1150, %v1150
    %v1153 = vsel %vm86, %v1151, 0.0
    %1154 = vadd.xlane.f32.xlu0 %v1153
    %v1155 = vpop.xlane.xlu0 %1154
    %v1156 = vsel %vm86, %v1152, 0.0
    %1157 = vadd.xlane.f32.xlu0 %v1156
    %v1158 = vpop.xlane.xlu0 %1157
    %v1159 = vmul.f32 %v1155, %v93
    %v1160 = vmul.f32 %v1158, %v93
    %v1161 = vadd.f32 %v1159, 1e-12
    %v1162 = vadd.f32 %v1160, 1e-12
    %v1163 = vrsqrt.pop %v1161
    %v1164 = vrsqrt.pop %v1162
    %v1165 = vmul.f32 %v1149, %v1163
    %v1166 = vmul.f32 %v1150, %v1164
    %v1168 = vlaneseq
    %v1169 = vshrl.u32 %v1168, 7
    %v1170 = vsub.s32 0, %v1169
    %v1171 = vrot.slane %v200, %v1170
    %v1173 = vmul.f32 %v1165, %v1171
    %v1174 = vmul.f32 %v1166, %v1171
    %v1176 = vlaneseq
    %v1177 = vshrl.u32 %v1176, 7
    %v1178 = vsub.s32 0, %v1177
    %v1179 = vrot.slane %v202, %v1178
    %v1181 = vadd.f32 %v1173, %v1179
    %v1182 = vadd.f32 %v1174, %v1179
    %v1183 = vpack.c.bf16 %v1182, %v1181
    %v1185 = vlaneseq
    %v1186 = vshrl.u32 %v1185, 7
    %v1187 = vsub.s32 0, %v1186
    %v1188 = vrot.slane %v212, %v1187
    %v1194 = vunpack.c.l.b16 %v204
    %v1195 = vunpack.c.l.b16 %v205
    %v1196 = vunpack.c.l.b16 %v206
    %v1197 = vunpack.c.l.b16 %v207
    %v1198 = vpack.c.b16 %v1195, %v1194
    %v1199 = vpack.c.b16 %v1197, %v1196
    %v1203 = vsel %vm86, %v1183, 0
    %1205 = vmatprep.subr.bf16.mxu0 0
    %1206 = vmatpush1.bf16.msra.mxu0 %v1198
    %1207 = vmatprep.subr.bf16.mxu0 0
    %1208 = vmatpush1.bf16.msra.mxu0 %v1199
    %1209 = vmatprep.subr.bf16.mxu0 0
    %1210 = vmatpush1.bf16.msra.mxu0 0
    %1211 = vmatprep.subr.bf16.mxu0 0
    %1212 = vmatpush1.bf16.msra.mxu0 0
    %1213 = vmatprep.subr.bf16.mxu0 0
    %1214 = vmatpush1.bf16.msra.mxu0 0
    %1215 = vmatprep.subr.bf16.mxu0 0
    %1216 = vmatpush1.bf16.msra.mxu0 0
    %1217 = vmatprep.subr.bf16.mxu0 0
    %1218 = vmatpush1.bf16.msra.mxu0 0
    %1219 = vmatprep.subr.bf16.mxu0 0
    %1220 = vmatpush1.bf16.msra.mxu0 0
    %1221 = vmatprep.subr.bf16.mxu0 0
    %1222 = vmatpush1.bf16.msra.mxu0 0
    %1223 = vmatprep.subr.bf16.mxu0 0
    %1224 = vmatpush1.bf16.msra.mxu0 0
    %1225 = vmatprep.subr.bf16.mxu0 0
    %1226 = vmatpush1.bf16.msra.mxu0 0
    %1227 = vmatprep.subr.bf16.mxu0 0
    %1228 = vmatpush1.bf16.msra.mxu0 0
    %1229 = vmatprep.subr.bf16.mxu0 0
    %1230 = vmatpush1.bf16.msra.mxu0 0
    %1231 = vmatprep.subr.bf16.mxu0 0
    %1232 = vmatpush1.bf16.msra.mxu0 0
    %1233 = vmatprep.subr.bf16.mxu0 0
    %1234 = vmatpush1.bf16.msra.mxu0 0
    %1235 = vmatprep.subr.bf16.mxu0 0
    %1236 = vmatpush1.bf16.msra.mxu0 0
    %1237 = vmatprep.mubr.bf16.mxu0 0
    %1238 = vmatmul.mubr.bf16.gmra.mrb[0].mxu0 %v1203
    %v1239 = vpop.f32.mrb[0].mxu0
    %v1240 = vadd.f32 %v1188, %v1239
    %v1241 = vpop.f32.mrb[0].mxu0
    %v1242 = vpop.f32.mrb[0].mxu0
    %v1243 = vadd.f32 %v1188, %v1242
    %v1244 = vpop.f32.mrb[0].mxu0
    %1245 = vdwg.mxu0
    %v1246 = vmul.f32 %v1240, 0.5
    %v1247 = vmul.f32 %v1243, 0.5
    %v1248 = vmul.f32 %v1240, 0.044715
    %v1249 = vmul.f32 %v1243, 0.044715
    %v1250 = vmul.f32 %v1248, %v1240
    %v1251 = vmul.f32 %v1249, %v1243
    %v1252 = vmul.f32 %v1250, %v1240
    %v1253 = vmul.f32 %v1251, %v1243
    %v1254 = vadd.f32 %v1240, %v1252
    %v1255 = vadd.f32 %v1243, %v1253
    %v1256 = vmul.f32 %v1254, 0.7978846
    %v1257 = vmul.f32 %v1255, 0.7978846
    %v1258 = vtanh.pop %v1256
    %v1259 = vtanh.pop %v1257
    %v1260 = vadd.f32 %v1258, 1.0
    %v1261 = vadd.f32 %v1259, 1.0
    %v1262 = vmul.f32 %v1246, %v1260
    %v1263 = vmul.f32 %v1247, %v1261
    %v1264 = vpack.c.bf16 %v1263, %v1262
    %v1266 = vlaneseq
    %v1267 = vshrl.u32 %v1266, 7
    %v1268 = vsub.s32 0, %v1267
    %v1269 = vrot.slane %v230, %v1268
    %v1279 = vunpack.c.l.b16 %v214
    %v1280 = vunpack.c.l.b16 %v215
    %v1281 = vunpack.c.l.b16 %v216
    %v1282 = vunpack.c.l.b16 %v217
    %v1283 = vunpack.c.l.b16 %v218
    %v1284 = vunpack.c.l.b16 %v219
    %v1285 = vunpack.c.l.b16 %v220
    %v1286 = vunpack.c.l.b16 %v221
    %v1287 = vpack.c.b16 %v1280, %v1279
    %v1288 = vpack.c.b16 %v1282, %v1281
    %v1289 = vpack.c.b16 %v1284, %v1283
    %v1290 = vpack.c.b16 %v1286, %v1285
    %vm1295 = vcmask 523264
    %v1297 = vsel %vm1295, %v1264, 0
    %1299 = vmatprep.subr.bf16.mxu0 0
    %1300 = vmatpush1.bf16.msra.mxu0 %v1287
    %1301 = vmatprep.subr.bf16.mxu0 0
    %1302 = vmatpush1.bf16.msra.mxu0 %v1288
    %1303 = vmatprep.subr.bf16.mxu0 0
    %1304 = vmatpush1.bf16.msra.mxu0 %v1289
    %1305 = vmatprep.subr.bf16.mxu0 0
    %1306 = vmatpush1.bf16.msra.mxu0 %v1290
    %1307 = vmatprep.subr.bf16.mxu0 0
    %1308 = vmatpush1.bf16.msra.mxu0 0
    %1309 = vmatprep.subr.bf16.mxu0 0
    %1310 = vmatpush1.bf16.msra.mxu0 0
    %1311 = vmatprep.subr.bf16.mxu0 0
    %1312 = vmatpush1.bf16.msra.mxu0 0
    %1313 = vmatprep.subr.bf16.mxu0 0
    %1314 = vmatpush1.bf16.msra.mxu0 0
    %1315 = vmatprep.subr.bf16.mxu0 0
    %1316 = vmatpush1.bf16.msra.mxu0 0
    %1317 = vmatprep.subr.bf16.mxu0 0
    %1318 = vmatpush1.bf16.msra.mxu0 0
    %1319 = vmatprep.subr.bf16.mxu0 0
    %1320 = vmatpush1.bf16.msra.mxu0 0
    %1321 = vmatprep.subr.bf16.mxu0 0
    %1322 = vmatpush1.bf16.msra.mxu0 0
    %1323 = vmatprep.subr.bf16.mxu0 0
    %1324 = vmatpush1.bf16.msra.mxu0 0
    %1325 = vmatprep.subr.bf16.mxu0 0
    %1326 = vmatpush1.bf16.msra.mxu0 0
    %1327 = vmatprep.subr.bf16.mxu0 0
    %1328 = vmatpush1.bf16.msra.mxu0 0
    %1329 = vmatprep.subr.bf16.mxu0 0
    %1330 = vmatpush1.bf16.msra.mxu0 0
    %1331 = vmatprep.mubr.bf16.mxu0 0
    %1332 = vmatmul.mubr.bf16.gmra.mrb[0].mxu0 %v1297
    %v1333 = vpop.f32.mrb[0].mxu0
    %v1334 = vadd.f32 %v1269, %v1333
    %v1335 = vpop.f32.mrb[0].mxu0
    %v1336 = vpop.f32.mrb[0].mxu0
    %v1337 = vadd.f32 %v1269, %v1336
    %v1338 = vpop.f32.mrb[0].mxu0
    %1339 = vdwg.mxu0
    %v1340 = vadd.f32 %v1181, %v1334
    %v1341 = vadd.f32 %v1182, %v1337
    %v1342 = vsel %vm86, %v1340, 0.0
    %1343 = vadd.xlane.f32.xlu0 %v1342
    %v1344 = vpop.xlane.xlu0 %1343
    %v1345 = vsel %vm86, %v1341, 0.0
    %1346 = vadd.xlane.f32.xlu0 %v1345
    %v1347 = vpop.xlane.xlu0 %1346
    %v1348 = vmul.f32 %v1344, %v93
    %v1349 = vmul.f32 %v1347, %v93
    %v1350 = vsub.f32 %v1340, %v1348
    %v1351 = vsub.f32 %v1341, %v1349
    %v1352 = vmul.f32 %v1350, %v1350
    %v1353 = vmul.f32 %v1351, %v1351
    %v1354 = vsel %vm86, %v1352, 0.0
    %1355 = vadd.xlane.f32.xlu0 %v1354
    %v1356 = vpop.xlane.xlu0 %1355
    %v1357 = vsel %vm86, %v1353, 0.0
    %1358 = vadd.xlane.f32.xlu0 %v1357
    %v1359 = vpop.xlane.xlu0 %1358
    %v1360 = vmul.f32 %v1356, %v93
    %v1361 = vmul.f32 %v1359, %v93
    %v1362 = vadd.f32 %v1360, 1e-12
    %v1363 = vadd.f32 %v1361, 1e-12
    %v1364 = vrsqrt.pop %v1362
    %v1365 = vrsqrt.pop %v1363
    %v1366 = vmul.f32 %v1350, %v1364
    %v1367 = vmul.f32 %v1351, %v1365
    %v1369 = vlaneseq
    %v1370 = vshrl.u32 %v1369, 7
    %v1371 = vsub.s32 0, %v1370
    %v1372 = vrot.slane %v232, %v1371
    %v1374 = vmul.f32 %v1366, %v1372
    %v1375 = vmul.f32 %v1367, %v1372
    %v1377 = vlaneseq
    %v1378 = vshrl.u32 %v1377, 7
    %v1379 = vsub.s32 0, %v1378
    %v1380 = vrot.slane %v234, %v1379
    %v1382 = vadd.f32 %v1374, %v1380
    %v1383 = vadd.f32 %v1375, %v1380
    %v1384 = vpack.c.bf16 %v1383, %v1382
    %v1386 = vlaneseq
    %v1387 = vshrl.u32 %v1386, 7
    %v1388 = vsub.s32 0, %v1387
    %v1389 = vrot.slane %v148, %v1388
    %v1395 = vunpack.c.l.b16 %v138
    %v1396 = vunpack.c.l.b16 %v139
    %v1397 = vunpack.c.l.b16 %v140
    %v1398 = vunpack.c.l.b16 %v141
    %v1399 = vpack.c.b16 %v1396, %v1395
    %v1400 = vpack.c.b16 %v1398, %v1397
    %v1404 = vsel %vm86, %v1384, 0
    %1406 = vmatprep.subr.bf16.mxu0 0
    %1407 = vmatpush1.bf16.msra.mxu0 %v1399
    %1408 = vmatprep.subr.bf16.mxu0 0
    %1409 = vmatpush1.bf16.msra.mxu0 %v1400
    %1410 = vmatprep.subr.bf16.mxu0 0
    %1411 = vmatpush1.bf16.msra.mxu0 0
    %1412 = vmatprep.subr.bf16.mxu0 0
    %1413 = vmatpush1.bf16.msra.mxu0 0
    %1414 = vmatprep.subr.bf16.mxu0 0
    %1415 = vmatpush1.bf16.msra.mxu0 0
    %1416 = vmatprep.subr.bf16.mxu0 0
    %1417 = vmatpush1.bf16.msra.mxu0 0
    %1418 = vmatprep.subr.bf16.mxu0 0
    %1419 = vmatpush1.bf16.msra.mxu0 0
    %1420 = vmatprep.subr.bf16.mxu0 0
    %1421 = vmatpush1.bf16.msra.mxu0 0
    %1422 = vmatprep.subr.bf16.mxu0 0
    %1423 = vmatpush1.bf16.msra.mxu0 0
    %1424 = vmatprep.subr.bf16.mxu0 0
    %1425 = vmatpush1.bf16.msra.mxu0 0
    %1426 = vmatprep.subr.bf16.mxu0 0
    %1427 = vmatpush1.bf16.msra.mxu0 0
    %1428 = vmatprep.subr.bf16.mxu0 0
    %1429 = vmatpush1.bf16.msra.mxu0 0
    %1430 = vmatprep.subr.bf16.mxu0 0
    %1431 = vmatpush1.bf16.msra.mxu0 0
    %1432 = vmatprep.subr.bf16.mxu0 0
    %1433 = vmatpush1.bf16.msra.mxu0 0
    %1434 = vmatprep.subr.bf16.mxu0 0
    %1435 = vmatpush1.bf16.msra.mxu0 0
    %1436 = vmatprep.subr.bf16.mxu0 0
    %1437 = vmatpush1.bf16.msra.mxu0 0
    %1438 = vmatprep.mubr.bf16.mxu0 0
    %1439 = vmatmul.mubr.bf16.gmra.mrb[0].mxu0 %v1404
    %v1440 = vpop.f32.mrb[0].mxu0
    %v1441 = vadd.f32 %v1389, %v1440
    %v1442 = vpop.f32.mrb[0].mxu0
    %v1443 = vpop.f32.mrb[0].mxu0
    %v1444 = vadd.f32 %v1389, %v1443
    %v1445 = vpop.f32.mrb[0].mxu0
    %1446 = vdwg.mxu0
    %v1448 = vlaneseq
    %v1449 = vshrl.u32 %v1448, 7
    %v1450 = vsub.s32 0, %v1449
    %v1451 = vrot.slane %v168, %v1450
    %v1457 = vunpack.c.l.b16 %v158
    %v1458 = vunpack.c.l.b16 %v159
    %v1459 = vunpack.c.l.b16 %v160
    %v1460 = vunpack.c.l.b16 %v161
    %v1461 = vpack.c.b16 %v1458, %v1457
    %v1462 = vpack.c.b16 %v1460, %v1459
    %1465 = vmatprep.subr.bf16.mxu0 0
    %1466 = vmatpush1.bf16.msra.mxu0 %v1461
    %1467 = vmatprep.subr.bf16.mxu0 0
    %1468 = vmatpush1.bf16.msra.mxu0 %v1462
    %1469 = vmatprep.subr.bf16.mxu0 0
    %1470 = vmatpush1.bf16.msra.mxu0 0
    %1471 = vmatprep.subr.bf16.mxu0 0
    %1472 = vmatpush1.bf16.msra.mxu0 0
    %1473 = vmatprep.subr.bf16.mxu0 0
    %1474 = vmatpush1.bf16.msra.mxu0 0
    %1475 = vmatprep.subr.bf16.mxu0 0
    %1476 = vmatpush1.bf16.msra.mxu0 0
    %1477 = vmatprep.subr.bf16.mxu0 0
    %1478 = vmatpush1.bf16.msra.mxu0 0
    %1479 = vmatprep.subr.bf16.mxu0 0
    %1480 = vmatpush1.bf16.msra.mxu0 0
    %1481 = vmatprep.subr.bf16.mxu0 0
    %1482 = vmatpush1.bf16.msra.mxu0 0
    %1483 = vmatprep.subr.bf16.mxu0 0
    %1484 = vmatpush1.bf16.msra.mxu0 0
    %1485 = vmatprep.subr.bf16.mxu0 0
    %1486 = vmatpush1.bf16.msra.mxu0 0
    %1487 = vmatprep.subr.bf16.mxu0 0
    %1488 = vmatpush1.bf16.msra.mxu0 0
    %1489 = vmatprep.subr.bf16.mxu0 0
    %1490 = vmatpush1.bf16.msra.mxu0 0
    %1491 = vmatprep.subr.bf16.mxu0 0
    %1492 = vmatpush1.bf16.msra.mxu0 0
    %1493 = vmatprep.subr.bf16.mxu0 0
    %1494 = vmatpush1.bf16.msra.mxu0 0
    %1495 = vmatprep.subr.bf16.mxu0 0
    %1496 = vmatpush1.bf16.msra.mxu0 0
    %1497 = vmatprep.mubr.bf16.mxu0 0
    %1498 = vmatmul.mubr.bf16.gmra.mrb[0].mxu0 %v1404
    %v1499 = vpop.f32.mrb[0].mxu0
    %v1500 = vadd.f32 %v1451, %v1499
    %v1501 = vpop.f32.mrb[0].mxu0
    %v1502 = vpop.f32.mrb[0].mxu0
    %v1503 = vadd.f32 %v1451, %v1502
    %v1504 = vpop.f32.mrb[0].mxu0
    %1505 = vdwg.mxu0
    %v1507 = vlaneseq
    %v1508 = vshrl.u32 %v1507, 7
    %v1509 = vsub.s32 0, %v1508
    %v1510 = vrot.slane %v188, %v1509
    %v1516 = vunpack.c.l.b16 %v178
    %v1517 = vunpack.c.l.b16 %v179
    %v1518 = vunpack.c.l.b16 %v180
    %v1519 = vunpack.c.l.b16 %v181
    %v1520 = vpack.c.b16 %v1517, %v1516
    %v1521 = vpack.c.b16 %v1519, %v1518
    %1524 = vmatprep.subr.bf16.mxu0 0
    %1525 = vmatpush1.bf16.msra.mxu0 %v1520
    %1526 = vmatprep.subr.bf16.mxu0 0
    %1527 = vmatpush1.bf16.msra.mxu0 %v1521
    %1528 = vmatprep.subr.bf16.mxu0 0
    %1529 = vmatpush1.bf16.msra.mxu0 0
    %1530 = vmatprep.subr.bf16.mxu0 0
    %1531 = vmatpush1.bf16.msra.mxu0 0
    %1532 = vmatprep.subr.bf16.mxu0 0
    %1533 = vmatpush1.bf16.msra.mxu0 0
    %1534 = vmatprep.subr.bf16.mxu0 0
    %1535 = vmatpush1.bf16.msra.mxu0 0
    %1536 = vmatprep.subr.bf16.mxu0 0
    %1537 = vmatpush1.bf16.msra.mxu0 0
    %1538 = vmatprep.subr.bf16.mxu0 0
    %1539 = vmatpush1.bf16.msra.mxu0 0
    %1540 = vmatprep.subr.bf16.mxu0 0
    %1541 = vmatpush1.bf16.msra.mxu0 0
    %1542 = vmatprep.subr.bf16.mxu0 0
    %1543 = vmatpush1.bf16.msra.mxu0 0
    %1544 = vmatprep.subr.bf16.mxu0 0
    %1545 = vmatpush1.bf16.msra.mxu0 0
    %1546 = vmatprep.subr.bf16.mxu0 0
    %1547 = vmatpush1.bf16.msra.mxu0 0
    %1548 = vmatprep.subr.bf16.mxu0 0
    %1549 = vmatpush1.bf16.msra.mxu0 0
    %1550 = vmatprep.subr.bf16.mxu0 0
    %1551 = vmatpush1.bf16.msra.mxu0 0
    %1552 = vmatprep.subr.bf16.mxu0 0
    %1553 = vmatpush1.bf16.msra.mxu0 0
    %1554 = vmatprep.subr.bf16.mxu0 0
    %1555 = vmatpush1.bf16.msra.mxu0 0
    %1556 = vmatprep.mubr.bf16.mxu0 0
    %1557 = vmatmul.mubr.bf16.gmra.mrb[0].mxu0 %v1404
    %v1558 = vpop.f32.mrb[0].mxu0
    %v1559 = vadd.f32 %v1510, %v1558
    %v1560 = vpop.f32.mrb[0].mxu0
    %v1561 = vpop.f32.mrb[0].mxu0
    %v1562 = vadd.f32 %v1510, %v1561
    %v1563 = vpop.f32.mrb[0].mxu0
    %1564 = vdwg.mxu0
    %v1565 = vpack.c.bf16 %v1441, %v1441
    %v1566 = vpack.c.bf16 %v1444, %v1444
    %v1567 = vpack.c.bf16 %v1500, %v1500
    %v1568 = vpack.c.bf16 %v1503, %v1503
    %v1570 = vsel %vm421, %v1565, 0
    %v1573 = vsel %vm421, %v1567, 0
    %1575 = vmatprep.subr.bf16.mxu0 0
    %1576 = vmatpush1.bf16.xpose.msra.mxu0 %v1573
    %1577 = vmatprep.subr.bf16.mxu0 0
    %1578 = vmatpush1.bf16.xpose.msra.mxu0 0
    %1579 = vmatprep.subr.bf16.mxu0 0
    %1580 = vmatpush1.bf16.xpose.msra.mxu0 0
    %1581 = vmatprep.subr.bf16.mxu0 0
    %1582 = vmatpush1.bf16.xpose.msra.mxu0 0
    %1583 = vmatprep.subr.bf16.mxu0 0
    %1584 = vmatpush1.bf16.xpose.msra.mxu0 0
    %1585 = vmatprep.subr.bf16.mxu0 0
    %1586 = vmatpush1.bf16.xpose.msra.mxu0 0
    %1587 = vmatprep.subr.bf16.mxu0 0
    %1588 = vmatpush1.bf16.xpose.msra.mxu0 0
    %1589 = vmatprep.subr.bf16.mxu0 0
    %1590 = vmatpush1.bf16.xpose.msra.mxu0 0
    %1591 = vmatprep.subr.bf16.mxu0 0
    %1592 = vmatpush1.bf16.xpose.msra.mxu0 0
    %1593 = vmatprep.subr.bf16.mxu0 0
    %1594 = vmatpush1.bf16.xpose.msra.mxu0 0
    %1595 = vmatprep.subr.bf16.mxu0 0
    %1596 = vmatpush1.bf16.xpose.msra.mxu0 0
    %1597 = vmatprep.subr.bf16.mxu0 0
    %1598 = vmatpush1.bf16.xpose.msra.mxu0 0
    %1599 = vmatprep.subr.bf16.mxu0 0
    %1600 = vmatpush1.bf16.xpose.msra.mxu0 0
    %1601 = vmatprep.subr.bf16.mxu0 0
    %1602 = vmatpush1.bf16.xpose.msra.mxu0 0
    %1603 = vmatprep.subr.bf16.mxu0 0
    %1604 = vmatpush1.bf16.xpose.msra.mxu0 0
    %1605 = vmatprep.subr.bf16.mxu0 0
    %1606 = vmatpush1.bf16.xpose.msra.mxu0 0
    %1607 = vmatprep.mubr.bf16.mxu0 0
    %1608 = vmatmul.mubr.bf16.gmra.mrb[0].mxu0 %v1570
    %v1609 = vpop.f32.mrb[0].mxu0
    %v1610 = vadd.f32 0.0, %v1609
    %v1611 = vpop.f32.mrb[0].mxu0
    %v1612 = vpop.f32.mrb[0].mxu0
    %v1613 = vpop.f32.mrb[0].mxu0
    %1614 = vdwg.mxu0
    %v1616 = vsel %vm421, %v1566, 0
    %v1619 = vsel %vm421, %v1568, 0
    %1621 = vmatprep.subr.bf16.mxu0 0
    %1622 = vmatpush1.bf16.xpose.msra.mxu0 %v1619
    %1623 = vmatprep.subr.bf16.mxu0 0
    %1624 = vmatpush1.bf16.xpose.msra.mxu0 0
    %1625 = vmatprep.subr.bf16.mxu0 0
    %1626 = vmatpush1.bf16.xpose.msra.mxu0 0
    %1627 = vmatprep.subr.bf16.mxu0 0
    %1628 = vmatpush1.bf16.xpose.msra.mxu0 0
    %1629 = vmatprep.subr.bf16.mxu0 0
    %1630 = vmatpush1.bf16.xpose.msra.mxu0 0
    %1631 = vmatprep.subr.bf16.mxu0 0
    %1632 = vmatpush1.bf16.xpose.msra.mxu0 0
    %1633 = vmatprep.subr.bf16.mxu0 0
    %1634 = vmatpush1.bf16.xpose.msra.mxu0 0
    %1635 = vmatprep.subr.bf16.mxu0 0
    %1636 = vmatpush1.bf16.xpose.msra.mxu0 0
    %1637 = vmatprep.subr.bf16.mxu0 0
    %1638 = vmatpush1.bf16.xpose.msra.mxu0 0
    %1639 = vmatprep.subr.bf16.mxu0 0
    %1640 = vmatpush1.bf16.xpose.msra.mxu0 0
    %1641 = vmatprep.subr.bf16.mxu0 0
    %1642 = vmatpush1.bf16.xpose.msra.mxu0 0
    %1643 = vmatprep.subr.bf16.mxu0 0
    %1644 = vmatpush1.bf16.xpose.msra.mxu0 0
    %1645 = vmatprep.subr.bf16.mxu0 0
    %1646 = vmatpush1.bf16.xpose.msra.mxu0 0
    %1647 = vmatprep.subr.bf16.mxu0 0
    %1648 = vmatpush1.bf16.xpose.msra.mxu0 0
    %1649 = vmatprep.subr.bf16.mxu0 0
    %1650 = vmatpush1.bf16.xpose.msra.mxu0 0
    %1651 = vmatprep.subr.bf16.mxu0 0
    %1652 = vmatpush1.bf16.xpose.msra.mxu0 0
    %1653 = vmatprep.mubr.bf16.mxu0 0
    %1654 = vmatmul.mubr.bf16.gmra.mrb[0].mxu0 %v1616
    %v1655 = vpop.f32.mrb[0].mxu0
    %v1656 = vadd.f32 0.0, %v1655
    %v1657 = vpop.f32.mrb[0].mxu0
    %v1658 = vpop.f32.mrb[0].mxu0
    %v1659 = vpop.f32.mrb[0].mxu0
    %1660 = vdwg.mxu0
    %v1661 = vmul.f32 %v1610, 0.25
    %v1662 = vmul.f32 %v1656, 0.25
    %v1663 = vsel %vm516, %v1661, -inf
    %1664 = vmax.xlane.f32.xlu0 %v1663
    %v1665 = vpop.xlane.xlu0 %1664
    %v1666 = vsel %vm516, %v1662, -inf
    %1667 = vmax.xlane.f32.xlu0 %v1666
    %v1668 = vpop.xlane.xlu0 %1667
    %v1669 = vsub.f32 %v1661, %v1665
    %v1670 = vsub.f32 %v1662, %v1668
    %v1671 = vmul.f32 %v1669, 1.442695
    %v1672 = vpow.pop %v1671
    %v1673 = vmul.f32 %v1670, 1.442695
    %v1674 = vpow.pop %v1673
    %v1675 = vsel %vm516, %v1672, 0.0
    %1676 = vadd.xlane.f32.xlu0 %v1675
    %v1677 = vpop.xlane.xlu0 %1676
    %v1678 = vsel %vm516, %v1674, 0.0
    %1679 = vadd.xlane.f32.xlu0 %v1678
    %v1680 = vpop.xlane.xlu0 %1679
    %v1681 = vrcp.pop %v1677
    %v1682 = vrcp.pop %v1680
    %v1683 = vmul.f32 %v1672, %v1681
    %v1684 = vmul.f32 %v1674, %v1682
    %v1685 = vpack.c.bf16 %v1683, %v1683
    %v1686 = vpack.c.bf16 %v1684, %v1684
    %v1687 = vpack.c.bf16 %v1559, %v1559
    %v1688 = vpack.c.bf16 %v1562, %v1562
    %v1690 = vsel %vm516, %v1685, 0
    %v1693 = vsel %vm546, %v1687, 0
    %1695 = vmatprep.subr.bf16.mxu0 0
    %1696 = vmatpush1.bf16.msra.mxu0 %v1693
    %1697 = vmatprep.subr.bf16.mxu0 0
    %1698 = vmatpush1.bf16.msra.mxu0 0
    %1699 = vmatprep.subr.bf16.mxu0 0
    %1700 = vmatpush1.bf16.msra.mxu0 0
    %1701 = vmatprep.subr.bf16.mxu0 0
    %1702 = vmatpush1.bf16.msra.mxu0 0
    %1703 = vmatprep.subr.bf16.mxu0 0
    %1704 = vmatpush1.bf16.msra.mxu0 0
    %1705 = vmatprep.subr.bf16.mxu0 0
    %1706 = vmatpush1.bf16.msra.mxu0 0
    %1707 = vmatprep.subr.bf16.mxu0 0
    %1708 = vmatpush1.bf16.msra.mxu0 0
    %1709 = vmatprep.subr.bf16.mxu0 0
    %1710 = vmatpush1.bf16.msra.mxu0 0
    %1711 = vmatprep.subr.bf16.mxu0 0
    %1712 = vmatpush1.bf16.msra.mxu0 0
    %1713 = vmatprep.subr.bf16.mxu0 0
    %1714 = vmatpush1.bf16.msra.mxu0 0
    %1715 = vmatprep.subr.bf16.mxu0 0
    %1716 = vmatpush1.bf16.msra.mxu0 0
    %1717 = vmatprep.subr.bf16.mxu0 0
    %1718 = vmatpush1.bf16.msra.mxu0 0
    %1719 = vmatprep.subr.bf16.mxu0 0
    %1720 = vmatpush1.bf16.msra.mxu0 0
    %1721 = vmatprep.subr.bf16.mxu0 0
    %1722 = vmatpush1.bf16.msra.mxu0 0
    %1723 = vmatprep.subr.bf16.mxu0 0
    %1724 = vmatpush1.bf16.msra.mxu0 0
    %1725 = vmatprep.subr.bf16.mxu0 0
    %1726 = vmatpush1.bf16.msra.mxu0 0
    %1727 = vmatprep.mubr.bf16.mxu0 0
    %1728 = vmatmul.mubr.bf16.gmra.mrb[0].mxu0 %v1690
    %v1729 = vpop.f32.mrb[0].mxu0
    %v1730 = vadd.f32 0.0, %v1729
    %v1731 = vpop.f32.mrb[0].mxu0
    %v1732 = vpop.f32.mrb[0].mxu0
    %v1733 = vpop.f32.mrb[0].mxu0
    %1734 = vdwg.mxu0
    %v1736 = vsel %vm516, %v1686, 0
    %v1739 = vsel %vm546, %v1688, 0
    %1741 = vmatprep.subr.bf16.mxu0 0
    %1742 = vmatpush1.bf16.msra.mxu0 %v1739
    %1743 = vmatprep.subr.bf16.mxu0 0
    %1744 = vmatpush1.bf16.msra.mxu0 0
    %1745 = vmatprep.subr.bf16.mxu0 0
    %1746 = vmatpush1.bf16.msra.mxu0 0
    %1747 = vmatprep.subr.bf16.mxu0 0
    %1748 = vmatpush1.bf16.msra.mxu0 0
    %1749 = vmatprep.subr.bf16.mxu0 0
    %1750 = vmatpush1.bf16.msra.mxu0 0
    %1751 = vmatprep.subr.bf16.mxu0 0
    %1752 = vmatpush1.bf16.msra.mxu0 0
    %1753 = vmatprep.subr.bf16.mxu0 0
    %1754 = vmatpush1.bf16.msra.mxu0 0
    %1755 = vmatprep.subr.bf16.mxu0 0
    %1756 = vmatpush1.bf16.msra.mxu0 0
    %1757 = vmatprep.subr.bf16.mxu0 0
    %1758 = vmatpush1.bf16.msra.mxu0 0
    %1759 = vmatprep.subr.bf16.mxu0 0
    %1760 = vmatpush1.bf16.msra.mxu0 0
    %1761 = vmatprep.subr.bf16.mxu0 0
    %1762 = vmatpush1.bf16.msra.mxu0 0
    %1763 = vmatprep.subr.bf16.mxu0 0
    %1764 = vmatpush1.bf16.msra.mxu0 0
    %1765 = vmatprep.subr.bf16.mxu0 0
    %1766 = vmatpush1.bf16.msra.mxu0 0
    %1767 = vmatprep.subr.bf16.mxu0 0
    %1768 = vmatpush1.bf16.msra.mxu0 0
    %1769 = vmatprep.subr.bf16.mxu0 0
    %1770 = vmatpush1.bf16.msra.mxu0 0
    %1771 = vmatprep.subr.bf16.mxu0 0
    %1772 = vmatpush1.bf16.msra.mxu0 0
    %1773 = vmatprep.mubr.bf16.mxu0 0
    %1774 = vmatmul.mubr.bf16.gmra.mrb[0].mxu0 %v1736
    %v1775 = vpop.f32.mrb[0].mxu0
    %v1776 = vadd.f32 0.0, %v1775
    %v1777 = vpop.f32.mrb[0].mxu0
    %v1778 = vpop.f32.mrb[0].mxu0
    %v1779 = vpop.f32.mrb[0].mxu0
    %1780 = vdwg.mxu0
    %v1781 = vpack.c.bf16 %v1776, %v1730
    %v1783 = vlaneseq
    %v1784 = vshrl.u32 %v1783, 7
    %v1785 = vsub.s32 0, %v1784
    %v1786 = vrot.slane %v149, %v1785
    %v1792 = vunpack.c.l.b16 %v142
    %v1793 = vunpack.c.l.b16 %v143
    %v1794 = vunpack.c.l.b16 %v144
    %v1795 = vunpack.c.l.b16 %v145
    %v1796 = vpack.c.b16 %v1793, %v1792
    %v1797 = vpack.c.b16 %v1795, %v1794
    %1800 = vmatprep.subr.bf16.mxu0 0
    %1801 = vmatpush1.bf16.msra.mxu0 %v1796
    %1802 = vmatprep.subr.bf16.mxu0 0
    %1803 = vmatpush1.bf16.msra.mxu0 %v1797
    %1804 = vmatprep.subr.bf16.mxu0 0
    %1805 = vmatpush1.bf16.msra.mxu0 0
    %1806 = vmatprep.subr.bf16.mxu0 0
    %1807 = vmatpush1.bf16.msra.mxu0 0
    %1808 = vmatprep.subr.bf16.mxu0 0
    %1809 = vmatpush1.bf16.msra.mxu0 0
    %1810 = vmatprep.subr.bf16.mxu0 0
    %1811 = vmatpush1.bf16.msra.mxu0 0
    %1812 = vmatprep.subr.bf16.mxu0 0
    %1813 = vmatpush1.bf16.msra.mxu0 0
    %1814 = vmatprep.subr.bf16.mxu0 0
    %1815 = vmatpush1.bf16.msra.mxu0 0
    %1816 = vmatprep.subr.bf16.mxu0 0
    %1817 = vmatpush1.bf16.msra.mxu0 0
    %1818 = vmatprep.subr.bf16.mxu0 0
    %1819 = vmatpush1.bf16.msra.mxu0 0
    %1820 = vmatprep.subr.bf16.mxu0 0
    %1821 = vmatpush1.bf16.msra.mxu0 0
    %1822 = vmatprep.subr.bf16.mxu0 0
    %1823 = vmatpush1.bf16.msra.mxu0 0
    %1824 = vmatprep.subr.bf16.mxu0 0
    %1825 = vmatpush1.bf16.msra.mxu0 0
    %1826 = vmatprep.subr.bf16.mxu0 0
    %1827 = vmatpush1.bf16.msra.mxu0 0
    %1828 = vmatprep.subr.bf16.mxu0 0
    %1829 = vmatpush1.bf16.msra.mxu0 0
    %1830 = vmatprep.subr.bf16.mxu0 0
    %1831 = vmatpush1.bf16.msra.mxu0 0
    %1832 = vmatprep.mubr.bf16.mxu0 0
    %1833 = vmatmul.mubr.bf16.gmra.mrb[0].mxu0 %v1404
    %v1834 = vpop.f32.mrb[0].mxu0
    %v1835 = vadd.f32 %v1786, %v1834
    %v1836 = vpop.f32.mrb[0].mxu0
    %v1837 = vpop.f32.mrb[0].mxu0
    %v1838 = vadd.f32 %v1786, %v1837
    %v1839 = vpop.f32.mrb[0].mxu0
    %1840 = vdwg.mxu0
    %v1842 = vlaneseq
    %v1843 = vshrl.u32 %v1842, 7
    %v1844 = vsub.s32 0, %v1843
    %v1845 = vrot.slane %v169, %v1844
    %v1851 = vunpack.c.l.b16 %v162
    %v1852 = vunpack.c.l.b16 %v163
    %v1853 = vunpack.c.l.b16 %v164
    %v1854 = vunpack.c.l.b16 %v165
    %v1855 = vpack.c.b16 %v1852, %v1851
    %v1856 = vpack.c.b16 %v1854, %v1853
    %1859 = vmatprep.subr.bf16.mxu0 0
    %1860 = vmatpush1.bf16.msra.mxu0 %v1855
    %1861 = vmatprep.subr.bf16.mxu0 0
    %1862 = vmatpush1.bf16.msra.mxu0 %v1856
    %1863 = vmatprep.subr.bf16.mxu0 0
    %1864 = vmatpush1.bf16.msra.mxu0 0
    %1865 = vmatprep.subr.bf16.mxu0 0
    %1866 = vmatpush1.bf16.msra.mxu0 0
    %1867 = vmatprep.subr.bf16.mxu0 0
    %1868 = vmatpush1.bf16.msra.mxu0 0
    %1869 = vmatprep.subr.bf16.mxu0 0
    %1870 = vmatpush1.bf16.msra.mxu0 0
    %1871 = vmatprep.subr.bf16.mxu0 0
    %1872 = vmatpush1.bf16.msra.mxu0 0
    %1873 = vmatprep.subr.bf16.mxu0 0
    %1874 = vmatpush1.bf16.msra.mxu0 0
    %1875 = vmatprep.subr.bf16.mxu0 0
    %1876 = vmatpush1.bf16.msra.mxu0 0
    %1877 = vmatprep.subr.bf16.mxu0 0
    %1878 = vmatpush1.bf16.msra.mxu0 0
    %1879 = vmatprep.subr.bf16.mxu0 0
    %1880 = vmatpush1.bf16.msra.mxu0 0
    %1881 = vmatprep.subr.bf16.mxu0 0
    %1882 = vmatpush1.bf16.msra.mxu0 0
    %1883 = vmatprep.subr.bf16.mxu0 0
    %1884 = vmatpush1.bf16.msra.mxu0 0
    %1885 = vmatprep.subr.bf16.mxu0 0
    %1886 = vmatpush1.bf16.msra.mxu0 0
    %1887 = vmatprep.subr.bf16.mxu0 0
    %1888 = vmatpush1.bf16.msra.mxu0 0
    %1889 = vmatprep.subr.bf16.mxu0 0
    %1890 = vmatpush1.bf16.msra.mxu0 0
    %1891 = vmatprep.mubr.bf16.mxu0 0
    %1892 = vmatmul.mubr.bf16.gmra.mrb[0].mxu0 %v1404
    %v1893 = vpop.f32.mrb[0].mxu0
    %v1894 = vadd.f32 %v1845, %v1893
    %v1895 = vpop.f32.mrb[0].mxu0
    %v1896 = vpop.f32.mrb[0].mxu0
    %v1897 = vadd.f32 %v1845, %v1896
    %v1898 = vpop.f32.mrb[0].mxu0
    %1899 = vdwg.mxu0
    %v1901 = vlaneseq
    %v1902 = vshrl.u32 %v1901, 7
    %v1903 = vsub.s32 0, %v1902
    %v1904 = vrot.slane %v189, %v1903
    %v1910 = vunpack.c.l.b16 %v182
    %v1911 = vunpack.c.l.b16 %v183
    %v1912 = vunpack.c.l.b16 %v184
    %v1913 = vunpack.c.l.b16 %v185
    %v1914 = vpack.c.b16 %v1911, %v1910
    %v1915 = vpack.c.b16 %v1913, %v1912
    %1918 = vmatprep.subr.bf16.mxu0 0
    %1919 = vmatpush1.bf16.msra.mxu0 %v1914
    %1920 = vmatprep.subr.bf16.mxu0 0
    %1921 = vmatpush1.bf16.msra.mxu0 %v1915
    %1922 = vmatprep.subr.bf16.mxu0 0
    %1923 = vmatpush1.bf16.msra.mxu0 0
    %1924 = vmatprep.subr.bf16.mxu0 0
    %1925 = vmatpush1.bf16.msra.mxu0 0
    %1926 = vmatprep.subr.bf16.mxu0 0
    %1927 = vmatpush1.bf16.msra.mxu0 0
    %1928 = vmatprep.subr.bf16.mxu0 0
    %1929 = vmatpush1.bf16.msra.mxu0 0
    %1930 = vmatprep.subr.bf16.mxu0 0
    %1931 = vmatpush1.bf16.msra.mxu0 0
    %1932 = vmatprep.subr.bf16.mxu0 0
    %1933 = vmatpush1.bf16.msra.mxu0 0
    %1934 = vmatprep.subr.bf16.mxu0 0
    %1935 = vmatpush1.bf16.msra.mxu0 0
    %1936 = vmatprep.subr.bf16.mxu0 0
    %1937 = vmatpush1.bf16.msra.mxu0 0
    %1938 = vmatprep.subr.bf16.mxu0 0
    %1939 = vmatpush1.bf16.msra.mxu0 0
    %1940 = vmatprep.subr.bf16.mxu0 0
    %1941 = vmatpush1.bf16.msra.mxu0 0
    %1942 = vmatprep.subr.bf16.mxu0 0
    %1943 = vmatpush1.bf16.msra.mxu0 0
    %1944 = vmatprep.subr.bf16.mxu0 0
    %1945 = vmatpush1.bf16.msra.mxu0 0
    %1946 = vmatprep.subr.bf16.mxu0 0
    %1947 = vmatpush1.bf16.msra.mxu0 0
    %1948 = vmatprep.subr.bf16.mxu0 0
    %1949 = vmatpush1.bf16.msra.mxu0 0
    %1950 = vmatprep.mubr.bf16.mxu0 0
    %1951 = vmatmul.mubr.bf16.gmra.mrb[0].mxu0 %v1404
    %v1952 = vpop.f32.mrb[0].mxu0
    %v1953 = vadd.f32 %v1904, %v1952
    %v1954 = vpop.f32.mrb[0].mxu0
    %v1955 = vpop.f32.mrb[0].mxu0
    %v1956 = vadd.f32 %v1904, %v1955
    %v1957 = vpop.f32.mrb[0].mxu0
    %1958 = vdwg.mxu0
    %v1959 = vpack.c.bf16 %v1835, %v1835
    %v1960 = vpack.c.bf16 %v1838, %v1838
    %v1961 = vpack.c.bf16 %v1894, %v1894
    %v1962 = vpack.c.bf16 %v1897, %v1897
    %v1964 = vsel %vm421, %v1959, 0
    %v1967 = vsel %vm421, %v1961, 0
    %1969 = vmatprep.subr.bf16.mxu0 0
    %1970 = vmatpush1.bf16.xpose.msra.mxu0 %v1967
    %1971 = vmatprep.subr.bf16.mxu0 0
    %1972 = vmatpush1.bf16.xpose.msra.mxu0 0
    %1973 = vmatprep.subr.bf16.mxu0 0
    %1974 = vmatpush1.bf16.xpose.msra.mxu0 0
    %1975 = vmatprep.subr.bf16.mxu0 0
    %1976 = vmatpush1.bf16.xpose.msra.mxu0 0
    %1977 = vmatprep.subr.bf16.mxu0 0
    %1978 = vmatpush1.bf16.xpose.msra.mxu0 0
    %1979 = vmatprep.subr.bf16.mxu0 0
    %1980 = vmatpush1.bf16.xpose.msra.mxu0 0
    %1981 = vmatprep.subr.bf16.mxu0 0
    %1982 = vmatpush1.bf16.xpose.msra.mxu0 0
    %1983 = vmatprep.subr.bf16.mxu0 0
    %1984 = vmatpush1.bf16.xpose.msra.mxu0 0
    %1985 = vmatprep.subr.bf16.mxu0 0
    %1986 = vmatpush1.bf16.xpose.msra.mxu0 0
    %1987 = vmatprep.subr.bf16.mxu0 0
    %1988 = vmatpush1.bf16.xpose.msra.mxu0 0
    %1989 = vmatprep.subr.bf16.mxu0 0
    %1990 = vmatpush1.bf16.xpose.msra.mxu0 0
    %1991 = vmatprep.subr.bf16.mxu0 0
    %1992 = vmatpush1.bf16.xpose.msra.mxu0 0
    %1993 = vmatprep.subr.bf16.mxu0 0
    %1994 = vmatpush1.bf16.xpose.msra.mxu0 0
    %1995 = vmatprep.subr.bf16.mxu0 0
    %1996 = vmatpush1.bf16.xpose.msra.mxu0 0
    %1997 = vmatprep.subr.bf16.mxu0 0
    %1998 = vmatpush1.bf16.xpose.msra.mxu0 0
    %1999 = vmatprep.subr.bf16.mxu0 0
    %2000 = vmatpush1.bf16.xpose.msra.mxu0 0
    %2001 = vmatprep.mubr.bf16.mxu0 0
    %2002 = vmatmul.mubr.bf16.gmra.mrb[0].mxu0 %v1964
    %v2003 = vpop.f32.mrb[0].mxu0
    %v2004 = vadd.f32 0.0, %v2003
    %v2005 = vpop.f32.mrb[0].mxu0
    %v2006 = vpop.f32.mrb[0].mxu0
    %v2007 = vpop.f32.mrb[0].mxu0
    %2008 = vdwg.mxu0
    %v2010 = vsel %vm421, %v1960, 0
    %v2013 = vsel %vm421, %v1962, 0
    %2015 = vmatprep.subr.bf16.mxu0 0
    %2016 = vmatpush1.bf16.xpose.msra.mxu0 %v2013
    %2017 = vmatprep.subr.bf16.mxu0 0
    %2018 = vmatpush1.bf16.xpose.msra.mxu0 0
    %2019 = vmatprep.subr.bf16.mxu0 0
    %2020 = vmatpush1.bf16.xpose.msra.mxu0 0
    %2021 = vmatprep.subr.bf16.mxu0 0
    %2022 = vmatpush1.bf16.xpose.msra.mxu0 0
    %2023 = vmatprep.subr.bf16.mxu0 0
    %2024 = vmatpush1.bf16.xpose.msra.mxu0 0
    %2025 = vmatprep.subr.bf16.mxu0 0
    %2026 = vmatpush1.bf16.xpose.msra.mxu0 0
    %2027 = vmatprep.subr.bf16.mxu0 0
    %2028 = vmatpush1.bf16.xpose.msra.mxu0 0
    %2029 = vmatprep.subr.bf16.mxu0 0
    %2030 = vmatpush1.bf16.xpose.msra.mxu0 0
    %2031 = vmatprep.subr.bf16.mxu0 0
    %2032 = vmatpush1.bf16.xpose.msra.mxu0 0
    %2033 = vmatprep.subr.bf16.mxu0 0
    %2034 = vmatpush1.bf16.xpose.msra.mxu0 0
    %2035 = vmatprep.subr.bf16.mxu0 0
    %2036 = vmatpush1.bf16.xpose.msra.mxu0 0
    %2037 = vmatprep.subr.bf16.mxu0 0
    %2038 = vmatpush1.bf16.xpose.msra.mxu0 0
    %2039 = vmatprep.subr.bf16.mxu0 0
    %2040 = vmatpush1.bf16.xpose.msra.mxu0 0
    %2041 = vmatprep.subr.bf16.mxu0 0
    %2042 = vmatpush1.bf16.xpose.msra.mxu0 0
    %2043 = vmatprep.subr.bf16.mxu0 0
    %2044 = vmatpush1.bf16.xpose.msra.mxu0 0
    %2045 = vmatprep.subr.bf16.mxu0 0
    %2046 = vmatpush1.bf16.xpose.msra.mxu0 0
    %2047 = vmatprep.mubr.bf16.mxu0 0
    %2048 = vmatmul.mubr.bf16.gmra.mrb[0].mxu0 %v2010
    %v2049 = vpop.f32.mrb[0].mxu0
    %v2050 = vadd.f32 0.0, %v2049
    %v2051 = vpop.f32.mrb[0].mxu0
    %v2052 = vpop.f32.mrb[0].mxu0
    %v2053 = vpop.f32.mrb[0].mxu0
    %2054 = vdwg.mxu0
    %v2055 = vmul.f32 %v2004, 0.25
    %v2056 = vmul.f32 %v2050, 0.25
    %v2057 = vsel %vm516, %v2055, -inf
    %2058 = vmax.xlane.f32.xlu0 %v2057
    %v2059 = vpop.xlane.xlu0 %2058
    %v2060 = vsel %vm516, %v2056, -inf
    %2061 = vmax.xlane.f32.xlu0 %v2060
    %v2062 = vpop.xlane.xlu0 %2061
    %v2063 = vsub.f32 %v2055, %v2059
    %v2064 = vsub.f32 %v2056, %v2062
    %v2065 = vmul.f32 %v2063, 1.442695
    %v2066 = vpow.pop %v2065
    %v2067 = vmul.f32 %v2064, 1.442695
    %v2068 = vpow.pop %v2067
    %v2069 = vsel %vm516, %v2066, 0.0
    %2070 = vadd.xlane.f32.xlu0 %v2069
    %v2071 = vpop.xlane.xlu0 %2070
    %v2072 = vsel %vm516, %v2068, 0.0
    %2073 = vadd.xlane.f32.xlu0 %v2072
    %v2074 = vpop.xlane.xlu0 %2073
    %v2075 = vrcp.pop %v2071
    %v2076 = vrcp.pop %v2074
    %v2077 = vmul.f32 %v2066, %v2075
    %v2078 = vmul.f32 %v2068, %v2076
    %v2079 = vpack.c.bf16 %v2077, %v2077
    %v2080 = vpack.c.bf16 %v2078, %v2078
    %v2081 = vpack.c.bf16 %v1953, %v1953
    %v2082 = vpack.c.bf16 %v1956, %v1956
    %v2084 = vsel %vm516, %v2079, 0
    %v2087 = vsel %vm546, %v2081, 0
    %2089 = vmatprep.subr.bf16.mxu0 0
    %2090 = vmatpush1.bf16.msra.mxu0 %v2087
    %2091 = vmatprep.subr.bf16.mxu0 0
    %2092 = vmatpush1.bf16.msra.mxu0 0
    %2093 = vmatprep.subr.bf16.mxu0 0
    %2094 = vmatpush1.bf16.msra.mxu0 0
    %2095 = vmatprep.subr.bf16.mxu0 0
    %2096 = vmatpush1.bf16.msra.mxu0 0
    %2097 = vmatprep.subr.bf16.mxu0 0
    %2098 = vmatpush1.bf16.msra.mxu0 0
    %2099 = vmatprep.subr.bf16.mxu0 0
    %2100 = vmatpush1.bf16.msra.mxu0 0
    %2101 = vmatprep.subr.bf16.mxu0 0
    %2102 = vmatpush1.bf16.msra.mxu0 0
    %2103 = vmatprep.subr.bf16.mxu0 0
    %2104 = vmatpush1.bf16.msra.mxu0 0
    %2105 = vmatprep.subr.bf16.mxu0 0
    %2106 = vmatpush1.bf16.msra.mxu0 0
    %2107 = vmatprep.subr.bf16.mxu0 0
    %2108 = vmatpush1.bf16.msra.mxu0 0
    %2109 = vmatprep.subr.bf16.mxu0 0
    %2110 = vmatpush1.bf16.msra.mxu0 0
    %2111 = vmatprep.subr.bf16.mxu0 0
    %2112 = vmatpush1.bf16.msra.mxu0 0
    %2113 = vmatprep.subr.bf16.mxu0 0
    %2114 = vmatpush1.bf16.msra.mxu0 0
    %2115 = vmatprep.subr.bf16.mxu0 0
    %2116 = vmatpush1.bf16.msra.mxu0 0
    %2117 = vmatprep.subr.bf16.mxu0 0
    %2118 = vmatpush1.bf16.msra.mxu0 0
    %2119 = vmatprep.subr.bf16.mxu0 0
    %2120 = vmatpush1.bf16.msra.mxu0 0
    %2121 = vmatprep.mubr.bf16.mxu0 0
    %2122 = vmatmul.mubr.bf16.gmra.mrb[0].mxu0 %v2084
    %v2123 = vpop.f32.mrb[0].mxu0
    %v2124 = vadd.f32 0.0, %v2123
    %v2125 = vpop.f32.mrb[0].mxu0
    %v2126 = vpop.f32.mrb[0].mxu0
    %v2127 = vpop.f32.mrb[0].mxu0
    %2128 = vdwg.mxu0
    %v2130 = vsel %vm516, %v2080, 0
    %v2133 = vsel %vm546, %v2082, 0
    %2135 = vmatprep.subr.bf16.mxu0 0
    %2136 = vmatpush1.bf16.msra.mxu0 %v2133
    %2137 = vmatprep.subr.bf16.mxu0 0
    %2138 = vmatpush1.bf16.msra.mxu0 0
    %2139 = vmatprep.subr.bf16.mxu0 0
    %2140 = vmatpush1.bf16.msra.mxu0 0
    %2141 = vmatprep.subr.bf16.mxu0 0
    %2142 = vmatpush1.bf16.msra.mxu0 0
    %2143 = vmatprep.subr.bf16.mxu0 0
    %2144 = vmatpush1.bf16.msra.mxu0 0
    %2145 = vmatprep.subr.bf16.mxu0 0
    %2146 = vmatpush1.bf16.msra.mxu0 0
    %2147 = vmatprep.subr.bf16.mxu0 0
    %2148 = vmatpush1.bf16.msra.mxu0 0
    %2149 = vmatprep.subr.bf16.mxu0 0
    %2150 = vmatpush1.bf16.msra.mxu0 0
    %2151 = vmatprep.subr.bf16.mxu0 0
    %2152 = vmatpush1.bf16.msra.mxu0 0
    %2153 = vmatprep.subr.bf16.mxu0 0
    %2154 = vmatpush1.bf16.msra.mxu0 0
    %2155 = vmatprep.subr.bf16.mxu0 0
    %2156 = vmatpush1.bf16.msra.mxu0 0
    %2157 = vmatprep.subr.bf16.mxu0 0
    %2158 = vmatpush1.bf16.msra.mxu0 0
    %2159 = vmatprep.subr.bf16.mxu0 0
    %2160 = vmatpush1.bf16.msra.mxu0 0
    %2161 = vmatprep.subr.bf16.mxu0 0
    %2162 = vmatpush1.bf16.msra.mxu0 0
    %2163 = vmatprep.subr.bf16.mxu0 0
    %2164 = vmatpush1.bf16.msra.mxu0 0
    %2165 = vmatprep.subr.bf16.mxu0 0
    %2166 = vmatpush1.bf16.msra.mxu0 0
    %2167 = vmatprep.mubr.bf16.mxu0 0
    %2168 = vmatmul.mubr.bf16.gmra.mrb[0].mxu0 %v2130
    %v2169 = vpop.f32.mrb[0].mxu0
    %v2170 = vadd.f32 0.0, %v2169
    %v2171 = vpop.f32.mrb[0].mxu0
    %v2172 = vpop.f32.mrb[0].mxu0
    %v2173 = vpop.f32.mrb[0].mxu0
    %2174 = vdwg.mxu0
    %v2175 = vpack.c.bf16 %v2170, %v2124
    %v2178 = vunpack.c.l.b16 %v196
    %v2179 = vunpack.c.l.b16 %v197
    %v2180 = vpack.c.b16 %v2179, %v2178
    %v2183 = vsel %vm421, %v2175, 0
    %2185 = vmatprep.subr.bf16.mxu0 0
    %2186 = vmatpush1.bf16.msra.mxu0 %v2180
    %2187 = vmatprep.subr.bf16.mxu0 0
    %2188 = vmatpush1.bf16.msra.mxu0 0
    %2189 = vmatprep.subr.bf16.mxu0 0
    %2190 = vmatpush1.bf16.msra.mxu0 0
    %2191 = vmatprep.subr.bf16.mxu0 0
    %2192 = vmatpush1.bf16.msra.mxu0 0
    %2193 = vmatprep.subr.bf16.mxu0 0
    %2194 = vmatpush1.bf16.msra.mxu0 0
    %2195 = vmatprep.subr.bf16.mxu0 0
    %2196 = vmatpush1.bf16.msra.mxu0 0
    %2197 = vmatprep.subr.bf16.mxu0 0
    %2198 = vmatpush1.bf16.msra.mxu0 0
    %2199 = vmatprep.subr.bf16.mxu0 0
    %2200 = vmatpush1.bf16.msra.mxu0 0
    %2201 = vmatprep.subr.bf16.mxu0 0
    %2202 = vmatpush1.bf16.msra.mxu0 0
    %2203 = vmatprep.subr.bf16.mxu0 0
    %2204 = vmatpush1.bf16.msra.mxu0 0
    %2205 = vmatprep.subr.bf16.mxu0 0
    %2206 = vmatpush1.bf16.msra.mxu0 0
    %2207 = vmatprep.subr.bf16.mxu0 0
    %2208 = vmatpush1.bf16.msra.mxu0 0
    %2209 = vmatprep.subr.bf16.mxu0 0
    %2210 = vmatpush1.bf16.msra.mxu0 0
    %2211 = vmatprep.subr.bf16.mxu0 0
    %2212 = vmatpush1.bf16.msra.mxu0 0
    %2213 = vmatprep.subr.bf16.mxu0 0
    %2214 = vmatpush1.bf16.msra.mxu0 0
    %2215 = vmatprep.subr.bf16.mxu0 0
    %2216 = vmatpush1.bf16.msra.mxu0 0
    %2217 = vmatprep.mubr.bf16.mxu0 0
    %2218 = vmatmul.mubr.bf16.gmra.mrb[0].mxu0 %v2183
    %v2219 = vpop.f32.mrb[0].mxu0
    %v2220 = vadd.f32 0.0, %v2219
    %v2221 = vpop.f32.mrb[0].mxu0
    %v2222 = vpop.f32.mrb[0].mxu0
    %v2223 = vadd.f32 0.0, %v2222
    %v2224 = vpop.f32.mrb[0].mxu0
    %2225 = vdwg.mxu0
    %v2228 = vunpack.c.l.b16 %v194
    %v2229 = vunpack.c.l.b16 %v195
    %v2230 = vpack.c.b16 %v2229, %v2228
    %v2233 = vsel %vm421, %v1781, 0
    %2235 = vmatprep.subr.bf16.mxu0 0
    %2236 = vmatpush1.bf16.msra.mxu0 %v2230
    %2237 = vmatprep.subr.bf16.mxu0 0
    %2238 = vmatpush1.bf16.msra.mxu0 0
    %2239 = vmatprep.subr.bf16.mxu0 0
    %2240 = vmatpush1.bf16.msra.mxu0 0
    %2241 = vmatprep.subr.bf16.mxu0 0
    %2242 = vmatpush1.bf16.msra.mxu0 0
    %2243 = vmatprep.subr.bf16.mxu0 0
    %2244 = vmatpush1.bf16.msra.mxu0 0
    %2245 = vmatprep.subr.bf16.mxu0 0
    %2246 = vmatpush1.bf16.msra.mxu0 0
    %2247 = vmatprep.subr.bf16.mxu0 0
    %2248 = vmatpush1.bf16.msra.mxu0 0
    %2249 = vmatprep.subr.bf16.mxu0 0
    %2250 = vmatpush1.bf16.msra.mxu0 0
    %2251 = vmatprep.subr.bf16.mxu0 0
    %2252 = vmatpush1.bf16.msra.mxu0 0
    %2253 = vmatprep.subr.bf16.mxu0 0
    %2254 = vmatpush1.bf16.msra.mxu0 0
    %2255 = vmatprep.subr.bf16.mxu0 0
    %2256 = vmatpush1.bf16.msra.mxu0 0
    %2257 = vmatprep.subr.bf16.mxu0 0
    %2258 = vmatpush1.bf16.msra.mxu0 0
    %2259 = vmatprep.subr.bf16.mxu0 0
    %2260 = vmatpush1.bf16.msra.mxu0 0
    %2261 = vmatprep.subr.bf16.mxu0 0
    %2262 = vmatpush1.bf16.msra.mxu0 0
    %2263 = vmatprep.subr.bf16.mxu0 0
    %2264 = vmatpush1.bf16.msra.mxu0 0
    %2265 = vmatprep.subr.bf16.mxu0 0
    %2266 = vmatpush1.bf16.msra.mxu0 0
    %2267 = vmatprep.mubr.bf16.mxu0 0
    %2268 = vmatmul.mubr.bf16.gmra.mrb[0].mxu0 %v2233
    %v2269 = vpop.f32.mrb[0].mxu0
    %v2270 = vadd.f32 %v2220, %v2269
    %v2271 = vpop.f32.mrb[0].mxu0
    %v2272 = vpop.f32.mrb[0].mxu0
    %v2273 = vadd.f32 %v2223, %v2272
    %v2274 = vpop.f32.mrb[0].mxu0
    %2275 = vdwg.mxu0
    %v2277 = vlaneseq
    %v2278 = vshrl.u32 %v2277, 7
    %v2279 = vsub.s32 0, %v2278
    %v2280 = vrot.slane %v199, %v2279
    %v2282 = vadd.f32 %v2270, %v2280
    %v2283 = vadd.f32 %v2273, %v2280
    %v2284 = vadd.f32 %v1382, %v2282
    %v2285 = vadd.f32 %v1383, %v2283
    %v2286 = vsel %vm86, %v2284, 0.0
    %2287 = vadd.xlane.f32.xlu0 %v2286
    %v2288 = vpop.xlane.xlu0 %2287
    %v2289 = vsel %vm86, %v2285, 0.0
    %2290 = vadd.xlane.f32.xlu0 %v2289
    %v2291 = vpop.xlane.xlu0 %2290
    %v2292 = vmul.f32 %v2288, %v93
    %v2293 = vmul.f32 %v2291, %v93
    %v2294 = vsub.f32 %v2284, %v2292
    %v2295 = vsub.f32 %v2285, %v2293
    %v2296 = vmul.f32 %v2294, %v2294
    %v2297 = vmul.f32 %v2295, %v2295
    %v2298 = vsel %vm86, %v2296, 0.0
    %2299 = vadd.xlane.f32.xlu0 %v2298
    %v2300 = vpop.xlane.xlu0 %2299
    %v2301 = vsel %vm86, %v2297, 0.0
    %2302 = vadd.xlane.f32.xlu0 %v2301
    %v2303 = vpop.xlane.xlu0 %2302
    %v2304 = vmul.f32 %v2300, %v93
    %v2305 = vmul.f32 %v2303, %v93
    %v2306 = vadd.f32 %v2304, 1e-12
    %v2307 = vadd.f32 %v2305, 1e-12
    %v2308 = vrsqrt.pop %v2306
    %v2309 = vrsqrt.pop %v2307
    %v2310 = vmul.f32 %v2294, %v2308
    %v2311 = vmul.f32 %v2295, %v2309
    %v2313 = vlaneseq
    %v2314 = vshrl.u32 %v2313, 7
    %v2315 = vsub.s32 0, %v2314
    %v2316 = vrot.slane %v201, %v2315
    %v2318 = vmul.f32 %v2310, %v2316
    %v2319 = vmul.f32 %v2311, %v2316
    %v2321 = vlaneseq
    %v2322 = vshrl.u32 %v2321, 7
    %v2323 = vsub.s32 0, %v2322
    %v2324 = vrot.slane %v203, %v2323
    %v2326 = vadd.f32 %v2318, %v2324
    %v2327 = vadd.f32 %v2319, %v2324
    %v2328 = vpack.c.bf16 %v2327, %v2326
    %v2330 = vlaneseq
    %v2331 = vshrl.u32 %v2330, 7
    %v2332 = vsub.s32 0, %v2331
    %v2333 = vrot.slane %v213, %v2332
    %v2339 = vunpack.c.l.b16 %v208
    %v2340 = vunpack.c.l.b16 %v209
    %v2341 = vunpack.c.l.b16 %v210
    %v2342 = vunpack.c.l.b16 %v211
    %v2343 = vpack.c.b16 %v2340, %v2339
    %v2344 = vpack.c.b16 %v2342, %v2341
    %v2348 = vsel %vm86, %v2328, 0
    %2350 = vmatprep.subr.bf16.mxu0 0
    %2351 = vmatpush1.bf16.msra.mxu0 %v2343
    %2352 = vmatprep.subr.bf16.mxu0 0
    %2353 = vmatpush1.bf16.msra.mxu0 %v2344
    %2354 = vmatprep.subr.bf16.mxu0 0
    %2355 = vmatpush1.bf16.msra.mxu0 0
    %2356 = vmatprep.subr.bf16.mxu0 0
    %2357 = vmatpush1.bf16.msra.mxu0 0
    %2358 = vmatprep.subr.bf16.mxu0 0
    %2359 = vmatpush1.bf16.msra.mxu0 0
    %2360 = vmatprep.subr.bf16.mxu0 0
    %2361 = vmatpush1.bf16.msra.mxu0 0
    %2362 = vmatprep.subr.bf16.mxu0 0
    %2363 = vmatpush1.bf16.msra.mxu0 0
    %2364 = vmatprep.subr.bf16.mxu0 0
    %2365 = vmatpush1.bf16.msra.mxu0 0
    %2366 = vmatprep.subr.bf16.mxu0 0
    %2367 = vmatpush1.bf16.msra.mxu0 0
    %2368 = vmatprep.subr.bf16.mxu0 0
    %2369 = vmatpush1.bf16.msra.mxu0 0
    %2370 = vmatprep.subr.bf16.mxu0 0
    %2371 = vmatpush1.bf16.msra.mxu0 0
    %2372 = vmatprep.subr.bf16.mxu0 0
    %2373 = vmatpush1.bf16.msra.mxu0 0
    %2374 = vmatprep.subr.bf16.mxu0 0
    %2375 = vmatpush1.bf16.msra.mxu0 0
    %2376 = vmatprep.subr.bf16.mxu0 0
    %2377 = vmatpush1.bf16.msra.mxu0 0
    %2378 = vmatprep.subr.bf16.mxu0 0
    %2379 = vmatpush1.bf16.msra.mxu0 0
    %2380 = vmatprep.subr.bf16.mxu0 0
    %2381 = vmatpush1.bf16.msra.mxu0 0
    %2382 = vmatprep.mubr.bf16.mxu0 0
    %2383 = vmatmul.mubr.bf16.gmra.mrb[0].mxu0 %v2348
    %v2384 = vpop.f32.mrb[0].mxu0
    %v2385 = vadd.f32 %v2333, %v2384
    %v2386 = vpop.f32.mrb[0].mxu0
    %v2387 = vpop.f32.mrb[0].mxu0
    %v2388 = vadd.f32 %v2333, %v2387
    %v2389 = vpop.f32.mrb[0].mxu0
    %2390 = vdwg.mxu0
    %v2391 = vmul.f32 %v2385, 0.5
    %v2392 = vmul.f32 %v2388, 0.5
    %v2393 = vmul.f32 %v2385, 0.044715
    %v2394 = vmul.f32 %v2388, 0.044715
    %v2395 = vmul.f32 %v2393, %v2385
    %v2396 = vmul.f32 %v2394, %v2388
    %v2397 = vmul.f32 %v2395, %v2385
    %v2398 = vmul.f32 %v2396, %v2388
    %v2399 = vadd.f32 %v2385, %v2397
    %v2400 = vadd.f32 %v2388, %v2398
    %v2401 = vmul.f32 %v2399, 0.7978846
    %v2402 = vmul.f32 %v2400, 0.7978846
    %v2403 = vtanh.pop %v2401
    %v2404 = vtanh.pop %v2402
    %v2405 = vadd.f32 %v2403, 1.0
    %v2406 = vadd.f32 %v2404, 1.0
    %v2407 = vmul.f32 %v2391, %v2405
    %v2408 = vmul.f32 %v2392, %v2406
    %v2409 = vpack.c.bf16 %v2408, %v2407
    %v2411 = vlaneseq
    %v2412 = vshrl.u32 %v2411, 7
    %v2413 = vsub.s32 0, %v2412
    %v2414 = vrot.slane %v231, %v2413
    %v2424 = vunpack.c.l.b16 %v222
    %v2425 = vunpack.c.l.b16 %v223
    %v2426 = vunpack.c.l.b16 %v224
    %v2427 = vunpack.c.l.b16 %v225
    %v2428 = vunpack.c.l.b16 %v226
    %v2429 = vunpack.c.l.b16 %v227
    %v2430 = vunpack.c.l.b16 %v228
    %v2431 = vunpack.c.l.b16 %v229
    %v2432 = vpack.c.b16 %v2425, %v2424
    %v2433 = vpack.c.b16 %v2427, %v2426
    %v2434 = vpack.c.b16 %v2429, %v2428
    %v2435 = vpack.c.b16 %v2431, %v2430
    %v2441 = vsel %vm1295, %v2409, 0
    %2443 = vmatprep.subr.bf16.mxu0 0
    %2444 = vmatpush1.bf16.msra.mxu0 %v2432
    %2445 = vmatprep.subr.bf16.mxu0 0
    %2446 = vmatpush1.bf16.msra.mxu0 %v2433
    %2447 = vmatprep.subr.bf16.mxu0 0
    %2448 = vmatpush1.bf16.msra.mxu0 %v2434
    %2449 = vmatprep.subr.bf16.mxu0 0
    %2450 = vmatpush1.bf16.msra.mxu0 %v2435
    %2451 = vmatprep.subr.bf16.mxu0 0
    %2452 = vmatpush1.bf16.msra.mxu0 0
    %2453 = vmatprep.subr.bf16.mxu0 0
    %2454 = vmatpush1.bf16.msra.mxu0 0
    %2455 = vmatprep.subr.bf16.mxu0 0
    %2456 = vmatpush1.bf16.msra.mxu0 0
    %2457 = vmatprep.subr.bf16.mxu0 0
    %2458 = vmatpush1.bf16.msra.mxu0 0
    %2459 = vmatprep.subr.bf16.mxu0 0
    %2460 = vmatpush1.bf16.msra.mxu0 0
    %2461 = vmatprep.subr.bf16.mxu0 0
    %2462 = vmatpush1.bf16.msra.mxu0 0
    %2463 = vmatprep.subr.bf16.mxu0 0
    %2464 = vmatpush1.bf16.msra.mxu0 0
    %2465 = vmatprep.subr.bf16.mxu0 0
    %2466 = vmatpush1.bf16.msra.mxu0 0
    %2467 = vmatprep.subr.bf16.mxu0 0
    %2468 = vmatpush1.bf16.msra.mxu0 0
    %2469 = vmatprep.subr.bf16.mxu0 0
    %2470 = vmatpush1.bf16.msra.mxu0 0
    %2471 = vmatprep.subr.bf16.mxu0 0
    %2472 = vmatpush1.bf16.msra.mxu0 0
    %2473 = vmatprep.subr.bf16.mxu0 0
    %2474 = vmatpush1.bf16.msra.mxu0 0
    %2475 = vmatprep.mubr.bf16.mxu0 0
    %2476 = vmatmul.mubr.bf16.gmra.mrb[0].mxu0 %v2441
    %v2477 = vpop.f32.mrb[0].mxu0
    %v2478 = vadd.f32 %v2414, %v2477
    %v2479 = vpop.f32.mrb[0].mxu0
    %v2480 = vpop.f32.mrb[0].mxu0
    %v2481 = vadd.f32 %v2414, %v2480
    %v2482 = vpop.f32.mrb[0].mxu0
    %2483 = vdwg.mxu0
    %v2484 = vadd.f32 %v2326, %v2478
    %v2485 = vadd.f32 %v2327, %v2481
    %v2486 = vsel %vm86, %v2484, 0.0
    %2487 = vadd.xlane.f32.xlu0 %v2486
    %v2488 = vpop.xlane.xlu0 %2487
    %v2489 = vsel %vm86, %v2485, 0.0
    %2490 = vadd.xlane.f32.xlu0 %v2489
    %v2491 = vpop.xlane.xlu0 %2490
    %v2492 = vmul.f32 %v2488, %v93
    %v2493 = vmul.f32 %v2491, %v93
    %v2494 = vsub.f32 %v2484, %v2492
    %v2495 = vsub.f32 %v2485, %v2493
    %v2496 = vmul.f32 %v2494, %v2494
    %v2497 = vmul.f32 %v2495, %v2495
    %v2498 = vsel %vm86, %v2496, 0.0
    %2499 = vadd.xlane.f32.xlu0 %v2498
    %v2500 = vpop.xlane.xlu0 %2499
    %v2501 = vsel %vm86, %v2497, 0.0
    %2502 = vadd.xlane.f32.xlu0 %v2501
    %v2503 = vpop.xlane.xlu0 %2502
    %v2504 = vmul.f32 %v2500, %v93
    %v2505 = vmul.f32 %v2503, %v93
    %v2506 = vadd.f32 %v2504, 1e-12
    %v2507 = vadd.f32 %v2505, 1e-12
    %v2508 = vrsqrt.pop %v2506
    %v2509 = vrsqrt.pop %v2507
    %v2510 = vmul.f32 %v2494, %v2508
    %v2511 = vmul.f32 %v2495, %v2509
    %v2513 = vlaneseq
    %v2514 = vshrl.u32 %v2513, 7
    %v2515 = vsub.s32 0, %v2514
    %v2516 = vrot.slane %v233, %v2515
    %v2518 = vmul.f32 %v2510, %v2516
    %v2519 = vmul.f32 %v2511, %v2516
    %v2521 = vlaneseq
    %v2522 = vshrl.u32 %v2521, 7
    %v2523 = vsub.s32 0, %v2522
    %v2524 = vrot.slane %v235, %v2523
    %v2526 = vadd.f32 %v2518, %v2524
    %v2527 = vadd.f32 %v2519, %v2524
    %v2528 = vld [vmem:[%s20] sm:$0xf]
    %v2529 = vld [vmem:[%s20 + $0x4] sm:$0xf]
    %v2530 = vld [vmem:[%s20 + $0x8] sm:$0xf]
    %v2531 = vld [vmem:[%s20 + $0xc] sm:$0xf]
    %v2532 = vld [vmem:[%s20 + $0x10] sm:$0xf]
    %v2533 = vld [vmem:[%s20 + $0x14] sm:$0xf]
    %v2534 = vld [vmem:[%s20 + $0x18] sm:$0xf]
    %v2535 = vld [vmem:[%s20 + $0x1c] sm:$0xf]
    %v2536 = vld [vmem:[%s20 + $0x20] sm:$0xf]
    %v2537 = vld [vmem:[%s20 + $0x24] sm:$0xf]
    %v2538 = vld [vmem:[%s20 + $0x28] sm:$0xf]
    %v2539 = vld [vmem:[%s20 + $0x2c] sm:$0xf]
    %v2540 = vld [vmem:[%s20 + $0x30] sm:$0xf]
    %v2541 = vld [vmem:[%s20 + $0x34] sm:$0xf]
    %v2542 = vld [vmem:[%s20 + $0x38] sm:$0xf]
    %v2543 = vld [vmem:[%s20 + $0x3c] sm:$0xf]
    %v2544 = vld [vmem:[%s21] sm:$0xf]
    %v2545 = vld [vmem:[%s21 + $0x4] sm:$0xf]
    %v2546 = vld [vmem:[%s21 + $0x8] sm:$0xf]
    %v2547 = vld [vmem:[%s21 + $0xc] sm:$0xf]
    %v2548 = vld [vmem:[%s21 + $0x10] sm:$0xf]
    %v2549 = vld [vmem:[%s21 + $0x14] sm:$0xf]
    %v2550 = vld [vmem:[%s21 + $0x18] sm:$0xf]
    %v2551 = vld [vmem:[%s21 + $0x1c] sm:$0xf]
    %v2552 = vld [vmem:[%s21 + $0x20] sm:$0xf]
    %v2553 = vld [vmem:[%s21 + $0x24] sm:$0xf]
    %v2554 = vld [vmem:[%s21 + $0x28] sm:$0xf]
    %v2555 = vld [vmem:[%s21 + $0x2c] sm:$0xf]
    %v2556 = vld [vmem:[%s21 + $0x30] sm:$0xf]
    %v2557 = vld [vmem:[%s21 + $0x34] sm:$0xf]
    %v2558 = vld [vmem:[%s21 + $0x38] sm:$0xf]
    %v2559 = vld [vmem:[%s21 + $0x3c] sm:$0xf]
    %v2560 = vld [vmem:[%s22] sm:$0x1]
    %v2561 = vld [vmem:[%s22 + $0x1] sm:$0x1]
    %v2562 = vld [vmem:[%s22 + $0x2] sm:$0x1]
    %v2563 = vld [vmem:[%s22 + $0x3] sm:$0x1]
    %v2564 = vld [vmem:[%s1] sm:$0x3]
    %v2565 = vpack.c.bf16 %v2527, %v2526
    %v2567 = vlaneseq
    %v2568 = vshrl.u32 %v2567, 7
    %v2569 = vsub.s32 0, %v2568
    %v2570 = vrot.slane %v2560, %v2569
    %v2576 = vunpack.c.l.b16 %v2528
    %v2577 = vunpack.c.l.b16 %v2529
    %v2578 = vunpack.c.l.b16 %v2530
    %v2579 = vunpack.c.l.b16 %v2531
    %v2580 = vpack.c.b16 %v2577, %v2576
    %v2581 = vpack.c.b16 %v2579, %v2578
    %v2585 = vsel %vm86, %v2565, 0
    %2587 = vmatprep.subr.bf16.mxu0 0
    %2588 = vmatpush1.bf16.msra.mxu0 %v2580
    %2589 = vmatprep.subr.bf16.mxu0 0
    %2590 = vmatpush1.bf16.msra.mxu0 %v2581
    %2591 = vmatprep.subr.bf16.mxu0 0
    %2592 = vmatpush1.bf16.msra.mxu0 0
    %2593 = vmatprep.subr.bf16.mxu0 0
    %2594 = vmatpush1.bf16.msra.mxu0 0
    %2595 = vmatprep.subr.bf16.mxu0 0
    %2596 = vmatpush1.bf16.msra.mxu0 0
    %2597 = vmatprep.subr.bf16.mxu0 0
    %2598 = vmatpush1.bf16.msra.mxu0 0
    %2599 = vmatprep.subr.bf16.mxu0 0
    %2600 = vmatpush1.bf16.msra.mxu0 0
    %2601 = vmatprep.subr.bf16.mxu0 0
    %2602 = vmatpush1.bf16.msra.mxu0 0
    %2603 = vmatprep.subr.bf16.mxu0 0
    %2604 = vmatpush1.bf16.msra.mxu0 0
    %2605 = vmatprep.subr.bf16.mxu0 0
    %2606 = vmatpush1.bf16.msra.mxu0 0
    %2607 = vmatprep.subr.bf16.mxu0 0
    %2608 = vmatpush1.bf16.msra.mxu0 0
    %2609 = vmatprep.subr.bf16.mxu0 0
    %2610 = vmatpush1.bf16.msra.mxu0 0
    %2611 = vmatprep.subr.bf16.mxu0 0
    %2612 = vmatpush1.bf16.msra.mxu0 0
    %2613 = vmatprep.subr.bf16.mxu0 0
    %2614 = vmatpush1.bf16.msra.mxu0 0
    %2615 = vmatprep.subr.bf16.mxu0 0
    %2616 = vmatpush1.bf16.msra.mxu0 0
    %2617 = vmatprep.subr.bf16.mxu0 0
    %2618 = vmatpush1.bf16.msra.mxu0 0
    %2619 = vmatprep.mubr.bf16.mxu0 0
    %2620 = vmatmul.mubr.bf16.gmra.mrb[0].mxu0 %v2585
    %v2621 = vpop.f32.mrb[0].mxu0
    %v2622 = vadd.f32 %v2570, %v2621
    %v2623 = vpop.f32.mrb[0].mxu0
    %v2624 = vpop.f32.mrb[0].mxu0
    %v2625 = vadd.f32 %v2570, %v2624
    %v2626 = vpop.f32.mrb[0].mxu0
    %2627 = vdwg.mxu0
    %v2629 = vlaneseq
    %v2630 = vshrl.u32 %v2629, 7
    %v2631 = vsub.s32 0, %v2630
    %v2632 = vrot.slane %v2561, %v2631
    %v2638 = vunpack.c.l.b16 %v2532
    %v2639 = vunpack.c.l.b16 %v2533
    %v2640 = vunpack.c.l.b16 %v2534
    %v2641 = vunpack.c.l.b16 %v2535
    %v2642 = vpack.c.b16 %v2639, %v2638
    %v2643 = vpack.c.b16 %v2641, %v2640
    %2646 = vmatprep.subr.bf16.mxu0 0
    %2647 = vmatpush1.bf16.msra.mxu0 %v2642
    %2648 = vmatprep.subr.bf16.mxu0 0
    %2649 = vmatpush1.bf16.msra.mxu0 %v2643
    %2650 = vmatprep.subr.bf16.mxu0 0
    %2651 = vmatpush1.bf16.msra.mxu0 0
    %2652 = vmatprep.subr.bf16.mxu0 0
    %2653 = vmatpush1.bf16.msra.mxu0 0
    %2654 = vmatprep.subr.bf16.mxu0 0
    %2655 = vmatpush1.bf16.msra.mxu0 0
    %2656 = vmatprep.subr.bf16.mxu0 0
    %2657 = vmatpush1.bf16.msra.mxu0 0
    %2658 = vmatprep.subr.bf16.mxu0 0
    %2659 = vmatpush1.bf16.msra.mxu0 0
    %2660 = vmatprep.subr.bf16.mxu0 0
    %2661 = vmatpush1.bf16.msra.mxu0 0
    %2662 = vmatprep.subr.bf16.mxu0 0
    %2663 = vmatpush1.bf16.msra.mxu0 0
    %2664 = vmatprep.subr.bf16.mxu0 0
    %2665 = vmatpush1.bf16.msra.mxu0 0
    %2666 = vmatprep.subr.bf16.mxu0 0
    %2667 = vmatpush1.bf16.msra.mxu0 0
    %2668 = vmatprep.subr.bf16.mxu0 0
    %2669 = vmatpush1.bf16.msra.mxu0 0
    %2670 = vmatprep.subr.bf16.mxu0 0
    %2671 = vmatpush1.bf16.msra.mxu0 0
    %2672 = vmatprep.subr.bf16.mxu0 0
    %2673 = vmatpush1.bf16.msra.mxu0 0
    %2674 = vmatprep.subr.bf16.mxu0 0
    %2675 = vmatpush1.bf16.msra.mxu0 0
    %2676 = vmatprep.subr.bf16.mxu0 0
    %2677 = vmatpush1.bf16.msra.mxu0 0
    %2678 = vmatprep.mubr.bf16.mxu0 0
    %2679 = vmatmul.mubr.bf16.gmra.mrb[0].mxu0 %v2585
    %v2680 = vpop.f32.mrb[0].mxu0
    %v2681 = vadd.f32 %v2632, %v2680
    %v2682 = vpop.f32.mrb[0].mxu0
    %v2683 = vpop.f32.mrb[0].mxu0
    %v2684 = vadd.f32 %v2632, %v2683
    %v2685 = vpop.f32.mrb[0].mxu0
    %2686 = vdwg.mxu0
    %v2688 = vlaneseq
    %v2689 = vshrl.u32 %v2688, 7
    %v2690 = vsub.s32 0, %v2689
    %v2691 = vrot.slane %v2562, %v2690
    %v2697 = vunpack.c.l.b16 %v2536
    %v2698 = vunpack.c.l.b16 %v2537
    %v2699 = vunpack.c.l.b16 %v2538
    %v2700 = vunpack.c.l.b16 %v2539
    %v2701 = vpack.c.b16 %v2698, %v2697
    %v2702 = vpack.c.b16 %v2700, %v2699
    %2705 = vmatprep.subr.bf16.mxu0 0
    %2706 = vmatpush1.bf16.msra.mxu0 %v2701
    %2707 = vmatprep.subr.bf16.mxu0 0
    %2708 = vmatpush1.bf16.msra.mxu0 %v2702
    %2709 = vmatprep.subr.bf16.mxu0 0
    %2710 = vmatpush1.bf16.msra.mxu0 0
    %2711 = vmatprep.subr.bf16.mxu0 0
    %2712 = vmatpush1.bf16.msra.mxu0 0
    %2713 = vmatprep.subr.bf16.mxu0 0
    %2714 = vmatpush1.bf16.msra.mxu0 0
    %2715 = vmatprep.subr.bf16.mxu0 0
    %2716 = vmatpush1.bf16.msra.mxu0 0
    %2717 = vmatprep.subr.bf16.mxu0 0
    %2718 = vmatpush1.bf16.msra.mxu0 0
    %2719 = vmatprep.subr.bf16.mxu0 0
    %2720 = vmatpush1.bf16.msra.mxu0 0
    %2721 = vmatprep.subr.bf16.mxu0 0
    %2722 = vmatpush1.bf16.msra.mxu0 0
    %2723 = vmatprep.subr.bf16.mxu0 0
    %2724 = vmatpush1.bf16.msra.mxu0 0
    %2725 = vmatprep.subr.bf16.mxu0 0
    %2726 = vmatpush1.bf16.msra.mxu0 0
    %2727 = vmatprep.subr.bf16.mxu0 0
    %2728 = vmatpush1.bf16.msra.mxu0 0
    %2729 = vmatprep.subr.bf16.mxu0 0
    %2730 = vmatpush1.bf16.msra.mxu0 0
    %2731 = vmatprep.subr.bf16.mxu0 0
    %2732 = vmatpush1.bf16.msra.mxu0 0
    %2733 = vmatprep.subr.bf16.mxu0 0
    %2734 = vmatpush1.bf16.msra.mxu0 0
    %2735 = vmatprep.subr.bf16.mxu0 0
    %2736 = vmatpush1.bf16.msra.mxu0 0
    %2737 = vmatprep.mubr.bf16.mxu0 0
    %2738 = vmatmul.mubr.bf16.gmra.mrb[0].mxu0 %v2585
    %v2739 = vpop.f32.mrb[0].mxu0
    %v2740 = vadd.f32 %v2691, %v2739
    %v2741 = vpop.f32.mrb[0].mxu0
    %v2742 = vpop.f32.mrb[0].mxu0
    %v2743 = vadd.f32 %v2691, %v2742
    %v2744 = vpop.f32.mrb[0].mxu0
    %2745 = vdwg.mxu0
    %v2747 = vlaneseq
    %v2748 = vshrl.u32 %v2747, 7
    %v2749 = vsub.s32 0, %v2748
    %v2750 = vrot.slane %v2563, %v2749
    %v2756 = vunpack.c.l.b16 %v2540
    %v2757 = vunpack.c.l.b16 %v2541
    %v2758 = vunpack.c.l.b16 %v2542
    %v2759 = vunpack.c.l.b16 %v2543
    %v2760 = vpack.c.b16 %v2757, %v2756
    %v2761 = vpack.c.b16 %v2759, %v2758
    %2764 = vmatprep.subr.bf16.mxu0 0
    %2765 = vmatpush1.bf16.msra.mxu0 %v2760
    %2766 = vmatprep.subr.bf16.mxu0 0
    %2767 = vmatpush1.bf16.msra.mxu0 %v2761
    %2768 = vmatprep.subr.bf16.mxu0 0
    %2769 = vmatpush1.bf16.msra.mxu0 0
    %2770 = vmatprep.subr.bf16.mxu0 0
    %2771 = vmatpush1.bf16.msra.mxu0 0
    %2772 = vmatprep.subr.bf16.mxu0 0
    %2773 = vmatpush1.bf16.msra.mxu0 0
    %2774 = vmatprep.subr.bf16.mxu0 0
    %2775 = vmatpush1.bf16.msra.mxu0 0
    %2776 = vmatprep.subr.bf16.mxu0 0
    %2777 = vmatpush1.bf16.msra.mxu0 0
    %2778 = vmatprep.subr.bf16.mxu0 0
    %2779 = vmatpush1.bf16.msra.mxu0 0
    %2780 = vmatprep.subr.bf16.mxu0 0
    %2781 = vmatpush1.bf16.msra.mxu0 0
    %2782 = vmatprep.subr.bf16.mxu0 0
    %2783 = vmatpush1.bf16.msra.mxu0 0
    %2784 = vmatprep.subr.bf16.mxu0 0
    %2785 = vmatpush1.bf16.msra.mxu0 0
    %2786 = vmatprep.subr.bf16.mxu0 0
    %2787 = vmatpush1.bf16.msra.mxu0 0
    %2788 = vmatprep.subr.bf16.mxu0 0
    %2789 = vmatpush1.bf16.msra.mxu0 0
    %2790 = vmatprep.subr.bf16.mxu0 0
    %2791 = vmatpush1.bf16.msra.mxu0 0
    %2792 = vmatprep.subr.bf16.mxu0 0
    %2793 = vmatpush1.bf16.msra.mxu0 0
    %2794 = vmatprep.subr.bf16.mxu0 0
    %2795 = vmatpush1.bf16.msra.mxu0 0
    %2796 = vmatprep.mubr.bf16.mxu0 0
    %2797 = vmatmul.mubr.bf16.gmra.mrb[0].mxu0 %v2585
    %v2798 = vpop.f32.mrb[0].mxu0
    %v2799 = vadd.f32 %v2750, %v2798
    %v2800 = vpop.f32.mrb[0].mxu0
    %v2801 = vpop.f32.mrb[0].mxu0
    %v2802 = vadd.f32 %v2750, %v2801
    %v2803 = vpop.f32.mrb[0].mxu0
    %2804 = vdwg.mxu0
    %v2809 = vunpack.c.l.b16 %v2544
    %v2810 = vunpack.c.l.b16 %v2545
    %v2811 = vunpack.c.l.b16 %v2546
    %v2812 = vunpack.c.l.b16 %v2547
    %v2813 = vpack.c.b16 %v2810, %v2809
    %v2814 = vpack.c.b16 %v2812, %v2811
    %v2818 = vsel %vm86, 0, 0
    %2820 = vmatprep.subr.bf16.mxu0 0
    %2821 = vmatpush1.bf16.msra.mxu0 %v2813
    %2822 = vmatprep.subr.bf16.mxu0 0
    %2823 = vmatpush1.bf16.msra.mxu0 %v2814
    %2824 = vmatprep.subr.bf16.mxu0 0
    %2825 = vmatpush1.bf16.msra.mxu0 0
    %2826 = vmatprep.subr.bf16.mxu0 0
    %2827 = vmatpush1.bf16.msra.mxu0 0
    %2828 = vmatprep.subr.bf16.mxu0 0
    %2829 = vmatpush1.bf16.msra.mxu0 0
    %2830 = vmatprep.subr.bf16.mxu0 0
    %2831 = vmatpush1.bf16.msra.mxu0 0
    %2832 = vmatprep.subr.bf16.mxu0 0
    %2833 = vmatpush1.bf16.msra.mxu0 0
    %2834 = vmatprep.subr.bf16.mxu0 0
    %2835 = vmatpush1.bf16.msra.mxu0 0
    %2836 = vmatprep.subr.bf16.mxu0 0
    %2837 = vmatpush1.bf16.msra.mxu0 0
    %2838 = vmatprep.subr.bf16.mxu0 0
    %2839 = vmatpush1.bf16.msra.mxu0 0
    %2840 = vmatprep.subr.bf16.mxu0 0
    %2841 = vmatpush1.bf16.msra.mxu0 0
    %2842 = vmatprep.subr.bf16.mxu0 0
    %2843 = vmatpush1.bf16.msra.mxu0 0
    %2844 = vmatprep.subr.bf16.mxu0 0
    %2845 = vmatpush1.bf16.msra.mxu0 0
    %2846 = vmatprep.subr.bf16.mxu0 0
    %2847 = vmatpush1.bf16.msra.mxu0 0
    %2848 = vmatprep.subr.bf16.mxu0 0
    %2849 = vmatpush1.bf16.msra.mxu0 0
    %2850 = vmatprep.subr.bf16.mxu0 0
    %2851 = vmatpush1.bf16.msra.mxu0 0
    %2852 = vmatprep.mubr.bf16.mxu0 0
    %2853 = vmatmul.mubr.bf16.gmra.mrb[0].mxu0 %v2818
    %v2854 = vpop.f32.mrb[0].mxu0
    %v2855 = vadd.f32 0.0, %v2854
    %v2856 = vpop.f32.mrb[0].mxu0
    %v2857 = vpop.f32.mrb[0].mxu0
    %v2858 = vpop.f32.mrb[0].mxu0
    %2859 = vdwg.mxu0
    %v2861 = vrot.slane %v2855, 1
    %v2864 = vadd.f32 %v2622, %v2855
    %v2865 = vadd.f32 %v2625, %v2861
    %v2866 = vxor.u32 %v2864, 2147483648
    %v2867 = vxor.u32 %v2865, 2147483648
    %v2868 = vmul.f32 %v2866, 1.442695
    %v2869 = vpow.pop %v2868
    %v2870 = vmul.f32 %v2867, 1.442695
    %v2871 = vpow.pop %v2870
    %v2872 = vadd.f32 %v2869, 1.0
    %v2873 = vadd.f32 %v2871, 1.0
    %v2874 = vrcp.pop %v2872
    %v2875 = vmul.f32 1.0, %v2874
    %v2876 = vrcp.pop %v2873
    %v2877 = vmul.f32 1.0, %v2876
    %v2882 = vunpack.c.l.b16 %v2548
    %v2883 = vunpack.c.l.b16 %v2549
    %v2884 = vunpack.c.l.b16 %v2550
    %v2885 = vunpack.c.l.b16 %v2551
    %v2886 = vpack.c.b16 %v2883, %v2882
    %v2887 = vpack.c.b16 %v2885, %v2884
    %2890 = vmatprep.subr.bf16.mxu0 0
    %2891 = vmatpush1.bf16.msra.mxu0 %v2886
    %2892 = vmatprep.subr.bf16.mxu0 0
    %2893 = vmatpush1.bf16.msra.mxu0 %v2887
    %2894 = vmatprep.subr.bf16.mxu0 0
    %2895 = vmatpush1.bf16.msra.mxu0 0
    %2896 = vmatprep.subr.bf16.mxu0 0
    %2897 = vmatpush1.bf16.msra.mxu0 0
    %2898 = vmatprep.subr.bf16.mxu0 0
    %2899 = vmatpush1.bf16.msra.mxu0 0
    %2900 = vmatprep.subr.bf16.mxu0 0
    %2901 = vmatpush1.bf16.msra.mxu0 0
    %2902 = vmatprep.subr.bf16.mxu0 0
    %2903 = vmatpush1.bf16.msra.mxu0 0
    %2904 = vmatprep.subr.bf16.mxu0 0
    %2905 = vmatpush1.bf16.msra.mxu0 0
    %2906 = vmatprep.subr.bf16.mxu0 0
    %2907 = vmatpush1.bf16.msra.mxu0 0
    %2908 = vmatprep.subr.bf16.mxu0 0
    %2909 = vmatpush1.bf16.msra.mxu0 0
    %2910 = vmatprep.subr.bf16.mxu0 0
    %2911 = vmatpush1.bf16.msra.mxu0 0
    %2912 = vmatprep.subr.bf16.mxu0 0
    %2913 = vmatpush1.bf16.msra.mxu0 0
    %2914 = vmatprep.subr.bf16.mxu0 0
    %2915 = vmatpush1.bf16.msra.mxu0 0
    %2916 = vmatprep.subr.bf16.mxu0 0
    %2917 = vmatpush1.bf16.msra.mxu0 0
    %2918 = vmatprep.subr.bf16.mxu0 0
    %2919 = vmatpush1.bf16.msra.mxu0 0
    %2920 = vmatprep.subr.bf16.mxu0 0
    %2921 = vmatpush1.bf16.msra.mxu0 0
    %2922 = vmatprep.mubr.bf16.mxu0 0
    %2923 = vmatmul.mubr.bf16.gmra.mrb[0].mxu0 %v2818
    %v2924 = vpop.f32.mrb[0].mxu0
    %v2925 = vadd.f32 0.0, %v2924
    %v2926 = vpop.f32.mrb[0].mxu0
    %v2927 = vpop.f32.mrb[0].mxu0
    %v2928 = vpop.f32.mrb[0].mxu0
    %2929 = vdwg.mxu0
    %v2931 = vrot.slane %v2925, 1
    %v2934 = vadd.f32 %v2681, %v2925
    %v2935 = vadd.f32 %v2684, %v2931
    %v2936 = vxor.u32 %v2934, 2147483648
    %v2937 = vxor.u32 %v2935, 2147483648
    %v2938 = vmul.f32 %v2936, 1.442695
    %v2939 = vpow.pop %v2938
    %v2940 = vmul.f32 %v2937, 1.442695
    %v2941 = vpow.pop %v2940
    %v2942 = vadd.f32 %v2939, 1.0
    %v2943 = vadd.f32 %v2941, 1.0
    %v2944 = vrcp.pop %v2942
    %v2945 = vmul.f32 1.0, %v2944
    %v2946 = vrcp.pop %v2943
    %v2947 = vmul.f32 1.0, %v2946
    %v2952 = vunpack.c.l.b16 %v2552
    %v2953 = vunpack.c.l.b16 %v2553
    %v2954 = vunpack.c.l.b16 %v2554
    %v2955 = vunpack.c.l.b16 %v2555
    %v2956 = vpack.c.b16 %v2953, %v2952
    %v2957 = vpack.c.b16 %v2955, %v2954
    %2960 = vmatprep.subr.bf16.mxu0 0
    %2961 = vmatpush1.bf16.msra.mxu0 %v2956
    %2962 = vmatprep.subr.bf16.mxu0 0
    %2963 = vmatpush1.bf16.msra.mxu0 %v2957
    %2964 = vmatprep.subr.bf16.mxu0 0
    %2965 = vmatpush1.bf16.msra.mxu0 0
    %2966 = vmatprep.subr.bf16.mxu0 0
    %2967 = vmatpush1.bf16.msra.mxu0 0
    %2968 = vmatprep.subr.bf16.mxu0 0
    %2969 = vmatpush1.bf16.msra.mxu0 0
    %2970 = vmatprep.subr.bf16.mxu0 0
    %2971 = vmatpush1.bf16.msra.mxu0 0
    %2972 = vmatprep.subr.bf16.mxu0 0
    %2973 = vmatpush1.bf16.msra.mxu0 0
    %2974 = vmatprep.subr.bf16.mxu0 0
    %2975 = vmatpush1.bf16.msra.mxu0 0
    %2976 = vmatprep.subr.bf16.mxu0 0
    %2977 = vmatpush1.bf16.msra.mxu0 0
    %2978 = vmatprep.subr.bf16.mxu0 0
    %2979 = vmatpush1.bf16.msra.mxu0 0
    %2980 = vmatprep.subr.bf16.mxu0 0
    %2981 = vmatpush1.bf16.msra.mxu0 0
    %2982 = vmatprep.subr.bf16.mxu0 0
    %2983 = vmatpush1.bf16.msra.mxu0 0
    %2984 = vmatprep.subr.bf16.mxu0 0
    %2985 = vmatpush1.bf16.msra.mxu0 0
    %2986 = vmatprep.subr.bf16.mxu0 0
    %2987 = vmatpush1.bf16.msra.mxu0 0
    %2988 = vmatprep.subr.bf16.mxu0 0
    %2989 = vmatpush1.bf16.msra.mxu0 0
    %2990 = vmatprep.subr.bf16.mxu0 0
    %2991 = vmatpush1.bf16.msra.mxu0 0
    %2992 = vmatprep.mubr.bf16.mxu0 0
    %2993 = vmatmul.mubr.bf16.gmra.mrb[0].mxu0 %v2818
    %v2994 = vpop.f32.mrb[0].mxu0
    %v2995 = vadd.f32 0.0, %v2994
    %v2996 = vpop.f32.mrb[0].mxu0
    %v2997 = vpop.f32.mrb[0].mxu0
    %v2998 = vpop.f32.mrb[0].mxu0
    %2999 = vdwg.mxu0
    %v3001 = vrot.slane %v2995, 1
    %v3004 = vadd.f32 %v2740, %v2995
    %v3005 = vadd.f32 %v2743, %v3001
    %v3006 = vtanh.pop %v3004
    %v3007 = vtanh.pop %v3005
    %v3012 = vunpack.c.l.b16 %v2556
    %v3013 = vunpack.c.l.b16 %v2557
    %v3014 = vunpack.c.l.b16 %v2558
    %v3015 = vunpack.c.l.b16 %v2559
    %v3016 = vpack.c.b16 %v3013, %v3012
    %v3017 = vpack.c.b16 %v3015, %v3014
    %3020 = vmatprep.subr.bf16.mxu0 0
    %3021 = vmatpush1.bf16.msra.mxu0 %v3016
    %3022 = vmatprep.subr.bf16.mxu0 0
    %3023 = vmatpush1.bf16.msra.mxu0 %v3017
    %3024 = vmatprep.subr.bf16.mxu0 0
    %3025 = vmatpush1.bf16.msra.mxu0 0
    %3026 = vmatprep.subr.bf16.mxu0 0
    %3027 = vmatpush1.bf16.msra.mxu0 0
    %3028 = vmatprep.subr.bf16.mxu0 0
    %3029 = vmatpush1.bf16.msra.mxu0 0
    %3030 = vmatprep.subr.bf16.mxu0 0
    %3031 = vmatpush1.bf16.msra.mxu0 0
    %3032 = vmatprep.subr.bf16.mxu0 0
    %3033 = vmatpush1.bf16.msra.mxu0 0
    %3034 = vmatprep.subr.bf16.mxu0 0
    %3035 = vmatpush1.bf16.msra.mxu0 0
    %3036 = vmatprep.subr.bf16.mxu0 0
    %3037 = vmatpush1.bf16.msra.mxu0 0
    %3038 = vmatprep.subr.bf16.mxu0 0
    %3039 = vmatpush1.bf16.msra.mxu0 0
    %3040 = vmatprep.subr.bf16.mxu0 0
    %3041 = vmatpush1.bf16.msra.mxu0 0
    %3042 = vmatprep.subr.bf16.mxu0 0
    %3043 = vmatpush1.bf16.msra.mxu0 0
    %3044 = vmatprep.subr.bf16.mxu0 0
    %3045 = vmatpush1.bf16.msra.mxu0 0
    %3046 = vmatprep.subr.bf16.mxu0 0
    %3047 = vmatpush1.bf16.msra.mxu0 0
    %3048 = vmatprep.subr.bf16.mxu0 0
    %3049 = vmatpush1.bf16.msra.mxu0 0
    %3050 = vmatprep.subr.bf16.mxu0 0
    %3051 = vmatpush1.bf16.msra.mxu0 0
    %3052 = vmatprep.mubr.bf16.mxu0 0
    %3053 = vmatmul.mubr.bf16.gmra.mrb[0].mxu0 %v2818
    %v3054 = vpop.f32.mrb[0].mxu0
    %v3055 = vadd.f32 0.0, %v3054
    %v3056 = vpop.f32.mrb[0].mxu0
    %v3057 = vpop.f32.mrb[0].mxu0
    %v3058 = vpop.f32.mrb[0].mxu0
    %3059 = vdwg.mxu0
    %v3061 = vrot.slane %v3055, 1
    %v3064 = vadd.f32 %v2799, %v3055
    %v3065 = vadd.f32 %v2802, %v3061
    %v3066 = vxor.u32 %v3064, 2147483648
    %v3067 = vxor.u32 %v3065, 2147483648
    %v3068 = vmul.f32 %v3066, 1.442695
    %v3069 = vpow.pop %v3068
    %v3070 = vmul.f32 %v3067, 1.442695
    %v3071 = vpow.pop %v3070
    %v3072 = vadd.f32 %v3069, 1.0
    %v3073 = vadd.f32 %v3071, 1.0
    %v3074 = vrcp.pop %v3072
    %v3075 = vmul.f32 1.0, %v3074
    %v3076 = vrcp.pop %v3073
    %v3077 = vmul.f32 1.0, %v3076
    %v3078 = vmul.f32 %v2945, 0.0
    %v3079 = vmul.f32 %v2947, 0.0
    %v3080 = vmul.f32 %v2875, %v3006
    %v3081 = vmul.f32 %v2877, %v3007
    %v3082 = vadd.f32 %v3078, %v3080
    %v3083 = vadd.f32 %v3079, %v3081
    %v3084 = vtanh.pop %v3082
    %v3085 = vtanh.pop %v3083
    %v3086 = vmul.f32 %v3075, %v3084
    %v3087 = vmul.f32 %v3077, %v3085
    %vm3088 = vcmp.gt.s32.totalorder %v2564, 0
    %v3089 = vsel %vm3088, 1, 0
    %3090 = vset.pattern.permute.xlu0 0
    %3091 = vperm.xlu0 %3090, %v3089
    %v3092 = vpop.permute.xlu0 %3091
    %vm3093 = vcmp.eq.s32.totalorder %v3092, 1
    %v3096 = vrot.slane %v3087, 7
    %vm3097 = vcmask 1041409
    %v3098 = vsel %vm3097, %v3096, %v3086
    %v3100 = vsel %vm3093, %v3098, 0.0
    %v3103 = vrot.slane %v3083, 7
    %v3104 = vsel %vm3097, %v3103, %v3082
    %v3106 = vsel %vm3093, %v3104, 0.0
    %v3107 = vpack.c.bf16 %v3100, %v3100
    %v3109 = vsel %vm86, %v3107, 0
    %3111 = vmatprep.subr.bf16.mxu0 0
    %3112 = vmatpush1.bf16.msra.mxu0 %v2813
    %3113 = vmatprep.subr.bf16.mxu0 0
    %3114 = vmatpush1.bf16.msra.mxu0 %v2814
    %3115 = vmatprep.subr.bf16.mxu0 0
    %3116 = vmatpush1.bf16.msra.mxu0 0
    %3117 = vmatprep.subr.bf16.mxu0 0
    %3118 = vmatpush1.bf16.msra.mxu0 0
    %3119 = vmatprep.subr.bf16.mxu0 0
    %3120 = vmatpush1.bf16.msra.mxu0 0
    %3121 = vmatprep.subr.bf16.mxu0 0
    %3122 = vmatpush1.bf16.msra.mxu0 0
    %3123 = vmatprep.subr.bf16.mxu0 0
    %3124 = vmatpush1.bf16.msra.mxu0 0
    %3125 = vmatprep.subr.bf16.mxu0 0
    %3126 = vmatpush1.bf16.msra.mxu0 0
    %3127 = vmatprep.subr.bf16.mxu0 0
    %3128 = vmatpush1.bf16.msra.mxu0 0
    %3129 = vmatprep.subr.bf16.mxu0 0
    %3130 = vmatpush1.bf16.msra.mxu0 0
    %3131 = vmatprep.subr.bf16.mxu0 0
    %3132 = vmatpush1.bf16.msra.mxu0 0
    %3133 = vmatprep.subr.bf16.mxu0 0
    %3134 = vmatpush1.bf16.msra.mxu0 0
    %3135 = vmatprep.subr.bf16.mxu0 0
    %3136 = vmatpush1.bf16.msra.mxu0 0
    %3137 = vmatprep.subr.bf16.mxu0 0
    %3138 = vmatpush1.bf16.msra.mxu0 0
    %3139 = vmatprep.subr.bf16.mxu0 0
    %3140 = vmatpush1.bf16.msra.mxu0 0
    %3141 = vmatprep.subr.bf16.mxu0 0
    %3142 = vmatpush1.bf16.msra.mxu0 0
    %3143 = vmatprep.mubr.bf16.mxu0 0
    %3144 = vmatmul.mubr.bf16.gmra.mrb[0].mxu0 %v3109
    %v3145 = vpop.f32.mrb[0].mxu0
    %v3146 = vadd.f32 0.0, %v3145
    %v3147 = vpop.f32.mrb[0].mxu0
    %v3148 = vpop.f32.mrb[0].mxu0
    %v3149 = vpop.f32.mrb[0].mxu0
    %3150 = vdwg.mxu0
    %v3152 = vrot.slane %v3146, 7
    %v3155 = vadd.f32 %v2622, %v3152
    %v3156 = vadd.f32 %v2625, %v3146
    %v3157 = vxor.u32 %v3155, 2147483648
    %v3158 = vxor.u32 %v3156, 2147483648
    %v3159 = vmul.f32 %v3157, 1.442695
    %v3160 = vpow.pop %v3159
    %v3161 = vmul.f32 %v3158, 1.442695
    %v3162 = vpow.pop %v3161
    %v3163 = vadd.f32 %v3160, 1.0
    %v3164 = vadd.f32 %v3162, 1.0
    %v3165 = vrcp.pop %v3163
    %v3166 = vmul.f32 1.0, %v3165
    %v3167 = vrcp.pop %v3164
    %v3168 = vmul.f32 1.0, %v3167
    %3169 = vmatprep.subr.bf16.mxu0 0
    %3170 = vmatpush1.bf16.msra.mxu0 %v2886
    %3171 = vmatprep.subr.bf16.mxu0 0
    %3172 = vmatpush1.bf16.msra.mxu0 %v2887
    %3173 = vmatprep.subr.bf16.mxu0 0
    %3174 = vmatpush1.bf16.msra.mxu0 0
    %3175 = vmatprep.subr.bf16.mxu0 0
    %3176 = vmatpush1.bf16.msra.mxu0 0
    %3177 = vmatprep.subr.bf16.mxu0 0
    %3178 = vmatpush1.bf16.msra.mxu0 0
    %3179 = vmatprep.subr.bf16.mxu0 0
    %3180 = vmatpush1.bf16.msra.mxu0 0
    %3181 = vmatprep.subr.bf16.mxu0 0
    %3182 = vmatpush1.bf16.msra.mxu0 0
    %3183 = vmatprep.subr.bf16.mxu0 0
    %3184 = vmatpush1.bf16.msra.mxu0 0
    %3185 = vmatprep.subr.bf16.mxu0 0
    %3186 = vmatpush1.bf16.msra.mxu0 0
    %3187 = vmatprep.subr.bf16.mxu0 0
    %3188 = vmatpush1.bf16.msra.mxu0 0
    %3189 = vmatprep.subr.bf16.mxu0 0
    %3190 = vmatpush1.bf16.msra.mxu0 0
    %3191 = vmatprep.subr.bf16.mxu0 0
    %3192 = vmatpush1.bf16.msra.mxu0 0
    %3193 = vmatprep.subr.bf16.mxu0 0
    %3194 = vmatpush1.bf16.msra.mxu0 0
    %3195 = vmatprep.subr.bf16.mxu0 0
    %3196 = vmatpush1.bf16.msra.mxu0 0
    %3197 = vmatprep.subr.bf16.mxu0 0
    %3198 = vmatpush1.bf16.msra.mxu0 0
    %3199 = vmatprep.subr.bf16.mxu0 0
    %3200 = vmatpush1.bf16.msra.mxu0 0
    %3201 = vmatprep.mubr.bf16.mxu0 0
    %3202 = vmatmul.mubr.bf16.gmra.mrb[0].mxu0 %v3109
    %v3203 = vpop.f32.mrb[0].mxu0
    %v3204 = vadd.f32 0.0, %v3203
    %v3205 = vpop.f32.mrb[0].mxu0
    %v3206 = vpop.f32.mrb[0].mxu0
    %v3207 = vpop.f32.mrb[0].mxu0
    %3208 = vdwg.mxu0
    %v3210 = vrot.slane %v3204, 7
    %v3213 = vadd.f32 %v2681, %v3210
    %v3214 = vadd.f32 %v2684, %v3204
    %v3215 = vxor.u32 %v3213, 2147483648
    %v3216 = vxor.u32 %v3214, 2147483648
    %v3217 = vmul.f32 %v3215, 1.442695
    %v3218 = vpow.pop %v3217
    %v3219 = vmul.f32 %v3216, 1.442695
    %v3220 = vpow.pop %v3219
    %v3221 = vadd.f32 %v3218, 1.0
    %v3222 = vadd.f32 %v3220, 1.0
    %v3223 = vrcp.pop %v3221
    %v3224 = vmul.f32 1.0, %v3223
    %v3225 = vrcp.pop %v3222
    %v3226 = vmul.f32 1.0, %v3225
    %3227 = vmatprep.subr.bf16.mxu0 0
    %3228 = vmatpush1.bf16.msra.mxu0 %v2956
    %3229 = vmatprep.subr.bf16.mxu0 0
    %3230 = vmatpush1.bf16.msra.mxu0 %v2957
    %3231 = vmatprep.subr.bf16.mxu0 0
    %3232 = vmatpush1.bf16.msra.mxu0 0
    %3233 = vmatprep.subr.bf16.mxu0 0
    %3234 = vmatpush1.bf16.msra.mxu0 0
    %3235 = vmatprep.subr.bf16.mxu0 0
    %3236 = vmatpush1.bf16.msra.mxu0 0
    %3237 = vmatprep.subr.bf16.mxu0 0
    %3238 = vmatpush1.bf16.msra.mxu0 0
    %3239 = vmatprep.subr.bf16.mxu0 0
    %3240 = vmatpush1.bf16.msra.mxu0 0
    %3241 = vmatprep.subr.bf16.mxu0 0
    %3242 = vmatpush1.bf16.msra.mxu0 0
    %3243 = vmatprep.subr.bf16.mxu0 0
    %3244 = vmatpush1.bf16.msra.mxu0 0
    %3245 = vmatprep.subr.bf16.mxu0 0
    %3246 = vmatpush1.bf16.msra.mxu0 0
    %3247 = vmatprep.subr.bf16.mxu0 0
    %3248 = vmatpush1.bf16.msra.mxu0 0
    %3249 = vmatprep.subr.bf16.mxu0 0
    %3250 = vmatpush1.bf16.msra.mxu0 0
    %3251 = vmatprep.subr.bf16.mxu0 0
    %3252 = vmatpush1.bf16.msra.mxu0 0
    %3253 = vmatprep.subr.bf16.mxu0 0
    %3254 = vmatpush1.bf16.msra.mxu0 0
    %3255 = vmatprep.subr.bf16.mxu0 0
    %3256 = vmatpush1.bf16.msra.mxu0 0
    %3257 = vmatprep.subr.bf16.mxu0 0
    %3258 = vmatpush1.bf16.msra.mxu0 0
    %3259 = vmatprep.mubr.bf16.mxu0 0
    %3260 = vmatmul.mubr.bf16.gmra.mrb[0].mxu0 %v3109
    %v3261 = vpop.f32.mrb[0].mxu0
    %v3262 = vadd.f32 0.0, %v3261
    %v3263 = vpop.f32.mrb[0].mxu0
    %v3264 = vpop.f32.mrb[0].mxu0
    %v3265 = vpop.f32.mrb[0].mxu0
    %3266 = vdwg.mxu0
    %v3268 = vrot.slane %v3262, 7
    %v3271 = vadd.f32 %v2740, %v3268
    %v3272 = vadd.f32 %v2743, %v3262
    %v3273 = vtanh.pop %v3271
    %v3274 = vtanh.pop %v3272
    %3275 = vmatprep.subr.bf16.mxu0 0
    %3276 = vmatpush1.bf16.msra.mxu0 %v3016
    %3277 = vmatprep.subr.bf16.mxu0 0
    %3278 = vmatpush1.bf16.msra.mxu0 %v3017
    %3279 = vmatprep.subr.bf16.mxu0 0
    %3280 = vmatpush1.bf16.msra.mxu0 0
    %3281 = vmatprep.subr.bf16.mxu0 0
    %3282 = vmatpush1.bf16.msra.mxu0 0
    %3283 = vmatprep.subr.bf16.mxu0 0
    %3284 = vmatpush1.bf16.msra.mxu0 0
    %3285 = vmatprep.subr.bf16.mxu0 0
    %3286 = vmatpush1.bf16.msra.mxu0 0
    %3287 = vmatprep.subr.bf16.mxu0 0
    %3288 = vmatpush1.bf16.msra.mxu0 0
    %3289 = vmatprep.subr.bf16.mxu0 0
    %3290 = vmatpush1.bf16.msra.mxu0 0
    %3291 = vmatprep.subr.bf16.mxu0 0
    %3292 = vmatpush1.bf16.msra.mxu0 0
    %3293 = vmatprep.subr.bf16.mxu0 0
    %3294 = vmatpush1.bf16.msra.mxu0 0
    %3295 = vmatprep.subr.bf16.mxu0 0
    %3296 = vmatpush1.bf16.msra.mxu0 0
    %3297 = vmatprep.subr.bf16.mxu0 0
    %3298 = vmatpush1.bf16.msra.mxu0 0
    %3299 = vmatprep.subr.bf16.mxu0 0
    %3300 = vmatpush1.bf16.msra.mxu0 0
    %3301 = vmatprep.subr.bf16.mxu0 0
    %3302 = vmatpush1.bf16.msra.mxu0 0
    %3303 = vmatprep.subr.bf16.mxu0 0
    %3304 = vmatpush1.bf16.msra.mxu0 0
    %3305 = vmatprep.subr.bf16.mxu0 0
    %3306 = vmatpush1.bf16.msra.mxu0 0
    %3307 = vmatprep.mubr.bf16.mxu0 0
    %3308 = vmatmul.mubr.bf16.gmra.mrb[0].mxu0 %v3109
    %v3309 = vpop.f32.mrb[0].mxu0
    %v3310 = vadd.f32 0.0, %v3309
    %v3311 = vpop.f32.mrb[0].mxu0
    %v3312 = vpop.f32.mrb[0].mxu0
    %v3313 = vpop.f32.mrb[0].mxu0
    %3314 = vdwg.mxu0
    %v3316 = vrot.slane %v3310, 7
    %v3319 = vadd.f32 %v2799, %v3316
    %v3320 = vadd.f32 %v2802, %v3310
    %v3321 = vxor.u32 %v3319, 2147483648
    %v3322 = vxor.u32 %v3320, 2147483648
    %v3323 = vmul.f32 %v3321, 1.442695
    %v3324 = vpow.pop %v3323
    %v3325 = vmul.f32 %v3322, 1.442695
    %v3326 = vpow.pop %v3325
    %v3327 = vadd.f32 %v3324, 1.0
    %v3328 = vadd.f32 %v3326, 1.0
    %v3329 = vrcp.pop %v3327
    %v3330 = vmul.f32 1.0, %v3329
    %v3331 = vrcp.pop %v3328
    %v3332 = vmul.f32 1.0, %v3331
    %v3334 = vrot.slane %v3106, 7
    %v3337 = vmul.f32 %v3224, %v3334
    %v3338 = vmul.f32 %v3226, %v3106
    %v3339 = vmul.f32 %v3166, %v3273
    %v3340 = vmul.f32 %v3168, %v3274
    %v3341 = vadd.f32 %v3337, %v3339
    %v3342 = vadd.f32 %v3338, %v3340
    %v3343 = vtanh.pop %v3341
    %v3344 = vtanh.pop %v3342
    %v3345 = vmul.f32 %v3330, %v3343
    %v3346 = vmul.f32 %v3332, %v3344
    %vm3347 = vcmp.gt.s32.totalorder %v2564, 1
    %v3348 = vsel %vm3347, 1, 0
    %3349 = vset.pattern.permute.xlu0 0
    %3350 = vperm.xlu0 %3349, %v3348
    %v3351 = vpop.permute.xlu0 %3350
    %vm3352 = vcmp.eq.s32.totalorder %v3351, 1
    %v3355 = vrot.slane %v3345, 1
    %v3356 = vsel %vm3097, %v3346, %v3355
    %v3358 = vsel %vm3352, %v3356, %v3100
    %v3361 = vrot.slane %v3341, 1
    %v3362 = vsel %vm3097, %v3342, %v3361
    %v3364 = vsel %vm3352, %v3362, %v3106
    %v3365 = vpack.c.bf16 %v3358, %v3358
    %v3367 = vsel %vm86, %v3365, 0
    %3369 = vmatprep.subr.bf16.mxu0 0
    %3370 = vmatpush1.bf16.msra.mxu0 %v2813
    %3371 = vmatprep.subr.bf16.mxu0 0
    %3372 = vmatpush1.bf16.msra.mxu0 %v2814
    %3373 = vmatprep.subr.bf16.mxu0 0
    %3374 = vmatpush1.bf16.msra.mxu0 0
    %3375 = vmatprep.subr.bf16.mxu0 0
    %3376 = vmatpush1.bf16.msra.mxu0 0
    %3377 = vmatprep.subr.bf16.mxu0 0
    %3378 = vmatpush1.bf16.msra.mxu0 0
    %3379 = vmatprep.subr.bf16.mxu0 0
    %3380 = vmatpush1.bf16.msra.mxu0 0
    %3381 = vmatprep.subr.bf16.mxu0 0
    %3382 = vmatpush1.bf16.msra.mxu0 0
    %3383 = vmatprep.subr.bf16.mxu0 0
    %3384 = vmatpush1.bf16.msra.mxu0 0
    %3385 = vmatprep.subr.bf16.mxu0 0
    %3386 = vmatpush1.bf16.msra.mxu0 0
    %3387 = vmatprep.subr.bf16.mxu0 0
    %3388 = vmatpush1.bf16.msra.mxu0 0
    %3389 = vmatprep.subr.bf16.mxu0 0
    %3390 = vmatpush1.bf16.msra.mxu0 0
    %3391 = vmatprep.subr.bf16.mxu0 0
    %3392 = vmatpush1.bf16.msra.mxu0 0
    %3393 = vmatprep.subr.bf16.mxu0 0
    %3394 = vmatpush1.bf16.msra.mxu0 0
    %3395 = vmatprep.subr.bf16.mxu0 0
    %3396 = vmatpush1.bf16.msra.mxu0 0
    %3397 = vmatprep.subr.bf16.mxu0 0
    %3398 = vmatpush1.bf16.msra.mxu0 0
    %3399 = vmatprep.subr.bf16.mxu0 0
    %3400 = vmatpush1.bf16.msra.mxu0 0
    %3401 = vmatprep.mubr.bf16.mxu0 0
    %3402 = vmatmul.mubr.bf16.gmra.mrb[0].mxu0 %v3367
    %v3403 = vpop.f32.mrb[0].mxu0
    %v3404 = vadd.f32 0.0, %v3403
    %v3405 = vpop.f32.mrb[0].mxu0
    %v3406 = vpop.f32.mrb[0].mxu0
    %v3407 = vpop.f32.mrb[0].mxu0
    %3408 = vdwg.mxu0
    %v3410 = vrot.slane %v3404, 6
    %v3411 = vrot.slane %v3404, 7
    %v3414 = vadd.f32 %v2622, %v3410
    %v3415 = vadd.f32 %v2625, %v3411
    %v3416 = vxor.u32 %v3414, 2147483648
    %v3417 = vxor.u32 %v3415, 2147483648
    %v3418 = vmul.f32 %v3416, 1.442695
    %v3419 = vpow.pop %v3418
    %v3420 = vmul.f32 %v3417, 1.442695
    %v3421 = vpow.pop %v3420
    %v3422 = vadd.f32 %v3419, 1.0
    %v3423 = vadd.f32 %v3421, 1.0
    %v3424 = vrcp.pop %v3422
    %v3425 = vmul.f32 1.0, %v3424
    %v3426 = vrcp.pop %v3423
    %v3427 = vmul.f32 1.0, %v3426
    %3428 = vmatprep.subr.bf16.mxu0 0
    %3429 = vmatpush1.bf16.msra.mxu0 %v2886
    %3430 = vmatprep.subr.bf16.mxu0 0
    %3431 = vmatpush1.bf16.msra.mxu0 %v2887
    %3432 = vmatprep.subr.bf16.mxu0 0
    %3433 = vmatpush1.bf16.msra.mxu0 0
    %3434 = vmatprep.subr.bf16.mxu0 0
    %3435 = vmatpush1.bf16.msra.mxu0 0
    %3436 = vmatprep.subr.bf16.mxu0 0
    %3437 = vmatpush1.bf16.msra.mxu0 0
    %3438 = vmatprep.subr.bf16.mxu0 0
    %3439 = vmatpush1.bf16.msra.mxu0 0
    %3440 = vmatprep.subr.bf16.mxu0 0
    %3441 = vmatpush1.bf16.msra.mxu0 0
    %3442 = vmatprep.subr.bf16.mxu0 0
    %3443 = vmatpush1.bf16.msra.mxu0 0
    %3444 = vmatprep.subr.bf16.mxu0 0
    %3445 = vmatpush1.bf16.msra.mxu0 0
    %3446 = vmatprep.subr.bf16.mxu0 0
    %3447 = vmatpush1.bf16.msra.mxu0 0
    %3448 = vmatprep.subr.bf16.mxu0 0
    %3449 = vmatpush1.bf16.msra.mxu0 0
    %3450 = vmatprep.subr.bf16.mxu0 0
    %3451 = vmatpush1.bf16.msra.mxu0 0
    %3452 = vmatprep.subr.bf16.mxu0 0
    %3453 = vmatpush1.bf16.msra.mxu0 0
    %3454 = vmatprep.subr.bf16.mxu0 0
    %3455 = vmatpush1.bf16.msra.mxu0 0
    %3456 = vmatprep.subr.bf16.mxu0 0
    %3457 = vmatpush1.bf16.msra.mxu0 0
    %3458 = vmatprep.subr.bf16.mxu0 0
    %3459 = vmatpush1.bf16.msra.mxu0 0
    %3460 = vmatprep.mubr.bf16.mxu0 0
    %3461 = vmatmul.mubr.bf16.gmra.mrb[0].mxu0 %v3367
    %v3462 = vpop.f32.mrb[0].mxu0
    %v3463 = vadd.f32 0.0, %v3462
    %v3464 = vpop.f32.mrb[0].mxu0
    %v3465 = vpop.f32.mrb[0].mxu0
    %v3466 = vpop.f32.mrb[0].mxu0
    %3467 = vdwg.mxu0
    %v3469 = vrot.slane %v3463, 6
    %v3470 = vrot.slane %v3463, 7
    %v3473 = vadd.f32 %v2681, %v3469
    %v3474 = vadd.f32 %v2684, %v3470
    %v3475 = vxor.u32 %v3473, 2147483648
    %v3476 = vxor.u32 %v3474, 2147483648
    %v3477 = vmul.f32 %v3475, 1.442695
    %v3478 = vpow.pop %v3477
    %v3479 = vmul.f32 %v3476, 1.442695
    %v3480 = vpow.pop %v3479
    %v3481 = vadd.f32 %v3478, 1.0
    %v3482 = vadd.f32 %v3480, 1.0
    %v3483 = vrcp.pop %v3481
    %v3484 = vmul.f32 1.0, %v3483
    %v3485 = vrcp.pop %v3482
    %v3486 = vmul.f32 1.0, %v3485
    %3487 = vmatprep.subr.bf16.mxu0 0
    %3488 = vmatpush1.bf16.msra.mxu0 %v2956
    %3489 = vmatprep.subr.bf16.mxu0 0
    %3490 = vmatpush1.bf16.msra.mxu0 %v2957
    %3491 = vmatprep.subr.bf16.mxu0 0
    %3492 = vmatpush1.bf16.msra.mxu0 0
    %3493 = vmatprep.subr.bf16.mxu0 0
    %3494 = vmatpush1.bf16.msra.mxu0 0
    %3495 = vmatprep.subr.bf16.mxu0 0
    %3496 = vmatpush1.bf16.msra.mxu0 0
    %3497 = vmatprep.subr.bf16.mxu0 0
    %3498 = vmatpush1.bf16.msra.mxu0 0
    %3499 = vmatprep.subr.bf16.mxu0 0
    %3500 = vmatpush1.bf16.msra.mxu0 0
    %3501 = vmatprep.subr.bf16.mxu0 0
    %3502 = vmatpush1.bf16.msra.mxu0 0
    %3503 = vmatprep.subr.bf16.mxu0 0
    %3504 = vmatpush1.bf16.msra.mxu0 0
    %3505 = vmatprep.subr.bf16.mxu0 0
    %3506 = vmatpush1.bf16.msra.mxu0 0
    %3507 = vmatprep.subr.bf16.mxu0 0
    %3508 = vmatpush1.bf16.msra.mxu0 0
    %3509 = vmatprep.subr.bf16.mxu0 0
    %3510 = vmatpush1.bf16.msra.mxu0 0
    %3511 = vmatprep.subr.bf16.mxu0 0
    %3512 = vmatpush1.bf16.msra.mxu0 0
    %3513 = vmatprep.subr.bf16.mxu0 0
    %3514 = vmatpush1.bf16.msra.mxu0 0
    %3515 = vmatprep.subr.bf16.mxu0 0
    %3516 = vmatpush1.bf16.msra.mxu0 0
    %3517 = vmatprep.subr.bf16.mxu0 0
    %3518 = vmatpush1.bf16.msra.mxu0 0
    %3519 = vmatprep.mubr.bf16.mxu0 0
    %3520 = vmatmul.mubr.bf16.gmra.mrb[0].mxu0 %v3367
    %v3521 = vpop.f32.mrb[0].mxu0
    %v3522 = vadd.f32 0.0, %v3521
    %v3523 = vpop.f32.mrb[0].mxu0
    %v3524 = vpop.f32.mrb[0].mxu0
    %v3525 = vpop.f32.mrb[0].mxu0
    %3526 = vdwg.mxu0
    %v3528 = vrot.slane %v3522, 6
    %v3529 = vrot.slane %v3522, 7
    %v3532 = vadd.f32 %v2740, %v3528
    %v3533 = vadd.f32 %v2743, %v3529
    %v3534 = vtanh.pop %v3532
    %v3535 = vtanh.pop %v3533
    %3536 = vmatprep.subr.bf16.mxu0 0
    %3537 = vmatpush1.bf16.msra.mxu0 %v3016
    %3538 = vmatprep.subr.bf16.mxu0 0
    %3539 = vmatpush1.bf16.msra.mxu0 %v3017
    %3540 = vmatprep.subr.bf16.mxu0 0
    %3541 = vmatpush1.bf16.msra.mxu0 0
    %3542 = vmatprep.subr.bf16.mxu0 0
    %3543 = vmatpush1.bf16.msra.mxu0 0
    %3544 = vmatprep.subr.bf16.mxu0 0
    %3545 = vmatpush1.bf16.msra.mxu0 0
    %3546 = vmatprep.subr.bf16.mxu0 0
    %3547 = vmatpush1.bf16.msra.mxu0 0
    %3548 = vmatprep.subr.bf16.mxu0 0
    %3549 = vmatpush1.bf16.msra.mxu0 0
    %3550 = vmatprep.subr.bf16.mxu0 0
    %3551 = vmatpush1.bf16.msra.mxu0 0
    %3552 = vmatprep.subr.bf16.mxu0 0
    %3553 = vmatpush1.bf16.msra.mxu0 0
    %3554 = vmatprep.subr.bf16.mxu0 0
    %3555 = vmatpush1.bf16.msra.mxu0 0
    %3556 = vmatprep.subr.bf16.mxu0 0
    %3557 = vmatpush1.bf16.msra.mxu0 0
    %3558 = vmatprep.subr.bf16.mxu0 0
    %3559 = vmatpush1.bf16.msra.mxu0 0
    %3560 = vmatprep.subr.bf16.mxu0 0
    %3561 = vmatpush1.bf16.msra.mxu0 0
    %3562 = vmatprep.subr.bf16.mxu0 0
    %3563 = vmatpush1.bf16.msra.mxu0 0
    %3564 = vmatprep.subr.bf16.mxu0 0
    %3565 = vmatpush1.bf16.msra.mxu0 0
    %3566 = vmatprep.subr.bf16.mxu0 0
    %3567 = vmatpush1.bf16.msra.mxu0 0
    %3568 = vmatprep.mubr.bf16.mxu0 0
    %3569 = vmatmul.mubr.bf16.gmra.mrb[0].mxu0 %v3367
    %v3570 = vpop.f32.mrb[0].mxu0
    %v3571 = vadd.f32 0.0, %v3570
    %v3572 = vpop.f32.mrb[0].mxu0
    %v3573 = vpop.f32.mrb[0].mxu0
    %v3574 = vpop.f32.mrb[0].mxu0
    %3575 = vdwg.mxu0
    %v3577 = vrot.slane %v3571, 6
    %v3578 = vrot.slane %v3571, 7
    %v3581 = vadd.f32 %v2799, %v3577
    %v3582 = vadd.f32 %v2802, %v3578
    %v3583 = vxor.u32 %v3581, 2147483648
    %v3584 = vxor.u32 %v3582, 2147483648
    %v3585 = vmul.f32 %v3583, 1.442695
    %v3586 = vpow.pop %v3585
    %v3587 = vmul.f32 %v3584, 1.442695
    %v3588 = vpow.pop %v3587
    %v3589 = vadd.f32 %v3586, 1.0
    %v3590 = vadd.f32 %v3588, 1.0
    %v3591 = vrcp.pop %v3589
    %v3592 = vmul.f32 1.0, %v3591
    %v3593 = vrcp.pop %v3590
    %v3594 = vmul.f32 1.0, %v3593
    %v3596 = vrot.slane %v3364, 6
    %v3597 = vrot.slane %v3364, 7
    %v3600 = vmul.f32 %v3484, %v3596
    %v3601 = vmul.f32 %v3486, %v3597
    %v3602 = vmul.f32 %v3425, %v3534
    %v3603 = vmul.f32 %v3427, %v3535
    %v3604 = vadd.f32 %v3600, %v3602
    %v3605 = vadd.f32 %v3601, %v3603
    %v3606 = vtanh.pop %v3604
    %v3607 = vtanh.pop %v3605
    %v3608 = vmul.f32 %v3592, %v3606
    %v3609 = vmul.f32 %v3594, %v3607
    %vm3610 = vcmp.gt.s32.totalorder %v2564, 2
    %v3611 = vsel %vm3610, 1, 0
    %3612 = vset.pattern.permute.xlu0 0
    %3613 = vperm.xlu0 %3612, %v3611
    %v3614 = vpop.permute.xlu0 %3613
    %vm3615 = vcmp.eq.s32.totalorder %v3614, 1
    %v3618 = vrot.slane %v3608, 2
    %v3619 = vrot.slane %v3609, 1
    %v3620 = vsel %vm3097, %v3619, %v3618
    %v3622 = vsel %vm3615, %v3620, %v3358
    %v3625 = vrot.slane %v3604, 2
    %v3626 = vrot.slane %v3605, 1
    %v3627 = vsel %vm3097, %v3626, %v3625
    %v3629 = vsel %vm3615, %v3627, %v3364
    %v3630 = vpack.c.bf16 %v3622, %v3622
    %v3632 = vsel %vm86, %v3630, 0
    %3634 = vmatprep.subr.bf16.mxu0 0
    %3635 = vmatpush1.bf16.msra.mxu0 %v2813
    %3636 = vmatprep.subr.bf16.mxu0 0
    %3637 = vmatpush1.bf16.msra.mxu0 %v2814
    %3638 = vmatprep.subr.bf16.mxu0 0
    %3639 = vmatpush1.bf16.msra.mxu0 0
    %3640 = vmatprep.subr.bf16.mxu0 0
    %3641 = vmatpush1.bf16.msra.mxu0 0
    %3642 = vmatprep.subr.bf16.mxu0 0
    %3643 = vmatpush1.bf16.msra.mxu0 0
    %3644 = vmatprep.subr.bf16.mxu0 0
    %3645 = vmatpush1.bf16.msra.mxu0 0
    %3646 = vmatprep.subr.bf16.mxu0 0
    %3647 = vmatpush1.bf16.msra.mxu0 0
    %3648 = vmatprep.subr.bf16.mxu0 0
    %3649 = vmatpush1.bf16.msra.mxu0 0
    %3650 = vmatprep.subr.bf16.mxu0 0
    %3651 = vmatpush1.bf16.msra.mxu0 0
    %3652 = vmatprep.subr.bf16.mxu0 0
    %3653 = vmatpush1.bf16.msra.mxu0 0
    %3654 = vmatprep.subr.bf16.mxu0 0
    %3655 = vmatpush1.bf16.msra.mxu0 0
    %3656 = vmatprep.subr.bf16.mxu0 0
    %3657 = vmatpush1.bf16.msra.mxu0 0
    %3658 = vmatprep.subr.bf16.mxu0 0
    %3659 = vmatpush1.bf16.msra.mxu0 0
    %3660 = vmatprep.subr.bf16.mxu0 0
    %3661 = vmatpush1.bf16.msra.mxu0 0
    %3662 = vmatprep.subr.bf16.mxu0 0
    %3663 = vmatpush1.bf16.msra.mxu0 0
    %3664 = vmatprep.subr.bf16.mxu0 0
    %3665 = vmatpush1.bf16.msra.mxu0 0
    %3666 = vmatprep.mubr.bf16.mxu0 0
    %3667 = vmatmul.mubr.bf16.gmra.mrb[0].mxu0 %v3632
    %v3668 = vpop.f32.mrb[0].mxu0
    %v3669 = vadd.f32 0.0, %v3668
    %v3670 = vpop.f32.mrb[0].mxu0
    %v3671 = vpop.f32.mrb[0].mxu0
    %v3672 = vpop.f32.mrb[0].mxu0
    %3673 = vdwg.mxu0
    %v3675 = vrot.slane %v3669, 5
    %v3676 = vrot.slane %v3669, 6
    %v3679 = vadd.f32 %v2622, %v3675
    %v3680 = vadd.f32 %v2625, %v3676
    %v3681 = vxor.u32 %v3679, 2147483648
    %v3682 = vxor.u32 %v3680, 2147483648
    %v3683 = vmul.f32 %v3681, 1.442695
    %v3684 = vpow.pop %v3683
    %v3685 = vmul.f32 %v3682, 1.442695
    %v3686 = vpow.pop %v3685
    %v3687 = vadd.f32 %v3684, 1.0
    %v3688 = vadd.f32 %v3686, 1.0
    %v3689 = vrcp.pop %v3687
    %v3690 = vmul.f32 1.0, %v3689
    %v3691 = vrcp.pop %v3688
    %v3692 = vmul.f32 1.0, %v3691
    %3693 = vmatprep.subr.bf16.mxu0 0
    %3694 = vmatpush1.bf16.msra.mxu0 %v2886
    %3695 = vmatprep.subr.bf16.mxu0 0
    %3696 = vmatpush1.bf16.msra.mxu0 %v2887
    %3697 = vmatprep.subr.bf16.mxu0 0
    %3698 = vmatpush1.bf16.msra.mxu0 0
    %3699 = vmatprep.subr.bf16.mxu0 0
    %3700 = vmatpush1.bf16.msra.mxu0 0
    %3701 = vmatprep.subr.bf16.mxu0 0
    %3702 = vmatpush1.bf16.msra.mxu0 0
    %3703 = vmatprep.subr.bf16.mxu0 0
    %3704 = vmatpush1.bf16.msra.mxu0 0
    %3705 = vmatprep.subr.bf16.mxu0 0
    %3706 = vmatpush1.bf16.msra.mxu0 0
    %3707 = vmatprep.subr.bf16.mxu0 0
    %3708 = vmatpush1.bf16.msra.mxu0 0
    %3709 = vmatprep.subr.bf16.mxu0 0
    %3710 = vmatpush1.bf16.msra.mxu0 0
    %3711 = vmatprep.subr.bf16.mxu0 0
    %3712 = vmatpush1.bf16.msra.mxu0 0
    %3713 = vmatprep.subr.bf16.mxu0 0
    %3714 = vmatpush1.bf16.msra.mxu0 0
    %3715 = vmatprep.subr.bf16.mxu0 0
    %3716 = vmatpush1.bf16.msra.mxu0 0
    %3717 = vmatprep.subr.bf16.mxu0 0
    %3718 = vmatpush1.bf16.msra.mxu0 0
    %3719 = vmatprep.subr.bf16.mxu0 0
    %3720 = vmatpush1.bf16.msra.mxu0 0
    %3721 = vmatprep.subr.bf16.mxu0 0
    %3722 = vmatpush1.bf16.msra.mxu0 0
    %3723 = vmatprep.subr.bf16.mxu0 0
    %3724 = vmatpush1.bf16.msra.mxu0 0
    %3725 = vmatprep.mubr.bf16.mxu0 0
    %3726 = vmatmul.mubr.bf16.gmra.mrb[0].mxu0 %v3632
    %v3727 = vpop.f32.mrb[0].mxu0
    %v3728 = vadd.f32 0.0, %v3727
    %v3729 = vpop.f32.mrb[0].mxu0
    %v3730 = vpop.f32.mrb[0].mxu0
    %v3731 = vpop.f32.mrb[0].mxu0
    %3732 = vdwg.mxu0
    %v3734 = vrot.slane %v3728, 5
    %v3735 = vrot.slane %v3728, 6
    %v3738 = vadd.f32 %v2681, %v3734
    %v3739 = vadd.f32 %v2684, %v3735
    %v3740 = vxor.u32 %v3738, 2147483648
    %v3741 = vxor.u32 %v3739, 2147483648
    %v3742 = vmul.f32 %v3740, 1.442695
    %v3743 = vpow.pop %v3742
    %v3744 = vmul.f32 %v3741, 1.442695
    %v3745 = vpow.pop %v3744
    %v3746 = vadd.f32 %v3743, 1.0
    %v3747 = vadd.f32 %v3745, 1.0
    %v3748 = vrcp.pop %v3746
    %v3749 = vmul.f32 1.0, %v3748
    %v3750 = vrcp.pop %v3747
    %v3751 = vmul.f32 1.0, %v3750
    %3752 = vmatprep.subr.bf16.mxu0 0
    %3753 = vmatpush1.bf16.msra.mxu0 %v2956
    %3754 = vmatprep.subr.bf16.mxu0 0
    %3755 = vmatpush1.bf16.msra.mxu0 %v2957
    %3756 = vmatprep.subr.bf16.mxu0 0
    %3757 = vmatpush1.bf16.msra.mxu0 0
    %3758 = vmatprep.subr.bf16.mxu0 0
    %3759 = vmatpush1.bf16.msra.mxu0 0
    %3760 = vmatprep.subr.bf16.mxu0 0
    %3761 = vmatpush1.bf16.msra.mxu0 0
    %3762 = vmatprep.subr.bf16.mxu0 0
    %3763 = vmatpush1.bf16.msra.mxu0 0
    %3764 = vmatprep.subr.bf16.mxu0 0
    %3765 = vmatpush1.bf16.msra.mxu0 0
    %3766 = vmatprep.subr.bf16.mxu0 0
    %3767 = vmatpush1.bf16.msra.mxu0 0
    %3768 = vmatprep.subr.bf16.mxu0 0
    %3769 = vmatpush1.bf16.msra.mxu0 0
    %3770 = vmatprep.subr.bf16.mxu0 0
    %3771 = vmatpush1.bf16.msra.mxu0 0
    %3772 = vmatprep.subr.bf16.mxu0 0
    %3773 = vmatpush1.bf16.msra.mxu0 0
    %3774 = vmatprep.subr.bf16.mxu0 0
    %3775 = vmatpush1.bf16.msra.mxu0 0
    %3776 = vmatprep.subr.bf16.mxu0 0
    %3777 = vmatpush1.bf16.msra.mxu0 0
    %3778 = vmatprep.subr.bf16.mxu0 0
    %3779 = vmatpush1.bf16.msra.mxu0 0
    %3780 = vmatprep.subr.bf16.mxu0 0
    %3781 = vmatpush1.bf16.msra.mxu0 0
    %3782 = vmatprep.subr.bf16.mxu0 0
    %3783 = vmatpush1.bf16.msra.mxu0 0
    %3784 = vmatprep.mubr.bf16.mxu0 0
    %3785 = vmatmul.mubr.bf16.gmra.mrb[0].mxu0 %v3632
    %v3786 = vpop.f32.mrb[0].mxu0
    %v3787 = vadd.f32 0.0, %v3786
    %v3788 = vpop.f32.mrb[0].mxu0
    %v3789 = vpop.f32.mrb[0].mxu0
    %v3790 = vpop.f32.mrb[0].mxu0
    %3791 = vdwg.mxu0
    %v3793 = vrot.slane %v3787, 5
    %v3794 = vrot.slane %v3787, 6
    %v3797 = vadd.f32 %v2740, %v3793
    %v3798 = vadd.f32 %v2743, %v3794
    %v3799 = vtanh.pop %v3797
    %v3800 = vtanh.pop %v3798
    %3801 = vmatprep.subr.bf16.mxu0 0
    %3802 = vmatpush1.bf16.msra.mxu0 %v3016
    %3803 = vmatprep.subr.bf16.mxu0 0
    %3804 = vmatpush1.bf16.msra.mxu0 %v3017
    %3805 = vmatprep.subr.bf16.mxu0 0
    %3806 = vmatpush1.bf16.msra.mxu0 0
    %3807 = vmatprep.subr.bf16.mxu0 0
    %3808 = vmatpush1.bf16.msra.mxu0 0
    %3809 = vmatprep.subr.bf16.mxu0 0
    %3810 = vmatpush1.bf16.msra.mxu0 0
    %3811 = vmatprep.subr.bf16.mxu0 0
    %3812 = vmatpush1.bf16.msra.mxu0 0
    %3813 = vmatprep.subr.bf16.mxu0 0
    %3814 = vmatpush1.bf16.msra.mxu0 0
    %3815 = vmatprep.subr.bf16.mxu0 0
    %3816 = vmatpush1.bf16.msra.mxu0 0
    %3817 = vmatprep.subr.bf16.mxu0 0
    %3818 = vmatpush1.bf16.msra.mxu0 0
    %3819 = vmatprep.subr.bf16.mxu0 0
    %3820 = vmatpush1.bf16.msra.mxu0 0
    %3821 = vmatprep.subr.bf16.mxu0 0
    %3822 = vmatpush1.bf16.msra.mxu0 0
    %3823 = vmatprep.subr.bf16.mxu0 0
    %3824 = vmatpush1.bf16.msra.mxu0 0
    %3825 = vmatprep.subr.bf16.mxu0 0
    %3826 = vmatpush1.bf16.msra.mxu0 0
    %3827 = vmatprep.subr.bf16.mxu0 0
    %3828 = vmatpush1.bf16.msra.mxu0 0
    %3829 = vmatprep.subr.bf16.mxu0 0
    %3830 = vmatpush1.bf16.msra.mxu0 0
    %3831 = vmatprep.subr.bf16.mxu0 0
    %3832 = vmatpush1.bf16.msra.mxu0 0
    %3833 = vmatprep.mubr.bf16.mxu0 0
    %3834 = vmatmul.mubr.bf16.gmra.mrb[0].mxu0 %v3632
    %v3835 = vpop.f32.mrb[0].mxu0
    %v3836 = vadd.f32 0.0, %v3835
    %v3837 = vpop.f32.mrb[0].mxu0
    %v3838 = vpop.f32.mrb[0].mxu0
    %v3839 = vpop.f32.mrb[0].mxu0
    %3840 = vdwg.mxu0
    %v3842 = vrot.slane %v3836, 5
    %v3843 = vrot.slane %v3836, 6
    %v3846 = vadd.f32 %v2799, %v3842
    %v3847 = vadd.f32 %v2802, %v3843
    %v3848 = vxor.u32 %v3846, 2147483648
    %v3849 = vxor.u32 %v3847, 2147483648
    %v3850 = vmul.f32 %v3848, 1.442695
    %v3851 = vpow.pop %v3850
    %v3852 = vmul.f32 %v3849, 1.442695
    %v3853 = vpow.pop %v3852
    %v3854 = vadd.f32 %v3851, 1.0
    %v3855 = vadd.f32 %v3853, 1.0
    %v3856 = vrcp.pop %v3854
    %v3857 = vmul.f32 1.0, %v3856
    %v3858 = vrcp.pop %v3855
    %v3859 = vmul.f32 1.0, %v3858
    %v3861 = vrot.slane %v3629, 5
    %v3862 = vrot.slane %v3629, 6
    %v3865 = vmul.f32 %v3749, %v3861
    %v3866 = vmul.f32 %v3751, %v3862
    %v3867 = vmul.f32 %v3690, %v3799
    %v3868 = vmul.f32 %v3692, %v3800
    %v3869 = vadd.f32 %v3865, %v3867
    %v3870 = vadd.f32 %v3866, %v3868
    %v3871 = vtanh.pop %v3869
    %v3872 = vtanh.pop %v3870
    %v3873 = vmul.f32 %v3857, %v3871
    %v3874 = vmul.f32 %v3859, %v3872
    %vm3875 = vcmp.gt.s32.totalorder %v2564, 3
    %v3876 = vsel %vm3875, 1, 0
    %3877 = vset.pattern.permute.xlu0 0
    %3878 = vperm.xlu0 %3877, %v3876
    %v3879 = vpop.permute.xlu0 %3878
    %vm3880 = vcmp.eq.s32.totalorder %v3879, 1
    %v3883 = vrot.slane %v3873, 3
    %v3884 = vrot.slane %v3874, 2
    %v3885 = vsel %vm3097, %v3884, %v3883
    %v3887 = vsel %vm3880, %v3885, %v3622
    %v3890 = vrot.slane %v3869, 3
    %v3891 = vrot.slane %v3870, 2
    %v3892 = vsel %vm3097, %v3891, %v3890
    %v3894 = vsel %vm3880, %v3892, %v3629
    %v3895 = vpack.c.bf16 %v3887, %v3887
    %v3897 = vsel %vm86, %v3895, 0
    %3899 = vmatprep.subr.bf16.mxu0 0
    %3900 = vmatpush1.bf16.msra.mxu0 %v2813
    %3901 = vmatprep.subr.bf16.mxu0 0
    %3902 = vmatpush1.bf16.msra.mxu0 %v2814
    %3903 = vmatprep.subr.bf16.mxu0 0
    %3904 = vmatpush1.bf16.msra.mxu0 0
    %3905 = vmatprep.subr.bf16.mxu0 0
    %3906 = vmatpush1.bf16.msra.mxu0 0
    %3907 = vmatprep.subr.bf16.mxu0 0
    %3908 = vmatpush1.bf16.msra.mxu0 0
    %3909 = vmatprep.subr.bf16.mxu0 0
    %3910 = vmatpush1.bf16.msra.mxu0 0
    %3911 = vmatprep.subr.bf16.mxu0 0
    %3912 = vmatpush1.bf16.msra.mxu0 0
    %3913 = vmatprep.subr.bf16.mxu0 0
    %3914 = vmatpush1.bf16.msra.mxu0 0
    %3915 = vmatprep.subr.bf16.mxu0 0
    %3916 = vmatpush1.bf16.msra.mxu0 0
    %3917 = vmatprep.subr.bf16.mxu0 0
    %3918 = vmatpush1.bf16.msra.mxu0 0
    %3919 = vmatprep.subr.bf16.mxu0 0
    %3920 = vmatpush1.bf16.msra.mxu0 0
    %3921 = vmatprep.subr.bf16.mxu0 0
    %3922 = vmatpush1.bf16.msra.mxu0 0
    %3923 = vmatprep.subr.bf16.mxu0 0
    %3924 = vmatpush1.bf16.msra.mxu0 0
    %3925 = vmatprep.subr.bf16.mxu0 0
    %3926 = vmatpush1.bf16.msra.mxu0 0
    %3927 = vmatprep.subr.bf16.mxu0 0
    %3928 = vmatpush1.bf16.msra.mxu0 0
    %3929 = vmatprep.subr.bf16.mxu0 0
    %3930 = vmatpush1.bf16.msra.mxu0 0
    %3931 = vmatprep.mubr.bf16.mxu0 0
    %3932 = vmatmul.mubr.bf16.gmra.mrb[0].mxu0 %v3897
    %v3933 = vpop.f32.mrb[0].mxu0
    %v3934 = vadd.f32 0.0, %v3933
    %v3935 = vpop.f32.mrb[0].mxu0
    %v3936 = vpop.f32.mrb[0].mxu0
    %v3937 = vpop.f32.mrb[0].mxu0
    %3938 = vdwg.mxu0
    %v3940 = vrot.slane %v3934, 4
    %v3941 = vrot.slane %v3934, 5
    %v3944 = vadd.f32 %v2622, %v3940
    %v3945 = vadd.f32 %v2625, %v3941
    %v3946 = vxor.u32 %v3944, 2147483648
    %v3947 = vxor.u32 %v3945, 2147483648
    %v3948 = vmul.f32 %v3946, 1.442695
    %v3949 = vpow.pop %v3948
    %v3950 = vmul.f32 %v3947, 1.442695
    %v3951 = vpow.pop %v3950
    %v3952 = vadd.f32 %v3949, 1.0
    %v3953 = vadd.f32 %v3951, 1.0
    %v3954 = vrcp.pop %v3952
    %v3955 = vmul.f32 1.0, %v3954
    %v3956 = vrcp.pop %v3953
    %v3957 = vmul.f32 1.0, %v3956
    %3958 = vmatprep.subr.bf16.mxu0 0
    %3959 = vmatpush1.bf16.msra.mxu0 %v2886
    %3960 = vmatprep.subr.bf16.mxu0 0
    %3961 = vmatpush1.bf16.msra.mxu0 %v2887
    %3962 = vmatprep.subr.bf16.mxu0 0
    %3963 = vmatpush1.bf16.msra.mxu0 0
    %3964 = vmatprep.subr.bf16.mxu0 0
    %3965 = vmatpush1.bf16.msra.mxu0 0
    %3966 = vmatprep.subr.bf16.mxu0 0
    %3967 = vmatpush1.bf16.msra.mxu0 0
    %3968 = vmatprep.subr.bf16.mxu0 0
    %3969 = vmatpush1.bf16.msra.mxu0 0
    %3970 = vmatprep.subr.bf16.mxu0 0
    %3971 = vmatpush1.bf16.msra.mxu0 0
    %3972 = vmatprep.subr.bf16.mxu0 0
    %3973 = vmatpush1.bf16.msra.mxu0 0
    %3974 = vmatprep.subr.bf16.mxu0 0
    %3975 = vmatpush1.bf16.msra.mxu0 0
    %3976 = vmatprep.subr.bf16.mxu0 0
    %3977 = vmatpush1.bf16.msra.mxu0 0
    %3978 = vmatprep.subr.bf16.mxu0 0
    %3979 = vmatpush1.bf16.msra.mxu0 0
    %3980 = vmatprep.subr.bf16.mxu0 0
    %3981 = vmatpush1.bf16.msra.mxu0 0
    %3982 = vmatprep.subr.bf16.mxu0 0
    %3983 = vmatpush1.bf16.msra.mxu0 0
    %3984 = vmatprep.subr.bf16.mxu0 0
    %3985 = vmatpush1.bf16.msra.mxu0 0
    %3986 = vmatprep.subr.bf16.mxu0 0
    %3987 = vmatpush1.bf16.msra.mxu0 0
    %3988 = vmatprep.subr.bf16.mxu0 0
    %3989 = vmatpush1.bf16.msra.mxu0 0
    %3990 = vmatprep.mubr.bf16.mxu0 0
    %3991 = vmatmul.mubr.bf16.gmra.mrb[0].mxu0 %v3897
    %v3992 = vpop.f32.mrb[0].mxu0
    %v3993 = vadd.f32 0.0, %v3992
    %v3994 = vpop.f32.mrb[0].mxu0
    %v3995 = vpop.f32.mrb[0].mxu0
    %v3996 = vpop.f32.mrb[0].mxu0
    %3997 = vdwg.mxu0
    %v3999 = vrot.slane %v3993, 4
    %v4000 = vrot.slane %v3993, 5
    %v4003 = vadd.f32 %v2681, %v3999
    %v4004 = vadd.f32 %v2684, %v4000
    %v4005 = vxor.u32 %v4003, 2147483648
    %v4006 = vxor.u32 %v4004, 2147483648
    %v4007 = vmul.f32 %v4005, 1.442695
    %v4008 = vpow.pop %v4007
    %v4009 = vmul.f32 %v4006, 1.442695
    %v4010 = vpow.pop %v4009
    %v4011 = vadd.f32 %v4008, 1.0
    %v4012 = vadd.f32 %v4010, 1.0
    %v4013 = vrcp.pop %v4011
    %v4014 = vmul.f32 1.0, %v4013
    %v4015 = vrcp.pop %v4012
    %v4016 = vmul.f32 1.0, %v4015
    %4017 = vmatprep.subr.bf16.mxu0 0
    %4018 = vmatpush1.bf16.msra.mxu0 %v2956
    %4019 = vmatprep.subr.bf16.mxu0 0
    %4020 = vmatpush1.bf16.msra.mxu0 %v2957
    %4021 = vmatprep.subr.bf16.mxu0 0
    %4022 = vmatpush1.bf16.msra.mxu0 0
    %4023 = vmatprep.subr.bf16.mxu0 0
    %4024 = vmatpush1.bf16.msra.mxu0 0
    %4025 = vmatprep.subr.bf16.mxu0 0
    %4026 = vmatpush1.bf16.msra.mxu0 0
    %4027 = vmatprep.subr.bf16.mxu0 0
    %4028 = vmatpush1.bf16.msra.mxu0 0
    %4029 = vmatprep.subr.bf16.mxu0 0
    %4030 = vmatpush1.bf16.msra.mxu0 0
    %4031 = vmatprep.subr.bf16.mxu0 0
    %4032 = vmatpush1.bf16.msra.mxu0 0
    %4033 = vmatprep.subr.bf16.mxu0 0
    %4034 = vmatpush1.bf16.msra.mxu0 0
    %4035 = vmatprep.subr.bf16.mxu0 0
    %4036 = vmatpush1.bf16.msra.mxu0 0
    %4037 = vmatprep.subr.bf16.mxu0 0
    %4038 = vmatpush1.bf16.msra.mxu0 0
    %4039 = vmatprep.subr.bf16.mxu0 0
    %4040 = vmatpush1.bf16.msra.mxu0 0
    %4041 = vmatprep.subr.bf16.mxu0 0
    %4042 = vmatpush1.bf16.msra.mxu0 0
    %4043 = vmatprep.subr.bf16.mxu0 0
    %4044 = vmatpush1.bf16.msra.mxu0 0
    %4045 = vmatprep.subr.bf16.mxu0 0
    %4046 = vmatpush1.bf16.msra.mxu0 0
    %4047 = vmatprep.subr.bf16.mxu0 0
    %4048 = vmatpush1.bf16.msra.mxu0 0
    %4049 = vmatprep.mubr.bf16.mxu0 0
    %4050 = vmatmul.mubr.bf16.gmra.mrb[0].mxu0 %v3897
    %v4051 = vpop.f32.mrb[0].mxu0
    %v4052 = vadd.f32 0.0, %v4051
    %v4053 = vpop.f32.mrb[0].mxu0
    %v4054 = vpop.f32.mrb[0].mxu0
    %v4055 = vpop.f32.mrb[0].mxu0
    %4056 = vdwg.mxu0
    %v4058 = vrot.slane %v4052, 4
    %v4059 = vrot.slane %v4052, 5
    %v4062 = vadd.f32 %v2740, %v4058
    %v4063 = vadd.f32 %v2743, %v4059
    %v4064 = vtanh.pop %v4062
    %v4065 = vtanh.pop %v4063
    %4066 = vmatprep.subr.bf16.mxu0 0
    %4067 = vmatpush1.bf16.msra.mxu0 %v3016
    %4068 = vmatprep.subr.bf16.mxu0 0
    %4069 = vmatpush1.bf16.msra.mxu0 %v3017
    %4070 = vmatprep.subr.bf16.mxu0 0
    %4071 = vmatpush1.bf16.msra.mxu0 0
    %4072 = vmatprep.subr.bf16.mxu0 0
    %4073 = vmatpush1.bf16.msra.mxu0 0
    %4074 = vmatprep.subr.bf16.mxu0 0
    %4075 = vmatpush1.bf16.msra.mxu0 0
    %4076 = vmatprep.subr.bf16.mxu0 0
    %4077 = vmatpush1.bf16.msra.mxu0 0
    %4078 = vmatprep.subr.bf16.mxu0 0
    %4079 = vmatpush1.bf16.msra.mxu0 0
    %4080 = vmatprep.subr.bf16.mxu0 0
    %4081 = vmatpush1.bf16.msra.mxu0 0
    %4082 = vmatprep.subr.bf16.mxu0 0
    %4083 = vmatpush1.bf16.msra.mxu0 0
    %4084 = vmatprep.subr.bf16.mxu0 0
    %4085 = vmatpush1.bf16.msra.mxu0 0
    %4086 = vmatprep.subr.bf16.mxu0 0
    %4087 = vmatpush1.bf16.msra.mxu0 0
    %4088 = vmatprep.subr.bf16.mxu0 0
    %4089 = vmatpush1.bf16.msra.mxu0 0
    %4090 = vmatprep.subr.bf16.mxu0 0
    %4091 = vmatpush1.bf16.msra.mxu0 0
    %4092 = vmatprep.subr.bf16.mxu0 0
    %4093 = vmatpush1.bf16.msra.mxu0 0
    %4094 = vmatprep.subr.bf16.mxu0 0
    %4095 = vmatpush1.bf16.msra.mxu0 0
    %4096 = vmatprep.subr.bf16.mxu0 0
    %4097 = vmatpush1.bf16.msra.mxu0 0
    %4098 = vmatprep.mubr.bf16.mxu0 0
    %4099 = vmatmul.mubr.bf16.gmra.mrb[0].mxu0 %v3897
    %v4100 = vpop.f32.mrb[0].mxu0
    %v4101 = vadd.f32 0.0, %v4100
    %v4102 = vpop.f32.mrb[0].mxu0
    %v4103 = vpop.f32.mrb[0].mxu0
    %v4104 = vpop.f32.mrb[0].mxu0
    %4105 = vdwg.mxu0
    %v4107 = vrot.slane %v4101, 4
    %v4108 = vrot.slane %v4101, 5
    %v4111 = vadd.f32 %v2799, %v4107
    %v4112 = vadd.f32 %v2802, %v4108
    %v4113 = vxor.u32 %v4111, 2147483648
    %v4114 = vxor.u32 %v4112, 2147483648
    %v4115 = vmul.f32 %v4113, 1.442695
    %v4116 = vpow.pop %v4115
    %v4117 = vmul.f32 %v4114, 1.442695
    %v4118 = vpow.pop %v4117
    %v4119 = vadd.f32 %v4116, 1.0
    %v4120 = vadd.f32 %v4118, 1.0
    %v4121 = vrcp.pop %v4119
    %v4122 = vmul.f32 1.0, %v4121
    %v4123 = vrcp.pop %v4120
    %v4124 = vmul.f32 1.0, %v4123
    %v4126 = vrot.slane %v3894, 4
    %v4127 = vrot.slane %v3894, 5
    %v4130 = vmul.f32 %v4014, %v4126
    %v4131 = vmul.f32 %v4016, %v4127
    %v4132 = vmul.f32 %v3955, %v4064
    %v4133 = vmul.f32 %v3957, %v4065
    %v4134 = vadd.f32 %v4130, %v4132
    %v4135 = vadd.f32 %v4131, %v4133
    %v4136 = vtanh.pop %v4134
    %v4137 = vtanh.pop %v4135
    %v4138 = vmul.f32 %v4122, %v4136
    %v4139 = vmul.f32 %v4124, %v4137
    %vm4140 = vcmp.gt.s32.totalorder %v2564, 4
    %v4141 = vsel %vm4140, 1, 0
    %4142 = vset.pattern.permute.xlu0 0
    %4143 = vperm.xlu0 %4142, %v4141
    %v4144 = vpop.permute.xlu0 %4143
    %vm4145 = vcmp.eq.s32.totalorder %v4144, 1
    %v4148 = vrot.slane %v4138, 4
    %v4149 = vrot.slane %v4139, 3
    %v4150 = vsel %vm3097, %v4149, %v4148
    %v4152 = vsel %vm4145, %v4150, %v3887
    %v4155 = vrot.slane %v4134, 4
    %v4156 = vrot.slane %v4135, 3
    %v4157 = vsel %vm3097, %v4156, %v4155
    %v4159 = vsel %vm4145, %v4157, %v3894
    %v4160 = vpack.c.bf16 %v4152, %v4152
    %v4162 = vsel %vm86, %v4160, 0
    %4164 = vmatprep.subr.bf16.mxu0 0
    %4165 = vmatpush1.bf16.msra.mxu0 %v2813
    %4166 = vmatprep.subr.bf16.mxu0 0
    %4167 = vmatpush1.bf16.msra.mxu0 %v2814
    %4168 = vmatprep.subr.bf16.mxu0 0
    %4169 = vmatpush1.bf16.msra.mxu0 0
    %4170 = vmatprep.subr.bf16.mxu0 0
    %4171 = vmatpush1.bf16.msra.mxu0 0
    %4172 = vmatprep.subr.bf16.mxu0 0
    %4173 = vmatpush1.bf16.msra.mxu0 0
    %4174 = vmatprep.subr.bf16.mxu0 0
    %4175 = vmatpush1.bf16.msra.mxu0 0
    %4176 = vmatprep.subr.bf16.mxu0 0
    %4177 = vmatpush1.bf16.msra.mxu0 0
    %4178 = vmatprep.subr.bf16.mxu0 0
    %4179 = vmatpush1.bf16.msra.mxu0 0
    %4180 = vmatprep.subr.bf16.mxu0 0
    %4181 = vmatpush1.bf16.msra.mxu0 0
    %4182 = vmatprep.subr.bf16.mxu0 0
    %4183 = vmatpush1.bf16.msra.mxu0 0
    %4184 = vmatprep.subr.bf16.mxu0 0
    %4185 = vmatpush1.bf16.msra.mxu0 0
    %4186 = vmatprep.subr.bf16.mxu0 0
    %4187 = vmatpush1.bf16.msra.mxu0 0
    %4188 = vmatprep.subr.bf16.mxu0 0
    %4189 = vmatpush1.bf16.msra.mxu0 0
    %4190 = vmatprep.subr.bf16.mxu0 0
    %4191 = vmatpush1.bf16.msra.mxu0 0
    %4192 = vmatprep.subr.bf16.mxu0 0
    %4193 = vmatpush1.bf16.msra.mxu0 0
    %4194 = vmatprep.subr.bf16.mxu0 0
    %4195 = vmatpush1.bf16.msra.mxu0 0
    %4196 = vmatprep.mubr.bf16.mxu0 0
    %4197 = vmatmul.mubr.bf16.gmra.mrb[0].mxu0 %v4162
    %v4198 = vpop.f32.mrb[0].mxu0
    %v4199 = vadd.f32 0.0, %v4198
    %v4200 = vpop.f32.mrb[0].mxu0
    %v4201 = vpop.f32.mrb[0].mxu0
    %v4202 = vpop.f32.mrb[0].mxu0
    %4203 = vdwg.mxu0
    %v4205 = vrot.slane %v4199, 3
    %v4206 = vrot.slane %v4199, 4
    %v4209 = vadd.f32 %v2622, %v4205
    %v4210 = vadd.f32 %v2625, %v4206
    %v4211 = vxor.u32 %v4209, 2147483648
    %v4212 = vxor.u32 %v4210, 2147483648
    %v4213 = vmul.f32 %v4211, 1.442695
    %v4214 = vpow.pop %v4213
    %v4215 = vmul.f32 %v4212, 1.442695
    %v4216 = vpow.pop %v4215
    %v4217 = vadd.f32 %v4214, 1.0
    %v4218 = vadd.f32 %v4216, 1.0
    %v4219 = vrcp.pop %v4217
    %v4220 = vmul.f32 1.0, %v4219
    %v4221 = vrcp.pop %v4218
    %v4222 = vmul.f32 1.0, %v4221
    %4223 = vmatprep.subr.bf16.mxu0 0
    %4224 = vmatpush1.bf16.msra.mxu0 %v2886
    %4225 = vmatprep.subr.bf16.mxu0 0
    %4226 = vmatpush1.bf16.msra.mxu0 %v2887
    %4227 = vmatprep.subr.bf16.mxu0 0
    %4228 = vmatpush1.bf16.msra.mxu0 0
    %4229 = vmatprep.subr.bf16.mxu0 0
    %4230 = vmatpush1.bf16.msra.mxu0 0
    %4231 = vmatprep.subr.bf16.mxu0 0
    %4232 = vmatpush1.bf16.msra.mxu0 0
    %4233 = vmatprep.subr.bf16.mxu0 0
    %4234 = vmatpush1.bf16.msra.mxu0 0
    %4235 = vmatprep.subr.bf16.mxu0 0
    %4236 = vmatpush1.bf16.msra.mxu0 0
    %4237 = vmatprep.subr.bf16.mxu0 0
    %4238 = vmatpush1.bf16.msra.mxu0 0
    %4239 = vmatprep.subr.bf16.mxu0 0
    %4240 = vmatpush1.bf16.msra.mxu0 0
    %4241 = vmatprep.subr.bf16.mxu0 0
    %4242 = vmatpush1.bf16.msra.mxu0 0
    %4243 = vmatprep.subr.bf16.mxu0 0
    %4244 = vmatpush1.bf16.msra.mxu0 0
    %4245 = vmatprep.subr.bf16.mxu0 0
    %4246 = vmatpush1.bf16.msra.mxu0 0
    %4247 = vmatprep.subr.bf16.mxu0 0
    %4248 = vmatpush1.bf16.msra.mxu0 0
    %4249 = vmatprep.subr.bf16.mxu0 0
    %4250 = vmatpush1.bf16.msra.mxu0 0
    %4251 = vmatprep.subr.bf16.mxu0 0
    %4252 = vmatpush1.bf16.msra.mxu0 0
    %4253 = vmatprep.subr.bf16.mxu0 0
    %4254 = vmatpush1.bf16.msra.mxu0 0
    %4255 = vmatprep.mubr.bf16.mxu0 0
    %4256 = vmatmul.mubr.bf16.gmra.mrb[0].mxu0 %v4162
    %v4257 = vpop.f32.mrb[0].mxu0
    %v4258 = vadd.f32 0.0, %v4257
    %v4259 = vpop.f32.mrb[0].mxu0
    %v4260 = vpop.f32.mrb[0].mxu0
    %v4261 = vpop.f32.mrb[0].mxu0
    %4262 = vdwg.mxu0
    %v4264 = vrot.slane %v4258, 3
    %v4265 = vrot.slane %v4258, 4
    %v4268 = vadd.f32 %v2681, %v4264
    %v4269 = vadd.f32 %v2684, %v4265
    %v4270 = vxor.u32 %v4268, 2147483648
    %v4271 = vxor.u32 %v4269, 2147483648
    %v4272 = vmul.f32 %v4270, 1.442695
    %v4273 = vpow.pop %v4272
    %v4274 = vmul.f32 %v4271, 1.442695
    %v4275 = vpow.pop %v4274
    %v4276 = vadd.f32 %v4273, 1.0
    %v4277 = vadd.f32 %v4275, 1.0
    %v4278 = vrcp.pop %v4276
    %v4279 = vmul.f32 1.0, %v4278
    %v4280 = vrcp.pop %v4277
    %v4281 = vmul.f32 1.0, %v4280
    %4282 = vmatprep.subr.bf16.mxu0 0
    %4283 = vmatpush1.bf16.msra.mxu0 %v2956
    %4284 = vmatprep.subr.bf16.mxu0 0
    %4285 = vmatpush1.bf16.msra.mxu0 %v2957
    %4286 = vmatprep.subr.bf16.mxu0 0
    %4287 = vmatpush1.bf16.msra.mxu0 0
    %4288 = vmatprep.subr.bf16.mxu0 0
    %4289 = vmatpush1.bf16.msra.mxu0 0
    %4290 = vmatprep.subr.bf16.mxu0 0
    %4291 = vmatpush1.bf16.msra.mxu0 0
    %4292 = vmatprep.subr.bf16.mxu0 0
    %4293 = vmatpush1.bf16.msra.mxu0 0
    %4294 = vmatprep.subr.bf16.mxu0 0
    %4295 = vmatpush1.bf16.msra.mxu0 0
    %4296 = vmatprep.subr.bf16.mxu0 0
    %4297 = vmatpush1.bf16.msra.mxu0 0
    %4298 = vmatprep.subr.bf16.mxu0 0
    %4299 = vmatpush1.bf16.msra.mxu0 0
    %4300 = vmatprep.subr.bf16.mxu0 0
    %4301 = vmatpush1.bf16.msra.mxu0 0
    %4302 = vmatprep.subr.bf16.mxu0 0
    %4303 = vmatpush1.bf16.msra.mxu0 0
    %4304 = vmatprep.subr.bf16.mxu0 0
    %4305 = vmatpush1.bf16.msra.mxu0 0
    %4306 = vmatprep.subr.bf16.mxu0 0
    %4307 = vmatpush1.bf16.msra.mxu0 0
    %4308 = vmatprep.subr.bf16.mxu0 0
    %4309 = vmatpush1.bf16.msra.mxu0 0
    %4310 = vmatprep.subr.bf16.mxu0 0
    %4311 = vmatpush1.bf16.msra.mxu0 0
    %4312 = vmatprep.subr.bf16.mxu0 0
    %4313 = vmatpush1.bf16.msra.mxu0 0
    %4314 = vmatprep.mubr.bf16.mxu0 0
    %4315 = vmatmul.mubr.bf16.gmra.mrb[0].mxu0 %v4162
    %v4316 = vpop.f32.mrb[0].mxu0
    %v4317 = vadd.f32 0.0, %v4316
    %v4318 = vpop.f32.mrb[0].mxu0
    %v4319 = vpop.f32.mrb[0].mxu0
    %v4320 = vpop.f32.mrb[0].mxu0
    %4321 = vdwg.mxu0
    %v4323 = vrot.slane %v4317, 3
    %v4324 = vrot.slane %v4317, 4
    %v4327 = vadd.f32 %v2740, %v4323
    %v4328 = vadd.f32 %v2743, %v4324
    %v4329 = vtanh.pop %v4327
    %v4330 = vtanh.pop %v4328
    %4331 = vmatprep.subr.bf16.mxu0 0
    %4332 = vmatpush1.bf16.msra.mxu0 %v3016
    %4333 = vmatprep.subr.bf16.mxu0 0
    %4334 = vmatpush1.bf16.msra.mxu0 %v3017
    %4335 = vmatprep.subr.bf16.mxu0 0
    %4336 = vmatpush1.bf16.msra.mxu0 0
    %4337 = vmatprep.subr.bf16.mxu0 0
    %4338 = vmatpush1.bf16.msra.mxu0 0
    %4339 = vmatprep.subr.bf16.mxu0 0
    %4340 = vmatpush1.bf16.msra.mxu0 0
    %4341 = vmatprep.subr.bf16.mxu0 0
    %4342 = vmatpush1.bf16.msra.mxu0 0
    %4343 = vmatprep.subr.bf16.mxu0 0
    %4344 = vmatpush1.bf16.msra.mxu0 0
    %4345 = vmatprep.subr.bf16.mxu0 0
    %4346 = vmatpush1.bf16.msra.mxu0 0
    %4347 = vmatprep.subr.bf16.mxu0 0
    %4348 = vmatpush1.bf16.msra.mxu0 0
    %4349 = vmatprep.subr.bf16.mxu0 0
    %4350 = vmatpush1.bf16.msra.mxu0 0
    %4351 = vmatprep.subr.bf16.mxu0 0
    %4352 = vmatpush1.bf16.msra.mxu0 0
    %4353 = vmatprep.subr.bf16.mxu0 0
    %4354 = vmatpush1.bf16.msra.mxu0 0
    %4355 = vmatprep.subr.bf16.mxu0 0
    %4356 = vmatpush1.bf16.msra.mxu0 0
    %4357 = vmatprep.subr.bf16.mxu0 0
    %4358 = vmatpush1.bf16.msra.mxu0 0
    %4359 = vmatprep.subr.bf16.mxu0 0
    %4360 = vmatpush1.bf16.msra.mxu0 0
    %4361 = vmatprep.subr.bf16.mxu0 0
    %4362 = vmatpush1.bf16.msra.mxu0 0
    %4363 = vmatprep.mubr.bf16.mxu0 0
    %4364 = vmatmul.mubr.bf16.gmra.mrb[0].mxu0 %v4162
    %v4365 = vpop.f32.mrb[0].mxu0
    %v4366 = vadd.f32 0.0, %v4365
    %v4367 = vpop.f32.mrb[0].mxu0
    %v4368 = vpop.f32.mrb[0].mxu0
    %v4369 = vpop.f32.mrb[0].mxu0
    %4370 = vdwg.mxu0
    %v4372 = vrot.slane %v4366, 3
    %v4373 = vrot.slane %v4366, 4
    %v4376 = vadd.f32 %v2799, %v4372
    %v4377 = vadd.f32 %v2802, %v4373
    %v4378 = vxor.u32 %v4376, 2147483648
    %v4379 = vxor.u32 %v4377, 2147483648
    %v4380 = vmul.f32 %v4378, 1.442695
    %v4381 = vpow.pop %v4380
    %v4382 = vmul.f32 %v4379, 1.442695
    %v4383 = vpow.pop %v4382
    %v4384 = vadd.f32 %v4381, 1.0
    %v4385 = vadd.f32 %v4383, 1.0
    %v4386 = vrcp.pop %v4384
    %v4387 = vmul.f32 1.0, %v4386
    %v4388 = vrcp.pop %v4385
    %v4389 = vmul.f32 1.0, %v4388
    %v4391 = vrot.slane %v4159, 3
    %v4392 = vrot.slane %v4159, 4
    %v4395 = vmul.f32 %v4279, %v4391
    %v4396 = vmul.f32 %v4281, %v4392
    %v4397 = vmul.f32 %v4220, %v4329
    %v4398 = vmul.f32 %v4222, %v4330
    %v4399 = vadd.f32 %v4395, %v4397
    %v4400 = vadd.f32 %v4396, %v4398
    %v4401 = vtanh.pop %v4399
    %v4402 = vtanh.pop %v4400
    %v4403 = vmul.f32 %v4387, %v4401
    %v4404 = vmul.f32 %v4389, %v4402
    %vm4405 = vcmp.gt.s32.totalorder %v2564, 5
    %v4406 = vsel %vm4405, 1, 0
    %4407 = vset.pattern.permute.xlu0 0
    %4408 = vperm.xlu0 %4407, %v4406
    %v4409 = vpop.permute.xlu0 %4408
    %vm4410 = vcmp.eq.s32.totalorder %v4409, 1
    %v4413 = vrot.slane %v4403, 5
    %v4414 = vrot.slane %v4404, 4
    %v4415 = vsel %vm3097, %v4414, %v4413
    %v4417 = vsel %vm4410, %v4415, %v4152
    %v4420 = vrot.slane %v4399, 5
    %v4421 = vrot.slane %v4400, 4
    %v4422 = vsel %vm3097, %v4421, %v4420
    %v4424 = vsel %vm4410, %v4422, %v4159
    %v4425 = vpack.c.bf16 %v4417, %v4417
    %v4427 = vsel %vm86, %v4425, 0
    %4429 = vmatprep.subr.bf16.mxu0 0
    %4430 = vmatpush1.bf16.msra.mxu0 %v2813
    %4431 = vmatprep.subr.bf16.mxu0 0
    %4432 = vmatpush1.bf16.msra.mxu0 %v2814
    %4433 = vmatprep.subr.bf16.mxu0 0
    %4434 = vmatpush1.bf16.msra.mxu0 0
    %4435 = vmatprep.subr.bf16.mxu0 0
    %4436 = vmatpush1.bf16.msra.mxu0 0
    %4437 = vmatprep.subr.bf16.mxu0 0
    %4438 = vmatpush1.bf16.msra.mxu0 0
    %4439 = vmatprep.subr.bf16.mxu0 0
    %4440 = vmatpush1.bf16.msra.mxu0 0
    %4441 = vmatprep.subr.bf16.mxu0 0
    %4442 = vmatpush1.bf16.msra.mxu0 0
    %4443 = vmatprep.subr.bf16.mxu0 0
    %4444 = vmatpush1.bf16.msra.mxu0 0
    %4445 = vmatprep.subr.bf16.mxu0 0
    %4446 = vmatpush1.bf16.msra.mxu0 0
    %4447 = vmatprep.subr.bf16.mxu0 0
    %4448 = vmatpush1.bf16.msra.mxu0 0
    %4449 = vmatprep.subr.bf16.mxu0 0
    %4450 = vmatpush1.bf16.msra.mxu0 0
    %4451 = vmatprep.subr.bf16.mxu0 0
    %4452 = vmatpush1.bf16.msra.mxu0 0
    %4453 = vmatprep.subr.bf16.mxu0 0
    %4454 = vmatpush1.bf16.msra.mxu0 0
    %4455 = vmatprep.subr.bf16.mxu0 0
    %4456 = vmatpush1.bf16.msra.mxu0 0
    %4457 = vmatprep.subr.bf16.mxu0 0
    %4458 = vmatpush1.bf16.msra.mxu0 0
    %4459 = vmatprep.subr.bf16.mxu0 0
    %4460 = vmatpush1.bf16.msra.mxu0 0
    %4461 = vmatprep.mubr.bf16.mxu0 0
    %4462 = vmatmul.mubr.bf16.gmra.mrb[0].mxu0 %v4427
    %v4463 = vpop.f32.mrb[0].mxu0
    %v4464 = vadd.f32 0.0, %v4463
    %v4465 = vpop.f32.mrb[0].mxu0
    %v4466 = vpop.f32.mrb[0].mxu0
    %v4467 = vpop.f32.mrb[0].mxu0
    %4468 = vdwg.mxu0
    %v4470 = vrot.slane %v4464, 2
    %v4471 = vrot.slane %v4464, 3
    %v4474 = vadd.f32 %v2622, %v4470
    %v4475 = vadd.f32 %v2625, %v4471
    %v4476 = vxor.u32 %v4474, 2147483648
    %v4477 = vxor.u32 %v4475, 2147483648
    %v4478 = vmul.f32 %v4476, 1.442695
    %v4479 = vpow.pop %v4478
    %v4480 = vmul.f32 %v4477, 1.442695
    %v4481 = vpow.pop %v4480
    %v4482 = vadd.f32 %v4479, 1.0
    %v4483 = vadd.f32 %v4481, 1.0
    %v4484 = vrcp.pop %v4482
    %v4485 = vmul.f32 1.0, %v4484
    %v4486 = vrcp.pop %v4483
    %v4487 = vmul.f32 1.0, %v4486
    %4488 = vmatprep.subr.bf16.mxu0 0
    %4489 = vmatpush1.bf16.msra.mxu0 %v2886
    %4490 = vmatprep.subr.bf16.mxu0 0
    %4491 = vmatpush1.bf16.msra.mxu0 %v2887
    %4492 = vmatprep.subr.bf16.mxu0 0
    %4493 = vmatpush1.bf16.msra.mxu0 0
    %4494 = vmatprep.subr.bf16.mxu0 0
    %4495 = vmatpush1.bf16.msra.mxu0 0
    %4496 = vmatprep.subr.bf16.mxu0 0
    %4497 = vmatpush1.bf16.msra.mxu0 0
    %4498 = vmatprep.subr.bf16.mxu0 0
    %4499 = vmatpush1.bf16.msra.mxu0 0
    %4500 = vmatprep.subr.bf16.mxu0 0
    %4501 = vmatpush1.bf16.msra.mxu0 0
    %4502 = vmatprep.subr.bf16.mxu0 0
    %4503 = vmatpush1.bf16.msra.mxu0 0
    %4504 = vmatprep.subr.bf16.mxu0 0
    %4505 = vmatpush1.bf16.msra.mxu0 0
    %4506 = vmatprep.subr.bf16.mxu0 0
    %4507 = vmatpush1.bf16.msra.mxu0 0
    %4508 = vmatprep.subr.bf16.mxu0 0
    %4509 = vmatpush1.bf16.msra.mxu0 0
    %4510 = vmatprep.subr.bf16.mxu0 0
    %4511 = vmatpush1.bf16.msra.mxu0 0
    %4512 = vmatprep.subr.bf16.mxu0 0
    %4513 = vmatpush1.bf16.msra.mxu0 0
    %4514 = vmatprep.subr.bf16.mxu0 0
    %4515 = vmatpush1.bf16.msra.mxu0 0
    %4516 = vmatprep.subr.bf16.mxu0 0
    %4517 = vmatpush1.bf16.msra.mxu0 0
    %4518 = vmatprep.subr.bf16.mxu0 0
    %4519 = vmatpush1.bf16.msra.mxu0 0
    %4520 = vmatprep.mubr.bf16.mxu0 0
    %4521 = vmatmul.mubr.bf16.gmra.mrb[0].mxu0 %v4427
    %v4522 = vpop.f32.mrb[0].mxu0
    %v4523 = vadd.f32 0.0, %v4522
    %v4524 = vpop.f32.mrb[0].mxu0
    %v4525 = vpop.f32.mrb[0].mxu0
    %v4526 = vpop.f32.mrb[0].mxu0
    %4527 = vdwg.mxu0
    %v4529 = vrot.slane %v4523, 2
    %v4530 = vrot.slane %v4523, 3
    %v4533 = vadd.f32 %v2681, %v4529
    %v4534 = vadd.f32 %v2684, %v4530
    %v4535 = vxor.u32 %v4533, 2147483648
    %v4536 = vxor.u32 %v4534, 2147483648
    %v4537 = vmul.f32 %v4535, 1.442695
    %v4538 = vpow.pop %v4537
    %v4539 = vmul.f32 %v4536, 1.442695
    %v4540 = vpow.pop %v4539
    %v4541 = vadd.f32 %v4538, 1.0
    %v4542 = vadd.f32 %v4540, 1.0
    %v4543 = vrcp.pop %v4541
    %v4544 = vmul.f32 1.0, %v4543
    %v4545 = vrcp.pop %v4542
    %v4546 = vmul.f32 1.0, %v4545
    %4547 = vmatprep.subr.bf16.mxu0 0
    %4548 = vmatpush1.bf16.msra.mxu0 %v2956
    %4549 = vmatprep.subr.bf16.mxu0 0
    %4550 = vmatpush1.bf16.msra.mxu0 %v2957
    %4551 = vmatprep.subr.bf16.mxu0 0
    %4552 = vmatpush1.bf16.msra.mxu0 0
    %4553 = vmatprep.subr.bf16.mxu0 0
    %4554 = vmatpush1.bf16.msra.mxu0 0
    %4555 = vmatprep.subr.bf16.mxu0 0
    %4556 = vmatpush1.bf16.msra.mxu0 0
    %4557 = vmatprep.subr.bf16.mxu0 0
    %4558 = vmatpush1.bf16.msra.mxu0 0
    %4559 = vmatprep.subr.bf16.mxu0 0
    %4560 = vmatpush1.bf16.msra.mxu0 0
    %4561 = vmatprep.subr.bf16.mxu0 0
    %4562 = vmatpush1.bf16.msra.mxu0 0
    %4563 = vmatprep.subr.bf16.mxu0 0
    %4564 = vmatpush1.bf16.msra.mxu0 0
    %4565 = vmatprep.subr.bf16.mxu0 0
    %4566 = vmatpush1.bf16.msra.mxu0 0
    %4567 = vmatprep.subr.bf16.mxu0 0
    %4568 = vmatpush1.bf16.msra.mxu0 0
    %4569 = vmatprep.subr.bf16.mxu0 0
    %4570 = vmatpush1.bf16.msra.mxu0 0
    %4571 = vmatprep.subr.bf16.mxu0 0
    %4572 = vmatpush1.bf16.msra.mxu0 0
    %4573 = vmatprep.subr.bf16.mxu0 0
    %4574 = vmatpush1.bf16.msra.mxu0 0
    %4575 = vmatprep.subr.bf16.mxu0 0
    %4576 = vmatpush1.bf16.msra.mxu0 0
    %4577 = vmatprep.subr.bf16.mxu0 0
    %4578 = vmatpush1.bf16.msra.mxu0 0
    %4579 = vmatprep.mubr.bf16.mxu0 0
    %4580 = vmatmul.mubr.bf16.gmra.mrb[0].mxu0 %v4427
    %v4581 = vpop.f32.mrb[0].mxu0
    %v4582 = vadd.f32 0.0, %v4581
    %v4583 = vpop.f32.mrb[0].mxu0
    %v4584 = vpop.f32.mrb[0].mxu0
    %v4585 = vpop.f32.mrb[0].mxu0
    %4586 = vdwg.mxu0
    %v4588 = vrot.slane %v4582, 2
    %v4589 = vrot.slane %v4582, 3
    %v4592 = vadd.f32 %v2740, %v4588
    %v4593 = vadd.f32 %v2743, %v4589
    %v4594 = vtanh.pop %v4592
    %v4595 = vtanh.pop %v4593
    %4596 = vmatprep.subr.bf16.mxu0 0
    %4597 = vmatpush1.bf16.msra.mxu0 %v3016
    %4598 = vmatprep.subr.bf16.mxu0 0
    %4599 = vmatpush1.bf16.msra.mxu0 %v3017
    %4600 = vmatprep.subr.bf16.mxu0 0
    %4601 = vmatpush1.bf16.msra.mxu0 0
    %4602 = vmatprep.subr.bf16.mxu0 0
    %4603 = vmatpush1.bf16.msra.mxu0 0
    %4604 = vmatprep.subr.bf16.mxu0 0
    %4605 = vmatpush1.bf16.msra.mxu0 0
    %4606 = vmatprep.subr.bf16.mxu0 0
    %4607 = vmatpush1.bf16.msra.mxu0 0
    %4608 = vmatprep.subr.bf16.mxu0 0
    %4609 = vmatpush1.bf16.msra.mxu0 0
    %4610 = vmatprep.subr.bf16.mxu0 0
    %4611 = vmatpush1.bf16.msra.mxu0 0
    %4612 = vmatprep.subr.bf16.mxu0 0
    %4613 = vmatpush1.bf16.msra.mxu0 0
    %4614 = vmatprep.subr.bf16.mxu0 0
    %4615 = vmatpush1.bf16.msra.mxu0 0
    %4616 = vmatprep.subr.bf16.mxu0 0
    %4617 = vmatpush1.bf16.msra.mxu0 0
    %4618 = vmatprep.subr.bf16.mxu0 0
    %4619 = vmatpush1.bf16.msra.mxu0 0
    %4620 = vmatprep.subr.bf16.mxu0 0
    %4621 = vmatpush1.bf16.msra.mxu0 0
    %4622 = vmatprep.subr.bf16.mxu0 0
    %4623 = vmatpush1.bf16.msra.mxu0 0
    %4624 = vmatprep.subr.bf16.mxu0 0
    %4625 = vmatpush1.bf16.msra.mxu0 0
    %4626 = vmatprep.subr.bf16.mxu0 0
    %4627 = vmatpush1.bf16.msra.mxu0 0
    %4628 = vmatprep.mubr.bf16.mxu0 0
    %4629 = vmatmul.mubr.bf16.gmra.mrb[0].mxu0 %v4427
    %v4630 = vpop.f32.mrb[0].mxu0
    %v4631 = vadd.f32 0.0, %v4630
    %v4632 = vpop.f32.mrb[0].mxu0
    %v4633 = vpop.f32.mrb[0].mxu0
    %v4634 = vpop.f32.mrb[0].mxu0
    %4635 = vdwg.mxu0
    %v4637 = vrot.slane %v4631, 2
    %v4638 = vrot.slane %v4631, 3
    %v4641 = vadd.f32 %v2799, %v4637
    %v4642 = vadd.f32 %v2802, %v4638
    %v4643 = vxor.u32 %v4641, 2147483648
    %v4644 = vxor.u32 %v4642, 2147483648
    %v4645 = vmul.f32 %v4643, 1.442695
    %v4646 = vpow.pop %v4645
    %v4647 = vmul.f32 %v4644, 1.442695
    %v4648 = vpow.pop %v4647
    %v4649 = vadd.f32 %v4646, 1.0
    %v4650 = vadd.f32 %v4648, 1.0
    %v4651 = vrcp.pop %v4649
    %v4652 = vmul.f32 1.0, %v4651
    %v4653 = vrcp.pop %v4650
    %v4654 = vmul.f32 1.0, %v4653
    %v4656 = vrot.slane %v4424, 2
    %v4657 = vrot.slane %v4424, 3
    %v4660 = vmul.f32 %v4544, %v4656
    %v4661 = vmul.f32 %v4546, %v4657
    %v4662 = vmul.f32 %v4485, %v4594
    %v4663 = vmul.f32 %v4487, %v4595
    %v4664 = vadd.f32 %v4660, %v4662
    %v4665 = vadd.f32 %v4661, %v4663
    %v4666 = vtanh.pop %v4664
    %v4667 = vtanh.pop %v4665
    %v4668 = vmul.f32 %v4652, %v4666
    %v4669 = vmul.f32 %v4654, %v4667
    %vm4670 = vcmp.gt.s32.totalorder %v2564, 6
    %v4671 = vsel %vm4670, 1, 0
    %4672 = vset.pattern.permute.xlu0 0
    %4673 = vperm.xlu0 %4672, %v4671
    %v4674 = vpop.permute.xlu0 %4673
    %vm4675 = vcmp.eq.s32.totalorder %v4674, 1
    %v4678 = vrot.slane %v4668, 6
    %v4679 = vrot.slane %v4669, 5
    %v4680 = vsel %vm3097, %v4679, %v4678
    %v4682 = vsel %vm4675, %v4680, %v4417
    %v4685 = vrot.slane %v4664, 6
    %v4686 = vrot.slane %v4665, 5
    %v4687 = vsel %vm3097, %v4686, %v4685
    %v4689 = vsel %vm4675, %v4687, %v4424
    %v4690 = vpack.c.bf16 %v4682, %v4682
    %v4692 = vsel %vm86, %v4690, 0
    %4694 = vmatprep.subr.bf16.mxu0 0
    %4695 = vmatpush1.bf16.msra.mxu0 %v2813
    %4696 = vmatprep.subr.bf16.mxu0 0
    %4697 = vmatpush1.bf16.msra.mxu0 %v2814
    %4698 = vmatprep.subr.bf16.mxu0 0
    %4699 = vmatpush1.bf16.msra.mxu0 0
    %4700 = vmatprep.subr.bf16.mxu0 0
    %4701 = vmatpush1.bf16.msra.mxu0 0
    %4702 = vmatprep.subr.bf16.mxu0 0
    %4703 = vmatpush1.bf16.msra.mxu0 0
    %4704 = vmatprep.subr.bf16.mxu0 0
    %4705 = vmatpush1.bf16.msra.mxu0 0
    %4706 = vmatprep.subr.bf16.mxu0 0
    %4707 = vmatpush1.bf16.msra.mxu0 0
    %4708 = vmatprep.subr.bf16.mxu0 0
    %4709 = vmatpush1.bf16.msra.mxu0 0
    %4710 = vmatprep.subr.bf16.mxu0 0
    %4711 = vmatpush1.bf16.msra.mxu0 0
    %4712 = vmatprep.subr.bf16.mxu0 0
    %4713 = vmatpush1.bf16.msra.mxu0 0
    %4714 = vmatprep.subr.bf16.mxu0 0
    %4715 = vmatpush1.bf16.msra.mxu0 0
    %4716 = vmatprep.subr.bf16.mxu0 0
    %4717 = vmatpush1.bf16.msra.mxu0 0
    %4718 = vmatprep.subr.bf16.mxu0 0
    %4719 = vmatpush1.bf16.msra.mxu0 0
    %4720 = vmatprep.subr.bf16.mxu0 0
    %4721 = vmatpush1.bf16.msra.mxu0 0
    %4722 = vmatprep.subr.bf16.mxu0 0
    %4723 = vmatpush1.bf16.msra.mxu0 0
    %4724 = vmatprep.subr.bf16.mxu0 0
    %4725 = vmatpush1.bf16.msra.mxu0 0
    %4726 = vmatprep.mubr.bf16.mxu0 0
    %4727 = vmatmul.mubr.bf16.gmra.mrb[0].mxu0 %v4692
    %v4728 = vpop.f32.mrb[0].mxu0
    %v4729 = vadd.f32 0.0, %v4728
    %v4730 = vpop.f32.mrb[0].mxu0
    %v4731 = vpop.f32.mrb[0].mxu0
    %v4732 = vpop.f32.mrb[0].mxu0
    %4733 = vdwg.mxu0
    %v4735 = vrot.slane %v4729, 1
    %v4736 = vrot.slane %v4729, 2
    %v4739 = vadd.f32 %v2622, %v4735
    %v4740 = vadd.f32 %v2625, %v4736
    %v4741 = vxor.u32 %v4739, 2147483648
    %v4742 = vxor.u32 %v4740, 2147483648
    %v4743 = vmul.f32 %v4741, 1.442695
    %v4744 = vpow.pop %v4743
    %v4745 = vmul.f32 %v4742, 1.442695
    %v4746 = vpow.pop %v4745
    %v4747 = vadd.f32 %v4744, 1.0
    %v4748 = vadd.f32 %v4746, 1.0
    %v4749 = vrcp.pop %v4747
    %v4750 = vmul.f32 1.0, %v4749
    %v4751 = vrcp.pop %v4748
    %v4752 = vmul.f32 1.0, %v4751
    %4753 = vmatprep.subr.bf16.mxu0 0
    %4754 = vmatpush1.bf16.msra.mxu0 %v2886
    %4755 = vmatprep.subr.bf16.mxu0 0
    %4756 = vmatpush1.bf16.msra.mxu0 %v2887
    %4757 = vmatprep.subr.bf16.mxu0 0
    %4758 = vmatpush1.bf16.msra.mxu0 0
    %4759 = vmatprep.subr.bf16.mxu0 0
    %4760 = vmatpush1.bf16.msra.mxu0 0
    %4761 = vmatprep.subr.bf16.mxu0 0
    %4762 = vmatpush1.bf16.msra.mxu0 0
    %4763 = vmatprep.subr.bf16.mxu0 0
    %4764 = vmatpush1.bf16.msra.mxu0 0
    %4765 = vmatprep.subr.bf16.mxu0 0
    %4766 = vmatpush1.bf16.msra.mxu0 0
    %4767 = vmatprep.subr.bf16.mxu0 0
    %4768 = vmatpush1.bf16.msra.mxu0 0
    %4769 = vmatprep.subr.bf16.mxu0 0
    %4770 = vmatpush1.bf16.msra.mxu0 0
    %4771 = vmatprep.subr.bf16.mxu0 0
    %4772 = vmatpush1.bf16.msra.mxu0 0
    %4773 = vmatprep.subr.bf16.mxu0 0
    %4774 = vmatpush1.bf16.msra.mxu0 0
    %4775 = vmatprep.subr.bf16.mxu0 0
    %4776 = vmatpush1.bf16.msra.mxu0 0
    %4777 = vmatprep.subr.bf16.mxu0 0
    %4778 = vmatpush1.bf16.msra.mxu0 0
    %4779 = vmatprep.subr.bf16.mxu0 0
    %4780 = vmatpush1.bf16.msra.mxu0 0
    %4781 = vmatprep.subr.bf16.mxu0 0
    %4782 = vmatpush1.bf16.msra.mxu0 0
    %4783 = vmatprep.subr.bf16.mxu0 0
    %4784 = vmatpush1.bf16.msra.mxu0 0
    %4785 = vmatprep.mubr.bf16.mxu0 0
    %4786 = vmatmul.mubr.bf16.gmra.mrb[0].mxu0 %v4692
    %v4787 = vpop.f32.mrb[0].mxu0
    %v4788 = vadd.f32 0.0, %v4787
    %v4789 = vpop.f32.mrb[0].mxu0
    %v4790 = vpop.f32.mrb[0].mxu0
    %v4791 = vpop.f32.mrb[0].mxu0
    %4792 = vdwg.mxu0
    %v4794 = vrot.slane %v4788, 1
    %v4795 = vrot.slane %v4788, 2
    %v4798 = vadd.f32 %v2681, %v4794
    %v4799 = vadd.f32 %v2684, %v4795
    %v4800 = vxor.u32 %v4798, 2147483648
    %v4801 = vxor.u32 %v4799, 2147483648
    %v4802 = vmul.f32 %v4800, 1.442695
    %v4803 = vpow.pop %v4802
    %v4804 = vmul.f32 %v4801, 1.442695
    %v4805 = vpow.pop %v4804
    %v4806 = vadd.f32 %v4803, 1.0
    %v4807 = vadd.f32 %v4805, 1.0
    %v4808 = vrcp.pop %v4806
    %v4809 = vmul.f32 1.0, %v4808
    %v4810 = vrcp.pop %v4807
    %v4811 = vmul.f32 1.0, %v4810
    %4812 = vmatprep.subr.bf16.mxu0 0
    %4813 = vmatpush1.bf16.msra.mxu0 %v2956
    %4814 = vmatprep.subr.bf16.mxu0 0
    %4815 = vmatpush1.bf16.msra.mxu0 %v2957
    %4816 = vmatprep.subr.bf16.mxu0 0
    %4817 = vmatpush1.bf16.msra.mxu0 0
    %4818 = vmatprep.subr.bf16.mxu0 0
    %4819 = vmatpush1.bf16.msra.mxu0 0
    %4820 = vmatprep.subr.bf16.mxu0 0
    %4821 = vmatpush1.bf16.msra.mxu0 0
    %4822 = vmatprep.subr.bf16.mxu0 0
    %4823 = vmatpush1.bf16.msra.mxu0 0
    %4824 = vmatprep.subr.bf16.mxu0 0
    %4825 = vmatpush1.bf16.msra.mxu0 0
    %4826 = vmatprep.subr.bf16.mxu0 0
    %4827 = vmatpush1.bf16.msra.mxu0 0
    %4828 = vmatprep.subr.bf16.mxu0 0
    %4829 = vmatpush1.bf16.msra.mxu0 0
    %4830 = vmatprep.subr.bf16.mxu0 0
    %4831 = vmatpush1.bf16.msra.mxu0 0
    %4832 = vmatprep.subr.bf16.mxu0 0
    %4833 = vmatpush1.bf16.msra.mxu0 0
    %4834 = vmatprep.subr.bf16.mxu0 0
    %4835 = vmatpush1.bf16.msra.mxu0 0
    %4836 = vmatprep.subr.bf16.mxu0 0
    %4837 = vmatpush1.bf16.msra.mxu0 0
    %4838 = vmatprep.subr.bf16.mxu0 0
    %4839 = vmatpush1.bf16.msra.mxu0 0
    %4840 = vmatprep.subr.bf16.mxu0 0
    %4841 = vmatpush1.bf16.msra.mxu0 0
    %4842 = vmatprep.subr.bf16.mxu0 0
    %4843 = vmatpush1.bf16.msra.mxu0 0
    %4844 = vmatprep.mubr.bf16.mxu0 0
    %4845 = vmatmul.mubr.bf16.gmra.mrb[0].mxu0 %v4692
    %v4846 = vpop.f32.mrb[0].mxu0
    %v4847 = vadd.f32 0.0, %v4846
    %v4848 = vpop.f32.mrb[0].mxu0
    %v4849 = vpop.f32.mrb[0].mxu0
    %v4850 = vpop.f32.mrb[0].mxu0
    %4851 = vdwg.mxu0
    %v4853 = vrot.slane %v4847, 1
    %v4854 = vrot.slane %v4847, 2
    %v4857 = vadd.f32 %v2740, %v4853
    %v4858 = vadd.f32 %v2743, %v4854
    %v4859 = vtanh.pop %v4857
    %v4860 = vtanh.pop %v4858
    %4861 = vmatprep.subr.bf16.mxu0 0
    %4862 = vmatpush1.bf16.msra.mxu0 %v3016
    %4863 = vmatprep.subr.bf16.mxu0 0
    %4864 = vmatpush1.bf16.msra.mxu0 %v3017
    %4865 = vmatprep.subr.bf16.mxu0 0
    %4866 = vmatpush1.bf16.msra.mxu0 0
    %4867 = vmatprep.subr.bf16.mxu0 0
    %4868 = vmatpush1.bf16.msra.mxu0 0
    %4869 = vmatprep.subr.bf16.mxu0 0
    %4870 = vmatpush1.bf16.msra.mxu0 0
    %4871 = vmatprep.subr.bf16.mxu0 0
    %4872 = vmatpush1.bf16.msra.mxu0 0
    %4873 = vmatprep.subr.bf16.mxu0 0
    %4874 = vmatpush1.bf16.msra.mxu0 0
    %4875 = vmatprep.subr.bf16.mxu0 0
    %4876 = vmatpush1.bf16.msra.mxu0 0
    %4877 = vmatprep.subr.bf16.mxu0 0
    %4878 = vmatpush1.bf16.msra.mxu0 0
    %4879 = vmatprep.subr.bf16.mxu0 0
    %4880 = vmatpush1.bf16.msra.mxu0 0
    %4881 = vmatprep.subr.bf16.mxu0 0
    %4882 = vmatpush1.bf16.msra.mxu0 0
    %4883 = vmatprep.subr.bf16.mxu0 0
    %4884 = vmatpush1.bf16.msra.mxu0 0
    %4885 = vmatprep.subr.bf16.mxu0 0
    %4886 = vmatpush1.bf16.msra.mxu0 0
    %4887 = vmatprep.subr.bf16.mxu0 0
    %4888 = vmatpush1.bf16.msra.mxu0 0
    %4889 = vmatprep.subr.bf16.mxu0 0
    %4890 = vmatpush1.bf16.msra.mxu0 0
    %4891 = vmatprep.subr.bf16.mxu0 0
    %4892 = vmatpush1.bf16.msra.mxu0 0
    %4893 = vmatprep.mubr.bf16.mxu0 0
    %4894 = vmatmul.mubr.bf16.gmra.mrb[0].mxu0 %v4692
    %v4895 = vpop.f32.mrb[0].mxu0
    %v4896 = vadd.f32 0.0, %v4895
    %v4897 = vpop.f32.mrb[0].mxu0
    %v4898 = vpop.f32.mrb[0].mxu0
    %v4899 = vpop.f32.mrb[0].mxu0
    %4900 = vdwg.mxu0
    %v4902 = vrot.slane %v4896, 1
    %v4903 = vrot.slane %v4896, 2
    %v4906 = vadd.f32 %v2799, %v4902
    %v4907 = vadd.f32 %v2802, %v4903
    %v4908 = vxor.u32 %v4906, 2147483648
    %v4909 = vxor.u32 %v4907, 2147483648
    %v4910 = vmul.f32 %v4908, 1.442695
    %v4911 = vpow.pop %v4910
    %v4912 = vmul.f32 %v4909, 1.442695
    %v4913 = vpow.pop %v4912
    %v4914 = vadd.f32 %v4911, 1.0
    %v4915 = vadd.f32 %v4913, 1.0
    %v4916 = vrcp.pop %v4914
    %v4917 = vmul.f32 1.0, %v4916
    %v4918 = vrcp.pop %v4915
    %v4919 = vmul.f32 1.0, %v4918
    %v4921 = vrot.slane %v4689, 1
    %v4922 = vrot.slane %v4689, 2
    %v4925 = vmul.f32 %v4809, %v4921
    %v4926 = vmul.f32 %v4811, %v4922
    %v4927 = vmul.f32 %v4750, %v4859
    %v4928 = vmul.f32 %v4752, %v4860
    %v4929 = vadd.f32 %v4925, %v4927
    %v4930 = vadd.f32 %v4926, %v4928
    %v4931 = vtanh.pop %v4929
    %v4932 = vtanh.pop %v4930
    %v4933 = vmul.f32 %v4917, %v4931
    %v4934 = vmul.f32 %v4919, %v4932
    %vm4935 = vcmp.gt.s32.totalorder %v2564, 7
    %v4936 = vsel %vm4935, 1, 0
    %4937 = vset.pattern.permute.xlu0 0
    %4938 = vperm.xlu0 %4937, %v4936
    %v4939 = vpop.permute.xlu0 %4938
    %vm4940 = vcmp.eq.s32.totalorder %v4939, 1
    %v4943 = vrot.slane %v4933, 7
    %v4944 = vrot.slane %v4934, 6
    %v4945 = vsel %vm3097, %v4944, %v4943
    %v4947 = vsel %vm4940, %v4945, %v4682
    %v4948 = vld [vmem:[%s23] sm:$0xff]
    %v4949 = vld [vmem:[%s23 + $0x8] sm:$0xff]
    %v4950 = vld [vmem:[%s23 + $0x10] sm:$0xff]
    %v4951 = vld [vmem:[%s23 + $0x18] sm:$0xff]
    %v4952 = vld [vmem:[%s24] sm:$0x1]
    %v4954 = vlaneseq
    %v4955 = vshrl.u32 %v4954, 7
    %v4956 = vsub.s32 0, %v4955
    %v4957 = vrot.slane %v4952, %v4956
    %v4960 = vsel %vm86, %v4947, 0
    %4962 = vmatprep.subr.mxu0 0.0
    %4963 = vmatpush1.msra.mxu0 %v4948
    %4964 = vmatprep.subr.mxu0 0.0
    %4965 = vmatpush1.msra.mxu0 %v4949
    %4966 = vmatprep.subr.mxu0 0.0
    %4967 = vmatpush1.msra.mxu0 %v4950
    %4968 = vmatprep.subr.mxu0 0.0
    %4969 = vmatpush1.msra.mxu0 %v4951
    %4970 = vmatprep.subr.mxu0 0.0
    %4971 = vmatpush1.msra.mxu0 0.0
    %4972 = vmatprep.subr.mxu0 0.0
    %4973 = vmatpush1.msra.mxu0 0.0
    %4974 = vmatprep.subr.mxu0 0.0
    %4975 = vmatpush1.msra.mxu0 0.0
    %4976 = vmatprep.subr.mxu0 0.0
    %4977 = vmatpush1.msra.mxu0 0.0
    %4978 = vmatprep.subr.mxu0 0.0
    %4979 = vmatpush1.msra.mxu0 0.0
    %4980 = vmatprep.subr.mxu0 0.0
    %4981 = vmatpush1.msra.mxu0 0.0
    %4982 = vmatprep.subr.mxu0 0.0
    %4983 = vmatpush1.msra.mxu0 0.0
    %4984 = vmatprep.subr.mxu0 0.0
    %4985 = vmatpush1.msra.mxu0 0.0
    %4986 = vmatprep.subr.mxu0 0.0
    %4987 = vmatpush1.msra.mxu0 0.0
    %4988 = vmatprep.subr.mxu0 0.0
    %4989 = vmatpush1.msra.mxu0 0.0
    %4990 = vmatprep.subr.mxu0 0.0
    %4991 = vmatpush1.msra.mxu0 0.0
    %4992 = vmatprep.subr.mxu0 0.0
    %4993 = vmatpush1.msra.mxu0 0.0
    %4994 = vmatprep.subr.mxu0 0.0
    %4995 = vmatpush1.msra.mxu0 0.0
    %4996 = vmatprep.subr.mxu0 0.0
    %4997 = vmatpush1.msra.mxu0 0.0
    %4998 = vmatprep.subr.mxu0 0.0
    %4999 = vmatpush1.msra.mxu0 0.0
    %5000 = vmatprep.subr.mxu0 0.0
    %5001 = vmatpush1.msra.mxu0 0.0
    %5002 = vmatprep.subr.mxu0 0.0
    %5003 = vmatpush1.msra.mxu0 0.0
    %5004 = vmatprep.subr.mxu0 0.0
    %5005 = vmatpush1.msra.mxu0 0.0
    %5006 = vmatprep.subr.mxu0 0.0
    %5007 = vmatpush1.msra.mxu0 0.0
    %5008 = vmatprep.subr.mxu0 0.0
    %5009 = vmatpush1.msra.mxu0 0.0
    %5010 = vmatprep.subr.mxu0 0.0
    %5011 = vmatpush1.msra.mxu0 0.0
    %5012 = vmatprep.subr.mxu0 0.0
    %5013 = vmatpush1.msra.mxu0 0.0
    %5014 = vmatprep.subr.mxu0 0.0
    %5015 = vmatpush1.msra.mxu0 0.0
    %5016 = vmatprep.subr.mxu0 0.0
    %5017 = vmatpush1.msra.mxu0 0.0
    %5018 = vmatprep.subr.mxu0 0.0
    %5019 = vmatpush1.msra.mxu0 0.0
    %5020 = vmatprep.subr.mxu0 0.0
    %5021 = vmatpush1.msra.mxu0 0.0
    %5022 = vmatprep.subr.mxu0 0.0
    %5023 = vmatpush1.msra.mxu0 0.0
    %5024 = vmatprep.subr.mxu0 0.0
    %5025 = vmatpush1.msra.mxu0 0.0
    %5026 = vmatprep.mubr.f32.mxu0 0.0
    %5027 = vmatmul.mubr.f32.gmra.mrb[0].mxu0 %v4960
    %v5028 = vpop.f32.mrb[0].mxu0
    %v5029 = vadd.f32 %v4957, %v5028
    %v5030 = vpop.f32.mrb[0].mxu0
    %5031 = vdwg.mxu0
    %vm5032 = vcmask 17408
    %5033 = vst.msk [vmem:[#allocation2] sm:$0x3] %vm5032, %v5029
    // Predicated region
    $region102: #{bert_lstm_forward.1} parent=1 // pred_check
      _
    $region103: #{bert_lstm_forward.1} parent=1 // pred_check_branch
      %5035 = sbr.rel (0) target = $region105
    $region104: #{bert_lstm_forward.1} parent=1 // pred_region
      %s5037 = ssub.s32 32, 32
      %5038 = vsyncadd [#allocation3], %s5037
      %s5040 = sshll.u32 [#allocation2], 4
      %s5041 = int_to_ptr.vmem [resolvable:$true] %s5040
      %5043 = dma.vmem_to_hbm [thread:$0]  %s5041, 32, %s25, [#allocation3]
    $region105: #{bert_lstm_forward.1} parent=1 // pred_fallthru
      _
    // Predicated region
    $region106: #{bert_lstm_forward.1} parent=1 // pred_check
      _
    $region107: #{bert_lstm_forward.1} parent=1 // pred_check_branch
      %5045 = sbr.rel (0) target = $region109
    $region108: #{bert_lstm_forward.1} parent=1 // pred_region
      %5046 = dma.done [#allocation3], 32
    $region109: #{bert_lstm_forward.1} parent=1 // pred_fallthru
      _
    %5047 = vsyncpa [#allocation3], 1

</llo_original>
